<compile_context>
chip_gen: v5e
topology: v5e:2x2
jax: 0.10.0
libtpu: 0.0.40
codegen_flags: <defaults>
</compile_context>

<pallas_src>
import functools

import jax
import jax.numpy as jnp
from jax.experimental import pallas as pl
from jax.experimental.pallas import tpu as pltpu

EPS = 1e-5


def _pick_vmem_limit():
    """Per-generation scoped-VMEM limit (v5e/v6e: 128 MiB parts, v7x: 64 MiB / TC)."""
    try:
        cap = int(pltpu.get_tpu_info().vmem_capacity_bytes)
    except Exception:
        cap = 64 * 1024 * 1024
    return int(max(16 * 1024 * 1024, min(96 * 1024 * 1024, cap // 2)))


_VMEM_LIMIT = _pick_vmem_limit()


# ----------------------------------------------------------------------------
# Kernel 1: down conv.  Conv2d(4,2,1) == 2x2 *valid* conv over a space-to-depth
# view of the 1-padded input.  Taps built in VMEM from two H-shifted row views;
# optional LeakyReLU fused; bf16 output; BN pass-1 stats accumulated in f32.
# ----------------------------------------------------------------------------
def _down_kernel(apply_leaky, want_stats, ra_ref, rb_ref, w_ref, b_ref, y_ref,
                 *stat_refs):
    wo = y_ref.shape[0]

    def tap(row_ref, dw):
        t = row_ref[dw:dw + wo, :]
        if apply_leaky:
            t = jnp.where(t > 0, t, t * 0.2)
        return t

    taps = (tap(ra_ref, 0), tap(ra_ref, 1), tap(rb_ref, 0), tap(rb_ref, 1))
    acc = jnp.zeros(y_ref.shape, jnp.float32)
    for t in range(4):                                # t = 2*dh + dw
        acc = acc + jnp.dot(taps[t], w_ref[t],
                            preferred_element_type=jnp.float32)
    y_ref[...] = (acc + b_ref[...]).astype(y_ref.dtype)

    if want_stats:
        s_ref, q_ref = stat_refs

        @pl.when((pl.program_id(0) == 0) & (pl.program_id(1) == 0))
        def _():
            s_ref[...] = jnp.zeros_like(s_ref)
            q_ref[...] = jnp.zeros_like(q_ref)

        s_ref[...] += jnp.sum(acc, axis=0, keepdims=True)
        q_ref[...] += jnp.sum(acc * acc, axis=0, keepdims=True)


def conv_down(x_s2d, w_pack, bias, *, apply_leaky, want_stats):
    """x_s2d: (N, Ho+1, Wo+1, 4*Cin) bf16, w_pack: (4, 4*Cin, Cout) bf16,
    bias: (1, Cout) f32.  Returns y (N, Ho, Wo, Cout) bf16
    [, per-channel sum / sum-sq of the pre-bias output]."""
    N, Hs, Ws, K4 = x_s2d.shape
    Ho, Wo = Hs - 1, Ws - 1
    Cout = w_pack.shape[-1]

    row_a = pl.BlockSpec((None, None, Ws, K4), lambda n, h: (n, h, 0, 0))
    row_b = pl.BlockSpec((None, None, Ws, K4), lambda n, h: (n, h + 1, 0, 0))
    w_spec = pl.BlockSpec((4, K4, Cout), lambda n, h: (0, 0, 0))
    b_spec = pl.BlockSpec((1, Cout), lambda n, h: (0, 0))
    y_spec = pl.BlockSpec((None, None, Wo, Cout), lambda n, h: (n, h, 0, 0))

    if want_stats:
        st_spec = pl.BlockSpec((1, Cout), lambda n, h: (0, 0))
        out_shape = (jax.ShapeDtypeStruct((N, Ho, Wo, Cout), jnp.bfloat16),
                     jax.ShapeDtypeStruct((1, Cout), jnp.float32),
                     jax.ShapeDtypeStruct((1, Cout), jnp.float32))
        out_specs = (y_spec, st_spec, st_spec)
        # Stats blocks are revisited across the whole grid -> sequential.
        # TODO(synk): v7x could split these axes across the two TensorCores with
        #             per-core partial sums combined in the JAX epilogue.
        semantics = ("arbitrary", "arbitrary")
    else:
        out_shape = jax.ShapeDtypeStruct((N, Ho, Wo, Cout), jnp.bfloat16)
        out_specs = y_spec
        semantics = ("parallel", "parallel")

    return pl.pallas_call(
        functools.partial(_down_kernel, apply_leaky, want_stats),
        out_shape=out_shape,
        grid=(N, Ho),
        in_specs=[row_a, row_b, w_spec, b_spec],
        out_specs=out_specs,
        compiler_params=pltpu.CompilerParams(
            dimension_semantics=semantics,
            vmem_limit_bytes=_VMEM_LIMIT),
    )(x_s2d, x_s2d, w_pack, bias)


# ----------------------------------------------------------------------------
# Kernel 2: up conv.  ConvTranspose2d(4,2,1) as 4 parity sub-convolutions with
# 2x2 taps, built in VMEM from three H-shifted row views of the 1-padded input.
# ReLU fused on the loaded windows; bf16 parity-major output; BN pass-1 stats.
# ----------------------------------------------------------------------------
def _up_kernel(r0_ref, r1_ref, r2_ref, w_ref, b_ref, y_ref, s_ref, q_ref):
    w_out = y_ref.shape[1]
    row_refs = (r0_ref, r1_ref, r2_ref)
    # ReLU fused over the 9 distinct (row, col-offset) windows used by the 4 parities.
    win = [[jnp.maximum(row_refs[i][j:j + w_out, :], 0) for j in range(3)]
           for i in range(3)]

    @pl.when((pl.program_id(1) == 0) & (pl.program_id(2) == 0))
    def _():
        s_ref[...] = jnp.zeros_like(s_ref)
        q_ref[...] = jnp.zeros_like(q_ref)

    ssum = jnp.zeros(s_ref.shape, jnp.float32)
    qsum = jnp.zeros(q_ref.shape, jnp.float32)
    for p_idx, (r, s) in enumerate(((0, 0), (0, 1), (1, 0), (1, 1))):
        acc = jnp.zeros((w_out, y_ref.shape[-1]), jnp.float32)
        for t, (dh, dw) in enumerate(((0, 0), (0, 1), (1, 0), (1, 1))):
            acc = acc + jnp.dot(win[r + dh][s + dw], w_ref[p_idx, t],
                                preferred_element_type=jnp.float32)
        ssum = ssum + jnp.sum(acc, axis=0, keepdims=True)
        qsum = qsum + jnp.sum(acc * acc, axis=0, keepdims=True)
        y_ref[p_idx] = (acc + b_ref[...]).astype(y_ref.dtype)
    s_ref[...] += ssum
    q_ref[...] += qsum


def conv_up(u_pad, w_pack, bias):
    """u_pad: (B, N, H+2, W+2, Cin) bf16 (1-pixel zero pad, pre-ReLU),
    w_pack: (B, 4 parities, 4 taps, Cin, Ce) bf16, bias: (B, 1, Ce) f32.
    Returns parity-major y (B, N, H, 4, W, Ce) bf16 plus per-branch BN pass-1
    sums / sums-of-squares (B, 1, Ce) f32 of the pre-bias output."""
    B, N, Hp, Wp, Cin = u_pad.shape
    H, W = Hp - 2, Wp - 2
    Ce = w_pack.shape[-1]

    def row_spec(off):
        return pl.BlockSpec((None, None, None, Wp, Cin),
                            lambda b, n, h: (b, n, h + off, 0, 0))

    w_spec = pl.BlockSpec((None, 4, 4, Cin, Ce), lambda b, n, h: (b, 0, 0, 0, 0))
    b_spec = pl.BlockSpec((None, 1, Ce), lambda b, n, h: (b, 0, 0))
    y_spec = pl.BlockSpec((None, None, None, 4, W, Ce),
                          lambda b, n, h: (b, n, h, 0, 0, 0))
    st_spec = pl.BlockSpec((None, 1, Ce), lambda b, n, h: (b, 0, 0))

    out_shape = (jax.ShapeDtypeStruct((B, N, H, 4, W, Ce), jnp.bfloat16),
                 jax.ShapeDtypeStruct((B, 1, Ce), jnp.float32),
                 jax.ShapeDtypeStruct((B, 1, Ce), jnp.float32))
    return pl.pallas_call(
        _up_kernel,
        out_shape=out_shape,
        grid=(B, N, H),
        in_specs=[row_spec(0), row_spec(1), row_spec(2), w_spec, b_spec],
        out_specs=(y_spec, st_spec, st_spec),
        compiler_params=pltpu.CompilerParams(
            dimension_semantics=("parallel", "arbitrary", "arbitrary"),
            vmem_limit_bytes=_VMEM_LIMIT),
    )(u_pad, u_pad, u_pad, w_pack, bias)


# ----------------------------------------------------------------------------
# Kernel 3 (outermost head): fused BN pass-2 + ReLU + Conv2d(k=1, Cout=1)
# directly on the parity-form up output (no interleave / f32 round trip first).
# ----------------------------------------------------------------------------
def _head_kernel(y_ref, sc_ref, sh_ref, w_ref, b_ref, o_ref):
    z = y_ref[...].astype(jnp.float32)                  # (4, W, C)
    z = z * sc_ref[...] + sh_ref[...]                   # fused BN pass-2
    z = jnp.maximum(z, 0.0)                             # fused ReLU
    o = jnp.sum(z * w_ref[...], axis=-1) + b_ref[...]   # 1x1 conv, Cout = 1
    o_ref[...] = o


def head_1x1(yu, scale, shift, w1, b1):
    """yu: (2, N, H, 4, W, C) bf16; scale/shift/w1: (2, 1, 1, C) f32; b1: (2, 1, 1) f32.
    Returns (2, N, H, 4, W) f32 (parity-major; interleaved by the caller)."""
    B, N, H, _, W, C = yu.shape
    y_spec = pl.BlockSpec((None, None, None, 4, W, C),
                          lambda b, n, h: (b, n, h, 0, 0, 0))
    v_spec = pl.BlockSpec((None, 1, 1, C), lambda b, n, h: (b, 0, 0, 0))
    b_spec = pl.BlockSpec((None, 1, 1), lambda b, n, h: (b, 0, 0))
    o_spec = pl.BlockSpec((None, None, None, 4, W), lambda b, n, h: (b, n, h, 0, 0))
    return pl.pallas_call(
        _head_kernel,
        out_shape=jax.ShapeDtypeStruct((B, N, H, 4, W), jnp.float32),
        grid=(B, N, H),
        in_specs=[y_spec, v_spec, v_spec, v_spec, b_spec],
        out_specs=o_spec,
        compiler_params=pltpu.CompilerParams(
            dimension_semantics=("parallel", "parallel", "parallel"),
            vmem_limit_bytes=_VMEM_LIMIT),
    )(yu, scale, shift, w1, b1)


# ----------------------------------------------------------------------------
# Plain-JAX glue: 1x-size layout passes (pad / space-to-depth / interleave),
# BN pass-2 scale/shift, and weight packing hoisted to __init__.
# ----------------------------------------------------------------------------
def _space_to_depth(x):
    """NHWC -> 1-padded 2x2 space-to-depth blocks: (N, H/2+1, W/2+1, 4C) bf16."""
    N, H, W, C = x.shape
    xp = jnp.pad(x, ((0, 0), (1, 1), (1, 1), (0, 0)))
    Hs, Ws = (H + 2) // 2, (W + 2) // 2
    s2d = xp.reshape(N, Hs, 2, Ws, 2, C).transpose(0, 1, 3, 2, 4, 5)
    return s2d.reshape(N, Hs, Ws, 4 * C).astype(jnp.bfloat16)


def _pad_hw(u):
    return jnp.pad(u, ((0, 0), (1, 1), (1, 1), (0, 0)))


def _interleave(y_p):
    """Parity-major (N, H, 4, W, C) -> (N, 2H, 2W, C)  (parity p = 2*r + s)."""
    N, H, _, W, C = y_p.shape
    y = y_p.reshape(N, H, 2, 2, W, C).transpose(0, 1, 2, 4, 3, 5)
    return y.reshape(N, 2 * H, 2 * W, C)


def _bn_scale_shift(s, q, count, bias, gamma, beta):
    """BN pass 2 from bias-centered pass-1 sums (stats of the pre-bias output)."""
    m0 = s / count
    mean = m0 + bias
    var = q / count - m0 * m0
    scale = gamma * jax.lax.rsqrt(var + EPS)
    shift = beta - mean * scale
    return scale, shift


def _pack_down_weight(w_oihw):
    """Conv2d weight (Cout, Cin, 4, 4) -> tap-major (4, 4*Cin, Cout) bf16 matching
    the space-to-depth channel order (p*2+q)*Cin + ci."""
    cout, cin = w_oihw.shape[:2]
    w6 = w_oihw.reshape(cout, cin, 2, 2, 2, 2)          # (co, ci, dh, p, dw, q)
    w6 = jnp.transpose(w6, (2, 4, 3, 5, 1, 0))          # (dh, dw, p, q, ci, co)
    return w6.reshape(4, 4 * cin, cout).astype(jnp.bfloat16)


def _pack_convT_weight(w_iohw):
    """ConvTranspose2d weight (Cin, Cout, 4, 4) -> (4 parities, 4 taps, Cin, Cout)."""
    cin, cout = w_iohw.shape[:2]
    wf = jnp.transpose(w_iohw[:, :, ::-1, ::-1], (2, 3, 0, 1))   # flipped (kh, kw, ci, co)
    mats = [wf[r::2, s::2].reshape(4, cin, cout)
            for r in (0, 1) for s in (0, 1)]
    return jnp.stack(mats, axis=0)                               # (4, 4, ci, co)


def _init(key, shape, scale=0.1):
    return scale * jax.random.normal(key, shape, jnp.float32)


# ----------------------------------------------------------------------------
# The module
# ----------------------------------------------------------------------------
class MultiUnetSkipConnectionBlock:
    def __init__(self, key, outer_nc, inner_nc, submodule=None,
                 outermost=False, innermost=False):
        self.outermost = outermost
        self.innermost = innermost
        self.submodule = submodule
        ks = jax.random.split(key, 16)
        p = {}
        # downconv: Conv2d(outer_nc -> inner_nc, k=4, s=2, p=1)
        p["down_w"] = _init(ks[0], (inner_nc, outer_nc, 4, 4))
        p["down_b"] = _init(ks[1], (inner_nc,))
        p["down_g"] = 1.0 + _init(ks[2], (inner_nc,))
        p["down_beta"] = _init(ks[3], (inner_nc,))
        up_in = inner_nc if innermost else inner_nc * 2
        up_out = inner_nc if outermost else outer_nc
        for i, br in enumerate(("1", "2")):
            base = 4 + 6 * i
            # ConvTranspose2d(up_in -> up_out, k=4, s=2, p=1): torch weight [in, out, kH, kW]
            p[f"up{br}_w"] = _init(ks[base], (up_in, up_out, 4, 4))
            p[f"up{br}_b"] = _init(ks[base + 1], (up_out,))
            p[f"up{br}_g"] = 1.0 + _init(ks[base + 2], (up_out,))
            p[f"up{br}_beta"] = _init(ks[base + 3], (up_out,))
            if outermost:
                p[f"up{br}_w1x1"] = _init(ks[base + 4], (1, inner_nc, 1, 1))
                p[f"up{br}_b1x1"] = _init(ks[base + 5], (1,))
        self.p = p
        self.up_out = up_out

        # ---- kernel-layout weights packed once at init (hoisted out of forward) ----
        k = {}
        k["down_w"] = _pack_down_weight(p["down_w"])
        k["down_b"] = p["down_b"].reshape(1, inner_nc).astype(jnp.float32)
        wp1 = _pack_convT_weight(p["up1_w"])
        wp2 = _pack_convT_weight(p["up2_w"])
        if innermost:
            # Both up branches read the same input -> fuse along Cout: one set of taps,
            # one pass over the input, lane-denser output.
            k["up_w"] = jnp.concatenate([wp1, wp2], axis=-1)[None].astype(jnp.bfloat16)
            k["up_b"] = jnp.concatenate([p["up1_b"], p["up2_b"]]).reshape(
                1, 1, 2 * up_out).astype(jnp.float32)
        else:
            # Different inputs per branch -> batch both branches on the leading
            # ("parallel") grid axis of one pallas_call.
            k["up_w"] = jnp.stack([wp1, wp2], axis=0).astype(jnp.bfloat16)
            k["up_b"] = jnp.stack([p["up1_b"].reshape(1, up_out),
                                   p["up2_b"].reshape(1, up_out)], 0).astype(jnp.float32)
        if outermost:
            k["w1x1"] = jnp.stack([p["up1_w1x1"].reshape(1, 1, inner_nc),
                                   p["up2_w1x1"].reshape(1, 1, inner_nc)], 0
                                  ).astype(jnp.float32)          # (2, 1, 1, C)
            k["b1x1"] = jnp.stack([p["up1_b1x1"].reshape(1, 1),
                                   p["up2_b1x1"].reshape(1, 1)], 0
                                  ).astype(jnp.float32)          # (2, 1, 1)
        self.k = k

    # ---------------- Pallas forward (NHWC internally) ----------------
    def __call__(self, x_nchw):
        x = jnp.transpose(x_nchw, (0, 2, 3, 1)).astype(jnp.bfloat16)
        o1, o2 = self._forward_nhwc(x)
        return (jnp.transpose(o1, (0, 3, 1, 2)).astype(jnp.float32),
                jnp.transpose(o2, (0, 3, 1, 2)).astype(jnp.float32))

    def _forward_nhwc(self, x):
        p, k = self.p, self.k
        N, H, W, _ = x.shape
        Ho, Wo = H // 2, W // 2
        co = self.up_out

        # ---- down path: [LeakyReLU] -> Conv(4,2,1) -> [BN pass 1] ----
        xs2d = _space_to_depth(x)
        down_bn = not (self.outermost or self.innermost)
        res = conv_down(xs2d, k["down_w"], k["down_b"],
                        apply_leaky=not self.outermost, want_stats=down_bn)
        if down_bn:
            yd, sd, qd = res
            dsc, dsh = _bn_scale_shift(sd[0], qd[0], N * Ho * Wo,
                                       p["down_b"], p["down_g"], p["down_beta"])
            down_x = (yd.astype(jnp.float32) * dsc + dsh).astype(jnp.bfloat16)
        else:
            down_x = res

        # ---- recurse ----
        if self.innermost:
            u_pad = _pad_hw(down_x)[None]                       # (1, N, Ho+2, Wo+2, C)
        else:
            u1, u2 = self.submodule._forward_nhwc(down_x)
            u_pad = jnp.stack([_pad_hw(u1), _pad_hw(u2)], axis=0)

        # ---- up path: ReLU -> ConvT(4,2,1) -> BN (branches / parities in one call) ----
        yu, su, qu = conv_up(u_pad, k["up_w"], k["up_b"])
        cnt = 4 * N * Ho * Wo
        if self.innermost:
            sc1, sh1 = _bn_scale_shift(su[0, 0, :co], qu[0, 0, :co], cnt,
                                       p["up1_b"], p["up1_g"], p["up1_beta"])
            sc2, sh2 = _bn_scale_shift(su[0, 0, co:], qu[0, 0, co:], cnt,
                                       p["up2_b"], p["up2_g"], p["up2_beta"])
            yp1, yp2 = yu[0, ..., :co], yu[0, ..., co:]
        else:
            sc1, sh1 = _bn_scale_shift(su[0, 0], qu[0, 0], cnt,
                                       p["up1_b"], p["up1_g"], p["up1_beta"])
            sc2, sh2 = _bn_scale_shift(su[1, 0], qu[1, 0], cnt,
                                       p["up2_b"], p["up2_g"], p["up2_beta"])
            yp1, yp2 = yu[0], yu[1]

        if self.outermost:
            # Fused BN pass-2 + ReLU + 1x1 conv (Cout=1) Pallas epilogue on the
            # parity-form tensor; the tiny 1-channel result is interleaved afterwards.
            sc = jnp.stack([sc1, sc2], 0).reshape(2, 1, 1, co)
            sh = jnp.stack([sh1, sh2], 0).reshape(2, 1, 1, co)
            o = head_1x1(yu, sc, sh, k["w1x1"], k["b1x1"])      # (2, N, Ho, 4, Wo)
            return _interleave(o[0][..., None]), _interleave(o[1][..., None])

        # BN pass-2 applied to the bf16 parity output, interleave, concat with x.
        y1 = _interleave((yp1.astype(jnp.float32) * sc1 + sh1).astype(jnp.bfloat16))
        y2 = _interleave((yp2.astype(jnp.float32) * sc2 + sh2).astype(jnp.bfloat16))
        return (jnp.concatenate([y1, x], axis=-1),
                jnp.concatenate([y2, x], axis=-1))

    # ---- pure-JAX reference (lax convs; mirrors bf16 MXU inputs + bf16 storage) ----
    def ref(self, x):
        p = self.p

        def q(t):  # mirror the kernels' bf16 inter-layer storage
            return t.astype(jnp.bfloat16).astype(jnp.float32)

        def bnorm(y, g, b):
            mean = jnp.mean(y, axis=(0, 2, 3), keepdims=True)
            var = jnp.mean(jnp.square(y - mean), axis=(0, 2, 3), keepdims=True)
            return ((y - mean) * jax.lax.rsqrt(var + EPS) * g.reshape(1, -1, 1, 1)
                    + b.reshape(1, -1, 1, 1))

        def conv(h, w, b, stride, pad, lhs_dil=(1, 1)):
            y = jax.lax.conv_general_dilated(
                h.astype(jnp.bfloat16), w.astype(jnp.bfloat16), stride, pad,
                lhs_dilation=lhs_dil,
                dimension_numbers=("NCHW", "OIHW", "NCHW"),
                preferred_element_type=jnp.float32)
            return y + b.reshape(1, -1, 1, 1)

        h = x
        if not self.outermost:
            h = jnp.where(h > 0, h, 0.2 * h)
        down_y = q(conv(h, p["down_w"], p["down_b"], (2, 2), ((1, 1), (1, 1))))
        if not (self.outermost or self.innermost):
            down_x = q(bnorm(down_y, p["down_g"], p["down_beta"]))
        else:
            down_x = down_y

        if self.innermost:
            u1 = u2 = down_x
        else:
            u1, u2 = self.submodule.ref(down_x)

        outs = []
        for br, u in (("1", u1), ("2", u2)):
            w_t = p[f"up{br}_w"]
            w_f = jnp.transpose(w_t[:, :, ::-1, ::-1], (1, 0, 2, 3))  # [out, in, kh, kw]
            y = q(conv(jnp.maximum(u, 0.0), w_f, p[f"up{br}_b"],
                       (1, 1), ((2, 2), (2, 2)), (2, 2)))
            y = bnorm(y, p[f"up{br}_g"], p[f"up{br}_beta"])
            if self.outermost:
                y = conv(jnp.maximum(y, 0.0), p[f"up{br}_w1x1"], p[f"up{br}_b1x1"],
                         (1, 1), ((0, 0), (0, 0)))
            else:
                y = jnp.concatenate([q(y), x], axis=1)
            outs.append(y)
        return outs[0], outs[1]


# ----------------------------------------------------------------------------
if __name__ == "__main__":
    key = jax.random.PRNGKey(0)
    k_in, k_mid, k_out, k_x = jax.random.split(key, 4)

    # 3-level U-Net exercising innermost / intermediate / outermost code paths.
    # x: [N=2, outer_nc=4, H=16, W=16]  (NCHW, matching the PyTorch module)
    inner_block = MultiUnetSkipConnectionBlock(k_in, outer_nc=16, inner_nc=32,
                                               innermost=True)
    mid_block = MultiUnetSkipConnectionBlock(k_mid, outer_nc=8, inner_nc=16,
                                             submodule=inner_block)
    root = MultiUnetSkipConnectionBlock(k_out, outer_nc=4, inner_nc=8,
                                        submodule=mid_block, outermost=True)

    x = jax.random.normal(k_x, (2, 4, 16, 16), jnp.float32)

    y1, y2 = jax.jit(lambda v: root(v))(x)
    jax.block_until_ready((y1, y2))

    r1, r2 = root.ref(x)

    assert y1.shape == (2, 1, 16, 16) and y2.shape == (2, 1, 16, 16), (y1.shape, y2.shape)
    # Kernel and reference feed the MXU bf16 inputs (f32 accumulation) and both round
    # inter-layer activations to bf16; the residual difference is summation-order /
    # stat-formula noise through 7 stacked conv + BatchNorm layers.
    d1 = float(jnp.max(jnp.abs(y1 - r1)))
    d2 = float(jnp.max(jnp.abs(y2 - r2)))
    ok1 = bool(jnp.allclose(y1, r1, atol=2e-2, rtol=2e-2))
    ok2 = bool(jnp.allclose(y2, r2, atol=2e-2, rtol=2e-2))
    assert ok1 and ok2, ("max|diff|", d1, d2)
    print("KERNEL_OK")
</pallas_src>

<mosaic_0001>
module attributes {stable_mosaic.version = 11 : i64} {
  func.func @_down_kernel(%arg0: i32, %arg1: i32, %arg2: memref<1x1x9x16xbf16, #tpu.memory_space<vmem>>, %arg3: memref<1x1x9x16xbf16, #tpu.memory_space<vmem>>, %arg4: memref<4x16x8xbf16, #tpu.memory_space<vmem>>, %arg5: memref<1x8xf32, #tpu.memory_space<vmem>>, %arg6: memref<1x1x8x8xbf16, #tpu.memory_space<vmem>>) attributes {dimension_semantics = [#tpu.dimension_semantics<parallel>, #tpu.dimension_semantics<parallel>], iteration_bounds = array<i64: 2, 8>, scalar_prefetch = 0 : i64, scratch_operands = 0 : i64, tpu.core_type = #tpu.core_type<tc>, window_params = [{transform_indices = @transform_0, window_bounds = array<i64: 1, 1, 9, 16>}, {transform_indices = @transform_1, window_bounds = array<i64: 1, 1, 9, 16>}, {pipeline_mode = #tpu.pipeline_mode<synchronous>, transform_indices = @transform_2, window_bounds = array<i64: 4, 16, 8>}, {pipeline_mode = #tpu.pipeline_mode<synchronous>, transform_indices = @transform_3, window_bounds = array<i64: 1, 8>}, {transform_indices = @transform_4, window_bounds = array<i64: 1, 1, 8, 8>}]} {
    %c0 = arith.constant 0 : index
    %c0_0 = arith.constant 0 : index
    %c0_1 = arith.constant 0 : index
    %c0_2 = arith.constant 0 : index
    %0 = vector.load %arg2[%c0, %c0_0, %c0_1, %c0_2] : memref<1x1x9x16xbf16, #tpu.memory_space<vmem>>, vector<1x1x8x16xbf16>
    %1 = vector.shape_cast %0 : vector<1x1x8x16xbf16> to vector<8x16xbf16>
    %c0_3 = arith.constant 0 : index
    %c0_4 = arith.constant 0 : index
    %c1 = arith.constant 1 : index
    %c0_5 = arith.constant 0 : index
    %2 = vector.load %arg2[%c0_3, %c0_4, %c1, %c0_5] : memref<1x1x9x16xbf16, #tpu.memory_space<vmem>>, vector<1x1x8x16xbf16>
    %3 = vector.shape_cast %2 : vector<1x1x8x16xbf16> to vector<8x16xbf16>
    %c0_6 = arith.constant 0 : index
    %c0_7 = arith.constant 0 : index
    %c0_8 = arith.constant 0 : index
    %c0_9 = arith.constant 0 : index
    %4 = vector.load %arg3[%c0_6, %c0_7, %c0_8, %c0_9] : memref<1x1x9x16xbf16, #tpu.memory_space<vmem>>, vector<1x1x8x16xbf16>
    %5 = vector.shape_cast %4 : vector<1x1x8x16xbf16> to vector<8x16xbf16>
    %c0_10 = arith.constant 0 : index
    %c0_11 = arith.constant 0 : index
    %c1_12 = arith.constant 1 : index
    %c0_13 = arith.constant 0 : index
    %6 = vector.load %arg3[%c0_10, %c0_11, %c1_12, %c0_13] : memref<1x1x9x16xbf16, #tpu.memory_space<vmem>>, vector<1x1x8x16xbf16>
    %7 = vector.shape_cast %6 : vector<1x1x8x16xbf16> to vector<8x16xbf16>
    %cst = arith.constant 0.000000e+00 : f32
    %8 = vector.broadcast %cst : f32 to vector<8x8xf32>
    %c0_14 = arith.constant 0 : index
    %c0_15 = arith.constant 0 : index
    %c0_16 = arith.constant 0 : index
    %9 = vector.load %arg4[%c0_14, %c0_15, %c0_16] : memref<4x16x8xbf16, #tpu.memory_space<vmem>>, vector<1x16x8xbf16>
    %10 = vector.shape_cast %9 : vector<1x16x8xbf16> to vector<16x8xbf16>
    %cst_17 = arith.constant dense<0.000000e+00> : vector<8x8xf32>
    %11 = tpu.matmul %1, %10, %cst_17 {dimension_numbers = #tpu.dot_dimension_numbers<[1], [0], [0], [1], [0, 0, 1, 1], [], []>} : vector<8x16xbf16>, vector<16x8xbf16>, vector<8x8xf32> -> vector<8x8xf32>
    %12 = arith.addf %8, %11 : vector<8x8xf32>
    %c1_18 = arith.constant 1 : index
    %c0_19 = arith.constant 0 : index
    %c0_20 = arith.constant 0 : index
    %13 = vector.load %arg4[%c1_18, %c0_19, %c0_20] : memref<4x16x8xbf16, #tpu.memory_space<vmem>>, vector<1x16x8xbf16>
    %14 = vector.shape_cast %13 : vector<1x16x8xbf16> to vector<16x8xbf16>
    %cst_21 = arith.constant dense<0.000000e+00> : vector<8x8xf32>
    %15 = tpu.matmul %3, %14, %cst_21 {dimension_numbers = #tpu.dot_dimension_numbers<[1], [0], [0], [1], [0, 0, 1, 1], [], []>} : vector<8x16xbf16>, vector<16x8xbf16>, vector<8x8xf32> -> vector<8x8xf32>
    %16 = arith.addf %12, %15 : vector<8x8xf32>
    %c2 = arith.constant 2 : index
    %c0_22 = arith.constant 0 : index
    %c0_23 = arith.constant 0 : index
    %17 = vector.load %arg4[%c2, %c0_22, %c0_23] : memref<4x16x8xbf16, #tpu.memory_space<vmem>>, vector<1x16x8xbf16>
    %18 = vector.shape_cast %17 : vector<1x16x8xbf16> to vector<16x8xbf16>
    %cst_24 = arith.constant dense<0.000000e+00> : vector<8x8xf32>
    %19 = tpu.matmul %5, %18, %cst_24 {dimension_numbers = #tpu.dot_dimension_numbers<[1], [0], [0], [1], [0, 0, 1, 1], [], []>} : vector<8x16xbf16>, vector<16x8xbf16>, vector<8x8xf32> -> vector<8x8xf32>
    %20 = arith.addf %16, %19 : vector<8x8xf32>
    %c3 = arith.constant 3 : index
    %c0_25 = arith.constant 0 : index
    %c0_26 = arith.constant 0 : index
    %21 = vector.load %arg4[%c3, %c0_25, %c0_26] : memref<4x16x8xbf16, #tpu.memory_space<vmem>>, vector<1x16x8xbf16>
    %22 = vector.shape_cast %21 : vector<1x16x8xbf16> to vector<16x8xbf16>
    %cst_27 = arith.constant dense<0.000000e+00> : vector<8x8xf32>
    %23 = tpu.matmul %7, %22, %cst_27 {dimension_numbers = #tpu.dot_dimension_numbers<[1], [0], [0], [1], [0, 0, 1, 1], [], []>} : vector<8x16xbf16>, vector<16x8xbf16>, vector<8x8xf32> -> vector<8x8xf32>
    %24 = arith.addf %20, %23 : vector<8x8xf32>
    %c0_28 = arith.constant 0 : index
    %c0_29 = arith.constant 0 : index
    %25 = vector.load %arg5[%c0_28, %c0_29] : memref<1x8xf32, #tpu.memory_space<vmem>>, vector<1x8xf32>
    %26 = vector.broadcast %25 : vector<1x8xf32> to vector<8x8xf32>
    %27 = arith.addf %24, %26 : vector<8x8xf32>
    %28 = arith.truncf %27 : vector<8x8xf32> to vector<8x8xbf16>
    %c0_30 = arith.constant 0 : index
    %c0_31 = arith.constant 0 : index
    %c0_32 = arith.constant 0 : index
    %c0_33 = arith.constant 0 : index
    %29 = vector.load %arg6[%c0_30, %c0_31, %c0_32, %c0_33] : memref<1x1x8x8xbf16, #tpu.memory_space<vmem>>, vector<1x1x8x8xbf16>
    %30 = vector.shape_cast %29 : vector<1x1x8x8xbf16> to vector<8x8xbf16>
    %31 = vector.shape_cast %28 : vector<8x8xbf16> to vector<1x1x8x8xbf16>
    tpu.vector_store %arg6[%c0_30, %c0_31, %c0_32, %c0_33], %31 {strides = array<i32>} : memref<1x1x8x8xbf16, #tpu.memory_space<vmem>>, vector<1x1x8x8xbf16>,
    return
  }
  func.func @transform_0(%arg0: i32, %arg1: i32) -> (i32, i32, i32, i32) {
    %c0_i32 = arith.constant 0 : i32
    %c0_i32_0 = arith.constant 0 : i32
    %c0_i32_1 = arith.constant 0 : i32
    return %arg0, %arg1, %c0_i32, %c0_i32_0 : i32, i32, i32, i32
  }
  func.func @transform_1(%arg0: i32, %arg1: i32) -> (i32, i32, i32, i32) {
    %c1_i32 = arith.constant 1 : i32
    %0 = arith.addi %arg1, %c1_i32 : i32
    %c0_i32 = arith.constant 0 : i32
    %c0_i32_0 = arith.constant 0 : i32
    %c0_i32_1 = arith.constant 0 : i32
    return %arg0, %0, %c0_i32, %c0_i32_0 : i32, i32, i32, i32
  }
  func.func @transform_2(%arg0: i32, %arg1: i32) -> (i32, i32, i32) {
    %c0_i32 = arith.constant 0 : i32
    %c0_i32_0 = arith.constant 0 : i32
    %c0_i32_1 = arith.constant 0 : i32
    %c0_i32_2 = arith.constant 0 : i32
    return %c0_i32, %c0_i32_0, %c0_i32_1 : i32, i32, i32
  }
  func.func @transform_3(%arg0: i32, %arg1: i32) -> (i32, i32) {
    %c0_i32 = arith.constant 0 : i32
    %c0_i32_0 = arith.constant 0 : i32
    %c0_i32_1 = arith.constant 0 : i32
    return %c0_i32, %c0_i32_0 : i32, i32
  }
  func.func @transform_4(%arg0: i32, %arg1: i32) -> (i32, i32, i32, i32) {
    %c0_i32 = arith.constant 0 : i32
    %c0_i32_0 = arith.constant 0 : i32
    %c0_i32_1 = arith.constant 0 : i32
    return %arg0, %arg1, %c0_i32, %c0_i32_0 : i32, i32, i32, i32
  }
}

module attributes {stable_mosaic.version = 11 : i64} {
  func.func @_down_kernel(%arg0: i32, %arg1: i32, %arg2: memref<1x1x5x32xbf16, #tpu.memory_space<vmem>>, %arg3: memref<1x1x5x32xbf16, #tpu.memory_space<vmem>>, %arg4: memref<4x32x16xbf16, #tpu.memory_space<vmem>>, %arg5: memref<1x16xf32, #tpu.memory_space<vmem>>, %arg6: memref<1x1x4x16xbf16, #tpu.memory_space<vmem>>, %arg7: memref<1x16xf32, #tpu.memory_space<vmem>>, %arg8: memref<1x16xf32, #tpu.memory_space<vmem>>) attributes {dimension_semantics = [#tpu.dimension_semantics<arbitrary>, #tpu.dimension_semantics<arbitrary>], iteration_bounds = array<i64: 2, 4>, scalar_prefetch = 0 : i64, scratch_operands = 0 : i64, tpu.core_type = #tpu.core_type<tc>, window_params = [{transform_indices = @transform_0, window_bounds = array<i64: 1, 1, 5, 32>}, {transform_indices = @transform_1, window_bounds = array<i64: 1, 1, 5, 32>}, {pipeline_mode = #tpu.pipeline_mode<synchronous>, transform_indices = @transform_2, window_bounds = array<i64: 4, 32, 16>}, {pipeline_mode = #tpu.pipeline_mode<synchronous>, transform_indices = @transform_3, window_bounds = array<i64: 1, 16>}, {transform_indices = @transform_4, window_bounds = array<i64: 1, 1, 4, 16>}, {pipeline_mode = #tpu.pipeline_mode<synchronous>, transform_indices = @transform_5, window_bounds = array<i64: 1, 16>}, {pipeline_mode = #tpu.pipeline_mode<synchronous>, transform_indices = @transform_6, window_bounds = array<i64: 1, 16>}]} {
    %c0 = arith.constant 0 : index
    %c0_0 = arith.constant 0 : index
    %c0_1 = arith.constant 0 : index
    %c0_2 = arith.constant 0 : index
    %0 = vector.load %arg2[%c0, %c0_0, %c0_1, %c0_2] : memref<1x1x5x32xbf16, #tpu.memory_space<vmem>>, vector<1x1x4x32xbf16>
    %1 = vector.shape_cast %0 : vector<1x1x4x32xbf16> to vector<4x32xbf16>
    %cst = arith.constant 0.000000e+00 : bf16
    %2 = vector.broadcast %cst : bf16 to vector<4x32xbf16>
    %3 = arith.cmpf ogt, %1, %2 : vector<4x32xbf16>
    %cst_3 = arith.constant 2.001950e-01 : bf16
    %4 = vector.broadcast %cst_3 : bf16 to vector<4x32xbf16>
    %5 = arith.mulf %1, %4 : vector<4x32xbf16>
    %6 = arith.select %3, %1, %5 : vector<4x32xi1>, vector<4x32xbf16>
    %c0_4 = arith.constant 0 : index
    %c0_5 = arith.constant 0 : index
    %c1 = arith.constant 1 : index
    %c0_6 = arith.constant 0 : index
    %7 = vector.load %arg2[%c0_4, %c0_5, %c1, %c0_6] : memref<1x1x5x32xbf16, #tpu.memory_space<vmem>>, vector<1x1x4x32xbf16>
    %8 = vector.shape_cast %7 : vector<1x1x4x32xbf16> to vector<4x32xbf16>
    %cst_7 = arith.constant 0.000000e+00 : bf16
    %9 = vector.broadcast %cst_7 : bf16 to vector<4x32xbf16>
    %10 = arith.cmpf ogt, %8, %9 : vector<4x32xbf16>
    %cst_8 = arith.constant 2.001950e-01 : bf16
    %11 = vector.broadcast %cst_8 : bf16 to vector<4x32xbf16>
    %12 = arith.mulf %8, %11 : vector<4x32xbf16>
    %13 = arith.select %10, %8, %12 : vector<4x32xi1>, vector<4x32xbf16>
    %c0_9 = arith.constant 0 : index
    %c0_10 = arith.constant 0 : index
    %c0_11 = arith.constant 0 : index
    %c0_12 = arith.constant 0 : index
    %14 = vector.load %arg3[%c0_9, %c0_10, %c0_11, %c0_12] : memref<1x1x5x32xbf16, #tpu.memory_space<vmem>>, vector<1x1x4x32xbf16>
    %15 = vector.shape_cast %14 : vector<1x1x4x32xbf16> to vector<4x32xbf16>
    %cst_13 = arith.constant 0.000000e+00 : bf16
    %16 = vector.broadcast %cst_13 : bf16 to vector<4x32xbf16>
    %17 = arith.cmpf ogt, %15, %16 : vector<4x32xbf16>
    %cst_14 = arith.constant 2.001950e-01 : bf16
    %18 = vector.broadcast %cst_14 : bf16 to vector<4x32xbf16>
    %19 = arith.mulf %15, %18 : vector<4x32xbf16>
    %20 = arith.select %17, %15, %19 : vector<4x32xi1>, vector<4x32xbf16>
    %c0_15 = arith.constant 0 : index
    %c0_16 = arith.constant 0 : index
    %c1_17 = arith.constant 1 : index
    %c0_18 = arith.constant 0 : index
    %21 = vector.load %arg3[%c0_15, %c0_16, %c1_17, %c0_18] : memref<1x1x5x32xbf16, #tpu.memory_space<vmem>>, vector<1x1x4x32xbf16>
    %22 = vector.shape_cast %21 : vector<1x1x4x32xbf16> to vector<4x32xbf16>
    %cst_19 = arith.constant 0.000000e+00 : bf16
    %23 = vector.broadcast %cst_19 : bf16 to vector<4x32xbf16>
    %24 = arith.cmpf ogt, %22, %23 : vector<4x32xbf16>
    %cst_20 = arith.constant 2.001950e-01 : bf16
    %25 = vector.broadcast %cst_20 : bf16 to vector<4x32xbf16>
    %26 = arith.mulf %22, %25 : vector<4x32xbf16>
    %27 = arith.select %24, %22, %26 : vector<4x32xi1>, vector<4x32xbf16>
    %cst_21 = arith.constant 0.000000e+00 : f32
    %28 = vector.broadcast %cst_21 : f32 to vector<4x16xf32>
    %c0_22 = arith.constant 0 : index
    %c0_23 = arith.constant 0 : index
    %c0_24 = arith.constant 0 : index
    %29 = vector.load %arg4[%c0_22, %c0_23, %c0_24] : memref<4x32x16xbf16, #tpu.memory_space<vmem>>, vector<1x32x16xbf16>
    %30 = vector.shape_cast %29 : vector<1x32x16xbf16> to vector<32x16xbf16>
    %cst_25 = arith.constant dense<0.000000e+00> : vector<4x16xf32>
    %31 = tpu.matmul %6, %30, %cst_25 {dimension_numbers = #tpu.dot_dimension_numbers<[1], [0], [0], [1], [0, 0, 1, 1], [], []>} : vector<4x32xbf16>, vector<32x16xbf16>, vector<4x16xf32> -> vector<4x16xf32>
    %32 = arith.addf %28, %31 : vector<4x16xf32>
    %c1_26 = arith.constant 1 : index
    %c0_27 = arith.constant 0 : index
    %c0_28 = arith.constant 0 : index
    %33 = vector.load %arg4[%c1_26, %c0_27, %c0_28] : memref<4x32x16xbf16, #tpu.memory_space<vmem>>, vector<1x32x16xbf16>
    %34 = vector.shape_cast %33 : vector<1x32x16xbf16> to vector<32x16xbf16>
    %cst_29 = arith.constant dense<0.000000e+00> : vector<4x16xf32>
    %35 = tpu.matmul %13, %34, %cst_29 {dimension_numbers = #tpu.dot_dimension_numbers<[1], [0], [0], [1], [0, 0, 1, 1], [], []>} : vector<4x32xbf16>, vector<32x16xbf16>, vector<4x16xf32> -> vector<4x16xf32>
    %36 = arith.addf %32, %35 : vector<4x16xf32>
    %c2 = arith.constant 2 : index
    %c0_30 = arith.constant 0 : index
    %c0_31 = arith.constant 0 : index
    %37 = vector.load %arg4[%c2, %c0_30, %c0_31] : memref<4x32x16xbf16, #tpu.memory_space<vmem>>, vector<1x32x16xbf16>
    %38 = vector.shape_cast %37 : vector<1x32x16xbf16> to vector<32x16xbf16>
    %cst_32 = arith.constant dense<0.000000e+00> : vector<4x16xf32>
    %39 = tpu.matmul %20, %38, %cst_32 {dimension_numbers = #tpu.dot_dimension_numbers<[1], [0], [0], [1], [0, 0, 1, 1], [], []>} : vector<4x32xbf16>, vector<32x16xbf16>, vector<4x16xf32> -> vector<4x16xf32>
    %40 = arith.addf %36, %39 : vector<4x16xf32>
    %c3 = arith.constant 3 : index
    %c0_33 = arith.constant 0 : index
    %c0_34 = arith.constant 0 : index
    %41 = vector.load %arg4[%c3, %c0_33, %c0_34] : memref<4x32x16xbf16, #tpu.memory_space<vmem>>, vector<1x32x16xbf16>
    %42 = vector.shape_cast %41 : vector<1x32x16xbf16> to vector<32x16xbf16>
    %cst_35 = arith.constant dense<0.000000e+00> : vector<4x16xf32>
    %43 = tpu.matmul %27, %42, %cst_35 {dimension_numbers = #tpu.dot_dimension_numbers<[1], [0], [0], [1], [0, 0, 1, 1], [], []>} : vector<4x32xbf16>, vector<32x16xbf16>, vector<4x16xf32> -> vector<4x16xf32>
    %44 = arith.addf %40, %43 : vector<4x16xf32>
    %c0_36 = arith.constant 0 : index
    %c0_37 = arith.constant 0 : index
    %45 = vector.load %arg5[%c0_36, %c0_37] : memref<1x16xf32, #tpu.memory_space<vmem>>, vector<1x16xf32>
    %46 = vector.broadcast %45 : vector<1x16xf32> to vector<4x16xf32>
    %47 = arith.addf %44, %46 : vector<4x16xf32>
    %48 = arith.truncf %47 : vector<4x16xf32> to vector<4x16xbf16>
    %c0_38 = arith.constant 0 : index
    %c0_39 = arith.constant 0 : index
    %c0_40 = arith.constant 0 : index
    %c0_41 = arith.constant 0 : index
    %49 = vector.load %arg6[%c0_38, %c0_39, %c0_40, %c0_41] : memref<1x1x4x16xbf16, #tpu.memory_space<vmem>>, vector<1x1x4x16xbf16>
    %50 = vector.shape_cast %49 : vector<1x1x4x16xbf16> to vector<4x16xbf16>
    %51 = vector.shape_cast %48 : vector<4x16xbf16> to vector<1x1x4x16xbf16>
    tpu.vector_store %arg6[%c0_38, %c0_39, %c0_40, %c0_41], %51 {strides = array<i32>} : memref<1x1x4x16xbf16, #tpu.memory_space<vmem>>, vector<1x1x4x16xbf16>,
    %c0_i32 = arith.constant 0 : i32
    %52 = arith.cmpi eq, %arg0, %c0_i32 : i32
    %c0_i32_42 = arith.constant 0 : i32
    %53 = arith.cmpi eq, %arg1, %c0_i32_42 : i32
    %54 = arith.andi %52, %53 : i1
    %55 = arith.extui %54 : i1 to i32
    %c0_i32_43 = arith.constant 0 : i32
    %56 = arith.cmpi ne, %55, %c0_i32_43 : i32
    scf.if %56 {
      %cst_54 = arith.constant 0.000000e+00 : f32
      %68 = vector.broadcast %cst_54 : f32 to vector<1x16xf32>
      %c0_55 = arith.constant 0 : index
      %c0_56 = arith.constant 0 : index
      %69 = vector.load %arg7[%c0_55, %c0_56] : memref<1x16xf32, #tpu.memory_space<vmem>>, vector<1x16xf32>
      tpu.vector_store %arg7[%c0_55, %c0_56], %68 {strides = array<i32>} : memref<1x16xf32, #tpu.memory_space<vmem>>, vector<1x16xf32>,
      %cst_57 = arith.constant 0.000000e+00 : f32
      %70 = vector.broadcast %cst_57 : f32 to vector<1x16xf32>
      %c0_58 = arith.constant 0 : index
      %c0_59 = arith.constant 0 : index
      %71 = vector.load %arg8[%c0_58, %c0_59] : memref<1x16xf32, #tpu.memory_space<vmem>>, vector<1x16xf32>
      tpu.vector_store %arg8[%c0_58, %c0_59], %70 {strides = array<i32>} : memref<1x16xf32, #tpu.memory_space<vmem>>, vector<1x16xf32>,
    } else {
    }
    %c0_44 = arith.constant 0 : index
    %c0_45 = arith.constant 0 : index
    %57 = vector.load %arg7[%c0_44, %c0_45] : memref<1x16xf32, #tpu.memory_space<vmem>>, vector<1x16xf32>
    %cst_46 = arith.constant dense<0.000000e+00> : vector<16xf32>
    %58 = vector.multi_reduction <add>, %44, %cst_46 [0] : vector<4x16xf32> to vector<16xf32>
    %59 = vector.shape_cast %58 : vector<16xf32> to vector<1x16xf32>
    %60 = arith.addf %57, %59 : vector<1x16xf32>
    %c0_47 = arith.constant 0 : index
    %c0_48 = arith.constant 0 : index
    %61 = vector.load %arg7[%c0_47, %c0_48] : memref<1x16xf32, #tpu.memory_space<vmem>>, vector<1x16xf32>
    tpu.vector_store %arg7[%c0_47, %c0_48], %60 {strides = array<i32>} : memref<1x16xf32, #tpu.memory_space<vmem>>, vector<1x16xf32>,
    %c0_49 = arith.constant 0 : index
    %c0_50 = arith.constant 0 : index
    %62 = vector.load %arg8[%c0_49, %c0_50] : memref<1x16xf32, #tpu.memory_space<vmem>>, vector<1x16xf32>
    %63 = arith.mulf %44, %44 : vector<4x16xf32>
    %cst_51 = arith.constant dense<0.000000e+00> : vector<16xf32>
    %64 = vector.multi_reduction <add>, %63, %cst_51 [0] : vector<4x16xf32> to vector<16xf32>
    %65 = vector.shape_cast %64 : vector<16xf32> to vector<1x16xf32>
    %66 = arith.addf %62, %65 : vector<1x16xf32>
    %c0_52 = arith.constant 0 : index
    %c0_53 = arith.constant 0 : index
    %67 = vector.load %arg8[%c0_52, %c0_53] : memref<1x16xf32, #tpu.memory_space<vmem>>, vector<1x16xf32>
    tpu.vector_store %arg8[%c0_52, %c0_53], %66 {strides = array<i32>} : memref<1x16xf32, #tpu.memory_space<vmem>>, vector<1x16xf32>,
    return
  }
  func.func @transform_0(%arg0: i32, %arg1: i32) -> (i32, i32, i32, i32) {
    %c0_i32 = arith.constant 0 : i32
    %c0_i32_0 = arith.constant 0 : i32
    %c0_i32_1 = arith.constant 0 : i32
    return %arg0, %arg1, %c0_i32, %c0_i32_0 : i32, i32, i32, i32
  }
  func.func @transform_1(%arg0: i32, %arg1: i32) -> (i32, i32, i32, i32) {
    %c1_i32 = arith.constant 1 : i32
    %0 = arith.addi %arg1, %c1_i32 : i32
    %c0_i32 = arith.constant 0 : i32
    %c0_i32_0 = arith.constant 0 : i32
    %c0_i32_1 = arith.constant 0 : i32
    return %arg0, %0, %c0_i32, %c0_i32_0 : i32, i32, i32, i32
  }
  func.func @transform_2(%arg0: i32, %arg1: i32) -> (i32, i32, i32) {
    %c0_i32 = arith.constant 0 : i32
    %c0_i32_0 = arith.constant 0 : i32
    %c0_i32_1 = arith.constant 0 : i32
    %c0_i32_2 = arith.constant 0 : i32
    return %c0_i32, %c0_i32_0, %c0_i32_1 : i32, i32, i32
  }
  func.func @transform_3(%arg0: i32, %arg1: i32) -> (i32, i32) {
    %c0_i32 = arith.constant 0 : i32
    %c0_i32_0 = arith.constant 0 : i32
    %c0_i32_1 = arith.constant 0 : i32
    return %c0_i32, %c0_i32_0 : i32, i32
  }
  func.func @transform_4(%arg0: i32, %arg1: i32) -> (i32, i32, i32, i32) {
    %c0_i32 = arith.constant 0 : i32
    %c0_i32_0 = arith.constant 0 : i32
    %c0_i32_1 = arith.constant 0 : i32
    return %arg0, %arg1, %c0_i32, %c0_i32_0 : i32, i32, i32, i32
  }
  func.func @transform_5(%arg0: i32, %arg1: i32) -> (i32, i32) {
    %c0_i32 = arith.constant 0 : i32
    %c0_i32_0 = arith.constant 0 : i32
    %c0_i32_1 = arith.constant 0 : i32
    return %c0_i32, %c0_i32_0 : i32, i32
  }
  func.func @transform_6(%arg0: i32, %arg1: i32) -> (i32, i32) {
    %c0_i32 = arith.constant 0 : i32
    %c0_i32_0 = arith.constant 0 : i32
    %c0_i32_1 = arith.constant 0 : i32
    return %c0_i32, %c0_i32_0 : i32, i32
  }
}

module attributes {stable_mosaic.version = 11 : i64} {
  func.func @_down_kernel(%arg0: i32, %arg1: i32, %arg2: memref<1x1x3x64xbf16, #tpu.memory_space<vmem>>, %arg3: memref<1x1x3x64xbf16, #tpu.memory_space<vmem>>, %arg4: memref<4x64x32xbf16, #tpu.memory_space<vmem>>, %arg5: memref<1x32xf32, #tpu.memory_space<vmem>>, %arg6: memref<1x1x2x32xbf16, #tpu.memory_space<vmem>>) attributes {dimension_semantics = [#tpu.dimension_semantics<parallel>, #tpu.dimension_semantics<parallel>], iteration_bounds = array<i64: 2, 2>, scalar_prefetch = 0 : i64, scratch_operands = 0 : i64, tpu.core_type = #tpu.core_type<tc>, window_params = [{transform_indices = @transform_0, window_bounds = array<i64: 1, 1, 3, 64>}, {transform_indices = @transform_1, window_bounds = array<i64: 1, 1, 3, 64>}, {pipeline_mode = #tpu.pipeline_mode<synchronous>, transform_indices = @transform_2, window_bounds = array<i64: 4, 64, 32>}, {pipeline_mode = #tpu.pipeline_mode<synchronous>, transform_indices = @transform_3, window_bounds = array<i64: 1, 32>}, {transform_indices = @transform_4, window_bounds = array<i64: 1, 1, 2, 32>}]} {
    %c0 = arith.constant 0 : index
    %c0_0 = arith.constant 0 : index
    %c0_1 = arith.constant 0 : index
    %c0_2 = arith.constant 0 : index
    %0 = vector.load %arg2[%c0, %c0_0, %c0_1, %c0_2] : memref<1x1x3x64xbf16, #tpu.memory_space<vmem>>, vector<1x1x2x64xbf16>
    %1 = vector.shape_cast %0 : vector<1x1x2x64xbf16> to vector<2x64xbf16>
    %cst = arith.constant 0.000000e+00 : bf16
    %2 = vector.broadcast %cst : bf16 to vector<2x64xbf16>
    %3 = arith.cmpf ogt, %1, %2 : vector<2x64xbf16>
    %cst_3 = arith.constant 2.001950e-01 : bf16
    %4 = vector.broadcast %cst_3 : bf16 to vector<2x64xbf16>
    %5 = arith.mulf %1, %4 : vector<2x64xbf16>
    %6 = arith.select %3, %1, %5 : vector<2x64xi1>, vector<2x64xbf16>
    %c0_4 = arith.constant 0 : index
    %c0_5 = arith.constant 0 : index
    %c1 = arith.constant 1 : index
    %c0_6 = arith.constant 0 : index
    %7 = vector.load %arg2[%c0_4, %c0_5, %c1, %c0_6] : memref<1x1x3x64xbf16, #tpu.memory_space<vmem>>, vector<1x1x2x64xbf16>
    %8 = vector.shape_cast %7 : vector<1x1x2x64xbf16> to vector<2x64xbf16>
    %cst_7 = arith.constant 0.000000e+00 : bf16
    %9 = vector.broadcast %cst_7 : bf16 to vector<2x64xbf16>
    %10 = arith.cmpf ogt, %8, %9 : vector<2x64xbf16>
    %cst_8 = arith.constant 2.001950e-01 : bf16
    %11 = vector.broadcast %cst_8 : bf16 to vector<2x64xbf16>
    %12 = arith.mulf %8, %11 : vector<2x64xbf16>
    %13 = arith.select %10, %8, %12 : vector<2x64xi1>, vector<2x64xbf16>
    %c0_9 = arith.constant 0 : index
    %c0_10 = arith.constant 0 : index
    %c0_11 = arith.constant 0 : index
    %c0_12 = arith.constant 0 : index
    %14 = vector.load %arg3[%c0_9, %c0_10, %c0_11, %c0_12] : memref<1x1x3x64xbf16, #tpu.memory_space<vmem>>, vector<1x1x2x64xbf16>
    %15 = vector.shape_cast %14 : vector<1x1x2x64xbf16> to vector<2x64xbf16>
    %cst_13 = arith.constant 0.000000e+00 : bf16
    %16 = vector.broadcast %cst_13 : bf16 to vector<2x64xbf16>
    %17 = arith.cmpf ogt, %15, %16 : vector<2x64xbf16>
    %cst_14 = arith.constant 2.001950e-01 : bf16
    %18 = vector.broadcast %cst_14 : bf16 to vector<2x64xbf16>
    %19 = arith.mulf %15, %18 : vector<2x64xbf16>
    %20 = arith.select %17, %15, %19 : vector<2x64xi1>, vector<2x64xbf16>
    %c0_15 = arith.constant 0 : index
    %c0_16 = arith.constant 0 : index
    %c1_17 = arith.constant 1 : index
    %c0_18 = arith.constant 0 : index
    %21 = vector.load %arg3[%c0_15, %c0_16, %c1_17, %c0_18] : memref<1x1x3x64xbf16, #tpu.memory_space<vmem>>, vector<1x1x2x64xbf16>
    %22 = vector.shape_cast %21 : vector<1x1x2x64xbf16> to vector<2x64xbf16>
    %cst_19 = arith.constant 0.000000e+00 : bf16
    %23 = vector.broadcast %cst_19 : bf16 to vector<2x64xbf16>
    %24 = arith.cmpf ogt, %22, %23 : vector<2x64xbf16>
    %cst_20 = arith.constant 2.001950e-01 : bf16
    %25 = vector.broadcast %cst_20 : bf16 to vector<2x64xbf16>
    %26 = arith.mulf %22, %25 : vector<2x64xbf16>
    %27 = arith.select %24, %22, %26 : vector<2x64xi1>, vector<2x64xbf16>
    %cst_21 = arith.constant 0.000000e+00 : f32
    %28 = vector.broadcast %cst_21 : f32 to vector<2x32xf32>
    %c0_22 = arith.constant 0 : index
    %c0_23 = arith.constant 0 : index
    %c0_24 = arith.constant 0 : index
    %29 = vector.load %arg4[%c0_22, %c0_23, %c0_24] : memref<4x64x32xbf16, #tpu.memory_space<vmem>>, vector<1x64x32xbf16>
    %30 = vector.shape_cast %29 : vector<1x64x32xbf16> to vector<64x32xbf16>
    %cst_25 = arith.constant dense<0.000000e+00> : vector<2x32xf32>
    %31 = tpu.matmul %6, %30, %cst_25 {dimension_numbers = #tpu.dot_dimension_numbers<[1], [0], [0], [1], [0, 0, 1, 1], [], []>} : vector<2x64xbf16>, vector<64x32xbf16>, vector<2x32xf32> -> vector<2x32xf32>
    %32 = arith.addf %28, %31 : vector<2x32xf32>
    %c1_26 = arith.constant 1 : index
    %c0_27 = arith.constant 0 : index
    %c0_28 = arith.constant 0 : index
    %33 = vector.load %arg4[%c1_26, %c0_27, %c0_28] : memref<4x64x32xbf16, #tpu.memory_space<vmem>>, vector<1x64x32xbf16>
    %34 = vector.shape_cast %33 : vector<1x64x32xbf16> to vector<64x32xbf16>
    %cst_29 = arith.constant dense<0.000000e+00> : vector<2x32xf32>
    %35 = tpu.matmul %13, %34, %cst_29 {dimension_numbers = #tpu.dot_dimension_numbers<[1], [0], [0], [1], [0, 0, 1, 1], [], []>} : vector<2x64xbf16>, vector<64x32xbf16>, vector<2x32xf32> -> vector<2x32xf32>
    %36 = arith.addf %32, %35 : vector<2x32xf32>
    %c2 = arith.constant 2 : index
    %c0_30 = arith.constant 0 : index
    %c0_31 = arith.constant 0 : index
    %37 = vector.load %arg4[%c2, %c0_30, %c0_31] : memref<4x64x32xbf16, #tpu.memory_space<vmem>>, vector<1x64x32xbf16>
    %38 = vector.shape_cast %37 : vector<1x64x32xbf16> to vector<64x32xbf16>
    %cst_32 = arith.constant dense<0.000000e+00> : vector<2x32xf32>
    %39 = tpu.matmul %20, %38, %cst_32 {dimension_numbers = #tpu.dot_dimension_numbers<[1], [0], [0], [1], [0, 0, 1, 1], [], []>} : vector<2x64xbf16>, vector<64x32xbf16>, vector<2x32xf32> -> vector<2x32xf32>
    %40 = arith.addf %36, %39 : vector<2x32xf32>
    %c3 = arith.constant 3 : index
    %c0_33 = arith.constant 0 : index
    %c0_34 = arith.constant 0 : index
    %41 = vector.load %arg4[%c3, %c0_33, %c0_34] : memref<4x64x32xbf16, #tpu.memory_space<vmem>>, vector<1x64x32xbf16>
    %42 = vector.shape_cast %41 : vector<1x64x32xbf16> to vector<64x32xbf16>
    %cst_35 = arith.constant dense<0.000000e+00> : vector<2x32xf32>
    %43 = tpu.matmul %27, %42, %cst_35 {dimension_numbers = #tpu.dot_dimension_numbers<[1], [0], [0], [1], [0, 0, 1, 1], [], []>} : vector<2x64xbf16>, vector<64x32xbf16>, vector<2x32xf32> -> vector<2x32xf32>
    %44 = arith.addf %40, %43 : vector<2x32xf32>
    %c0_36 = arith.constant 0 : index
    %c0_37 = arith.constant 0 : index
    %45 = vector.load %arg5[%c0_36, %c0_37] : memref<1x32xf32, #tpu.memory_space<vmem>>, vector<1x32xf32>
    %46 = vector.broadcast %45 : vector<1x32xf32> to vector<2x32xf32>
    %47 = arith.addf %44, %46 : vector<2x32xf32>
    %48 = arith.truncf %47 : vector<2x32xf32> to vector<2x32xbf16>
    %c0_38 = arith.constant 0 : index
    %c0_39 = arith.constant 0 : index
    %c0_40 = arith.constant 0 : index
    %c0_41 = arith.constant 0 : index
    %49 = vector.load %arg6[%c0_38, %c0_39, %c0_40, %c0_41] : memref<1x1x2x32xbf16, #tpu.memory_space<vmem>>, vector<1x1x2x32xbf16>
    %50 = vector.shape_cast %49 : vector<1x1x2x32xbf16> to vector<2x32xbf16>
    %51 = vector.shape_cast %48 : vector<2x32xbf16> to vector<1x1x2x32xbf16>
    tpu.vector_store %arg6[%c0_38, %c0_39, %c0_40, %c0_41], %51 {strides = array<i32>} : memref<1x1x2x32xbf16, #tpu.memory_space<vmem>>, vector<1x1x2x32xbf16>,
    return
  }
  func.func @transform_0(%arg0: i32, %arg1: i32) -> (i32, i32, i32, i32) {
    %c0_i32 = arith.constant 0 : i32
    %c0_i32_0 = arith.constant 0 : i32
    %c0_i32_1 = arith.constant 0 : i32
    return %arg0, %arg1, %c0_i32, %c0_i32_0 : i32, i32, i32, i32
  }
  func.func @transform_1(%arg0: i32, %arg1: i32) -> (i32, i32, i32, i32) {
    %c1_i32 = arith.constant 1 : i32
    %0 = arith.addi %arg1, %c1_i32 : i32
    %c0_i32 = arith.constant 0 : i32
    %c0_i32_0 = arith.constant 0 : i32
    %c0_i32_1 = arith.constant 0 : i32
    return %arg0, %0, %c0_i32, %c0_i32_0 : i32, i32, i32, i32
  }
  func.func @transform_2(%arg0: i32, %arg1: i32) -> (i32, i32, i32) {
    %c0_i32 = arith.constant 0 : i32
    %c0_i32_0 = arith.constant 0 : i32
    %c0_i32_1 = arith.constant 0 : i32
    %c0_i32_2 = arith.constant 0 : i32
    return %c0_i32, %c0_i32_0, %c0_i32_1 : i32, i32, i32
  }
  func.func @transform_3(%arg0: i32, %arg1: i32) -> (i32, i32) {
    %c0_i32 = arith.constant 0 : i32
    %c0_i32_0 = arith.constant 0 : i32
    %c0_i32_1 = arith.constant 0 : i32
    return %c0_i32, %c0_i32_0 : i32, i32
  }
  func.func @transform_4(%arg0: i32, %arg1: i32) -> (i32, i32, i32, i32) {
    %c0_i32 = arith.constant 0 : i32
    %c0_i32_0 = arith.constant 0 : i32
    %c0_i32_1 = arith.constant 0 : i32
    return %arg0, %arg1, %c0_i32, %c0_i32_0 : i32, i32, i32, i32
  }
}

module attributes {stable_mosaic.version = 11 : i64} {
  func.func @_up_kernel(%arg0: i32, %arg1: i32, %arg2: i32, %arg3: memref<1x1x1x4x32xbf16, #tpu.memory_space<vmem>>, %arg4: memref<1x1x1x4x32xbf16, #tpu.memory_space<vmem>>, %arg5: memref<1x1x1x4x32xbf16, #tpu.memory_space<vmem>>, %arg6: memref<1x4x4x32x32xbf16, #tpu.memory_space<vmem>>, %arg7: memref<1x1x32xf32, #tpu.memory_space<vmem>>, %arg8: memref<1x1x1x4x2x32xbf16, #tpu.memory_space<vmem>>, %arg9: memref<1x1x32xf32, #tpu.memory_space<vmem>>, %arg10: memref<1x1x32xf32, #tpu.memory_space<vmem>>) attributes {dimension_semantics = [#tpu.dimension_semantics<parallel>, #tpu.dimension_semantics<arbitrary>, #tpu.dimension_semantics<arbitrary>], iteration_bounds = array<i64: 1, 2, 2>, scalar_prefetch = 0 : i64, scratch_operands = 0 : i64, tpu.core_type = #tpu.core_type<tc>, window_params = [{transform_indices = @transform_0, window_bounds = array<i64: 1, 1, 1, 4, 32>}, {transform_indices = @transform_1, window_bounds = array<i64: 1, 1, 1, 4, 32>}, {transform_indices = @transform_2, window_bounds = array<i64: 1, 1, 1, 4, 32>}, {transform_indices = @transform_3, window_bounds = array<i64: 1, 4, 4, 32, 32>}, {transform_indices = @transform_4, window_bounds = array<i64: 1, 1, 32>}, {transform_indices = @transform_5, window_bounds = array<i64: 1, 1, 1, 4, 2, 32>}, {transform_indices = @transform_6, window_bounds = array<i64: 1, 1, 32>}, {transform_indices = @transform_7, window_bounds = array<i64: 1, 1, 32>}]} {
    %c0 = arith.constant 0 : index
    %c0_0 = arith.constant 0 : index
    %c0_1 = arith.constant 0 : index
    %c0_2 = arith.constant 0 : index
    %c0_3 = arith.constant 0 : index
    %0 = vector.load %arg3[%c0, %c0_0, %c0_1, %c0_2, %c0_3] : memref<1x1x1x4x32xbf16, #tpu.memory_space<vmem>>, vector<1x1x1x2x32xbf16>
    %1 = vector.shape_cast %0 : vector<1x1x1x2x32xbf16> to vector<2x32xbf16>
    %cst = arith.constant 0.000000e+00 : bf16
    %2 = vector.broadcast %cst : bf16 to vector<2x32xbf16>
    %3 = arith.maximumf %1, %2 : vector<2x32xbf16>
    %c0_4 = arith.constant 0 : index
    %c0_5 = arith.constant 0 : index
    %c0_6 = arith.constant 0 : index
    %c1 = arith.constant 1 : index
    %c0_7 = arith.constant 0 : index
    %4 = vector.load %arg3[%c0_4, %c0_5, %c0_6, %c1, %c0_7] : memref<1x1x1x4x32xbf16, #tpu.memory_space<vmem>>, vector<1x1x1x2x32xbf16>
    %5 = vector.shape_cast %4 : vector<1x1x1x2x32xbf16> to vector<2x32xbf16>
    %cst_8 = arith.constant 0.000000e+00 : bf16
    %6 = vector.broadcast %cst_8 : bf16 to vector<2x32xbf16>
    %7 = arith.maximumf %5, %6 : vector<2x32xbf16>
    %c0_9 = arith.constant 0 : index
    %c0_10 = arith.constant 0 : index
    %c0_11 = arith.constant 0 : index
    %c2 = arith.constant 2 : index
    %c0_12 = arith.constant 0 : index
    %8 = vector.load %arg3[%c0_9, %c0_10, %c0_11, %c2, %c0_12] : memref<1x1x1x4x32xbf16, #tpu.memory_space<vmem>>, vector<1x1x1x2x32xbf16>
    %9 = vector.shape_cast %8 : vector<1x1x1x2x32xbf16> to vector<2x32xbf16>
    %cst_13 = arith.constant 0.000000e+00 : bf16
    %10 = vector.broadcast %cst_13 : bf16 to vector<2x32xbf16>
    %11 = arith.maximumf %9, %10 : vector<2x32xbf16>
    %c0_14 = arith.constant 0 : index
    %c0_15 = arith.constant 0 : index
    %c0_16 = arith.constant 0 : index
    %c0_17 = arith.constant 0 : index
    %c0_18 = arith.constant 0 : index
    %12 = vector.load %arg4[%c0_14, %c0_15, %c0_16, %c0_17, %c0_18] : memref<1x1x1x4x32xbf16, #tpu.memory_space<vmem>>, vector<1x1x1x2x32xbf16>
    %13 = vector.shape_cast %12 : vector<1x1x1x2x32xbf16> to vector<2x32xbf16>
    %cst_19 = arith.constant 0.000000e+00 : bf16
    %14 = vector.broadcast %cst_19 : bf16 to vector<2x32xbf16>
    %15 = arith.maximumf %13, %14 : vector<2x32xbf16>
    %c0_20 = arith.constant 0 : index
    %c0_21 = arith.constant 0 : index
    %c0_22 = arith.constant 0 : index
    %c1_23 = arith.constant 1 : index
    %c0_24 = arith.constant 0 : index
    %16 = vector.load %arg4[%c0_20, %c0_21, %c0_22, %c1_23, %c0_24] : memref<1x1x1x4x32xbf16, #tpu.memory_space<vmem>>, vector<1x1x1x2x32xbf16>
    %17 = vector.shape_cast %16 : vector<1x1x1x2x32xbf16> to vector<2x32xbf16>
    %cst_25 = arith.constant 0.000000e+00 : bf16
    %18 = vector.broadcast %cst_25 : bf16 to vector<2x32xbf16>
    %19 = arith.maximumf %17, %18 : vector<2x32xbf16>
    %c0_26 = arith.constant 0 : index
    %c0_27 = arith.constant 0 : index
    %c0_28 = arith.constant 0 : index
    %c2_29 = arith.constant 2 : index
    %c0_30 = arith.constant 0 : index
    %20 = vector.load %arg4[%c0_26, %c0_27, %c0_28, %c2_29, %c0_30] : memref<1x1x1x4x32xbf16, #tpu.memory_space<vmem>>, vector<1x1x1x2x32xbf16>
    %21 = vector.shape_cast %20 : vector<1x1x1x2x32xbf16> to vector<2x32xbf16>
    %cst_31 = arith.constant 0.000000e+00 : bf16
    %22 = vector.broadcast %cst_31 : bf16 to vector<2x32xbf16>
    %23 = arith.maximumf %21, %22 : vector<2x32xbf16>
    %c0_32 = arith.constant 0 : index
    %c0_33 = arith.constant 0 : index
    %c0_34 = arith.constant 0 : index
    %c0_35 = arith.constant 0 : index
    %c0_36 = arith.constant 0 : index
    %24 = vector.load %arg5[%c0_32, %c0_33, %c0_34, %c0_35, %c0_36] : memref<1x1x1x4x32xbf16, #tpu.memory_space<vmem>>, vector<1x1x1x2x32xbf16>
    %25 = vector.shape_cast %24 : vector<1x1x1x2x32xbf16> to vector<2x32xbf16>
    %cst_37 = arith.constant 0.000000e+00 : bf16
    %26 = vector.broadcast %cst_37 : bf16 to vector<2x32xbf16>
    %27 = arith.maximumf %25, %26 : vector<2x32xbf16>
    %c0_38 = arith.constant 0 : index
    %c0_39 = arith.constant 0 : index
    %c0_40 = arith.constant 0 : index
    %c1_41 = arith.constant 1 : index
    %c0_42 = arith.constant 0 : index
    %28 = vector.load %arg5[%c0_38, %c0_39, %c0_40, %c1_41, %c0_42] : memref<1x1x1x4x32xbf16, #tpu.memory_space<vmem>>, vector<1x1x1x2x32xbf16>
    %29 = vector.shape_cast %28 : vector<1x1x1x2x32xbf16> to vector<2x32xbf16>
    %cst_43 = arith.constant 0.000000e+00 : bf16
    %30 = vector.broadcast %cst_43 : bf16 to vector<2x32xbf16>
    %31 = arith.maximumf %29, %30 : vector<2x32xbf16>
    %c0_44 = arith.constant 0 : index
    %c0_45 = arith.constant 0 : index
    %c0_46 = arith.constant 0 : index
    %c2_47 = arith.constant 2 : index
    %c0_48 = arith.constant 0 : index
    %32 = vector.load %arg5[%c0_44, %c0_45, %c0_46, %c2_47, %c0_48] : memref<1x1x1x4x32xbf16, #tpu.memory_space<vmem>>, vector<1x1x1x2x32xbf16>
    %33 = vector.shape_cast %32 : vector<1x1x1x2x32xbf16> to vector<2x32xbf16>
    %cst_49 = arith.constant 0.000000e+00 : bf16
    %34 = vector.broadcast %cst_49 : bf16 to vector<2x32xbf16>
    %35 = arith.maximumf %33, %34 : vector<2x32xbf16>
    %c0_i32 = arith.constant 0 : i32
    %36 = arith.cmpi eq, %arg1, %c0_i32 : i32
    %c0_i32_50 = arith.constant 0 : i32
    %37 = arith.cmpi eq, %arg2, %c0_i32_50 : i32
    %38 = arith.andi %36, %37 : i1
    %39 = arith.extui %38 : i1 to i32
    %c0_i32_51 = arith.constant 0 : i32
    %40 = arith.cmpi ne, %39, %c0_i32_51 : i32
    scf.if %40 {
      %cst_209 = arith.constant 0.000000e+00 : f32
      %183 = vector.broadcast %cst_209 : f32 to vector<1x32xf32>
      %c0_210 = arith.constant 0 : index
      %c0_211 = arith.constant 0 : index
      %c0_212 = arith.constant 0 : index
      %184 = vector.load %arg9[%c0_210, %c0_211, %c0_212] : memref<1x1x32xf32, #tpu.memory_space<vmem>>, vector<1x1x32xf32>
      %185 = vector.shape_cast %184 : vector<1x1x32xf32> to vector<1x32xf32>
      %186 = vector.shape_cast %183 : vector<1x32xf32> to vector<1x1x32xf32>
      tpu.vector_store %arg9[%c0_210, %c0_211, %c0_212], %186 {strides = array<i32>} : memref<1x1x32xf32, #tpu.memory_space<vmem>>, vector<1x1x32xf32>,
      %cst_213 = arith.constant 0.000000e+00 : f32
      %187 = vector.broadcast %cst_213 : f32 to vector<1x32xf32>
      %c0_214 = arith.constant 0 : index
      %c0_215 = arith.constant 0 : index
      %c0_216 = arith.constant 0 : index
      %188 = vector.load %arg10[%c0_214, %c0_215, %c0_216] : memref<1x1x32xf32, #tpu.memory_space<vmem>>, vector<1x1x32xf32>
      %189 = vector.shape_cast %188 : vector<1x1x32xf32> to vector<1x32xf32>
      %190 = vector.shape_cast %187 : vector<1x32xf32> to vector<1x1x32xf32>
      tpu.vector_store %arg10[%c0_214, %c0_215, %c0_216], %190 {strides = array<i32>} : memref<1x1x32xf32, #tpu.memory_space<vmem>>, vector<1x1x32xf32>,
    } else {
    }
    %cst_52 = arith.constant 0.000000e+00 : f32
    %41 = vector.broadcast %cst_52 : f32 to vector<1x32xf32>
    %cst_53 = arith.constant 0.000000e+00 : f32
    %42 = vector.broadcast %cst_53 : f32 to vector<1x32xf32>
    %cst_54 = arith.constant 0.000000e+00 : f32
    %43 = vector.broadcast %cst_54 : f32 to vector<2x32xf32>
    %c0_55 = arith.constant 0 : index
    %c0_56 = arith.constant 0 : index
    %c0_57 = arith.constant 0 : index
    %c0_58 = arith.constant 0 : index
    %c0_59 = arith.constant 0 : index
    %44 = vector.load %arg6[%c0_55, %c0_56, %c0_57, %c0_58, %c0_59] : memref<1x4x4x32x32xbf16, #tpu.memory_space<vmem>>, vector<1x1x1x32x32xbf16>
    %45 = vector.shape_cast %44 : vector<1x1x1x32x32xbf16> to vector<32x32xbf16>
    %cst_60 = arith.constant dense<0.000000e+00> : vector<2x32xf32>
    %46 = tpu.matmul %3, %45, %cst_60 {dimension_numbers = #tpu.dot_dimension_numbers<[1], [0], [0], [1], [0, 0, 1, 1], [], []>} : vector<2x32xbf16>, vector<32x32xbf16>, vector<2x32xf32> -> vector<2x32xf32>
    %47 = arith.addf %43, %46 : vector<2x32xf32>
    %c0_61 = arith.constant 0 : index
    %c0_62 = arith.constant 0 : index
    %c1_63 = arith.constant 1 : index
    %c0_64 = arith.constant 0 : index
    %c0_65 = arith.constant 0 : index
    %48 = vector.load %arg6[%c0_61, %c0_62, %c1_63, %c0_64, %c0_65] : memref<1x4x4x32x32xbf16, #tpu.memory_space<vmem>>, vector<1x1x1x32x32xbf16>
    %49 = vector.shape_cast %48 : vector<1x1x1x32x32xbf16> to vector<32x32xbf16>
    %cst_66 = arith.constant dense<0.000000e+00> : vector<2x32xf32>
    %50 = tpu.matmul %7, %49, %cst_66 {dimension_numbers = #tpu.dot_dimension_numbers<[1], [0], [0], [1], [0, 0, 1, 1], [], []>} : vector<2x32xbf16>, vector<32x32xbf16>, vector<2x32xf32> -> vector<2x32xf32>
    %51 = arith.addf %47, %50 : vector<2x32xf32>
    %c0_67 = arith.constant 0 : index
    %c0_68 = arith.constant 0 : index
    %c2_69 = arith.constant 2 : index
    %c0_70 = arith.constant 0 : index
    %c0_71 = arith.constant 0 : index
    %52 = vector.load %arg6[%c0_67, %c0_68, %c2_69, %c0_70, %c0_71] : memref<1x4x4x32x32xbf16, #tpu.memory_space<vmem>>, vector<1x1x1x32x32xbf16>
    %53 = vector.shape_cast %52 : vector<1x1x1x32x32xbf16> to vector<32x32xbf16>
    %cst_72 = arith.constant dense<0.000000e+00> : vector<2x32xf32>
    %54 = tpu.matmul %15, %53, %cst_72 {dimension_numbers = #tpu.dot_dimension_numbers<[1], [0], [0], [1], [0, 0, 1, 1], [], []>} : vector<2x32xbf16>, vector<32x32xbf16>, vector<2x32xf32> -> vector<2x32xf32>
    %55 = arith.addf %51, %54 : vector<2x32xf32>
    %c0_73 = arith.constant 0 : index
    %c0_74 = arith.constant 0 : index
    %c3 = arith.constant 3 : index
    %c0_75 = arith.constant 0 : index
    %c0_76 = arith.constant 0 : index
    %56 = vector.load %arg6[%c0_73, %c0_74, %c3, %c0_75, %c0_76] : memref<1x4x4x32x32xbf16, #tpu.memory_space<vmem>>, vector<1x1x1x32x32xbf16>
    %57 = vector.shape_cast %56 : vector<1x1x1x32x32xbf16> to vector<32x32xbf16>
    %cst_77 = arith.constant dense<0.000000e+00> : vector<2x32xf32>
    %58 = tpu.matmul %19, %57, %cst_77 {dimension_numbers = #tpu.dot_dimension_numbers<[1], [0], [0], [1], [0, 0, 1, 1], [], []>} : vector<2x32xbf16>, vector<32x32xbf16>, vector<2x32xf32> -> vector<2x32xf32>
    %59 = arith.addf %55, %58 : vector<2x32xf32>
    %cst_78 = arith.constant dense<0.000000e+00> : vector<32xf32>
    %60 = vector.multi_reduction <add>, %59, %cst_78 [0] : vector<2x32xf32> to vector<32xf32>
    %61 = vector.shape_cast %60 : vector<32xf32> to vector<1x32xf32>
    %62 = arith.addf %41, %61 : vector<1x32xf32>
    %63 = arith.mulf %59, %59 : vector<2x32xf32>
    %cst_79 = arith.constant dense<0.000000e+00> : vector<32xf32>
    %64 = vector.multi_reduction <add>, %63, %cst_79 [0] : vector<2x32xf32> to vector<32xf32>
    %65 = vector.shape_cast %64 : vector<32xf32> to vector<1x32xf32>
    %66 = arith.addf %42, %65 : vector<1x32xf32>
    %c0_80 = arith.constant 0 : index
    %c0_81 = arith.constant 0 : index
    %c0_82 = arith.constant 0 : index
    %67 = vector.load %arg7[%c0_80, %c0_81, %c0_82] : memref<1x1x32xf32, #tpu.memory_space<vmem>>, vector<1x1x32xf32>
    %68 = vector.shape_cast %67 : vector<1x1x32xf32> to vector<1x32xf32>
    %69 = vector.broadcast %68 : vector<1x32xf32> to vector<2x32xf32>
    %70 = arith.addf %59, %69 : vector<2x32xf32>
    %71 = arith.truncf %70 : vector<2x32xf32> to vector<2x32xbf16>
    %c0_83 = arith.constant 0 : index
    %c0_84 = arith.constant 0 : index
    %c0_85 = arith.constant 0 : index
    %c0_86 = arith.constant 0 : index
    %c0_87 = arith.constant 0 : index
    %c0_88 = arith.constant 0 : index
    %72 = vector.load %arg8[%c0_83, %c0_84, %c0_85, %c0_86, %c0_87, %c0_88] : memref<1x1x1x4x2x32xbf16, #tpu.memory_space<vmem>>, vector<1x1x1x1x2x32xbf16>
    %73 = vector.shape_cast %72 : vector<1x1x1x1x2x32xbf16> to vector<2x32xbf16>
    %74 = vector.shape_cast %71 : vector<2x32xbf16> to vector<1x1x1x1x2x32xbf16>
    tpu.vector_store %arg8[%c0_83, %c0_84, %c0_85, %c0_86, %c0_87, %c0_88], %74 {strides = array<i32>} : memref<1x1x1x4x2x32xbf16, #tpu.memory_space<vmem>>, vector<1x1x1x1x2x32xbf16>,
    %cst_89 = arith.constant 0.000000e+00 : f32
    %75 = vector.broadcast %cst_89 : f32 to vector<2x32xf32>
    %c0_90 = arith.constant 0 : index
    %c1_91 = arith.constant 1 : index
    %c0_92 = arith.constant 0 : index
    %c0_93 = arith.constant 0 : index
    %c0_94 = arith.constant 0 : index
    %76 = vector.load %arg6[%c0_90, %c1_91, %c0_92, %c0_93, %c0_94] : memref<1x4x4x32x32xbf16, #tpu.memory_space<vmem>>, vector<1x1x1x32x32xbf16>
    %77 = vector.shape_cast %76 : vector<1x1x1x32x32xbf16> to vector<32x32xbf16>
    %cst_95 = arith.constant dense<0.000000e+00> : vector<2x32xf32>
    %78 = tpu.matmul %7, %77, %cst_95 {dimension_numbers = #tpu.dot_dimension_numbers<[1], [0], [0], [1], [0, 0, 1, 1], [], []>} : vector<2x32xbf16>, vector<32x32xbf16>, vector<2x32xf32> -> vector<2x32xf32>
    %79 = arith.addf %75, %78 : vector<2x32xf32>
    %c0_96 = arith.constant 0 : index
    %c1_97 = arith.constant 1 : index
    %c1_98 = arith.constant 1 : index
    %c0_99 = arith.constant 0 : index
    %c0_100 = arith.constant 0 : index
    %80 = vector.load %arg6[%c0_96, %c1_97, %c1_98, %c0_99, %c0_100] : memref<1x4x4x32x32xbf16, #tpu.memory_space<vmem>>, vector<1x1x1x32x32xbf16>
    %81 = vector.shape_cast %80 : vector<1x1x1x32x32xbf16> to vector<32x32xbf16>
    %cst_101 = arith.constant dense<0.000000e+00> : vector<2x32xf32>
    %82 = tpu.matmul %11, %81, %cst_101 {dimension_numbers = #tpu.dot_dimension_numbers<[1], [0], [0], [1], [0, 0, 1, 1], [], []>} : vector<2x32xbf16>, vector<32x32xbf16>, vector<2x32xf32> -> vector<2x32xf32>
    %83 = arith.addf %79, %82 : vector<2x32xf32>
    %c0_102 = arith.constant 0 : index
    %c1_103 = arith.constant 1 : index
    %c2_104 = arith.constant 2 : index
    %c0_105 = arith.constant 0 : index
    %c0_106 = arith.constant 0 : index
    %84 = vector.load %arg6[%c0_102, %c1_103, %c2_104, %c0_105, %c0_106] : memref<1x4x4x32x32xbf16, #tpu.memory_space<vmem>>, vector<1x1x1x32x32xbf16>
    %85 = vector.shape_cast %84 : vector<1x1x1x32x32xbf16> to vector<32x32xbf16>
    %cst_107 = arith.constant dense<0.000000e+00> : vector<2x32xf32>
    %86 = tpu.matmul %19, %85, %cst_107 {dimension_numbers = #tpu.dot_dimension_numbers<[1], [0], [0], [1], [0, 0, 1, 1], [], []>} : vector<2x32xbf16>, vector<32x32xbf16>, vector<2x32xf32> -> vector<2x32xf32>
    %87 = arith.addf %83, %86 : vector<2x32xf32>
    %c0_108 = arith.constant 0 : index
    %c1_109 = arith.constant 1 : index
    %c3_110 = arith.constant 3 : index
    %c0_111 = arith.constant 0 : index
    %c0_112 = arith.constant 0 : index
    %88 = vector.load %arg6[%c0_108, %c1_109, %c3_110, %c0_111, %c0_112] : memref<1x4x4x32x32xbf16, #tpu.memory_space<vmem>>, vector<1x1x1x32x32xbf16>
    %89 = vector.shape_cast %88 : vector<1x1x1x32x32xbf16> to vector<32x32xbf16>
    %cst_113 = arith.constant dense<0.000000e+00> : vector<2x32xf32>
    %90 = tpu.matmul %23, %89, %cst_113 {dimension_numbers = #tpu.dot_dimension_numbers<[1], [0], [0], [1], [0, 0, 1, 1], [], []>} : vector<2x32xbf16>, vector<32x32xbf16>, vector<2x32xf32> -> vector<2x32xf32>
    %91 = arith.addf %87, %90 : vector<2x32xf32>
    %cst_114 = arith.constant dense<0.000000e+00> : vector<32xf32>
    %92 = vector.multi_reduction <add>, %91, %cst_114 [0] : vector<2x32xf32> to vector<32xf32>
    %93 = vector.shape_cast %92 : vector<32xf32> to vector<1x32xf32>
    %94 = arith.addf %62, %93 : vector<1x32xf32>
    %95 = arith.mulf %91, %91 : vector<2x32xf32>
    %cst_115 = arith.constant dense<0.000000e+00> : vector<32xf32>
    %96 = vector.multi_reduction <add>, %95, %cst_115 [0] : vector<2x32xf32> to vector<32xf32>
    %97 = vector.shape_cast %96 : vector<32xf32> to vector<1x32xf32>
    %98 = arith.addf %66, %97 : vector<1x32xf32>
    %c0_116 = arith.constant 0 : index
    %c0_117 = arith.constant 0 : index
    %c0_118 = arith.constant 0 : index
    %99 = vector.load %arg7[%c0_116, %c0_117, %c0_118] : memref<1x1x32xf32, #tpu.memory_space<vmem>>, vector<1x1x32xf32>
    %100 = vector.shape_cast %99 : vector<1x1x32xf32> to vector<1x32xf32>
    %101 = vector.broadcast %100 : vector<1x32xf32> to vector<2x32xf32>
    %102 = arith.addf %91, %101 : vector<2x32xf32>
    %103 = arith.truncf %102 : vector<2x32xf32> to vector<2x32xbf16>
    %c0_119 = arith.constant 0 : index
    %c0_120 = arith.constant 0 : index
    %c0_121 = arith.constant 0 : index
    %c1_122 = arith.constant 1 : index
    %c0_123 = arith.constant 0 : index
    %c0_124 = arith.constant 0 : index
    %104 = vector.load %arg8[%c0_119, %c0_120, %c0_121, %c1_122, %c0_123, %c0_124] : memref<1x1x1x4x2x32xbf16, #tpu.memory_space<vmem>>, vector<1x1x1x1x2x32xbf16>
    %105 = vector.shape_cast %104 : vector<1x1x1x1x2x32xbf16> to vector<2x32xbf16>
    %106 = vector.shape_cast %103 : vector<2x32xbf16> to vector<1x1x1x1x2x32xbf16>
    tpu.vector_store %arg8[%c0_119, %c0_120, %c0_121, %c1_122, %c0_123, %c0_124], %106 {strides = array<i32>} : memref<1x1x1x4x2x32xbf16, #tpu.memory_space<vmem>>, vector<1x1x1x1x2x32xbf16>,
    %cst_125 = arith.constant 0.000000e+00 : f32
    %107 = vector.broadcast %cst_125 : f32 to vector<2x32xf32>
    %c0_126 = arith.constant 0 : index
    %c2_127 = arith.constant 2 : index
    %c0_128 = arith.constant 0 : index
    %c0_129 = arith.constant 0 : index
    %c0_130 = arith.constant 0 : index
    %108 = vector.load %arg6[%c0_126, %c2_127, %c0_128, %c0_129, %c0_130] : memref<1x4x4x32x32xbf16, #tpu.memory_space<vmem>>, vector<1x1x1x32x32xbf16>
    %109 = vector.shape_cast %108 : vector<1x1x1x32x32xbf16> to vector<32x32xbf16>
    %cst_131 = arith.constant dense<0.000000e+00> : vector<2x32xf32>
    %110 = tpu.matmul %15, %109, %cst_131 {dimension_numbers = #tpu.dot_dimension_numbers<[1], [0], [0], [1], [0, 0, 1, 1], [], []>} : vector<2x32xbf16>, vector<32x32xbf16>, vector<2x32xf32> -> vector<2x32xf32>
    %111 = arith.addf %107, %110 : vector<2x32xf32>
    %c0_132 = arith.constant 0 : index
    %c2_133 = arith.constant 2 : index
    %c1_134 = arith.constant 1 : index
    %c0_135 = arith.constant 0 : index
    %c0_136 = arith.constant 0 : index
    %112 = vector.load %arg6[%c0_132, %c2_133, %c1_134, %c0_135, %c0_136] : memref<1x4x4x32x32xbf16, #tpu.memory_space<vmem>>, vector<1x1x1x32x32xbf16>
    %113 = vector.shape_cast %112 : vector<1x1x1x32x32xbf16> to vector<32x32xbf16>
    %cst_137 = arith.constant dense<0.000000e+00> : vector<2x32xf32>
    %114 = tpu.matmul %19, %113, %cst_137 {dimension_numbers = #tpu.dot_dimension_numbers<[1], [0], [0], [1], [0, 0, 1, 1], [], []>} : vector<2x32xbf16>, vector<32x32xbf16>, vector<2x32xf32> -> vector<2x32xf32>
    %115 = arith.addf %111, %114 : vector<2x32xf32>
    %c0_138 = arith.constant 0 : index
    %c2_139 = arith.constant 2 : index
    %c2_140 = arith.constant 2 : index
    %c0_141 = arith.constant 0 : index
    %c0_142 = arith.constant 0 : index
    %116 = vector.load %arg6[%c0_138, %c2_139, %c2_140, %c0_141, %c0_142] : memref<1x4x4x32x32xbf16, #tpu.memory_space<vmem>>, vector<1x1x1x32x32xbf16>
    %117 = vector.shape_cast %116 : vector<1x1x1x32x32xbf16> to vector<32x32xbf16>
    %cst_143 = arith.constant dense<0.000000e+00> : vector<2x32xf32>
    %118 = tpu.matmul %27, %117, %cst_143 {dimension_numbers = #tpu.dot_dimension_numbers<[1], [0], [0], [1], [0, 0, 1, 1], [], []>} : vector<2x32xbf16>, vector<32x32xbf16>, vector<2x32xf32> -> vector<2x32xf32>
    %119 = arith.addf %115, %118 : vector<2x32xf32>
    %c0_144 = arith.constant 0 : index
    %c2_145 = arith.constant 2 : index
    %c3_146 = arith.constant 3 : index
    %c0_147 = arith.constant 0 : index
    %c0_148 = arith.constant 0 : index
    %120 = vector.load %arg6[%c0_144, %c2_145, %c3_146, %c0_147, %c0_148] : memref<1x4x4x32x32xbf16, #tpu.memory_space<vmem>>, vector<1x1x1x32x32xbf16>
    %121 = vector.shape_cast %120 : vector<1x1x1x32x32xbf16> to vector<32x32xbf16>
    %cst_149 = arith.constant dense<0.000000e+00> : vector<2x32xf32>
    %122 = tpu.matmul %31, %121, %cst_149 {dimension_numbers = #tpu.dot_dimension_numbers<[1], [0], [0], [1], [0, 0, 1, 1], [], []>} : vector<2x32xbf16>, vector<32x32xbf16>, vector<2x32xf32> -> vector<2x32xf32>
    %123 = arith.addf %119, %122 : vector<2x32xf32>
    %cst_150 = arith.constant dense<0.000000e+00> : vector<32xf32>
    %124 = vector.multi_reduction <add>, %123, %cst_150 [0] : vector<2x32xf32> to vector<32xf32>
    %125 = vector.shape_cast %124 : vector<32xf32> to vector<1x32xf32>
    %126 = arith.addf %94, %125 : vector<1x32xf32>
    %127 = arith.mulf %123, %123 : vector<2x32xf32>
    %cst_151 = arith.constant dense<0.000000e+00> : vector<32xf32>
    %128 = vector.multi_reduction <add>, %127, %cst_151 [0] : vector<2x32xf32> to vector<32xf32>
    %129 = vector.shape_cast %128 : vector<32xf32> to vector<1x32xf32>
    %130 = arith.addf %98, %129 : vector<1x32xf32>
    %c0_152 = arith.constant 0 : index
    %c0_153 = arith.constant 0 : index
    %c0_154 = arith.constant 0 : index
    %131 = vector.load %arg7[%c0_152, %c0_153, %c0_154] : memref<1x1x32xf32, #tpu.memory_space<vmem>>, vector<1x1x32xf32>
    %132 = vector.shape_cast %131 : vector<1x1x32xf32> to vector<1x32xf32>
    %133 = vector.broadcast %132 : vector<1x32xf32> to vector<2x32xf32>
    %134 = arith.addf %123, %133 : vector<2x32xf32>
    %135 = arith.truncf %134 : vector<2x32xf32> to vector<2x32xbf16>
    %c0_155 = arith.constant 0 : index
    %c0_156 = arith.constant 0 : index
    %c0_157 = arith.constant 0 : index
    %c2_158 = arith.constant 2 : index
    %c0_159 = arith.constant 0 : index
    %c0_160 = arith.constant 0 : index
    %136 = vector.load %arg8[%c0_155, %c0_156, %c0_157, %c2_158, %c0_159, %c0_160] : memref<1x1x1x4x2x32xbf16, #tpu.memory_space<vmem>>, vector<1x1x1x1x2x32xbf16>
    %137 = vector.shape_cast %136 : vector<1x1x1x1x2x32xbf16> to vector<2x32xbf16>
    %138 = vector.shape_cast %135 : vector<2x32xbf16> to vector<1x1x1x1x2x32xbf16>
    tpu.vector_store %arg8[%c0_155, %c0_156, %c0_157, %c2_158, %c0_159, %c0_160], %138 {strides = array<i32>} : memref<1x1x1x4x2x32xbf16, #tpu.memory_space<vmem>>, vector<1x1x1x1x2x32xbf16>,
    %cst_161 = arith.constant 0.000000e+00 : f32
    %139 = vector.broadcast %cst_161 : f32 to vector<2x32xf32>
    %c0_162 = arith.constant 0 : index
    %c3_163 = arith.constant 3 : index
    %c0_164 = arith.constant 0 : index
    %c0_165 = arith.constant 0 : index
    %c0_166 = arith.constant 0 : index
    %140 = vector.load %arg6[%c0_162, %c3_163, %c0_164, %c0_165, %c0_166] : memref<1x4x4x32x32xbf16, #tpu.memory_space<vmem>>, vector<1x1x1x32x32xbf16>
    %141 = vector.shape_cast %140 : vector<1x1x1x32x32xbf16> to vector<32x32xbf16>
    %cst_167 = arith.constant dense<0.000000e+00> : vector<2x32xf32>
    %142 = tpu.matmul %19, %141, %cst_167 {dimension_numbers = #tpu.dot_dimension_numbers<[1], [0], [0], [1], [0, 0, 1, 1], [], []>} : vector<2x32xbf16>, vector<32x32xbf16>, vector<2x32xf32> -> vector<2x32xf32>
    %143 = arith.addf %139, %142 : vector<2x32xf32>
    %c0_168 = arith.constant 0 : index
    %c3_169 = arith.constant 3 : index
    %c1_170 = arith.constant 1 : index
    %c0_171 = arith.constant 0 : index
    %c0_172 = arith.constant 0 : index
    %144 = vector.load %arg6[%c0_168, %c3_169, %c1_170, %c0_171, %c0_172] : memref<1x4x4x32x32xbf16, #tpu.memory_space<vmem>>, vector<1x1x1x32x32xbf16>
    %145 = vector.shape_cast %144 : vector<1x1x1x32x32xbf16> to vector<32x32xbf16>
    %cst_173 = arith.constant dense<0.000000e+00> : vector<2x32xf32>
    %146 = tpu.matmul %23, %145, %cst_173 {dimension_numbers = #tpu.dot_dimension_numbers<[1], [0], [0], [1], [0, 0, 1, 1], [], []>} : vector<2x32xbf16>, vector<32x32xbf16>, vector<2x32xf32> -> vector<2x32xf32>
    %147 = arith.addf %143, %146 : vector<2x32xf32>
    %c0_174 = arith.constant 0 : index
    %c3_175 = arith.constant 3 : index
    %c2_176 = arith.constant 2 : index
    %c0_177 = arith.constant 0 : index
    %c0_178 = arith.constant 0 : index
    %148 = vector.load %arg6[%c0_174, %c3_175, %c2_176, %c0_177, %c0_178] : memref<1x4x4x32x32xbf16, #tpu.memory_space<vmem>>, vector<1x1x1x32x32xbf16>
    %149 = vector.shape_cast %148 : vector<1x1x1x32x32xbf16> to vector<32x32xbf16>
    %cst_179 = arith.constant dense<0.000000e+00> : vector<2x32xf32>
    %150 = tpu.matmul %31, %149, %cst_179 {dimension_numbers = #tpu.dot_dimension_numbers<[1], [0], [0], [1], [0, 0, 1, 1], [], []>} : vector<2x32xbf16>, vector<32x32xbf16>, vector<2x32xf32> -> vector<2x32xf32>
    %151 = arith.addf %147, %150 : vector<2x32xf32>
    %c0_180 = arith.constant 0 : index
    %c3_181 = arith.constant 3 : index
    %c3_182 = arith.constant 3 : index
    %c0_183 = arith.constant 0 : index
    %c0_184 = arith.constant 0 : index
    %152 = vector.load %arg6[%c0_180, %c3_181, %c3_182, %c0_183, %c0_184] : memref<1x4x4x32x32xbf16, #tpu.memory_space<vmem>>, vector<1x1x1x32x32xbf16>
    %153 = vector.shape_cast %152 : vector<1x1x1x32x32xbf16> to vector<32x32xbf16>
    %cst_185 = arith.constant dense<0.000000e+00> : vector<2x32xf32>
    %154 = tpu.matmul %35, %153, %cst_185 {dimension_numbers = #tpu.dot_dimension_numbers<[1], [0], [0], [1], [0, 0, 1, 1], [], []>} : vector<2x32xbf16>, vector<32x32xbf16>, vector<2x32xf32> -> vector<2x32xf32>
    %155 = arith.addf %151, %154 : vector<2x32xf32>
    %cst_186 = arith.constant dense<0.000000e+00> : vector<32xf32>
    %156 = vector.multi_reduction <add>, %155, %cst_186 [0] : vector<2x32xf32> to vector<32xf32>
    %157 = vector.shape_cast %156 : vector<32xf32> to vector<1x32xf32>
    %158 = arith.addf %126, %157 : vector<1x32xf32>
    %159 = arith.mulf %155, %155 : vector<2x32xf32>
    %cst_187 = arith.constant dense<0.000000e+00> : vector<32xf32>
    %160 = vector.multi_reduction <add>, %159, %cst_187 [0] : vector<2x32xf32> to vector<32xf32>
    %161 = vector.shape_cast %160 : vector<32xf32> to vector<1x32xf32>
    %162 = arith.addf %130, %161 : vector<1x32xf32>
    %c0_188 = arith.constant 0 : index
    %c0_189 = arith.constant 0 : index
    %c0_190 = arith.constant 0 : index
    %163 = vector.load %arg7[%c0_188, %c0_189, %c0_190] : memref<1x1x32xf32, #tpu.memory_space<vmem>>, vector<1x1x32xf32>
    %164 = vector.shape_cast %163 : vector<1x1x32xf32> to vector<1x32xf32>
    %165 = vector.broadcast %164 : vector<1x32xf32> to vector<2x32xf32>
    %166 = arith.addf %155, %165 : vector<2x32xf32>
    %167 = arith.truncf %166 : vector<2x32xf32> to vector<2x32xbf16>
    %c0_191 = arith.constant 0 : index
    %c0_192 = arith.constant 0 : index
    %c0_193 = arith.constant 0 : index
    %c3_194 = arith.constant 3 : index
    %c0_195 = arith.constant 0 : index
    %c0_196 = arith.constant 0 : index
    %168 = vector.load %arg8[%c0_191, %c0_192, %c0_193, %c3_194, %c0_195, %c0_196] : memref<1x1x1x4x2x32xbf16, #tpu.memory_space<vmem>>, vector<1x1x1x1x2x32xbf16>
    %169 = vector.shape_cast %168 : vector<1x1x1x1x2x32xbf16> to vector<2x32xbf16>
    %170 = vector.shape_cast %167 : vector<2x32xbf16> to vector<1x1x1x1x2x32xbf16>
    tpu.vector_store %arg8[%c0_191, %c0_192, %c0_193, %c3_194, %c0_195, %c0_196], %170 {strides = array<i32>} : memref<1x1x1x4x2x32xbf16, #tpu.memory_space<vmem>>, vector<1x1x1x1x2x32xbf16>,
    %c0_197 = arith.constant 0 : index
    %c0_198 = arith.constant 0 : index
    %c0_199 = arith.constant 0 : index
    %171 = vector.load %arg9[%c0_197, %c0_198, %c0_199] : memref<1x1x32xf32, #tpu.memory_space<vmem>>, vector<1x1x32xf32>
    %172 = vector.shape_cast %171 : vector<1x1x32xf32> to vector<1x32xf32>
    %173 = arith.addf %172, %158 : vector<1x32xf32>
    %c0_200 = arith.constant 0 : index
    %c0_201 = arith.constant 0 : index
    %c0_202 = arith.constant 0 : index
    %174 = vector.load %arg9[%c0_200, %c0_201, %c0_202] : memref<1x1x32xf32, #tpu.memory_space<vmem>>, vector<1x1x32xf32>
    %175 = vector.shape_cast %174 : vector<1x1x32xf32> to vector<1x32xf32>
    %176 = vector.shape_cast %173 : vector<1x32xf32> to vector<1x1x32xf32>
    tpu.vector_store %arg9[%c0_200, %c0_201, %c0_202], %176 {strides = array<i32>} : memref<1x1x32xf32, #tpu.memory_space<vmem>>, vector<1x1x32xf32>,
    %c0_203 = arith.constant 0 : index
    %c0_204 = arith.constant 0 : index
    %c0_205 = arith.constant 0 : index
    %177 = vector.load %arg10[%c0_203, %c0_204, %c0_205] : memref<1x1x32xf32, #tpu.memory_space<vmem>>, vector<1x1x32xf32>
    %178 = vector.shape_cast %177 : vector<1x1x32xf32> to vector<1x32xf32>
    %179 = arith.addf %178, %162 : vector<1x32xf32>
    %c0_206 = arith.constant 0 : index
    %c0_207 = arith.constant 0 : index
    %c0_208 = arith.constant 0 : index
    %180 = vector.load %arg10[%c0_206, %c0_207, %c0_208] : memref<1x1x32xf32, #tpu.memory_space<vmem>>, vector<1x1x32xf32>
    %181 = vector.shape_cast %180 : vector<1x1x32xf32> to vector<1x32xf32>
    %182 = vector.shape_cast %179 : vector<1x32xf32> to vector<1x1x32xf32>
    tpu.vector_store %arg10[%c0_206, %c0_207, %c0_208], %182 {strides = array<i32>} : memref<1x1x32xf32, #tpu.memory_space<vmem>>, vector<1x1x32xf32>,
    return
  }
  func.func @transform_0(%arg0: i32, %arg1: i32, %arg2: i32) -> (i32, i32, i32, i32, i32) {
    %c0_i32 = arith.constant 0 : i32
    %0 = arith.addi %arg2, %c0_i32 : i32
    %c0_i32_0 = arith.constant 0 : i32
    %c0_i32_1 = arith.constant 0 : i32
    %c0_i32_2 = arith.constant 0 : i32
    return %arg0, %arg1, %0, %c0_i32_0, %c0_i32_1 : i32, i32, i32, i32, i32
  }
  func.func @transform_1(%arg0: i32, %arg1: i32, %arg2: i32) -> (i32, i32, i32, i32, i32) {
    %c1_i32 = arith.constant 1 : i32
    %0 = arith.addi %arg2, %c1_i32 : i32
    %c0_i32 = arith.constant 0 : i32
    %c0_i32_0 = arith.constant 0 : i32
    %c0_i32_1 = arith.constant 0 : i32
    return %arg0, %arg1, %0, %c0_i32, %c0_i32_0 : i32, i32, i32, i32, i32
  }
  func.func @transform_2(%arg0: i32, %arg1: i32, %arg2: i32) -> (i32, i32, i32, i32, i32) {
    %c2_i32 = arith.constant 2 : i32
    %0 = arith.addi %arg2, %c2_i32 : i32
    %c0_i32 = arith.constant 0 : i32
    %c0_i32_0 = arith.constant 0 : i32
    %c0_i32_1 = arith.constant 0 : i32
    return %arg0, %arg1, %0, %c0_i32, %c0_i32_0 : i32, i32, i32, i32, i32
  }
  func.func @transform_3(%arg0: i32, %arg1: i32, %arg2: i32) -> (i32, i32, i32, i32, i32) {
    %c0_i32 = arith.constant 0 : i32
    %c0_i32_0 = arith.constant 0 : i32
    %c0_i32_1 = arith.constant 0 : i32
    %c0_i32_2 = arith.constant 0 : i32
    %c0_i32_3 = arith.constant 0 : i32
    return %arg0, %c0_i32, %c0_i32_0, %c0_i32_1, %c0_i32_2 : i32, i32, i32, i32, i32
  }
  func.func @transform_4(%arg0: i32, %arg1: i32, %arg2: i32) -> (i32, i32, i32) {
    %c0_i32 = arith.constant 0 : i32
    %c0_i32_0 = arith.constant 0 : i32
    %c0_i32_1 = arith.constant 0 : i32
    return %arg0, %c0_i32, %c0_i32_0 : i32, i32, i32
  }
  func.func @transform_5(%arg0: i32, %arg1: i32, %arg2: i32) -> (i32, i32, i32, i32, i32, i32) {
    %c0_i32 = arith.constant 0 : i32
    %c0_i32_0 = arith.constant 0 : i32
    %c0_i32_1 = arith.constant 0 : i32
    %c0_i32_2 = arith.constant 0 : i32
    return %arg0, %arg1, %arg2, %c0_i32, %c0_i32_0, %c0_i32_1 : i32, i32, i32, i32, i32, i32
  }
  func.func @transform_6(%arg0: i32, %arg1: i32, %arg2: i32) -> (i32, i32, i32) {
    %c0_i32 = arith.constant 0 : i32
    %c0_i32_0 = arith.constant 0 : i32
    %c0_i32_1 = arith.constant 0 : i32
    return %arg0, %c0_i32, %c0_i32_0 : i32, i32, i32
  }
  func.func @transform_7(%arg0: i32, %arg1: i32, %arg2: i32) -> (i32, i32, i32) {
    %c0_i32 = arith.constant 0 : i32
    %c0_i32_0 = arith.constant 0 : i32
    %c0_i32_1 = arith.constant 0 : i32
    return %arg0, %c0_i32, %c0_i32_0 : i32, i32, i32
  }
}

module attributes {stable_mosaic.version = 11 : i64} {
  func.func @_up_kernel(%arg0: i32, %arg1: i32, %arg2: i32, %arg3: memref<1x1x1x6x32xbf16, #tpu.memory_space<vmem>>, %arg4: memref<1x1x1x6x32xbf16, #tpu.memory_space<vmem>>, %arg5: memref<1x1x1x6x32xbf16, #tpu.memory_space<vmem>>, %arg6: memref<1x4x4x32x8xbf16, #tpu.memory_space<vmem>>, %arg7: memref<1x1x8xf32, #tpu.memory_space<vmem>>, %arg8: memref<1x1x1x4x4x8xbf16, #tpu.memory_space<vmem>>, %arg9: memref<1x1x8xf32, #tpu.memory_space<vmem>>, %arg10: memref<1x1x8xf32, #tpu.memory_space<vmem>>) attributes {dimension_semantics = [#tpu.dimension_semantics<parallel>, #tpu.dimension_semantics<arbitrary>, #tpu.dimension_semantics<arbitrary>], iteration_bounds = array<i64: 2, 2, 4>, scalar_prefetch = 0 : i64, scratch_operands = 0 : i64, tpu.core_type = #tpu.core_type<tc>, window_params = [{transform_indices = @transform_0, window_bounds = array<i64: 1, 1, 1, 6, 32>}, {transform_indices = @transform_1, window_bounds = array<i64: 1, 1, 1, 6, 32>}, {transform_indices = @transform_2, window_bounds = array<i64: 1, 1, 1, 6, 32>}, {transform_indices = @transform_3, window_bounds = array<i64: 1, 4, 4, 32, 8>}, {transform_indices = @transform_4, window_bounds = array<i64: 1, 1, 8>}, {transform_indices = @transform_5, window_bounds = array<i64: 1, 1, 1, 4, 4, 8>}, {transform_indices = @transform_6, window_bounds = array<i64: 1, 1, 8>}, {transform_indices = @transform_7, window_bounds = array<i64: 1, 1, 8>}]} {
    %c0 = arith.constant 0 : index
    %c0_0 = arith.constant 0 : index
    %c0_1 = arith.constant 0 : index
    %c0_2 = arith.constant 0 : index
    %c0_3 = arith.constant 0 : index
    %0 = vector.load %arg3[%c0, %c0_0, %c0_1, %c0_2, %c0_3] : memref<1x1x1x6x32xbf16, #tpu.memory_space<vmem>>, vector<1x1x1x4x32xbf16>
    %1 = vector.shape_cast %0 : vector<1x1x1x4x32xbf16> to vector<4x32xbf16>
    %cst = arith.constant 0.000000e+00 : bf16
    %2 = vector.broadcast %cst : bf16 to vector<4x32xbf16>
    %3 = arith.maximumf %1, %2 : vector<4x32xbf16>
    %c0_4 = arith.constant 0 : index
    %c0_5 = arith.constant 0 : index
    %c0_6 = arith.constant 0 : index
    %c1 = arith.constant 1 : index
    %c0_7 = arith.constant 0 : index
    %4 = vector.load %arg3[%c0_4, %c0_5, %c0_6, %c1, %c0_7] : memref<1x1x1x6x32xbf16, #tpu.memory_space<vmem>>, vector<1x1x1x4x32xbf16>
    %5 = vector.shape_cast %4 : vector<1x1x1x4x32xbf16> to vector<4x32xbf16>
    %cst_8 = arith.constant 0.000000e+00 : bf16
    %6 = vector.broadcast %cst_8 : bf16 to vector<4x32xbf16>
    %7 = arith.maximumf %5, %6 : vector<4x32xbf16>
    %c0_9 = arith.constant 0 : index
    %c0_10 = arith.constant 0 : index
    %c0_11 = arith.constant 0 : index
    %c2 = arith.constant 2 : index
    %c0_12 = arith.constant 0 : index
    %8 = vector.load %arg3[%c0_9, %c0_10, %c0_11, %c2, %c0_12] : memref<1x1x1x6x32xbf16, #tpu.memory_space<vmem>>, vector<1x1x1x4x32xbf16>
    %9 = vector.shape_cast %8 : vector<1x1x1x4x32xbf16> to vector<4x32xbf16>
    %cst_13 = arith.constant 0.000000e+00 : bf16
    %10 = vector.broadcast %cst_13 : bf16 to vector<4x32xbf16>
    %11 = arith.maximumf %9, %10 : vector<4x32xbf16>
    %c0_14 = arith.constant 0 : index
    %c0_15 = arith.constant 0 : index
    %c0_16 = arith.constant 0 : index
    %c0_17 = arith.constant 0 : index
    %c0_18 = arith.constant 0 : index
    %12 = vector.load %arg4[%c0_14, %c0_15, %c0_16, %c0_17, %c0_18] : memref<1x1x1x6x32xbf16, #tpu.memory_space<vmem>>, vector<1x1x1x4x32xbf16>
    %13 = vector.shape_cast %12 : vector<1x1x1x4x32xbf16> to vector<4x32xbf16>
    %cst_19 = arith.constant 0.000000e+00 : bf16
    %14 = vector.broadcast %cst_19 : bf16 to vector<4x32xbf16>
    %15 = arith.maximumf %13, %14 : vector<4x32xbf16>
    %c0_20 = arith.constant 0 : index
    %c0_21 = arith.constant 0 : index
    %c0_22 = arith.constant 0 : index
    %c1_23 = arith.constant 1 : index
    %c0_24 = arith.constant 0 : index
    %16 = vector.load %arg4[%c0_20, %c0_21, %c0_22, %c1_23, %c0_24] : memref<1x1x1x6x32xbf16, #tpu.memory_space<vmem>>, vector<1x1x1x4x32xbf16>
    %17 = vector.shape_cast %16 : vector<1x1x1x4x32xbf16> to vector<4x32xbf16>
    %cst_25 = arith.constant 0.000000e+00 : bf16
    %18 = vector.broadcast %cst_25 : bf16 to vector<4x32xbf16>
    %19 = arith.maximumf %17, %18 : vector<4x32xbf16>
    %c0_26 = arith.constant 0 : index
    %c0_27 = arith.constant 0 : index
    %c0_28 = arith.constant 0 : index
    %c2_29 = arith.constant 2 : index
    %c0_30 = arith.constant 0 : index
    %20 = vector.load %arg4[%c0_26, %c0_27, %c0_28, %c2_29, %c0_30] : memref<1x1x1x6x32xbf16, #tpu.memory_space<vmem>>, vector<1x1x1x4x32xbf16>
    %21 = vector.shape_cast %20 : vector<1x1x1x4x32xbf16> to vector<4x32xbf16>
    %cst_31 = arith.constant 0.000000e+00 : bf16
    %22 = vector.broadcast %cst_31 : bf16 to vector<4x32xbf16>
    %23 = arith.maximumf %21, %22 : vector<4x32xbf16>
    %c0_32 = arith.constant 0 : index
    %c0_33 = arith.constant 0 : index
    %c0_34 = arith.constant 0 : index
    %c0_35 = arith.constant 0 : index
    %c0_36 = arith.constant 0 : index
    %24 = vector.load %arg5[%c0_32, %c0_33, %c0_34, %c0_35, %c0_36] : memref<1x1x1x6x32xbf16, #tpu.memory_space<vmem>>, vector<1x1x1x4x32xbf16>
    %25 = vector.shape_cast %24 : vector<1x1x1x4x32xbf16> to vector<4x32xbf16>
    %cst_37 = arith.constant 0.000000e+00 : bf16
    %26 = vector.broadcast %cst_37 : bf16 to vector<4x32xbf16>
    %27 = arith.maximumf %25, %26 : vector<4x32xbf16>
    %c0_38 = arith.constant 0 : index
    %c0_39 = arith.constant 0 : index
    %c0_40 = arith.constant 0 : index
    %c1_41 = arith.constant 1 : index
    %c0_42 = arith.constant 0 : index
    %28 = vector.load %arg5[%c0_38, %c0_39, %c0_40, %c1_41, %c0_42] : memref<1x1x1x6x32xbf16, #tpu.memory_space<vmem>>, vector<1x1x1x4x32xbf16>
    %29 = vector.shape_cast %28 : vector<1x1x1x4x32xbf16> to vector<4x32xbf16>
    %cst_43 = arith.constant 0.000000e+00 : bf16
    %30 = vector.broadcast %cst_43 : bf16 to vector<4x32xbf16>
    %31 = arith.maximumf %29, %30 : vector<4x32xbf16>
    %c0_44 = arith.constant 0 : index
    %c0_45 = arith.constant 0 : index
    %c0_46 = arith.constant 0 : index
    %c2_47 = arith.constant 2 : index
    %c0_48 = arith.constant 0 : index
    %32 = vector.load %arg5[%c0_44, %c0_45, %c0_46, %c2_47, %c0_48] : memref<1x1x1x6x32xbf16, #tpu.memory_space<vmem>>, vector<1x1x1x4x32xbf16>
    %33 = vector.shape_cast %32 : vector<1x1x1x4x32xbf16> to vector<4x32xbf16>
    %cst_49 = arith.constant 0.000000e+00 : bf16
    %34 = vector.broadcast %cst_49 : bf16 to vector<4x32xbf16>
    %35 = arith.maximumf %33, %34 : vector<4x32xbf16>
    %c0_i32 = arith.constant 0 : i32
    %36 = arith.cmpi eq, %arg1, %c0_i32 : i32
    %c0_i32_50 = arith.constant 0 : i32
    %37 = arith.cmpi eq, %arg2, %c0_i32_50 : i32
    %38 = arith.andi %36, %37 : i1
    %39 = arith.extui %38 : i1 to i32
    %c0_i32_51 = arith.constant 0 : i32
    %40 = arith.cmpi ne, %39, %c0_i32_51 : i32
    scf.if %40 {
      %cst_209 = arith.constant 0.000000e+00 : f32
      %183 = vector.broadcast %cst_209 : f32 to vector<1x8xf32>
      %c0_210 = arith.constant 0 : index
      %c0_211 = arith.constant 0 : index
      %c0_212 = arith.constant 0 : index
      %184 = vector.load %arg9[%c0_210, %c0_211, %c0_212] : memref<1x1x8xf32, #tpu.memory_space<vmem>>, vector<1x1x8xf32>
      %185 = vector.shape_cast %184 : vector<1x1x8xf32> to vector<1x8xf32>
      %186 = vector.shape_cast %183 : vector<1x8xf32> to vector<1x1x8xf32>
      tpu.vector_store %arg9[%c0_210, %c0_211, %c0_212], %186 {strides = array<i32>} : memref<1x1x8xf32, #tpu.memory_space<vmem>>, vector<1x1x8xf32>,
      %cst_213 = arith.constant 0.000000e+00 : f32
      %187 = vector.broadcast %cst_213 : f32 to vector<1x8xf32>
      %c0_214 = arith.constant 0 : index
      %c0_215 = arith.constant 0 : index
      %c0_216 = arith.constant 0 : index
      %188 = vector.load %arg10[%c0_214, %c0_215, %c0_216] : memref<1x1x8xf32, #tpu.memory_space<vmem>>, vector<1x1x8xf32>
      %189 = vector.shape_cast %188 : vector<1x1x8xf32> to vector<1x8xf32>
      %190 = vector.shape_cast %187 : vector<1x8xf32> to vector<1x1x8xf32>
      tpu.vector_store %arg10[%c0_214, %c0_215, %c0_216], %190 {strides = array<i32>} : memref<1x1x8xf32, #tpu.memory_space<vmem>>, vector<1x1x8xf32>,
    } else {
    }
    %cst_52 = arith.constant 0.000000e+00 : f32
    %41 = vector.broadcast %cst_52 : f32 to vector<1x8xf32>
    %cst_53 = arith.constant 0.000000e+00 : f32
    %42 = vector.broadcast %cst_53 : f32 to vector<1x8xf32>
    %cst_54 = arith.constant 0.000000e+00 : f32
    %43 = vector.broadcast %cst_54 : f32 to vector<4x8xf32>
    %c0_55 = arith.constant 0 : index
    %c0_56 = arith.constant 0 : index
    %c0_57 = arith.constant 0 : index
    %c0_58 = arith.constant 0 : index
    %c0_59 = arith.constant 0 : index
    %44 = vector.load %arg6[%c0_55, %c0_56, %c0_57, %c0_58, %c0_59] : memref<1x4x4x32x8xbf16, #tpu.memory_space<vmem>>, vector<1x1x1x32x8xbf16>
    %45 = vector.shape_cast %44 : vector<1x1x1x32x8xbf16> to vector<32x8xbf16>
    %cst_60 = arith.constant dense<0.000000e+00> : vector<4x8xf32>
    %46 = tpu.matmul %3, %45, %cst_60 {dimension_numbers = #tpu.dot_dimension_numbers<[1], [0], [0], [1], [0, 0, 1, 1], [], []>} : vector<4x32xbf16>, vector<32x8xbf16>, vector<4x8xf32> -> vector<4x8xf32>
    %47 = arith.addf %43, %46 : vector<4x8xf32>
    %c0_61 = arith.constant 0 : index
    %c0_62 = arith.constant 0 : index
    %c1_63 = arith.constant 1 : index
    %c0_64 = arith.constant 0 : index
    %c0_65 = arith.constant 0 : index
    %48 = vector.load %arg6[%c0_61, %c0_62, %c1_63, %c0_64, %c0_65] : memref<1x4x4x32x8xbf16, #tpu.memory_space<vmem>>, vector<1x1x1x32x8xbf16>
    %49 = vector.shape_cast %48 : vector<1x1x1x32x8xbf16> to vector<32x8xbf16>
    %cst_66 = arith.constant dense<0.000000e+00> : vector<4x8xf32>
    %50 = tpu.matmul %7, %49, %cst_66 {dimension_numbers = #tpu.dot_dimension_numbers<[1], [0], [0], [1], [0, 0, 1, 1], [], []>} : vector<4x32xbf16>, vector<32x8xbf16>, vector<4x8xf32> -> vector<4x8xf32>
    %51 = arith.addf %47, %50 : vector<4x8xf32>
    %c0_67 = arith.constant 0 : index
    %c0_68 = arith.constant 0 : index
    %c2_69 = arith.constant 2 : index
    %c0_70 = arith.constant 0 : index
    %c0_71 = arith.constant 0 : index
    %52 = vector.load %arg6[%c0_67, %c0_68, %c2_69, %c0_70, %c0_71] : memref<1x4x4x32x8xbf16, #tpu.memory_space<vmem>>, vector<1x1x1x32x8xbf16>
    %53 = vector.shape_cast %52 : vector<1x1x1x32x8xbf16> to vector<32x8xbf16>
    %cst_72 = arith.constant dense<0.000000e+00> : vector<4x8xf32>
    %54 = tpu.matmul %15, %53, %cst_72 {dimension_numbers = #tpu.dot_dimension_numbers<[1], [0], [0], [1], [0, 0, 1, 1], [], []>} : vector<4x32xbf16>, vector<32x8xbf16>, vector<4x8xf32> -> vector<4x8xf32>
    %55 = arith.addf %51, %54 : vector<4x8xf32>
    %c0_73 = arith.constant 0 : index
    %c0_74 = arith.constant 0 : index
    %c3 = arith.constant 3 : index
    %c0_75 = arith.constant 0 : index
    %c0_76 = arith.constant 0 : index
    %56 = vector.load %arg6[%c0_73, %c0_74, %c3, %c0_75, %c0_76] : memref<1x4x4x32x8xbf16, #tpu.memory_space<vmem>>, vector<1x1x1x32x8xbf16>
    %57 = vector.shape_cast %56 : vector<1x1x1x32x8xbf16> to vector<32x8xbf16>
    %cst_77 = arith.constant dense<0.000000e+00> : vector<4x8xf32>
    %58 = tpu.matmul %19, %57, %cst_77 {dimension_numbers = #tpu.dot_dimension_numbers<[1], [0], [0], [1], [0, 0, 1, 1], [], []>} : vector<4x32xbf16>, vector<32x8xbf16>, vector<4x8xf32> -> vector<4x8xf32>
    %59 = arith.addf %55, %58 : vector<4x8xf32>
    %cst_78 = arith.constant dense<0.000000e+00> : vector<8xf32>
    %60 = vector.multi_reduction <add>, %59, %cst_78 [0] : vector<4x8xf32> to vector<8xf32>
    %61 = vector.shape_cast %60 : vector<8xf32> to vector<1x8xf32>
    %62 = arith.addf %41, %61 : vector<1x8xf32>
    %63 = arith.mulf %59, %59 : vector<4x8xf32>
    %cst_79 = arith.constant dense<0.000000e+00> : vector<8xf32>
    %64 = vector.multi_reduction <add>, %63, %cst_79 [0] : vector<4x8xf32> to vector<8xf32>
    %65 = vector.shape_cast %64 : vector<8xf32> to vector<1x8xf32>
    %66 = arith.addf %42, %65 : vector<1x8xf32>
    %c0_80 = arith.constant 0 : index
    %c0_81 = arith.constant 0 : index
    %c0_82 = arith.constant 0 : index
    %67 = vector.load %arg7[%c0_80, %c0_81, %c0_82] : memref<1x1x8xf32, #tpu.memory_space<vmem>>, vector<1x1x8xf32>
    %68 = vector.shape_cast %67 : vector<1x1x8xf32> to vector<1x8xf32>
    %69 = vector.broadcast %68 : vector<1x8xf32> to vector<4x8xf32>
    %70 = arith.addf %59, %69 : vector<4x8xf32>
    %71 = arith.truncf %70 : vector<4x8xf32> to vector<4x8xbf16>
    %c0_83 = arith.constant 0 : index
    %c0_84 = arith.constant 0 : index
    %c0_85 = arith.constant 0 : index
    %c0_86 = arith.constant 0 : index
    %c0_87 = arith.constant 0 : index
    %c0_88 = arith.constant 0 : index
    %72 = vector.load %arg8[%c0_83, %c0_84, %c0_85, %c0_86, %c0_87, %c0_88] : memref<1x1x1x4x4x8xbf16, #tpu.memory_space<vmem>>, vector<1x1x1x1x4x8xbf16>
    %73 = vector.shape_cast %72 : vector<1x1x1x1x4x8xbf16> to vector<4x8xbf16>
    %74 = vector.shape_cast %71 : vector<4x8xbf16> to vector<1x1x1x1x4x8xbf16>
    tpu.vector_store %arg8[%c0_83, %c0_84, %c0_85, %c0_86, %c0_87, %c0_88], %74 {strides = array<i32>} : memref<1x1x1x4x4x8xbf16, #tpu.memory_space<vmem>>, vector<1x1x1x1x4x8xbf16>,
    %cst_89 = arith.constant 0.000000e+00 : f32
    %75 = vector.broadcast %cst_89 : f32 to vector<4x8xf32>
    %c0_90 = arith.constant 0 : index
    %c1_91 = arith.constant 1 : index
    %c0_92 = arith.constant 0 : index
    %c0_93 = arith.constant 0 : index
    %c0_94 = arith.constant 0 : index
    %76 = vector.load %arg6[%c0_90, %c1_91, %c0_92, %c0_93, %c0_94] : memref<1x4x4x32x8xbf16, #tpu.memory_space<vmem>>, vector<1x1x1x32x8xbf16>
    %77 = vector.shape_cast %76 : vector<1x1x1x32x8xbf16> to vector<32x8xbf16>
    %cst_95 = arith.constant dense<0.000000e+00> : vector<4x8xf32>
    %78 = tpu.matmul %7, %77, %cst_95 {dimension_numbers = #tpu.dot_dimension_numbers<[1], [0], [0], [1], [0, 0, 1, 1], [], []>} : vector<4x32xbf16>, vector<32x8xbf16>, vector<4x8xf32> -> vector<4x8xf32>
    %79 = arith.addf %75, %78 : vector<4x8xf32>
    %c0_96 = arith.constant 0 : index
    %c1_97 = arith.constant 1 : index
    %c1_98 = arith.constant 1 : index
    %c0_99 = arith.constant 0 : index
    %c0_100 = arith.constant 0 : index
    %80 = vector.load %arg6[%c0_96, %c1_97, %c1_98, %c0_99, %c0_100] : memref<1x4x4x32x8xbf16, #tpu.memory_space<vmem>>, vector<1x1x1x32x8xbf16>
    %81 = vector.shape_cast %80 : vector<1x1x1x32x8xbf16> to vector<32x8xbf16>
    %cst_101 = arith.constant dense<0.000000e+00> : vector<4x8xf32>
    %82 = tpu.matmul %11, %81, %cst_101 {dimension_numbers = #tpu.dot_dimension_numbers<[1], [0], [0], [1], [0, 0, 1, 1], [], []>} : vector<4x32xbf16>, vector<32x8xbf16>, vector<4x8xf32> -> vector<4x8xf32>
    %83 = arith.addf %79, %82 : vector<4x8xf32>
    %c0_102 = arith.constant 0 : index
    %c1_103 = arith.constant 1 : index
    %c2_104 = arith.constant 2 : index
    %c0_105 = arith.constant 0 : index
    %c0_106 = arith.constant 0 : index
    %84 = vector.load %arg6[%c0_102, %c1_103, %c2_104, %c0_105, %c0_106] : memref<1x4x4x32x8xbf16, #tpu.memory_space<vmem>>, vector<1x1x1x32x8xbf16>
    %85 = vector.shape_cast %84 : vector<1x1x1x32x8xbf16> to vector<32x8xbf16>
    %cst_107 = arith.constant dense<0.000000e+00> : vector<4x8xf32>
    %86 = tpu.matmul %19, %85, %cst_107 {dimension_numbers = #tpu.dot_dimension_numbers<[1], [0], [0], [1], [0, 0, 1, 1], [], []>} : vector<4x32xbf16>, vector<32x8xbf16>, vector<4x8xf32> -> vector<4x8xf32>
    %87 = arith.addf %83, %86 : vector<4x8xf32>
    %c0_108 = arith.constant 0 : index
    %c1_109 = arith.constant 1 : index
    %c3_110 = arith.constant 3 : index
    %c0_111 = arith.constant 0 : index
    %c0_112 = arith.constant 0 : index
    %88 = vector.load %arg6[%c0_108, %c1_109, %c3_110, %c0_111, %c0_112] : memref<1x4x4x32x8xbf16, #tpu.memory_space<vmem>>, vector<1x1x1x32x8xbf16>
    %89 = vector.shape_cast %88 : vector<1x1x1x32x8xbf16> to vector<32x8xbf16>
    %cst_113 = arith.constant dense<0.000000e+00> : vector<4x8xf32>
    %90 = tpu.matmul %23, %89, %cst_113 {dimension_numbers = #tpu.dot_dimension_numbers<[1], [0], [0], [1], [0, 0, 1, 1], [], []>} : vector<4x32xbf16>, vector<32x8xbf16>, vector<4x8xf32> -> vector<4x8xf32>
    %91 = arith.addf %87, %90 : vector<4x8xf32>
    %cst_114 = arith.constant dense<0.000000e+00> : vector<8xf32>
    %92 = vector.multi_reduction <add>, %91, %cst_114 [0] : vector<4x8xf32> to vector<8xf32>
    %93 = vector.shape_cast %92 : vector<8xf32> to vector<1x8xf32>
    %94 = arith.addf %62, %93 : vector<1x8xf32>
    %95 = arith.mulf %91, %91 : vector<4x8xf32>
    %cst_115 = arith.constant dense<0.000000e+00> : vector<8xf32>
    %96 = vector.multi_reduction <add>, %95, %cst_115 [0] : vector<4x8xf32> to vector<8xf32>
    %97 = vector.shape_cast %96 : vector<8xf32> to vector<1x8xf32>
    %98 = arith.addf %66, %97 : vector<1x8xf32>
    %c0_116 = arith.constant 0 : index
    %c0_117 = arith.constant 0 : index
    %c0_118 = arith.constant 0 : index
    %99 = vector.load %arg7[%c0_116, %c0_117, %c0_118] : memref<1x1x8xf32, #tpu.memory_space<vmem>>, vector<1x1x8xf32>
    %100 = vector.shape_cast %99 : vector<1x1x8xf32> to vector<1x8xf32>
    %101 = vector.broadcast %100 : vector<1x8xf32> to vector<4x8xf32>
    %102 = arith.addf %91, %101 : vector<4x8xf32>
    %103 = arith.truncf %102 : vector<4x8xf32> to vector<4x8xbf16>
    %c0_119 = arith.constant 0 : index
    %c0_120 = arith.constant 0 : index
    %c0_121 = arith.constant 0 : index
    %c1_122 = arith.constant 1 : index
    %c0_123 = arith.constant 0 : index
    %c0_124 = arith.constant 0 : index
    %104 = vector.load %arg8[%c0_119, %c0_120, %c0_121, %c1_122, %c0_123, %c0_124] : memref<1x1x1x4x4x8xbf16, #tpu.memory_space<vmem>>, vector<1x1x1x1x4x8xbf16>
    %105 = vector.shape_cast %104 : vector<1x1x1x1x4x8xbf16> to vector<4x8xbf16>
    %106 = vector.shape_cast %103 : vector<4x8xbf16> to vector<1x1x1x1x4x8xbf16>
    tpu.vector_store %arg8[%c0_119, %c0_120, %c0_121, %c1_122, %c0_123, %c0_124], %106 {strides = array<i32>} : memref<1x1x1x4x4x8xbf16, #tpu.memory_space<vmem>>, vector<1x1x1x1x4x8xbf16>,
    %cst_125 = arith.constant 0.000000e+00 : f32
    %107 = vector.broadcast %cst_125 : f32 to vector<4x8xf32>
    %c0_126 = arith.constant 0 : index
    %c2_127 = arith.constant 2 : index
    %c0_128 = arith.constant 0 : index
    %c0_129 = arith.constant 0 : index
    %c0_130 = arith.constant 0 : index
    %108 = vector.load %arg6[%c0_126, %c2_127, %c0_128, %c0_129, %c0_130] : memref<1x4x4x32x8xbf16, #tpu.memory_space<vmem>>, vector<1x1x1x32x8xbf16>
    %109 = vector.shape_cast %108 : vector<1x1x1x32x8xbf16> to vector<32x8xbf16>
    %cst_131 = arith.constant dense<0.000000e+00> : vector<4x8xf32>
    %110 = tpu.matmul %15, %109, %cst_131 {dimension_numbers = #tpu.dot_dimension_numbers<[1], [0], [0], [1], [0, 0, 1, 1], [], []>} : vector<4x32xbf16>, vector<32x8xbf16>, vector<4x8xf32> -> vector<4x8xf32>
    %111 = arith.addf %107, %110 : vector<4x8xf32>
    %c0_132 = arith.constant 0 : index
    %c2_133 = arith.constant 2 : index
    %c1_134 = arith.constant 1 : index
    %c0_135 = arith.constant 0 : index
    %c0_136 = arith.constant 0 : index
    %112 = vector.load %arg6[%c0_132, %c2_133, %c1_134, %c0_135, %c0_136] : memref<1x4x4x32x8xbf16, #tpu.memory_space<vmem>>, vector<1x1x1x32x8xbf16>
    %113 = vector.shape_cast %112 : vector<1x1x1x32x8xbf16> to vector<32x8xbf16>
    %cst_137 = arith.constant dense<0.000000e+00> : vector<4x8xf32>
    %114 = tpu.matmul %19, %113, %cst_137 {dimension_numbers = #tpu.dot_dimension_numbers<[1], [0], [0], [1], [0, 0, 1, 1], [], []>} : vector<4x32xbf16>, vector<32x8xbf16>, vector<4x8xf32> -> vector<4x8xf32>
    %115 = arith.addf %111, %114 : vector<4x8xf32>
    %c0_138 = arith.constant 0 : index
    %c2_139 = arith.constant 2 : index
    %c2_140 = arith.constant 2 : index
    %c0_141 = arith.constant 0 : index
    %c0_142 = arith.constant 0 : index
    %116 = vector.load %arg6[%c0_138, %c2_139, %c2_140, %c0_141, %c0_142] : memref<1x4x4x32x8xbf16, #tpu.memory_space<vmem>>, vector<1x1x1x32x8xbf16>
    %117 = vector.shape_cast %116 : vector<1x1x1x32x8xbf16> to vector<32x8xbf16>
    %cst_143 = arith.constant dense<0.000000e+00> : vector<4x8xf32>
    %118 = tpu.matmul %27, %117, %cst_143 {dimension_numbers = #tpu.dot_dimension_numbers<[1], [0], [0], [1], [0, 0, 1, 1], [], []>} : vector<4x32xbf16>, vector<32x8xbf16>, vector<4x8xf32> -> vector<4x8xf32>
    %119 = arith.addf %115, %118 : vector<4x8xf32>
    %c0_144 = arith.constant 0 : index
    %c2_145 = arith.constant 2 : index
    %c3_146 = arith.constant 3 : index
    %c0_147 = arith.constant 0 : index
    %c0_148 = arith.constant 0 : index
    %120 = vector.load %arg6[%c0_144, %c2_145, %c3_146, %c0_147, %c0_148] : memref<1x4x4x32x8xbf16, #tpu.memory_space<vmem>>, vector<1x1x1x32x8xbf16>
    %121 = vector.shape_cast %120 : vector<1x1x1x32x8xbf16> to vector<32x8xbf16>
    %cst_149 = arith.constant dense<0.000000e+00> : vector<4x8xf32>
    %122 = tpu.matmul %31, %121, %cst_149 {dimension_numbers = #tpu.dot_dimension_numbers<[1], [0], [0], [1], [0, 0, 1, 1], [], []>} : vector<4x32xbf16>, vector<32x8xbf16>, vector<4x8xf32> -> vector<4x8xf32>
    %123 = arith.addf %119, %122 : vector<4x8xf32>
    %cst_150 = arith.constant dense<0.000000e+00> : vector<8xf32>
    %124 = vector.multi_reduction <add>, %123, %cst_150 [0] : vector<4x8xf32> to vector<8xf32>
    %125 = vector.shape_cast %124 : vector<8xf32> to vector<1x8xf32>
    %126 = arith.addf %94, %125 : vector<1x8xf32>
    %127 = arith.mulf %123, %123 : vector<4x8xf32>
    %cst_151 = arith.constant dense<0.000000e+00> : vector<8xf32>
    %128 = vector.multi_reduction <add>, %127, %cst_151 [0] : vector<4x8xf32> to vector<8xf32>
    %129 = vector.shape_cast %128 : vector<8xf32> to vector<1x8xf32>
    %130 = arith.addf %98, %129 : vector<1x8xf32>
    %c0_152 = arith.constant 0 : index
    %c0_153 = arith.constant 0 : index
    %c0_154 = arith.constant 0 : index
    %131 = vector.load %arg7[%c0_152, %c0_153, %c0_154] : memref<1x1x8xf32, #tpu.memory_space<vmem>>, vector<1x1x8xf32>
    %132 = vector.shape_cast %131 : vector<1x1x8xf32> to vector<1x8xf32>
    %133 = vector.broadcast %132 : vector<1x8xf32> to vector<4x8xf32>
    %134 = arith.addf %123, %133 : vector<4x8xf32>
    %135 = arith.truncf %134 : vector<4x8xf32> to vector<4x8xbf16>
    %c0_155 = arith.constant 0 : index
    %c0_156 = arith.constant 0 : index
    %c0_157 = arith.constant 0 : index
    %c2_158 = arith.constant 2 : index
    %c0_159 = arith.constant 0 : index
    %c0_160 = arith.constant 0 : index
    %136 = vector.load %arg8[%c0_155, %c0_156, %c0_157, %c2_158, %c0_159, %c0_160] : memref<1x1x1x4x4x8xbf16, #tpu.memory_space<vmem>>, vector<1x1x1x1x4x8xbf16>
    %137 = vector.shape_cast %136 : vector<1x1x1x1x4x8xbf16> to vector<4x8xbf16>
    %138 = vector.shape_cast %135 : vector<4x8xbf16> to vector<1x1x1x1x4x8xbf16>
    tpu.vector_store %arg8[%c0_155, %c0_156, %c0_157, %c2_158, %c0_159, %c0_160], %138 {strides = array<i32>} : memref<1x1x1x4x4x8xbf16, #tpu.memory_space<vmem>>, vector<1x1x1x1x4x8xbf16>,
    %cst_161 = arith.constant 0.000000e+00 : f32
    %139 = vector.broadcast %cst_161 : f32 to vector<4x8xf32>
    %c0_162 = arith.constant 0 : index
    %c3_163 = arith.constant 3 : index
    %c0_164 = arith.constant 0 : index
    %c0_165 = arith.constant 0 : index
    %c0_166 = arith.constant 0 : index
    %140 = vector.load %arg6[%c0_162, %c3_163, %c0_164, %c0_165, %c0_166] : memref<1x4x4x32x8xbf16, #tpu.memory_space<vmem>>, vector<1x1x1x32x8xbf16>
    %141 = vector.shape_cast %140 : vector<1x1x1x32x8xbf16> to vector<32x8xbf16>
    %cst_167 = arith.constant dense<0.000000e+00> : vector<4x8xf32>
    %142 = tpu.matmul %19, %141, %cst_167 {dimension_numbers = #tpu.dot_dimension_numbers<[1], [0], [0], [1], [0, 0, 1, 1], [], []>} : vector<4x32xbf16>, vector<32x8xbf16>, vector<4x8xf32> -> vector<4x8xf32>
    %143 = arith.addf %139, %142 : vector<4x8xf32>
    %c0_168 = arith.constant 0 : index
    %c3_169 = arith.constant 3 : index
    %c1_170 = arith.constant 1 : index
    %c0_171 = arith.constant 0 : index
    %c0_172 = arith.constant 0 : index
    %144 = vector.load %arg6[%c0_168, %c3_169, %c1_170, %c0_171, %c0_172] : memref<1x4x4x32x8xbf16, #tpu.memory_space<vmem>>, vector<1x1x1x32x8xbf16>
    %145 = vector.shape_cast %144 : vector<1x1x1x32x8xbf16> to vector<32x8xbf16>
    %cst_173 = arith.constant dense<0.000000e+00> : vector<4x8xf32>
    %146 = tpu.matmul %23, %145, %cst_173 {dimension_numbers = #tpu.dot_dimension_numbers<[1], [0], [0], [1], [0, 0, 1, 1], [], []>} : vector<4x32xbf16>, vector<32x8xbf16>, vector<4x8xf32> -> vector<4x8xf32>
    %147 = arith.addf %143, %146 : vector<4x8xf32>
    %c0_174 = arith.constant 0 : index
    %c3_175 = arith.constant 3 : index
    %c2_176 = arith.constant 2 : index
    %c0_177 = arith.constant 0 : index
    %c0_178 = arith.constant 0 : index
    %148 = vector.load %arg6[%c0_174, %c3_175, %c2_176, %c0_177, %c0_178] : memref<1x4x4x32x8xbf16, #tpu.memory_space<vmem>>, vector<1x1x1x32x8xbf16>
    %149 = vector.shape_cast %148 : vector<1x1x1x32x8xbf16> to vector<32x8xbf16>
    %cst_179 = arith.constant dense<0.000000e+00> : vector<4x8xf32>
    %150 = tpu.matmul %31, %149, %cst_179 {dimension_numbers = #tpu.dot_dimension_numbers<[1], [0], [0], [1], [0, 0, 1, 1], [], []>} : vector<4x32xbf16>, vector<32x8xbf16>, vector<4x8xf32> -> vector<4x8xf32>
    %151 = arith.addf %147, %150 : vector<4x8xf32>
    %c0_180 = arith.constant 0 : index
    %c3_181 = arith.constant 3 : index
    %c3_182 = arith.constant 3 : index
    %c0_183 = arith.constant 0 : index
    %c0_184 = arith.constant 0 : index
    %152 = vector.load %arg6[%c0_180, %c3_181, %c3_182, %c0_183, %c0_184] : memref<1x4x4x32x8xbf16, #tpu.memory_space<vmem>>, vector<1x1x1x32x8xbf16>
    %153 = vector.shape_cast %152 : vector<1x1x1x32x8xbf16> to vector<32x8xbf16>
    %cst_185 = arith.constant dense<0.000000e+00> : vector<4x8xf32>
    %154 = tpu.matmul %35, %153, %cst_185 {dimension_numbers = #tpu.dot_dimension_numbers<[1], [0], [0], [1], [0, 0, 1, 1], [], []>} : vector<4x32xbf16>, vector<32x8xbf16>, vector<4x8xf32> -> vector<4x8xf32>
    %155 = arith.addf %151, %154 : vector<4x8xf32>
    %cst_186 = arith.constant dense<0.000000e+00> : vector<8xf32>
    %156 = vector.multi_reduction <add>, %155, %cst_186 [0] : vector<4x8xf32> to vector<8xf32>
    %157 = vector.shape_cast %156 : vector<8xf32> to vector<1x8xf32>
    %158 = arith.addf %126, %157 : vector<1x8xf32>
    %159 = arith.mulf %155, %155 : vector<4x8xf32>
    %cst_187 = arith.constant dense<0.000000e+00> : vector<8xf32>
    %160 = vector.multi_reduction <add>, %159, %cst_187 [0] : vector<4x8xf32> to vector<8xf32>
    %161 = vector.shape_cast %160 : vector<8xf32> to vector<1x8xf32>
    %162 = arith.addf %130, %161 : vector<1x8xf32>
    %c0_188 = arith.constant 0 : index
    %c0_189 = arith.constant 0 : index
    %c0_190 = arith.constant 0 : index
    %163 = vector.load %arg7[%c0_188, %c0_189, %c0_190] : memref<1x1x8xf32, #tpu.memory_space<vmem>>, vector<1x1x8xf32>
    %164 = vector.shape_cast %163 : vector<1x1x8xf32> to vector<1x8xf32>
    %165 = vector.broadcast %164 : vector<1x8xf32> to vector<4x8xf32>
    %166 = arith.addf %155, %165 : vector<4x8xf32>
    %167 = arith.truncf %166 : vector<4x8xf32> to vector<4x8xbf16>
    %c0_191 = arith.constant 0 : index
    %c0_192 = arith.constant 0 : index
    %c0_193 = arith.constant 0 : index
    %c3_194 = arith.constant 3 : index
    %c0_195 = arith.constant 0 : index
    %c0_196 = arith.constant 0 : index
    %168 = vector.load %arg8[%c0_191, %c0_192, %c0_193, %c3_194, %c0_195, %c0_196] : memref<1x1x1x4x4x8xbf16, #tpu.memory_space<vmem>>, vector<1x1x1x1x4x8xbf16>
    %169 = vector.shape_cast %168 : vector<1x1x1x1x4x8xbf16> to vector<4x8xbf16>
    %170 = vector.shape_cast %167 : vector<4x8xbf16> to vector<1x1x1x1x4x8xbf16>
    tpu.vector_store %arg8[%c0_191, %c0_192, %c0_193, %c3_194, %c0_195, %c0_196], %170 {strides = array<i32>} : memref<1x1x1x4x4x8xbf16, #tpu.memory_space<vmem>>, vector<1x1x1x1x4x8xbf16>,
    %c0_197 = arith.constant 0 : index
    %c0_198 = arith.constant 0 : index
    %c0_199 = arith.constant 0 : index
    %171 = vector.load %arg9[%c0_197, %c0_198, %c0_199] : memref<1x1x8xf32, #tpu.memory_space<vmem>>, vector<1x1x8xf32>
    %172 = vector.shape_cast %171 : vector<1x1x8xf32> to vector<1x8xf32>
    %173 = arith.addf %172, %158 : vector<1x8xf32>
    %c0_200 = arith.constant 0 : index
    %c0_201 = arith.constant 0 : index
    %c0_202 = arith.constant 0 : index
    %174 = vector.load %arg9[%c0_200, %c0_201, %c0_202] : memref<1x1x8xf32, #tpu.memory_space<vmem>>, vector<1x1x8xf32>
    %175 = vector.shape_cast %174 : vector<1x1x8xf32> to vector<1x8xf32>
    %176 = vector.shape_cast %173 : vector<1x8xf32> to vector<1x1x8xf32>
    tpu.vector_store %arg9[%c0_200, %c0_201, %c0_202], %176 {strides = array<i32>} : memref<1x1x8xf32, #tpu.memory_space<vmem>>, vector<1x1x8xf32>,
    %c0_203 = arith.constant 0 : index
    %c0_204 = arith.constant 0 : index
    %c0_205 = arith.constant 0 : index
    %177 = vector.load %arg10[%c0_203, %c0_204, %c0_205] : memref<1x1x8xf32, #tpu.memory_space<vmem>>, vector<1x1x8xf32>
    %178 = vector.shape_cast %177 : vector<1x1x8xf32> to vector<1x8xf32>
    %179 = arith.addf %178, %162 : vector<1x8xf32>
    %c0_206 = arith.constant 0 : index
    %c0_207 = arith.constant 0 : index
    %c0_208 = arith.constant 0 : index
    %180 = vector.load %arg10[%c0_206, %c0_207, %c0_208] : memref<1x1x8xf32, #tpu.memory_space<vmem>>, vector<1x1x8xf32>
    %181 = vector.shape_cast %180 : vector<1x1x8xf32> to vector<1x8xf32>
    %182 = vector.shape_cast %179 : vector<1x8xf32> to vector<1x1x8xf32>
    tpu.vector_store %arg10[%c0_206, %c0_207, %c0_208], %182 {strides = array<i32>} : memref<1x1x8xf32, #tpu.memory_space<vmem>>, vector<1x1x8xf32>,
    return
  }
  func.func @transform_0(%arg0: i32, %arg1: i32, %arg2: i32) -> (i32, i32, i32, i32, i32) {
    %c0_i32 = arith.constant 0 : i32
    %0 = arith.addi %arg2, %c0_i32 : i32
    %c0_i32_0 = arith.constant 0 : i32
    %c0_i32_1 = arith.constant 0 : i32
    %c0_i32_2 = arith.constant 0 : i32
    return %arg0, %arg1, %0, %c0_i32_0, %c0_i32_1 : i32, i32, i32, i32, i32
  }
  func.func @transform_1(%arg0: i32, %arg1: i32, %arg2: i32) -> (i32, i32, i32, i32, i32) {
    %c1_i32 = arith.constant 1 : i32
    %0 = arith.addi %arg2, %c1_i32 : i32
    %c0_i32 = arith.constant 0 : i32
    %c0_i32_0 = arith.constant 0 : i32
    %c0_i32_1 = arith.constant 0 : i32
    return %arg0, %arg1, %0, %c0_i32, %c0_i32_0 : i32, i32, i32, i32, i32
  }
  func.func @transform_2(%arg0: i32, %arg1: i32, %arg2: i32) -> (i32, i32, i32, i32, i32) {
    %c2_i32 = arith.constant 2 : i32
    %0 = arith.addi %arg2, %c2_i32 : i32
    %c0_i32 = arith.constant 0 : i32
    %c0_i32_0 = arith.constant 0 : i32
    %c0_i32_1 = arith.constant 0 : i32
    return %arg0, %arg1, %0, %c0_i32, %c0_i32_0 : i32, i32, i32, i32, i32
  }
  func.func @transform_3(%arg0: i32, %arg1: i32, %arg2: i32) -> (i32, i32, i32, i32, i32) {
    %c0_i32 = arith.constant 0 : i32
    %c0_i32_0 = arith.constant 0 : i32
    %c0_i32_1 = arith.constant 0 : i32
    %c0_i32_2 = arith.constant 0 : i32
    %c0_i32_3 = arith.constant 0 : i32
    return %arg0, %c0_i32, %c0_i32_0, %c0_i32_1, %c0_i32_2 : i32, i32, i32, i32, i32
  }
  func.func @transform_4(%arg0: i32, %arg1: i32, %arg2: i32) -> (i32, i32, i32) {
    %c0_i32 = arith.constant 0 : i32
    %c0_i32_0 = arith.constant 0 : i32
    %c0_i32_1 = arith.constant 0 : i32
    return %arg0, %c0_i32, %c0_i32_0 : i32, i32, i32
  }
  func.func @transform_5(%arg0: i32, %arg1: i32, %arg2: i32) -> (i32, i32, i32, i32, i32, i32) {
    %c0_i32 = arith.constant 0 : i32
    %c0_i32_0 = arith.constant 0 : i32
    %c0_i32_1 = arith.constant 0 : i32
    %c0_i32_2 = arith.constant 0 : i32
    return %arg0, %arg1, %arg2, %c0_i32, %c0_i32_0, %c0_i32_1 : i32, i32, i32, i32, i32, i32
  }
  func.func @transform_6(%arg0: i32, %arg1: i32, %arg2: i32) -> (i32, i32, i32) {
    %c0_i32 = arith.constant 0 : i32
    %c0_i32_0 = arith.constant 0 : i32
    %c0_i32_1 = arith.constant 0 : i32
    return %arg0, %c0_i32, %c0_i32_0 : i32, i32, i32
  }
  func.func @transform_7(%arg0: i32, %arg1: i32, %arg2: i32) -> (i32, i32, i32) {
    %c0_i32 = arith.constant 0 : i32
    %c0_i32_0 = arith.constant 0 : i32
    %c0_i32_1 = arith.constant 0 : i32
    return %arg0, %c0_i32, %c0_i32_0 : i32, i32, i32
  }
}

module attributes {stable_mosaic.version = 11 : i64} {
  func.func @_up_kernel(%arg0: i32, %arg1: i32, %arg2: i32, %arg3: memref<1x1x1x10x16xbf16, #tpu.memory_space<vmem>>, %arg4: memref<1x1x1x10x16xbf16, #tpu.memory_space<vmem>>, %arg5: memref<1x1x1x10x16xbf16, #tpu.memory_space<vmem>>, %arg6: memref<1x4x4x16x8xbf16, #tpu.memory_space<vmem>>, %arg7: memref<1x1x8xf32, #tpu.memory_space<vmem>>, %arg8: memref<1x1x1x4x8x8xbf16, #tpu.memory_space<vmem>>, %arg9: memref<1x1x8xf32, #tpu.memory_space<vmem>>, %arg10: memref<1x1x8xf32, #tpu.memory_space<vmem>>) attributes {dimension_semantics = [#tpu.dimension_semantics<parallel>, #tpu.dimension_semantics<arbitrary>, #tpu.dimension_semantics<arbitrary>], iteration_bounds = array<i64: 2, 2, 8>, scalar_prefetch = 0 : i64, scratch_operands = 0 : i64, tpu.core_type = #tpu.core_type<tc>, window_params = [{transform_indices = @transform_0, window_bounds = array<i64: 1, 1, 1, 10, 16>}, {transform_indices = @transform_1, window_bounds = array<i64: 1, 1, 1, 10, 16>}, {transform_indices = @transform_2, window_bounds = array<i64: 1, 1, 1, 10, 16>}, {transform_indices = @transform_3, window_bounds = array<i64: 1, 4, 4, 16, 8>}, {transform_indices = @transform_4, window_bounds = array<i64: 1, 1, 8>}, {transform_indices = @transform_5, window_bounds = array<i64: 1, 1, 1, 4, 8, 8>}, {transform_indices = @transform_6, window_bounds = array<i64: 1, 1, 8>}, {transform_indices = @transform_7, window_bounds = array<i64: 1, 1, 8>}]} {
    %c0 = arith.constant 0 : index
    %c0_0 = arith.constant 0 : index
    %c0_1 = arith.constant 0 : index
    %c0_2 = arith.constant 0 : index
    %c0_3 = arith.constant 0 : index
    %0 = vector.load %arg3[%c0, %c0_0, %c0_1, %c0_2, %c0_3] : memref<1x1x1x10x16xbf16, #tpu.memory_space<vmem>>, vector<1x1x1x8x16xbf16>
    %1 = vector.shape_cast %0 : vector<1x1x1x8x16xbf16> to vector<8x16xbf16>
    %cst = arith.constant 0.000000e+00 : bf16
    %2 = vector.broadcast %cst : bf16 to vector<8x16xbf16>
    %3 = arith.maximumf %1, %2 : vector<8x16xbf16>
    %c0_4 = arith.constant 0 : index
    %c0_5 = arith.constant 0 : index
    %c0_6 = arith.constant 0 : index
    %c1 = arith.constant 1 : index
    %c0_7 = arith.constant 0 : index
    %4 = vector.load %arg3[%c0_4, %c0_5, %c0_6, %c1, %c0_7] : memref<1x1x1x10x16xbf16, #tpu.memory_space<vmem>>, vector<1x1x1x8x16xbf16>
    %5 = vector.shape_cast %4 : vector<1x1x1x8x16xbf16> to vector<8x16xbf16>
    %cst_8 = arith.constant 0.000000e+00 : bf16
    %6 = vector.broadcast %cst_8 : bf16 to vector<8x16xbf16>
    %7 = arith.maximumf %5, %6 : vector<8x16xbf16>
    %c0_9 = arith.constant 0 : index
    %c0_10 = arith.constant 0 : index
    %c0_11 = arith.constant 0 : index
    %c2 = arith.constant 2 : index
    %c0_12 = arith.constant 0 : index
    %8 = vector.load %arg3[%c0_9, %c0_10, %c0_11, %c2, %c0_12] : memref<1x1x1x10x16xbf16, #tpu.memory_space<vmem>>, vector<1x1x1x8x16xbf16>
    %9 = vector.shape_cast %8 : vector<1x1x1x8x16xbf16> to vector<8x16xbf16>
    %cst_13 = arith.constant 0.000000e+00 : bf16
    %10 = vector.broadcast %cst_13 : bf16 to vector<8x16xbf16>
    %11 = arith.maximumf %9, %10 : vector<8x16xbf16>
    %c0_14 = arith.constant 0 : index
    %c0_15 = arith.constant 0 : index
    %c0_16 = arith.constant 0 : index
    %c0_17 = arith.constant 0 : index
    %c0_18 = arith.constant 0 : index
    %12 = vector.load %arg4[%c0_14, %c0_15, %c0_16, %c0_17, %c0_18] : memref<1x1x1x10x16xbf16, #tpu.memory_space<vmem>>, vector<1x1x1x8x16xbf16>
    %13 = vector.shape_cast %12 : vector<1x1x1x8x16xbf16> to vector<8x16xbf16>
    %cst_19 = arith.constant 0.000000e+00 : bf16
    %14 = vector.broadcast %cst_19 : bf16 to vector<8x16xbf16>
    %15 = arith.maximumf %13, %14 : vector<8x16xbf16>
    %c0_20 = arith.constant 0 : index
    %c0_21 = arith.constant 0 : index
    %c0_22 = arith.constant 0 : index
    %c1_23 = arith.constant 1 : index
    %c0_24 = arith.constant 0 : index
    %16 = vector.load %arg4[%c0_20, %c0_21, %c0_22, %c1_23, %c0_24] : memref<1x1x1x10x16xbf16, #tpu.memory_space<vmem>>, vector<1x1x1x8x16xbf16>
    %17 = vector.shape_cast %16 : vector<1x1x1x8x16xbf16> to vector<8x16xbf16>
    %cst_25 = arith.constant 0.000000e+00 : bf16
    %18 = vector.broadcast %cst_25 : bf16 to vector<8x16xbf16>
    %19 = arith.maximumf %17, %18 : vector<8x16xbf16>
    %c0_26 = arith.constant 0 : index
    %c0_27 = arith.constant 0 : index
    %c0_28 = arith.constant 0 : index
    %c2_29 = arith.constant 2 : index
    %c0_30 = arith.constant 0 : index
    %20 = vector.load %arg4[%c0_26, %c0_27, %c0_28, %c2_29, %c0_30] : memref<1x1x1x10x16xbf16, #tpu.memory_space<vmem>>, vector<1x1x1x8x16xbf16>
    %21 = vector.shape_cast %20 : vector<1x1x1x8x16xbf16> to vector<8x16xbf16>
    %cst_31 = arith.constant 0.000000e+00 : bf16
    %22 = vector.broadcast %cst_31 : bf16 to vector<8x16xbf16>
    %23 = arith.maximumf %21, %22 : vector<8x16xbf16>
    %c0_32 = arith.constant 0 : index
    %c0_33 = arith.constant 0 : index
    %c0_34 = arith.constant 0 : index
    %c0_35 = arith.constant 0 : index
    %c0_36 = arith.constant 0 : index
    %24 = vector.load %arg5[%c0_32, %c0_33, %c0_34, %c0_35, %c0_36] : memref<1x1x1x10x16xbf16, #tpu.memory_space<vmem>>, vector<1x1x1x8x16xbf16>
    %25 = vector.shape_cast %24 : vector<1x1x1x8x16xbf16> to vector<8x16xbf16>
    %cst_37 = arith.constant 0.000000e+00 : bf16
    %26 = vector.broadcast %cst_37 : bf16 to vector<8x16xbf16>
    %27 = arith.maximumf %25, %26 : vector<8x16xbf16>
    %c0_38 = arith.constant 0 : index
    %c0_39 = arith.constant 0 : index
    %c0_40 = arith.constant 0 : index
    %c1_41 = arith.constant 1 : index
    %c0_42 = arith.constant 0 : index
    %28 = vector.load %arg5[%c0_38, %c0_39, %c0_40, %c1_41, %c0_42] : memref<1x1x1x10x16xbf16, #tpu.memory_space<vmem>>, vector<1x1x1x8x16xbf16>
    %29 = vector.shape_cast %28 : vector<1x1x1x8x16xbf16> to vector<8x16xbf16>
    %cst_43 = arith.constant 0.000000e+00 : bf16
    %30 = vector.broadcast %cst_43 : bf16 to vector<8x16xbf16>
    %31 = arith.maximumf %29, %30 : vector<8x16xbf16>
    %c0_44 = arith.constant 0 : index
    %c0_45 = arith.constant 0 : index
    %c0_46 = arith.constant 0 : index
    %c2_47 = arith.constant 2 : index
    %c0_48 = arith.constant 0 : index
    %32 = vector.load %arg5[%c0_44, %c0_45, %c0_46, %c2_47, %c0_48] : memref<1x1x1x10x16xbf16, #tpu.memory_space<vmem>>, vector<1x1x1x8x16xbf16>
    %33 = vector.shape_cast %32 : vector<1x1x1x8x16xbf16> to vector<8x16xbf16>
    %cst_49 = arith.constant 0.000000e+00 : bf16
    %34 = vector.broadcast %cst_49 : bf16 to vector<8x16xbf16>
    %35 = arith.maximumf %33, %34 : vector<8x16xbf16>
    %c0_i32 = arith.constant 0 : i32
    %36 = arith.cmpi eq, %arg1, %c0_i32 : i32
    %c0_i32_50 = arith.constant 0 : i32
    %37 = arith.cmpi eq, %arg2, %c0_i32_50 : i32
    %38 = arith.andi %36, %37 : i1
    %39 = arith.extui %38 : i1 to i32
    %c0_i32_51 = arith.constant 0 : i32
    %40 = arith.cmpi ne, %39, %c0_i32_51 : i32
    scf.if %40 {
      %cst_209 = arith.constant 0.000000e+00 : f32
      %183 = vector.broadcast %cst_209 : f32 to vector<1x8xf32>
      %c0_210 = arith.constant 0 : index
      %c0_211 = arith.constant 0 : index
      %c0_212 = arith.constant 0 : index
      %184 = vector.load %arg9[%c0_210, %c0_211, %c0_212] : memref<1x1x8xf32, #tpu.memory_space<vmem>>, vector<1x1x8xf32>
      %185 = vector.shape_cast %184 : vector<1x1x8xf32> to vector<1x8xf32>
      %186 = vector.shape_cast %183 : vector<1x8xf32> to vector<1x1x8xf32>
      tpu.vector_store %arg9[%c0_210, %c0_211, %c0_212], %186 {strides = array<i32>} : memref<1x1x8xf32, #tpu.memory_space<vmem>>, vector<1x1x8xf32>,
      %cst_213 = arith.constant 0.000000e+00 : f32
      %187 = vector.broadcast %cst_213 : f32 to vector<1x8xf32>
      %c0_214 = arith.constant 0 : index
      %c0_215 = arith.constant 0 : index
      %c0_216 = arith.constant 0 : index
      %188 = vector.load %arg10[%c0_214, %c0_215, %c0_216] : memref<1x1x8xf32, #tpu.memory_space<vmem>>, vector<1x1x8xf32>
      %189 = vector.shape_cast %188 : vector<1x1x8xf32> to vector<1x8xf32>
      %190 = vector.shape_cast %187 : vector<1x8xf32> to vector<1x1x8xf32>
      tpu.vector_store %arg10[%c0_214, %c0_215, %c0_216], %190 {strides = array<i32>} : memref<1x1x8xf32, #tpu.memory_space<vmem>>, vector<1x1x8xf32>,
    } else {
    }
    %cst_52 = arith.constant 0.000000e+00 : f32
    %41 = vector.broadcast %cst_52 : f32 to vector<1x8xf32>
    %cst_53 = arith.constant 0.000000e+00 : f32
    %42 = vector.broadcast %cst_53 : f32 to vector<1x8xf32>
    %cst_54 = arith.constant 0.000000e+00 : f32
    %43 = vector.broadcast %cst_54 : f32 to vector<8x8xf32>
    %c0_55 = arith.constant 0 : index
    %c0_56 = arith.constant 0 : index
    %c0_57 = arith.constant 0 : index
    %c0_58 = arith.constant 0 : index
    %c0_59 = arith.constant 0 : index
    %44 = vector.load %arg6[%c0_55, %c0_56, %c0_57, %c0_58, %c0_59] : memref<1x4x4x16x8xbf16, #tpu.memory_space<vmem>>, vector<1x1x1x16x8xbf16>
    %45 = vector.shape_cast %44 : vector<1x1x1x16x8xbf16> to vector<16x8xbf16>
    %cst_60 = arith.constant dense<0.000000e+00> : vector<8x8xf32>
    %46 = tpu.matmul %3, %45, %cst_60 {dimension_numbers = #tpu.dot_dimension_numbers<[1], [0], [0], [1], [0, 0, 1, 1], [], []>} : vector<8x16xbf16>, vector<16x8xbf16>, vector<8x8xf32> -> vector<8x8xf32>
    %47 = arith.addf %43, %46 : vector<8x8xf32>
    %c0_61 = arith.constant 0 : index
    %c0_62 = arith.constant 0 : index
    %c1_63 = arith.constant 1 : index
    %c0_64 = arith.constant 0 : index
    %c0_65 = arith.constant 0 : index
    %48 = vector.load %arg6[%c0_61, %c0_62, %c1_63, %c0_64, %c0_65] : memref<1x4x4x16x8xbf16, #tpu.memory_space<vmem>>, vector<1x1x1x16x8xbf16>
    %49 = vector.shape_cast %48 : vector<1x1x1x16x8xbf16> to vector<16x8xbf16>
    %cst_66 = arith.constant dense<0.000000e+00> : vector<8x8xf32>
    %50 = tpu.matmul %7, %49, %cst_66 {dimension_numbers = #tpu.dot_dimension_numbers<[1], [0], [0], [1], [0, 0, 1, 1], [], []>} : vector<8x16xbf16>, vector<16x8xbf16>, vector<8x8xf32> -> vector<8x8xf32>
    %51 = arith.addf %47, %50 : vector<8x8xf32>
    %c0_67 = arith.constant 0 : index
    %c0_68 = arith.constant 0 : index
    %c2_69 = arith.constant 2 : index
    %c0_70 = arith.constant 0 : index
    %c0_71 = arith.constant 0 : index
    %52 = vector.load %arg6[%c0_67, %c0_68, %c2_69, %c0_70, %c0_71] : memref<1x4x4x16x8xbf16, #tpu.memory_space<vmem>>, vector<1x1x1x16x8xbf16>
    %53 = vector.shape_cast %52 : vector<1x1x1x16x8xbf16> to vector<16x8xbf16>
    %cst_72 = arith.constant dense<0.000000e+00> : vector<8x8xf32>
    %54 = tpu.matmul %15, %53, %cst_72 {dimension_numbers = #tpu.dot_dimension_numbers<[1], [0], [0], [1], [0, 0, 1, 1], [], []>} : vector<8x16xbf16>, vector<16x8xbf16>, vector<8x8xf32> -> vector<8x8xf32>
    %55 = arith.addf %51, %54 : vector<8x8xf32>
    %c0_73 = arith.constant 0 : index
    %c0_74 = arith.constant 0 : index
    %c3 = arith.constant 3 : index
    %c0_75 = arith.constant 0 : index
    %c0_76 = arith.constant 0 : index
    %56 = vector.load %arg6[%c0_73, %c0_74, %c3, %c0_75, %c0_76] : memref<1x4x4x16x8xbf16, #tpu.memory_space<vmem>>, vector<1x1x1x16x8xbf16>
    %57 = vector.shape_cast %56 : vector<1x1x1x16x8xbf16> to vector<16x8xbf16>
    %cst_77 = arith.constant dense<0.000000e+00> : vector<8x8xf32>
    %58 = tpu.matmul %19, %57, %cst_77 {dimension_numbers = #tpu.dot_dimension_numbers<[1], [0], [0], [1], [0, 0, 1, 1], [], []>} : vector<8x16xbf16>, vector<16x8xbf16>, vector<8x8xf32> -> vector<8x8xf32>
    %59 = arith.addf %55, %58 : vector<8x8xf32>
    %cst_78 = arith.constant dense<0.000000e+00> : vector<8xf32>
    %60 = vector.multi_reduction <add>, %59, %cst_78 [0] : vector<8x8xf32> to vector<8xf32>
    %61 = vector.shape_cast %60 : vector<8xf32> to vector<1x8xf32>
    %62 = arith.addf %41, %61 : vector<1x8xf32>
    %63 = arith.mulf %59, %59 : vector<8x8xf32>
    %cst_79 = arith.constant dense<0.000000e+00> : vector<8xf32>
    %64 = vector.multi_reduction <add>, %63, %cst_79 [0] : vector<8x8xf32> to vector<8xf32>
    %65 = vector.shape_cast %64 : vector<8xf32> to vector<1x8xf32>
    %66 = arith.addf %42, %65 : vector<1x8xf32>
    %c0_80 = arith.constant 0 : index
    %c0_81 = arith.constant 0 : index
    %c0_82 = arith.constant 0 : index
    %67 = vector.load %arg7[%c0_80, %c0_81, %c0_82] : memref<1x1x8xf32, #tpu.memory_space<vmem>>, vector<1x1x8xf32>
    %68 = vector.shape_cast %67 : vector<1x1x8xf32> to vector<1x8xf32>
    %69 = vector.broadcast %68 : vector<1x8xf32> to vector<8x8xf32>
    %70 = arith.addf %59, %69 : vector<8x8xf32>
    %71 = arith.truncf %70 : vector<8x8xf32> to vector<8x8xbf16>
    %c0_83 = arith.constant 0 : index
    %c0_84 = arith.constant 0 : index
    %c0_85 = arith.constant 0 : index
    %c0_86 = arith.constant 0 : index
    %c0_87 = arith.constant 0 : index
    %c0_88 = arith.constant 0 : index
    %72 = vector.load %arg8[%c0_83, %c0_84, %c0_85, %c0_86, %c0_87, %c0_88] : memref<1x1x1x4x8x8xbf16, #tpu.memory_space<vmem>>, vector<1x1x1x1x8x8xbf16>
    %73 = vector.shape_cast %72 : vector<1x1x1x1x8x8xbf16> to vector<8x8xbf16>
    %74 = vector.shape_cast %71 : vector<8x8xbf16> to vector<1x1x1x1x8x8xbf16>
    tpu.vector_store %arg8[%c0_83, %c0_84, %c0_85, %c0_86, %c0_87, %c0_88], %74 {strides = array<i32>} : memref<1x1x1x4x8x8xbf16, #tpu.memory_space<vmem>>, vector<1x1x1x1x8x8xbf16>,
    %cst_89 = arith.constant 0.000000e+00 : f32
    %75 = vector.broadcast %cst_89 : f32 to vector<8x8xf32>
    %c0_90 = arith.constant 0 : index
    %c1_91 = arith.constant 1 : index
    %c0_92 = arith.constant 0 : index
    %c0_93 = arith.constant 0 : index
    %c0_94 = arith.constant 0 : index
    %76 = vector.load %arg6[%c0_90, %c1_91, %c0_92, %c0_93, %c0_94] : memref<1x4x4x16x8xbf16, #tpu.memory_space<vmem>>, vector<1x1x1x16x8xbf16>
    %77 = vector.shape_cast %76 : vector<1x1x1x16x8xbf16> to vector<16x8xbf16>
    %cst_95 = arith.constant dense<0.000000e+00> : vector<8x8xf32>
    %78 = tpu.matmul %7, %77, %cst_95 {dimension_numbers = #tpu.dot_dimension_numbers<[1], [0], [0], [1], [0, 0, 1, 1], [], []>} : vector<8x16xbf16>, vector<16x8xbf16>, vector<8x8xf32> -> vector<8x8xf32>
    %79 = arith.addf %75, %78 : vector<8x8xf32>
    %c0_96 = arith.constant 0 : index
    %c1_97 = arith.constant 1 : index
    %c1_98 = arith.constant 1 : index
    %c0_99 = arith.constant 0 : index
    %c0_100 = arith.constant 0 : index
    %80 = vector.load %arg6[%c0_96, %c1_97, %c1_98, %c0_99, %c0_100] : memref<1x4x4x16x8xbf16, #tpu.memory_space<vmem>>, vector<1x1x1x16x8xbf16>
    %81 = vector.shape_cast %80 : vector<1x1x1x16x8xbf16> to vector<16x8xbf16>
    %cst_101 = arith.constant dense<0.000000e+00> : vector<8x8xf32>
    %82 = tpu.matmul %11, %81, %cst_101 {dimension_numbers = #tpu.dot_dimension_numbers<[1], [0], [0], [1], [0, 0, 1, 1], [], []>} : vector<8x16xbf16>, vector<16x8xbf16>, vector<8x8xf32> -> vector<8x8xf32>
    %83 = arith.addf %79, %82 : vector<8x8xf32>
    %c0_102 = arith.constant 0 : index
    %c1_103 = arith.constant 1 : index
    %c2_104 = arith.constant 2 : index
    %c0_105 = arith.constant 0 : index
    %c0_106 = arith.constant 0 : index
    %84 = vector.load %arg6[%c0_102, %c1_103, %c2_104, %c0_105, %c0_106] : memref<1x4x4x16x8xbf16, #tpu.memory_space<vmem>>, vector<1x1x1x16x8xbf16>
    %85 = vector.shape_cast %84 : vector<1x1x1x16x8xbf16> to vector<16x8xbf16>
    %cst_107 = arith.constant dense<0.000000e+00> : vector<8x8xf32>
    %86 = tpu.matmul %19, %85, %cst_107 {dimension_numbers = #tpu.dot_dimension_numbers<[1], [0], [0], [1], [0, 0, 1, 1], [], []>} : vector<8x16xbf16>, vector<16x8xbf16>, vector<8x8xf32> -> vector<8x8xf32>
    %87 = arith.addf %83, %86 : vector<8x8xf32>
    %c0_108 = arith.constant 0 : index
    %c1_109 = arith.constant 1 : index
    %c3_110 = arith.constant 3 : index
    %c0_111 = arith.constant 0 : index
    %c0_112 = arith.constant 0 : index
    %88 = vector.load %arg6[%c0_108, %c1_109, %c3_110, %c0_111, %c0_112] : memref<1x4x4x16x8xbf16, #tpu.memory_space<vmem>>, vector<1x1x1x16x8xbf16>
    %89 = vector.shape_cast %88 : vector<1x1x1x16x8xbf16> to vector<16x8xbf16>
    %cst_113 = arith.constant dense<0.000000e+00> : vector<8x8xf32>
    %90 = tpu.matmul %23, %89, %cst_113 {dimension_numbers = #tpu.dot_dimension_numbers<[1], [0], [0], [1], [0, 0, 1, 1], [], []>} : vector<8x16xbf16>, vector<16x8xbf16>, vector<8x8xf32> -> vector<8x8xf32>
    %91 = arith.addf %87, %90 : vector<8x8xf32>
    %cst_114 = arith.constant dense<0.000000e+00> : vector<8xf32>
    %92 = vector.multi_reduction <add>, %91, %cst_114 [0] : vector<8x8xf32> to vector<8xf32>
    %93 = vector.shape_cast %92 : vector<8xf32> to vector<1x8xf32>
    %94 = arith.addf %62, %93 : vector<1x8xf32>
    %95 = arith.mulf %91, %91 : vector<8x8xf32>
    %cst_115 = arith.constant dense<0.000000e+00> : vector<8xf32>
    %96 = vector.multi_reduction <add>, %95, %cst_115 [0] : vector<8x8xf32> to vector<8xf32>
    %97 = vector.shape_cast %96 : vector<8xf32> to vector<1x8xf32>
    %98 = arith.addf %66, %97 : vector<1x8xf32>
    %c0_116 = arith.constant 0 : index
    %c0_117 = arith.constant 0 : index
    %c0_118 = arith.constant 0 : index
    %99 = vector.load %arg7[%c0_116, %c0_117, %c0_118] : memref<1x1x8xf32, #tpu.memory_space<vmem>>, vector<1x1x8xf32>
    %100 = vector.shape_cast %99 : vector<1x1x8xf32> to vector<1x8xf32>
    %101 = vector.broadcast %100 : vector<1x8xf32> to vector<8x8xf32>
    %102 = arith.addf %91, %101 : vector<8x8xf32>
    %103 = arith.truncf %102 : vector<8x8xf32> to vector<8x8xbf16>
    %c0_119 = arith.constant 0 : index
    %c0_120 = arith.constant 0 : index
    %c0_121 = arith.constant 0 : index
    %c1_122 = arith.constant 1 : index
    %c0_123 = arith.constant 0 : index
    %c0_124 = arith.constant 0 : index
    %104 = vector.load %arg8[%c0_119, %c0_120, %c0_121, %c1_122, %c0_123, %c0_124] : memref<1x1x1x4x8x8xbf16, #tpu.memory_space<vmem>>, vector<1x1x1x1x8x8xbf16>
    %105 = vector.shape_cast %104 : vector<1x1x1x1x8x8xbf16> to vector<8x8xbf16>
    %106 = vector.shape_cast %103 : vector<8x8xbf16> to vector<1x1x1x1x8x8xbf16>
    tpu.vector_store %arg8[%c0_119, %c0_120, %c0_121, %c1_122, %c0_123, %c0_124], %106 {strides = array<i32>} : memref<1x1x1x4x8x8xbf16, #tpu.memory_space<vmem>>, vector<1x1x1x1x8x8xbf16>,
    %cst_125 = arith.constant 0.000000e+00 : f32
    %107 = vector.broadcast %cst_125 : f32 to vector<8x8xf32>
    %c0_126 = arith.constant 0 : index
    %c2_127 = arith.constant 2 : index
    %c0_128 = arith.constant 0 : index
    %c0_129 = arith.constant 0 : index
    %c0_130 = arith.constant 0 : index
    %108 = vector.load %arg6[%c0_126, %c2_127, %c0_128, %c0_129, %c0_130] : memref<1x4x4x16x8xbf16, #tpu.memory_space<vmem>>, vector<1x1x1x16x8xbf16>
    %109 = vector.shape_cast %108 : vector<1x1x1x16x8xbf16> to vector<16x8xbf16>
    %cst_131 = arith.constant dense<0.000000e+00> : vector<8x8xf32>
    %110 = tpu.matmul %15, %109, %cst_131 {dimension_numbers = #tpu.dot_dimension_numbers<[1], [0], [0], [1], [0, 0, 1, 1], [], []>} : vector<8x16xbf16>, vector<16x8xbf16>, vector<8x8xf32> -> vector<8x8xf32>
    %111 = arith.addf %107, %110 : vector<8x8xf32>
    %c0_132 = arith.constant 0 : index
    %c2_133 = arith.constant 2 : index
    %c1_134 = arith.constant 1 : index
    %c0_135 = arith.constant 0 : index
    %c0_136 = arith.constant 0 : index
    %112 = vector.load %arg6[%c0_132, %c2_133, %c1_134, %c0_135, %c0_136] : memref<1x4x4x16x8xbf16, #tpu.memory_space<vmem>>, vector<1x1x1x16x8xbf16>
    %113 = vector.shape_cast %112 : vector<1x1x1x16x8xbf16> to vector<16x8xbf16>
    %cst_137 = arith.constant dense<0.000000e+00> : vector<8x8xf32>
    %114 = tpu.matmul %19, %113, %cst_137 {dimension_numbers = #tpu.dot_dimension_numbers<[1], [0], [0], [1], [0, 0, 1, 1], [], []>} : vector<8x16xbf16>, vector<16x8xbf16>, vector<8x8xf32> -> vector<8x8xf32>
    %115 = arith.addf %111, %114 : vector<8x8xf32>
    %c0_138 = arith.constant 0 : index
    %c2_139 = arith.constant 2 : index
    %c2_140 = arith.constant 2 : index
    %c0_141 = arith.constant 0 : index
    %c0_142 = arith.constant 0 : index
    %116 = vector.load %arg6[%c0_138, %c2_139, %c2_140, %c0_141, %c0_142] : memref<1x4x4x16x8xbf16, #tpu.memory_space<vmem>>, vector<1x1x1x16x8xbf16>
    %117 = vector.shape_cast %116 : vector<1x1x1x16x8xbf16> to vector<16x8xbf16>
    %cst_143 = arith.constant dense<0.000000e+00> : vector<8x8xf32>
    %118 = tpu.matmul %27, %117, %cst_143 {dimension_numbers = #tpu.dot_dimension_numbers<[1], [0], [0], [1], [0, 0, 1, 1], [], []>} : vector<8x16xbf16>, vector<16x8xbf16>, vector<8x8xf32> -> vector<8x8xf32>
    %119 = arith.addf %115, %118 : vector<8x8xf32>
    %c0_144 = arith.constant 0 : index
    %c2_145 = arith.constant 2 : index
    %c3_146 = arith.constant 3 : index
    %c0_147 = arith.constant 0 : index
    %c0_148 = arith.constant 0 : index
    %120 = vector.load %arg6[%c0_144, %c2_145, %c3_146, %c0_147, %c0_148] : memref<1x4x4x16x8xbf16, #tpu.memory_space<vmem>>, vector<1x1x1x16x8xbf16>
    %121 = vector.shape_cast %120 : vector<1x1x1x16x8xbf16> to vector<16x8xbf16>
    %cst_149 = arith.constant dense<0.000000e+00> : vector<8x8xf32>
    %122 = tpu.matmul %31, %121, %cst_149 {dimension_numbers = #tpu.dot_dimension_numbers<[1], [0], [0], [1], [0, 0, 1, 1], [], []>} : vector<8x16xbf16>, vector<16x8xbf16>, vector<8x8xf32> -> vector<8x8xf32>
    %123 = arith.addf %119, %122 : vector<8x8xf32>
    %cst_150 = arith.constant dense<0.000000e+00> : vector<8xf32>
    %124 = vector.multi_reduction <add>, %123, %cst_150 [0] : vector<8x8xf32> to vector<8xf32>
    %125 = vector.shape_cast %124 : vector<8xf32> to vector<1x8xf32>
    %126 = arith.addf %94, %125 : vector<1x8xf32>
    %127 = arith.mulf %123, %123 : vector<8x8xf32>
    %cst_151 = arith.constant dense<0.000000e+00> : vector<8xf32>
    %128 = vector.multi_reduction <add>, %127, %cst_151 [0] : vector<8x8xf32> to vector<8xf32>
    %129 = vector.shape_cast %128 : vector<8xf32> to vector<1x8xf32>
    %130 = arith.addf %98, %129 : vector<1x8xf32>
    %c0_152 = arith.constant 0 : index
    %c0_153 = arith.constant 0 : index
    %c0_154 = arith.constant 0 : index
    %131 = vector.load %arg7[%c0_152, %c0_153, %c0_154] : memref<1x1x8xf32, #tpu.memory_space<vmem>>, vector<1x1x8xf32>
    %132 = vector.shape_cast %131 : vector<1x1x8xf32> to vector<1x8xf32>
    %133 = vector.broadcast %132 : vector<1x8xf32> to vector<8x8xf32>
    %134 = arith.addf %123, %133 : vector<8x8xf32>
    %135 = arith.truncf %134 : vector<8x8xf32> to vector<8x8xbf16>
    %c0_155 = arith.constant 0 : index
    %c0_156 = arith.constant 0 : index
    %c0_157 = arith.constant 0 : index
    %c2_158 = arith.constant 2 : index
    %c0_159 = arith.constant 0 : index
    %c0_160 = arith.constant 0 : index
    %136 = vector.load %arg8[%c0_155, %c0_156, %c0_157, %c2_158, %c0_159, %c0_160] : memref<1x1x1x4x8x8xbf16, #tpu.memory_space<vmem>>, vector<1x1x1x1x8x8xbf16>
    %137 = vector.shape_cast %136 : vector<1x1x1x1x8x8xbf16> to vector<8x8xbf16>
    %138 = vector.shape_cast %135 : vector<8x8xbf16> to vector<1x1x1x1x8x8xbf16>
    tpu.vector_store %arg8[%c0_155, %c0_156, %c0_157, %c2_158, %c0_159, %c0_160], %138 {strides = array<i32>} : memref<1x1x1x4x8x8xbf16, #tpu.memory_space<vmem>>, vector<1x1x1x1x8x8xbf16>,
    %cst_161 = arith.constant 0.000000e+00 : f32
    %139 = vector.broadcast %cst_161 : f32 to vector<8x8xf32>
    %c0_162 = arith.constant 0 : index
    %c3_163 = arith.constant 3 : index
    %c0_164 = arith.constant 0 : index
    %c0_165 = arith.constant 0 : index
    %c0_166 = arith.constant 0 : index
    %140 = vector.load %arg6[%c0_162, %c3_163, %c0_164, %c0_165, %c0_166] : memref<1x4x4x16x8xbf16, #tpu.memory_space<vmem>>, vector<1x1x1x16x8xbf16>
    %141 = vector.shape_cast %140 : vector<1x1x1x16x8xbf16> to vector<16x8xbf16>
    %cst_167 = arith.constant dense<0.000000e+00> : vector<8x8xf32>
    %142 = tpu.matmul %19, %141, %cst_167 {dimension_numbers = #tpu.dot_dimension_numbers<[1], [0], [0], [1], [0, 0, 1, 1], [], []>} : vector<8x16xbf16>, vector<16x8xbf16>, vector<8x8xf32> -> vector<8x8xf32>
    %143 = arith.addf %139, %142 : vector<8x8xf32>
    %c0_168 = arith.constant 0 : index
    %c3_169 = arith.constant 3 : index
    %c1_170 = arith.constant 1 : index
    %c0_171 = arith.constant 0 : index
    %c0_172 = arith.constant 0 : index
    %144 = vector.load %arg6[%c0_168, %c3_169, %c1_170, %c0_171, %c0_172] : memref<1x4x4x16x8xbf16, #tpu.memory_space<vmem>>, vector<1x1x1x16x8xbf16>
    %145 = vector.shape_cast %144 : vector<1x1x1x16x8xbf16> to vector<16x8xbf16>
    %cst_173 = arith.constant dense<0.000000e+00> : vector<8x8xf32>
    %146 = tpu.matmul %23, %145, %cst_173 {dimension_numbers = #tpu.dot_dimension_numbers<[1], [0], [0], [1], [0, 0, 1, 1], [], []>} : vector<8x16xbf16>, vector<16x8xbf16>, vector<8x8xf32> -> vector<8x8xf32>
    %147 = arith.addf %143, %146 : vector<8x8xf32>
    %c0_174 = arith.constant 0 : index
    %c3_175 = arith.constant 3 : index
    %c2_176 = arith.constant 2 : index
    %c0_177 = arith.constant 0 : index
    %c0_178 = arith.constant 0 : index
    %148 = vector.load %arg6[%c0_174, %c3_175, %c2_176, %c0_177, %c0_178] : memref<1x4x4x16x8xbf16, #tpu.memory_space<vmem>>, vector<1x1x1x16x8xbf16>
    %149 = vector.shape_cast %148 : vector<1x1x1x16x8xbf16> to vector<16x8xbf16>
    %cst_179 = arith.constant dense<0.000000e+00> : vector<8x8xf32>
    %150 = tpu.matmul %31, %149, %cst_179 {dimension_numbers = #tpu.dot_dimension_numbers<[1], [0], [0], [1], [0, 0, 1, 1], [], []>} : vector<8x16xbf16>, vector<16x8xbf16>, vector<8x8xf32> -> vector<8x8xf32>
    %151 = arith.addf %147, %150 : vector<8x8xf32>
    %c0_180 = arith.constant 0 : index
    %c3_181 = arith.constant 3 : index
    %c3_182 = arith.constant 3 : index
    %c0_183 = arith.constant 0 : index
    %c0_184 = arith.constant 0 : index
    %152 = vector.load %arg6[%c0_180, %c3_181, %c3_182, %c0_183, %c0_184] : memref<1x4x4x16x8xbf16, #tpu.memory_space<vmem>>, vector<1x1x1x16x8xbf16>
    %153 = vector.shape_cast %152 : vector<1x1x1x16x8xbf16> to vector<16x8xbf16>
    %cst_185 = arith.constant dense<0.000000e+00> : vector<8x8xf32>
    %154 = tpu.matmul %35, %153, %cst_185 {dimension_numbers = #tpu.dot_dimension_numbers<[1], [0], [0], [1], [0, 0, 1, 1], [], []>} : vector<8x16xbf16>, vector<16x8xbf16>, vector<8x8xf32> -> vector<8x8xf32>
    %155 = arith.addf %151, %154 : vector<8x8xf32>
    %cst_186 = arith.constant dense<0.000000e+00> : vector<8xf32>
    %156 = vector.multi_reduction <add>, %155, %cst_186 [0] : vector<8x8xf32> to vector<8xf32>
    %157 = vector.shape_cast %156 : vector<8xf32> to vector<1x8xf32>
    %158 = arith.addf %126, %157 : vector<1x8xf32>
    %159 = arith.mulf %155, %155 : vector<8x8xf32>
    %cst_187 = arith.constant dense<0.000000e+00> : vector<8xf32>
    %160 = vector.multi_reduction <add>, %159, %cst_187 [0] : vector<8x8xf32> to vector<8xf32>
    %161 = vector.shape_cast %160 : vector<8xf32> to vector<1x8xf32>
    %162 = arith.addf %130, %161 : vector<1x8xf32>
    %c0_188 = arith.constant 0 : index
    %c0_189 = arith.constant 0 : index
    %c0_190 = arith.constant 0 : index
    %163 = vector.load %arg7[%c0_188, %c0_189, %c0_190] : memref<1x1x8xf32, #tpu.memory_space<vmem>>, vector<1x1x8xf32>
    %164 = vector.shape_cast %163 : vector<1x1x8xf32> to vector<1x8xf32>
    %165 = vector.broadcast %164 : vector<1x8xf32> to vector<8x8xf32>
    %166 = arith.addf %155, %165 : vector<8x8xf32>
    %167 = arith.truncf %166 : vector<8x8xf32> to vector<8x8xbf16>
    %c0_191 = arith.constant 0 : index
    %c0_192 = arith.constant 0 : index
    %c0_193 = arith.constant 0 : index
    %c3_194 = arith.constant 3 : index
    %c0_195 = arith.constant 0 : index
    %c0_196 = arith.constant 0 : index
    %168 = vector.load %arg8[%c0_191, %c0_192, %c0_193, %c3_194, %c0_195, %c0_196] : memref<1x1x1x4x8x8xbf16, #tpu.memory_space<vmem>>, vector<1x1x1x1x8x8xbf16>
    %169 = vector.shape_cast %168 : vector<1x1x1x1x8x8xbf16> to vector<8x8xbf16>
    %170 = vector.shape_cast %167 : vector<8x8xbf16> to vector<1x1x1x1x8x8xbf16>
    tpu.vector_store %arg8[%c0_191, %c0_192, %c0_193, %c3_194, %c0_195, %c0_196], %170 {strides = array<i32>} : memref<1x1x1x4x8x8xbf16, #tpu.memory_space<vmem>>, vector<1x1x1x1x8x8xbf16>,
    %c0_197 = arith.constant 0 : index
    %c0_198 = arith.constant 0 : index
    %c0_199 = arith.constant 0 : index
    %171 = vector.load %arg9[%c0_197, %c0_198, %c0_199] : memref<1x1x8xf32, #tpu.memory_space<vmem>>, vector<1x1x8xf32>
    %172 = vector.shape_cast %171 : vector<1x1x8xf32> to vector<1x8xf32>
    %173 = arith.addf %172, %158 : vector<1x8xf32>
    %c0_200 = arith.constant 0 : index
    %c0_201 = arith.constant 0 : index
    %c0_202 = arith.constant 0 : index
    %174 = vector.load %arg9[%c0_200, %c0_201, %c0_202] : memref<1x1x8xf32, #tpu.memory_space<vmem>>, vector<1x1x8xf32>
    %175 = vector.shape_cast %174 : vector<1x1x8xf32> to vector<1x8xf32>
    %176 = vector.shape_cast %173 : vector<1x8xf32> to vector<1x1x8xf32>
    tpu.vector_store %arg9[%c0_200, %c0_201, %c0_202], %176 {strides = array<i32>} : memref<1x1x8xf32, #tpu.memory_space<vmem>>, vector<1x1x8xf32>,
    %c0_203 = arith.constant 0 : index
    %c0_204 = arith.constant 0 : index
    %c0_205 = arith.constant 0 : index
    %177 = vector.load %arg10[%c0_203, %c0_204, %c0_205] : memref<1x1x8xf32, #tpu.memory_space<vmem>>, vector<1x1x8xf32>
    %178 = vector.shape_cast %177 : vector<1x1x8xf32> to vector<1x8xf32>
    %179 = arith.addf %178, %162 : vector<1x8xf32>
    %c0_206 = arith.constant 0 : index
    %c0_207 = arith.constant 0 : index
    %c0_208 = arith.constant 0 : index
    %180 = vector.load %arg10[%c0_206, %c0_207, %c0_208] : memref<1x1x8xf32, #tpu.memory_space<vmem>>, vector<1x1x8xf32>
    %181 = vector.shape_cast %180 : vector<1x1x8xf32> to vector<1x8xf32>
    %182 = vector.shape_cast %179 : vector<1x8xf32> to vector<1x1x8xf32>
    tpu.vector_store %arg10[%c0_206, %c0_207, %c0_208], %182 {strides = array<i32>} : memref<1x1x8xf32, #tpu.memory_space<vmem>>, vector<1x1x8xf32>,
    return
  }
  func.func @transform_0(%arg0: i32, %arg1: i32, %arg2: i32) -> (i32, i32, i32, i32, i32) {
    %c0_i32 = arith.constant 0 : i32
    %0 = arith.addi %arg2, %c0_i32 : i32
    %c0_i32_0 = arith.constant 0 : i32
    %c0_i32_1 = arith.constant 0 : i32
    %c0_i32_2 = arith.constant 0 : i32
    return %arg0, %arg1, %0, %c0_i32_0, %c0_i32_1 : i32, i32, i32, i32, i32
  }
  func.func @transform_1(%arg0: i32, %arg1: i32, %arg2: i32) -> (i32, i32, i32, i32, i32) {
    %c1_i32 = arith.constant 1 : i32
    %0 = arith.addi %arg2, %c1_i32 : i32
    %c0_i32 = arith.constant 0 : i32
    %c0_i32_0 = arith.constant 0 : i32
    %c0_i32_1 = arith.constant 0 : i32
    return %arg0, %arg1, %0, %c0_i32, %c0_i32_0 : i32, i32, i32, i32, i32
  }
  func.func @transform_2(%arg0: i32, %arg1: i32, %arg2: i32) -> (i32, i32, i32, i32, i32) {
    %c2_i32 = arith.constant 2 : i32
    %0 = arith.addi %arg2, %c2_i32 : i32
    %c0_i32 = arith.constant 0 : i32
    %c0_i32_0 = arith.constant 0 : i32
    %c0_i32_1 = arith.constant 0 : i32
    return %arg0, %arg1, %0, %c0_i32, %c0_i32_0 : i32, i32, i32, i32, i32
  }
  func.func @transform_3(%arg0: i32, %arg1: i32, %arg2: i32) -> (i32, i32, i32, i32, i32) {
    %c0_i32 = arith.constant 0 : i32
    %c0_i32_0 = arith.constant 0 : i32
    %c0_i32_1 = arith.constant 0 : i32
    %c0_i32_2 = arith.constant 0 : i32
    %c0_i32_3 = arith.constant 0 : i32
    return %arg0, %c0_i32, %c0_i32_0, %c0_i32_1, %c0_i32_2 : i32, i32, i32, i32, i32
  }
  func.func @transform_4(%arg0: i32, %arg1: i32, %arg2: i32) -> (i32, i32, i32) {
    %c0_i32 = arith.constant 0 : i32
    %c0_i32_0 = arith.constant 0 : i32
    %c0_i32_1 = arith.constant 0 : i32
    return %arg0, %c0_i32, %c0_i32_0 : i32, i32, i32
  }
  func.func @transform_5(%arg0: i32, %arg1: i32, %arg2: i32) -> (i32, i32, i32, i32, i32, i32) {
    %c0_i32 = arith.constant 0 : i32
    %c0_i32_0 = arith.constant 0 : i32
    %c0_i32_1 = arith.constant 0 : i32
    %c0_i32_2 = arith.constant 0 : i32
    return %arg0, %arg1, %arg2, %c0_i32, %c0_i32_0, %c0_i32_1 : i32, i32, i32, i32, i32, i32
  }
  func.func @transform_6(%arg0: i32, %arg1: i32, %arg2: i32) -> (i32, i32, i32) {
    %c0_i32 = arith.constant 0 : i32
    %c0_i32_0 = arith.constant 0 : i32
    %c0_i32_1 = arith.constant 0 : i32
    return %arg0, %c0_i32, %c0_i32_0 : i32, i32, i32
  }
  func.func @transform_7(%arg0: i32, %arg1: i32, %arg2: i32) -> (i32, i32, i32) {
    %c0_i32 = arith.constant 0 : i32
    %c0_i32_0 = arith.constant 0 : i32
    %c0_i32_1 = arith.constant 0 : i32
    return %arg0, %c0_i32, %c0_i32_0 : i32, i32, i32
  }
}

module attributes {stable_mosaic.version = 11 : i64} {
  func.func @_head_kernel(%arg0: i32, %arg1: i32, %arg2: i32, %arg3: memref<1x1x1x4x8x8xbf16, #tpu.memory_space<vmem>>, %arg4: memref<1x1x1x8xf32, #tpu.memory_space<vmem>>, %arg5: memref<1x1x1x8xf32, #tpu.memory_space<vmem>>, %arg6: memref<1x1x1x8xf32, #tpu.memory_space<vmem>>, %arg7: memref<1x1x1xf32, #tpu.memory_space<vmem>>, %arg8: memref<1x1x1x4x8xf32, #tpu.memory_space<vmem>>) attributes {dimension_semantics = [#tpu.dimension_semantics<parallel>, #tpu.dimension_semantics<parallel>, #tpu.dimension_semantics<parallel>], iteration_bounds = array<i64: 2, 2, 8>, scalar_prefetch = 0 : i64, scratch_operands = 0 : i64, tpu.core_type = #tpu.core_type<tc>, window_params = [{transform_indices = @transform_0, window_bounds = array<i64: 1, 1, 1, 4, 8, 8>}, {transform_indices = @transform_1, window_bounds = array<i64: 1, 1, 1, 8>}, {transform_indices = @transform_2, window_bounds = array<i64: 1, 1, 1, 8>}, {transform_indices = @transform_3, window_bounds = array<i64: 1, 1, 1, 8>}, {transform_indices = @transform_4, window_bounds = array<i64: 1, 1, 1>}, {transform_indices = @transform_5, window_bounds = array<i64: 1, 1, 1, 4, 8>}]} {
    %c0 = arith.constant 0 : index
    %c0_0 = arith.constant 0 : index
    %c0_1 = arith.constant 0 : index
    %c0_2 = arith.constant 0 : index
    %c0_3 = arith.constant 0 : index
    %c0_4 = arith.constant 0 : index
    %0 = vector.load %arg3[%c0, %c0_0, %c0_1, %c0_2, %c0_3, %c0_4] : memref<1x1x1x4x8x8xbf16, #tpu.memory_space<vmem>>, vector<1x1x1x4x8x8xbf16>
    %1 = vector.shape_cast %0 : vector<1x1x1x4x8x8xbf16> to vector<4x8x8xbf16>
    %2 = arith.extf %1 : vector<4x8x8xbf16> to vector<4x8x8xf32>
    %c0_5 = arith.constant 0 : index
    %c0_6 = arith.constant 0 : index
    %c0_7 = arith.constant 0 : index
    %c0_8 = arith.constant 0 : index
    %3 = vector.load %arg4[%c0_5, %c0_6, %c0_7, %c0_8] : memref<1x1x1x8xf32, #tpu.memory_space<vmem>>, vector<1x1x1x8xf32>
    %4 = vector.shape_cast %3 : vector<1x1x1x8xf32> to vector<1x1x8xf32>
    %5 = vector.broadcast %4 : vector<1x1x8xf32> to vector<4x8x8xf32>
    %6 = arith.mulf %2, %5 : vector<4x8x8xf32>
    %c0_9 = arith.constant 0 : index
    %c0_10 = arith.constant 0 : index
    %c0_11 = arith.constant 0 : index
    %c0_12 = arith.constant 0 : index
    %7 = vector.load %arg5[%c0_9, %c0_10, %c0_11, %c0_12] : memref<1x1x1x8xf32, #tpu.memory_space<vmem>>, vector<1x1x1x8xf32>
    %8 = vector.shape_cast %7 : vector<1x1x1x8xf32> to vector<1x1x8xf32>
    %9 = vector.broadcast %8 : vector<1x1x8xf32> to vector<4x8x8xf32>
    %10 = arith.addf %6, %9 : vector<4x8x8xf32>
    %cst = arith.constant 0.000000e+00 : f32
    %11 = vector.broadcast %cst : f32 to vector<4x8x8xf32>
    %12 = arith.maximumf %10, %11 : vector<4x8x8xf32>
    %c0_13 = arith.constant 0 : index
    %c0_14 = arith.constant 0 : index
    %c0_15 = arith.constant 0 : index
    %c0_16 = arith.constant 0 : index
    %13 = vector.load %arg6[%c0_13, %c0_14, %c0_15, %c0_16] : memref<1x1x1x8xf32, #tpu.memory_space<vmem>>, vector<1x1x1x8xf32>
    %14 = vector.shape_cast %13 : vector<1x1x1x8xf32> to vector<1x1x8xf32>
    %15 = vector.broadcast %14 : vector<1x1x8xf32> to vector<4x8x8xf32>
    %16 = arith.mulf %12, %15 : vector<4x8x8xf32>
    %cst_17 = arith.constant dense<0.000000e+00> : vector<4x8xf32>
    %17 = vector.multi_reduction <add>, %16, %cst_17 [2] : vector<4x8x8xf32> to vector<4x8xf32>
    %c0_18 = arith.constant 0 : index
    %c0_19 = arith.constant 0 : index
    %c0_20 = arith.constant 0 : index
    %18 = vector.load %arg7[%c0_18, %c0_19, %c0_20] : memref<1x1x1xf32, #tpu.memory_space<vmem>>, vector<1x1x1xf32>
    %19 = vector.shape_cast %18 : vector<1x1x1xf32> to vector<1x1xf32>
    %20 = vector.broadcast %19 : vector<1x1xf32> to vector<4x8xf32>
    %21 = arith.addf %17, %20 : vector<4x8xf32>
    %c0_21 = arith.constant 0 : index
    %c0_22 = arith.constant 0 : index
    %c0_23 = arith.constant 0 : index
    %c0_24 = arith.constant 0 : index
    %c0_25 = arith.constant 0 : index
    %22 = vector.load %arg8[%c0_21, %c0_22, %c0_23, %c0_24, %c0_25] : memref<1x1x1x4x8xf32, #tpu.memory_space<vmem>>, vector<1x1x1x4x8xf32>
    %23 = vector.shape_cast %22 : vector<1x1x1x4x8xf32> to vector<4x8xf32>
    %24 = vector.shape_cast %21 : vector<4x8xf32> to vector<1x1x1x4x8xf32>
    tpu.vector_store %arg8[%c0_21, %c0_22, %c0_23, %c0_24, %c0_25], %24 {strides = array<i32>} : memref<1x1x1x4x8xf32, #tpu.memory_space<vmem>>, vector<1x1x1x4x8xf32>,
    return
  }
  func.func @transform_0(%arg0: i32, %arg1: i32, %arg2: i32) -> (i32, i32, i32, i32, i32, i32) {
    %c0_i32 = arith.constant 0 : i32
    %c0_i32_0 = arith.constant 0 : i32
    %c0_i32_1 = arith.constant 0 : i32
    %c0_i32_2 = arith.constant 0 : i32
    return %arg0, %arg1, %arg2, %c0_i32, %c0_i32_0, %c0_i32_1 : i32, i32, i32, i32, i32, i32
  }
  func.func @transform_1(%arg0: i32, %arg1: i32, %arg2: i32) -> (i32, i32, i32, i32) {
    %c0_i32 = arith.constant 0 : i32
    %c0_i32_0 = arith.constant 0 : i32
    %c0_i32_1 = arith.constant 0 : i32
    %c0_i32_2 = arith.constant 0 : i32
    return %arg0, %c0_i32, %c0_i32_0, %c0_i32_1 : i32, i32, i32, i32
  }
  func.func @transform_2(%arg0: i32, %arg1: i32, %arg2: i32) -> (i32, i32, i32, i32) {
    %c0_i32 = arith.constant 0 : i32
    %c0_i32_0 = arith.constant 0 : i32
    %c0_i32_1 = arith.constant 0 : i32
    %c0_i32_2 = arith.constant 0 : i32
    return %arg0, %c0_i32, %c0_i32_0, %c0_i32_1 : i32, i32, i32, i32
  }
  func.func @transform_3(%arg0: i32, %arg1: i32, %arg2: i32) -> (i32, i32, i32, i32) {
    %c0_i32 = arith.constant 0 : i32
    %c0_i32_0 = arith.constant 0 : i32
    %c0_i32_1 = arith.constant 0 : i32
    %c0_i32_2 = arith.constant 0 : i32
    return %arg0, %c0_i32, %c0_i32_0, %c0_i32_1 : i32, i32, i32, i32
  }
  func.func @transform_4(%arg0: i32, %arg1: i32, %arg2: i32) -> (i32, i32, i32) {
    %c0_i32 = arith.constant 0 : i32
    %c0_i32_0 = arith.constant 0 : i32
    %c0_i32_1 = arith.constant 0 : i32
    return %arg0, %c0_i32, %c0_i32_0 : i32, i32, i32
  }
  func.func @transform_5(%arg0: i32, %arg1: i32, %arg2: i32) -> (i32, i32, i32, i32, i32) {
    %c0_i32 = arith.constant 0 : i32
    %c0_i32_0 = arith.constant 0 : i32
    %c0_i32_1 = arith.constant 0 : i32
    return %arg0, %arg1, %arg2, %c0_i32, %c0_i32_0 : i32, i32, i32, i32, i32
  }
}

</mosaic_0001>

<llo_original>
// kernel: _lambda_.7
$region0: #{_lambda_.7}
  #allocation0 [shape = 'u32[]', space=smem, size = 0x4, offset = 0x4, fixed_abs, tag = 'smem constant byte address 0x4 - core index']
  #allocation1 [shape = 'u32[72,128]{1,0:T(1,128)}', space=vmem, size = 0x9000, scoped, tag = 'internal scratch']
  %s0 = inlined_call_operand.vmem [shape: bf16[2,9,9,16], index: 0, kind: input, shape index: {}, may-alias: {0,1}]
  %s1 = inlined_call_operand.vmem [shape: bf16[2,9,9,16], index: 1, kind: input, shape index: {}, may-alias: {0,1}]
  %s2 = inlined_call_operand.vmem [shape: bf16[4,16,8], index: 2, kind: input, shape index: {}]
  %s3 = inlined_call_operand.vmem [shape: f32[1,8], index: 3, kind: input, shape index: {}]
  %s4 = inlined_call_operand.vmem [shape: bf16[2,8,8,8], index: 4, kind: output, shape index: {}]
  %s5 = sld [smem:[#allocation0]]
  $region49: #{_lambda_.7} parent=0
    _
  %s7 = ssub.s32 1, %s5
  %s8 = scalar_select 0, %s7, %s5
  loop: start=0, step=1, limit=18
  $region2: #{_lambda_.7} parent=0 // loop_pre_header
    _
  $region3: #{_lambda_.7} parent=0 // loop_header
    %s10 = sphi 0, %s14
    %p11 = scmp.ge.s32.totalorder %s10, 18
    %s17 = sphi 0, %s29
    %s18 = sphi 0, %s25
    %s19 = sphi 0, %s17
    %s20 = sphi 0, %s18
    %s21 = sphi 0, %s19
    %s22 = sphi 0, %s20
    %s34 = sphi 0, %s36
    %s37 = sphi 0, %s34
    %s38 = sphi 0, %s37
    %s54 = sphi 0, %s38
    %s64 = sphi 0, %s66
    %s67 = sphi 0, %s64
    %s68 = sphi 0, %s67
    %s84 = sphi 0, %s68
    %s88 = sphi 0, %s88
    %s90 = sphi 0, %s88
    %s91 = sphi 0, %s90
    %s105 = sphi 0, %s91
    %s109 = sphi 0, %s109
    %s111 = sphi 0, %s109
    %s112 = sphi 0, %s111
    %s126 = sphi 0, %s112
    %s134 = sphi 0, %s136
    %s137 = sphi 0, %s134
    %s138 = sphi 0, %s137
    %s154 = sphi 0, %s138
  $region4: #{_lambda_.7} parent=0 // loop_header_branch
    %13 = sbr.rel (%p11) target = $region8
  $region5: #{_lambda_.7} parent=0 // loop_body
    %s15 = ssub.s32 %s10, 1
    %s16 = ssub.s32 %s10, 2
    %s23 = sadd.s32 1, %s18
    %p24 = scmp.ge.s32.totalorder %s23, 8
    %s25 = scalar_select %p24, 0, %s23
    %s26 = sadd.s32 1, %s17
    %s27 = scalar_select %p24, %s26, %s17
    %p28 = scmp.ge.s32.totalorder %s27, 2
    %s29 = scalar_select %p28, 0, %s27
    %s30 = ssub.s32 %s17, %s29
    %s31 = ssub.s32 %s18, %s25
    %s32 = sor.u32 %s30, %s31
    %p33 = scmp.eq.s32.totalorder %s32, 0
    %s35 = sadd.s32 %s34, 1
    %s36 = scalar_select %p33, %s34, %s35
    %p39 = pneg %p33
    %p40 = scmp.eq.s32.totalorder %s10, 15
    %p41 = por %p39, %p40
    %p42 = scmp.ne.s32.totalorder %s34, %s37
    %p43 = scmp.eq.s32.totalorder %s10, 0
    %p44 = por %p42, %p43
    %p45 = scmp.ne.s32.totalorder %s34, %s37
    %p46 = scmp.eq.s32.totalorder %s15, 15
    %p47 = por %p45, %p46
    %p48 = scmp.ne.s32.totalorder %s37, %s38
    %p49 = scmp.eq.s32.totalorder %s15, 0
    %p50 = por %p48, %p49
    %p51 = scmp.ne.s32.totalorder %s37, %s38
    %p52 = scmp.eq.s32.totalorder %s16, 15
    %p53 = por %p51, %p52
    %p55 = scmp.ne.s32.totalorder %s38, %s54
    %p56 = scmp.eq.s32.totalorder %s16, 0
    %p57 = por %p55, %p56
    %s58 = sadd.s32 %s18, 1
    %s59 = sadd.s32 %s25, 1
    %s60 = ssub.s32 %s17, %s29
    %s61 = ssub.s32 %s58, %s59
    %s62 = sor.u32 %s60, %s61
    %p63 = scmp.eq.s32.totalorder %s62, 0
    %s65 = sadd.s32 %s64, 1
    %s66 = scalar_select %p63, %s64, %s65
    %p69 = pneg %p63
    %p70 = scmp.eq.s32.totalorder %s10, 15
    %p71 = por %p69, %p70
    %p72 = scmp.ne.s32.totalorder %s64, %s67
    %p73 = scmp.eq.s32.totalorder %s10, 0
    %p74 = por %p72, %p73
    %p75 = scmp.ne.s32.totalorder %s64, %s67
    %p76 = scmp.eq.s32.totalorder %s15, 15
    %p77 = por %p75, %p76
    %p78 = scmp.ne.s32.totalorder %s67, %s68
    %p79 = scmp.eq.s32.totalorder %s15, 0
    %p80 = por %p78, %p79
    %p81 = scmp.ne.s32.totalorder %s67, %s68
    %p82 = scmp.eq.s32.totalorder %s16, 15
    %p83 = por %p81, %p82
    %p85 = scmp.ne.s32.totalorder %s68, %s84
    %p86 = scmp.eq.s32.totalorder %s16, 0
    %p87 = por %p85, %p86
    %s89 = sadd.s32 %s88, 1
    %p92 = scmp.eq.s32.totalorder %s10, 15
    %p93 = scmp.ne.s32.totalorder %s88, %s90
    %p94 = scmp.eq.s32.totalorder %s10, 0
    %p95 = por %p93, %p94
    %p96 = scmp.ne.s32.totalorder %s88, %s90
    %p97 = scmp.eq.s32.totalorder %s15, 15
    %p98 = por %p96, %p97
    %p99 = scmp.ne.s32.totalorder %s90, %s91
    %p100 = scmp.eq.s32.totalorder %s15, 0
    %p101 = por %p99, %p100
    %p102 = scmp.ne.s32.totalorder %s90, %s91
    %p103 = scmp.eq.s32.totalorder %s16, 15
    %p104 = por %p102, %p103
    %p106 = scmp.ne.s32.totalorder %s91, %s105
    %p107 = scmp.eq.s32.totalorder %s16, 0
    %p108 = por %p106, %p107
    %s110 = sadd.s32 %s109, 1
    %p113 = scmp.eq.s32.totalorder %s10, 15
    %p114 = scmp.ne.s32.totalorder %s109, %s111
    %p115 = scmp.eq.s32.totalorder %s10, 0
    %p116 = por %p114, %p115
    %p117 = scmp.ne.s32.totalorder %s109, %s111
    %p118 = scmp.eq.s32.totalorder %s15, 15
    %p119 = por %p117, %p118
    %p120 = scmp.ne.s32.totalorder %s111, %s112
    %p121 = scmp.eq.s32.totalorder %s15, 0
    %p122 = por %p120, %p121
    %p123 = scmp.ne.s32.totalorder %s111, %s112
    %p124 = scmp.eq.s32.totalorder %s16, 15
    %p125 = por %p123, %p124
    %p127 = scmp.ne.s32.totalorder %s112, %s126
    %p128 = scmp.eq.s32.totalorder %s16, 0
    %p129 = por %p127, %p128
    %s130 = ssub.s32 %s17, %s29
    %s131 = ssub.s32 %s18, %s25
    %s132 = sor.u32 %s130, %s131
    %p133 = scmp.eq.s32.totalorder %s132, 0
    %s135 = sadd.s32 %s134, 1
    %s136 = scalar_select %p133, %s134, %s135
    %p139 = pneg %p133
    %p140 = scmp.eq.s32.totalorder %s10, 15
    %p141 = por %p139, %p140
    %p142 = scmp.ne.s32.totalorder %s134, %s137
    %p143 = scmp.eq.s32.totalorder %s10, 0
    %p144 = por %p142, %p143
    %p145 = scmp.ne.s32.totalorder %s134, %s137
    %p146 = scmp.eq.s32.totalorder %s15, 15
    %p147 = por %p145, %p146
    %p148 = scmp.ne.s32.totalorder %s137, %s138
    %p149 = scmp.eq.s32.totalorder %s15, 0
    %p150 = por %p148, %p149
    %p151 = scmp.ne.s32.totalorder %s137, %s138
    %p152 = scmp.eq.s32.totalorder %s16, 15
    %p153 = por %p151, %p152
    %p155 = scmp.ne.s32.totalorder %s138, %s154
    %p156 = scmp.eq.s32.totalorder %s16, 0
    %p157 = por %p155, %p156
    %p158 = scmp.le.s32.totalorder 1, %s10
    %p159 = scmp.lt.s32.totalorder %s10, 17
    %p160 = pnand %p158, %p159
    %p161 = pneg %p160
    // Predicated region
    $region9: #{_lambda_.7} parent=5 // pred_check
      _
    $region10: #{_lambda_.7} parent=5 // pred_check_branch
      %163 = sbr.rel (%p160) target = $region12
    $region11: #{_lambda_.7} parent=5 // pred_region
      %s164 = ssub.s32 %s10, 1
      // Predicated region
      $region13: #{_lambda_.7} parent=11 // pred_check
        %p165 = pneg %p101
      $region14: #{_lambda_.7} parent=11 // pred_check_branch
        %167 = sbr.rel (%p165) target = $region16
      $region15: #{_lambda_.7} parent=11 // pred_region
        _
      $region16: #{_lambda_.7} parent=11 // pred_fallthru
        _
      // Predicated region
      $region17: #{_lambda_.7} parent=11 // pred_check
        %p168 = pneg %p122
      $region18: #{_lambda_.7} parent=11 // pred_check_branch
        %170 = sbr.rel (%p168) target = $region20
      $region19: #{_lambda_.7} parent=11 // pred_region
        _
      $region20: #{_lambda_.7} parent=11 // pred_fallthru
        _
    $region12: #{_lambda_.7} parent=5 // pred_fallthru
      _
    %p171 = scmp.lt.s32.totalorder %s10, 16
    // Predicated region
    $region21: #{_lambda_.7} parent=5 // pred_check
      %p172 = pneg %p171
    $region22: #{_lambda_.7} parent=5 // pred_check_branch
      %174 = sbr.rel (%p172) target = $region24
    $region23: #{_lambda_.7} parent=5 // pred_region
      // Predicated region
      $region25: #{_lambda_.7} parent=23 // pred_check
        %p175 = pneg %p44
      $region26: #{_lambda_.7} parent=23 // pred_check_branch
        %177 = sbr.rel (%p175) target = $region28
      $region27: #{_lambda_.7} parent=23 // pred_region
        %p178 = scmp.lt.s32.totalorder %s17, 1
        %s179 = scalar_select %p178, %s17, 1
        %p180 = scmp.lt.s32.totalorder %s18, 8
        %s181 = scalar_select %p180, %s18, 8
        %s182 = smul.addr %s181, 2
        %s183 = smul.addr %s179, 18
        %s184 = sadd.s32 %s182, %s183
        %s185 = smul.addr %s184, 4
        %s186 = scalar_lea.vmem %s0, %s185
      $region28: #{_lambda_.7} parent=23 // pred_fallthru
        _
      // Predicated region
      $region29: #{_lambda_.7} parent=23 // pred_check
        %p187 = pneg %p74
      $region30: #{_lambda_.7} parent=23 // pred_check_branch
        %189 = sbr.rel (%p187) target = $region32
      $region31: #{_lambda_.7} parent=23 // pred_region
        %s190 = sadd.s32 %s18, 1
        %p191 = scmp.lt.s32.totalorder %s17, 1
        %s192 = scalar_select %p191, %s17, 1
        %p193 = scmp.lt.s32.totalorder %s190, 8
        %s194 = scalar_select %p193, %s190, 8
        %s195 = smul.addr %s194, 2
        %s196 = smul.addr %s192, 18
        %s197 = sadd.s32 %s195, %s196
        %s198 = smul.addr %s197, 4
        %s199 = scalar_lea.vmem %s1, %s198
        %s200 = sadd.s32 %s18, 1
      $region32: #{_lambda_.7} parent=23 // pred_fallthru
        _
    $region24: #{_lambda_.7} parent=5 // pred_fallthru
      _
    %p201 = scmp.le.s32.totalorder 1, %s10
    %p202 = scmp.lt.s32.totalorder %s10, 17
    %p203 = pnand %p201, %p202
    %p204 = pneg %p203
    // Predicated region
    $region33: #{_lambda_.7} parent=5 // pred_check
      _
    $region34: #{_lambda_.7} parent=5 // pred_check_branch
      %206 = sbr.rel (%p203) target = $region36
    $region35: #{_lambda_.7} parent=5 // pred_region
      %s207 = ssub.s32 %s10, 1
      %p208 = scmp.lt.s32.totalorder %s19, 1
      %s209 = scalar_select %p208, %s19, 1
      %p210 = scmp.lt.s32.totalorder %s20, 8
      %s211 = scalar_select %p210, %s20, 8
      %s212 = smul.addr %s211, 2
      %s213 = smul.addr %s209, 18
      %s214 = sadd.s32 %s212, %s213
      %s215 = smul.addr %s214, 4
      %s216 = scalar_lea.vmem %s0, %s215
      %p217 = pneg %p50
      %p218 = pneg %p47
      %s219 = sadd.s32 %s20, 1
      %p220 = scmp.lt.s32.totalorder %s19, 1
      %s221 = scalar_select %p220, %s19, 1
      %p222 = scmp.lt.s32.totalorder %s219, 8
      %s223 = scalar_select %p222, %s219, 8
      %s224 = smul.addr %s223, 2
      %s225 = smul.addr %s221, 18
      %s226 = sadd.s32 %s224, %s225
      %s227 = smul.addr %s226, 4
      %s228 = scalar_lea.vmem %s1, %s227
      %p229 = pneg %p80
      %p230 = pneg %p77
      %p231 = pneg %p101
      %p232 = pneg %p98
      %p233 = pneg %p122
      %p234 = pneg %p119
      %p235 = pneg %p150
      %p236 = pneg %p147
      %p237 = scmp.lt.s32.totalorder %s19, 1
      %s238 = scalar_select %p237, %s19, 1
      %p239 = scmp.lt.s32.totalorder %s20, 7
      %s240 = scalar_select %p239, %s20, 7
      %s241 = smul.addr %s238, 8
      %s242 = sadd.s32 %s240, %s241
      %s243 = smul.addr %s242, 4
      %s244 = scalar_lea.vmem %s4, %s243
      %p245 = scmp.lt.s32.totalorder %s19, 1
      %s246 = scalar_select %p245, %s19, 1
      %p247 = scmp.lt.s32.totalorder %s20, 8
      %s248 = scalar_select %p247, %s20, 8
      %s249 = smul.addr %s248, 2
      %s250 = smul.addr %s246, 18
      %s251 = sadd.s32 %s249, %s250
      %s252 = smul.addr %s251, 4
      %s253 = scalar_lea.vmem %s0, %s252
      %s254 = sadd.s32 %s20, 1
      %p255 = scmp.lt.s32.totalorder %s19, 1
      %s256 = scalar_select %p255, %s19, 1
      %p257 = scmp.lt.s32.totalorder %s254, 8
      %s258 = scalar_select %p257, %s254, 8
      %s259 = smul.addr %s258, 2
      %s260 = smul.addr %s256, 18
      %s261 = sadd.s32 %s259, %s260
      %s262 = smul.addr %s261, 4
      %s263 = scalar_lea.vmem %s1, %s262
      %s264 = sadd.s32 %s20, 1
      %p265 = scmp.lt.s32.totalorder %s19, 1
      %s266 = scalar_select %p265, %s19, 1
      %p267 = scmp.lt.s32.totalorder %s20, 7
      %s268 = scalar_select %p267, %s20, 7
      %s269 = smul.addr %s266, 8
      %s270 = sadd.s32 %s268, %s269
      %s271 = smul.addr %s270, 4
      %s272 = scalar_lea.vmem %s4, %s271
      %v274 = vld [vmem:[%s253] sm:$0xf]
      %v275 = vld [vmem:[%s253 + $0x4] sm:$0x1]
      %v276 = vld [vmem:[%s263] sm:$0xf]
      %v277 = vld [vmem:[%s263 + $0x4] sm:$0x1]
      %v278 = vld [vmem:[%s2] sm:$0xf]
      %v279 = vld [vmem:[%s2 + $0x4] sm:$0xf]
      %s280 = scalar_lea.vmem %s2, 8
      %v281 = vld [vmem:[%s280] sm:$0xf]
      %v282 = vld [vmem:[%s280 + $0x4] sm:$0xf]
      %v285 = vunpack.c.l.b16 %v274
      %v286 = vunpack.c.l.b16 %v275
      %v287 = vpack.c.b16 %v286, %v285
      %v289 = vshrl.u32 %v287, 16
      %v291 = vshll.u32 %v287, 16
      %v293 = vrot.slane %v291, 1
      %v294 = vor.u32 %v289, %v293
      %v297 = vunpack.c.l.b16 %v281
      %v298 = vunpack.c.l.b16 %v282
      %v299 = vpack.c.b16 %v298, %v297
      %vm301 = vcmask 130048
      %v303 = vsel %vm301, %v294, 0
      %305 = vmatpush.bf16.msra.mxu0 0
      %306 = vmatpush.bf16.msra.mxu0 0
      %307 = vmatpush.bf16.msra.mxu0 0
      %308 = vmatpush.bf16.msra.mxu0 0
      %309 = vmatpush.bf16.msra.mxu0 0
      %310 = vmatpush.bf16.msra.mxu0 0
      %311 = vmatpush.bf16.msra.mxu0 0
      %312 = vmatpush.bf16.msra.mxu0 %v299
      %313 = vmatmul.bf16.gmra.mxu0 %v303
      %v314 = vpop.f32.mrf.mxu0
      %v315 = vadd.f32 0.0, %v314
      %v316 = vpop.f32.mrf.mxu0
      %317 = vdwg.mxu0
      %v320 = vunpack.c.l.b16 %v278
      %v321 = vunpack.c.l.b16 %v279
      %v322 = vpack.c.b16 %v321, %v320
      %v325 = vsel %vm301, %v274, 0
      %327 = vmatpush.bf16.msra.mxu0 0
      %328 = vmatpush.bf16.msra.mxu0 0
      %329 = vmatpush.bf16.msra.mxu0 0
      %330 = vmatpush.bf16.msra.mxu0 0
      %331 = vmatpush.bf16.msra.mxu0 0
      %332 = vmatpush.bf16.msra.mxu0 0
      %333 = vmatpush.bf16.msra.mxu0 0
      %334 = vmatpush.bf16.msra.mxu0 %v322
      %335 = vmatmul.bf16.gmra.mxu0 %v325
      %v336 = vpop.f32.mrf.mxu0
      %v337 = vadd.f32 %v315, %v336
      %v338 = vpop.f32.mrf.mxu0
      %339 = vdwg.mxu0
      %s340 = scalar_lea.vmem %s2, 16
      %v341 = vld [vmem:[%s340] sm:$0xf]
      %v342 = vld [vmem:[%s340 + $0x4] sm:$0xf]
      %v345 = vunpack.c.l.b16 %v341
      %v346 = vunpack.c.l.b16 %v342
      %v347 = vpack.c.b16 %v346, %v345
      %v350 = vsel %vm301, %v276, 0
      %352 = vmatpush.bf16.msra.mxu0 0
      %353 = vmatpush.bf16.msra.mxu0 0
      %354 = vmatpush.bf16.msra.mxu0 0
      %355 = vmatpush.bf16.msra.mxu0 0
      %356 = vmatpush.bf16.msra.mxu0 0
      %357 = vmatpush.bf16.msra.mxu0 0
      %358 = vmatpush.bf16.msra.mxu0 0
      %359 = vmatpush.bf16.msra.mxu0 %v347
      %360 = vmatmul.bf16.gmra.mxu0 %v350
      %v361 = vpop.f32.mrf.mxu0
      %v362 = vadd.f32 0.0, %v361
      %v363 = vpop.f32.mrf.mxu0
      %364 = vdwg.mxu0
      %v365 = vadd.f32 %v337, %v362
      %s366 = scalar_lea.vmem %s2, 24
      %v367 = vld [vmem:[%s366] sm:$0xf]
      %v368 = vld [vmem:[%s366 + $0x4] sm:$0xf]
      %v371 = vunpack.c.l.b16 %v276
      %v372 = vunpack.c.l.b16 %v277
      %v373 = vpack.c.b16 %v372, %v371
      %v375 = vshrl.u32 %v373, 16
      %v377 = vshll.u32 %v373, 16
      %v379 = vrot.slane %v377, 1
      %v380 = vor.u32 %v375, %v379
      %v383 = vunpack.c.l.b16 %v367
      %v384 = vunpack.c.l.b16 %v368
      %v385 = vpack.c.b16 %v384, %v383
      %v388 = vsel %vm301, %v380, 0
      %390 = vmatpush.bf16.msra.mxu0 0
      %391 = vmatpush.bf16.msra.mxu0 0
      %392 = vmatpush.bf16.msra.mxu0 0
      %393 = vmatpush.bf16.msra.mxu0 0
      %394 = vmatpush.bf16.msra.mxu0 0
      %395 = vmatpush.bf16.msra.mxu0 0
      %396 = vmatpush.bf16.msra.mxu0 0
      %397 = vmatpush.bf16.msra.mxu0 %v385
      %398 = vmatmul.bf16.gmra.mxu0 %v388
      %v399 = vpop.f32.mrf.mxu0
      %v400 = vadd.f32 0.0, %v399
      %v401 = vpop.f32.mrf.mxu0
      %402 = vdwg.mxu0
      %v403 = vadd.f32 %v365, %v400
      %v404 = vld [vmem:[%s3] sm:$0x1]
      %v406 = vperm.slane %v404, 0
      %v408 = vadd.f32 %v403, %v406
      %v409 = vpack.c.bf16 %v408, %v408
      %vm410 = vcmask 60416
      %411 = vst.msk [vmem:[%s272] sm:$0xf] %vm410, %v409
      %p412 = scmp.lt.s32.totalorder %s19, 1
      %s413 = scalar_select %p412, %s19, 1
      %p414 = scmp.lt.s32.totalorder %s20, 7
      %s415 = scalar_select %p414, %s20, 7
      %s416 = smul.addr %s413, 8
      %s417 = sadd.s32 %s415, %s416
      %s418 = smul.addr %s417, 4
      %s419 = scalar_lea.vmem %s4, %s418
      // Predicated region
      $region37: #{_lambda_.7} parent=35 // pred_check
        %p420 = pneg %p147
      $region38: #{_lambda_.7} parent=35 // pred_check_branch
        %422 = sbr.rel (%p420) target = $region40
      $region39: #{_lambda_.7} parent=35 // pred_region
        _
      $region40: #{_lambda_.7} parent=35 // pred_fallthru
        _
    $region36: #{_lambda_.7} parent=5 // pred_fallthru
      _
    %p423 = scmp.le.s32.totalorder 2, %s10
    // Predicated region
    $region41: #{_lambda_.7} parent=5 // pred_check
      %p424 = pneg %p423
    $region42: #{_lambda_.7} parent=5 // pred_check_branch
      %426 = sbr.rel (%p424) target = $region44
    $region43: #{_lambda_.7} parent=5 // pred_region
      %s427 = ssub.s32 %s10, 2
      // Predicated region
      $region45: #{_lambda_.7} parent=43 // pred_check
        %p428 = pneg %p153
      $region46: #{_lambda_.7} parent=43 // pred_check_branch
        %430 = sbr.rel (%p428) target = $region48
      $region47: #{_lambda_.7} parent=43 // pred_region
        %p431 = scmp.lt.s32.totalorder %s21, 1
        %s432 = scalar_select %p431, %s21, 1
        %p433 = scmp.lt.s32.totalorder %s22, 7
        %s434 = scalar_select %p433, %s22, 7
        %s435 = smul.addr %s432, 8
        %s436 = sadd.s32 %s434, %s435
        %s437 = smul.addr %s436, 4
        %s438 = scalar_lea.vmem %s4, %s437
      $region48: #{_lambda_.7} parent=43 // pred_fallthru
        _
    $region44: #{_lambda_.7} parent=5 // pred_fallthru
      _
  $region6: #{_lambda_.7} parent=0 // loop_footer
    %s14 = sadd.s32 1, %s10
  $region7: #{_lambda_.7} parent=0 // loop_footer_branch
    %9 = sbr.rel target = $region3
  $region8: #{_lambda_.7} parent=0 // loop_exit
    _

// kernel: _lambda_.8
$region0: #{_lambda_.8}
  #allocation0 [shape = 'u32[]', space=smem, size = 0x4, offset = 0x4, fixed_abs, tag = 'smem constant byte address 0x4 - core index']
  #allocation1 [shape = 'u32[72,128]{1,0:T(1,128)}', space=vmem, size = 0x9000, scoped, tag = 'internal scratch']
  %s0 = inlined_call_operand.vmem [shape: bf16[2,5,5,32], index: 0, kind: input, shape index: {}, may-alias: {0,1}]
  %s1 = inlined_call_operand.vmem [shape: bf16[2,5,5,32], index: 1, kind: input, shape index: {}, may-alias: {0,1}]
  %s2 = inlined_call_operand.vmem [shape: bf16[4,32,16], index: 2, kind: input, shape index: {}]
  %s3 = inlined_call_operand.vmem [shape: f32[1,16], index: 3, kind: input, shape index: {}]
  %s4 = inlined_call_operand.vmem [shape: bf16[2,4,4,16], index: 4, kind: output, shape index: {0}]
  %s5 = inlined_call_operand.vmem [shape: f32[1,16], index: 5, kind: output, shape index: {1}]
  %s6 = inlined_call_operand.vmem [shape: f32[1,16], index: 6, kind: output, shape index: {2}]
  %7 = xla_tuple %s4, %s5, %s6
  %s8 = sld [smem:[#allocation0]]
  $region69: #{_lambda_.8} parent=0
    _
  %s10 = ssub.s32 1, %s8
  %s11 = scalar_select 0, %s10, %s8
  loop: start=0, step=1, limit=10
  $region2: #{_lambda_.8} parent=0 // loop_pre_header
    _
  $region3: #{_lambda_.8} parent=0 // loop_header
    %s13 = sphi 0, %s17
    %p14 = scmp.ge.s32.totalorder %s13, 10
    %s20 = sphi 0, %s32
    %s21 = sphi 0, %s28
    %s22 = sphi 0, %s20
    %s23 = sphi 0, %s21
    %s24 = sphi 0, %s22
    %s25 = sphi 0, %s23
    %s37 = sphi 0, %s39
    %s40 = sphi 0, %s37
    %s41 = sphi 0, %s40
    %s57 = sphi 0, %s41
    %s67 = sphi 0, %s69
    %s70 = sphi 0, %s67
    %s71 = sphi 0, %s70
    %s87 = sphi 0, %s71
    %s91 = sphi 0, %s91
    %s93 = sphi 0, %s91
    %s94 = sphi 0, %s93
    %s108 = sphi 0, %s94
    %s112 = sphi 0, %s112
    %s114 = sphi 0, %s112
    %s115 = sphi 0, %s114
    %s129 = sphi 0, %s115
    %s137 = sphi 0, %s139
    %s140 = sphi 0, %s137
    %s141 = sphi 0, %s140
    %s157 = sphi 0, %s141
    %s161 = sphi 0, %s161
    %s163 = sphi 0, %s161
    %s164 = sphi 0, %s163
    %s178 = sphi 0, %s164
    %s182 = sphi 0, %s182
    %s184 = sphi 0, %s182
    %s185 = sphi 0, %s184
    %s199 = sphi 0, %s185
  $region4: #{_lambda_.8} parent=0 // loop_header_branch
    %16 = sbr.rel (%p14) target = $region8
  $region5: #{_lambda_.8} parent=0 // loop_body
    %s18 = ssub.s32 %s13, 1
    %s19 = ssub.s32 %s13, 2
    %s26 = sadd.s32 1, %s21
    %p27 = scmp.ge.s32.totalorder %s26, 4
    %s28 = scalar_select %p27, 0, %s26
    %s29 = sadd.s32 1, %s20
    %s30 = scalar_select %p27, %s29, %s20
    %p31 = scmp.ge.s32.totalorder %s30, 2
    %s32 = scalar_select %p31, 0, %s30
    %s33 = ssub.s32 %s20, %s32
    %s34 = ssub.s32 %s21, %s28
    %s35 = sor.u32 %s33, %s34
    %p36 = scmp.eq.s32.totalorder %s35, 0
    %s38 = sadd.s32 %s37, 1
    %s39 = scalar_select %p36, %s37, %s38
    %p42 = pneg %p36
    %p43 = scmp.eq.s32.totalorder %s13, 7
    %p44 = por %p42, %p43
    %p45 = scmp.ne.s32.totalorder %s37, %s40
    %p46 = scmp.eq.s32.totalorder %s13, 0
    %p47 = por %p45, %p46
    %p48 = scmp.ne.s32.totalorder %s37, %s40
    %p49 = scmp.eq.s32.totalorder %s18, 7
    %p50 = por %p48, %p49
    %p51 = scmp.ne.s32.totalorder %s40, %s41
    %p52 = scmp.eq.s32.totalorder %s18, 0
    %p53 = por %p51, %p52
    %p54 = scmp.ne.s32.totalorder %s40, %s41
    %p55 = scmp.eq.s32.totalorder %s19, 7
    %p56 = por %p54, %p55
    %p58 = scmp.ne.s32.totalorder %s41, %s57
    %p59 = scmp.eq.s32.totalorder %s19, 0
    %p60 = por %p58, %p59
    %s61 = sadd.s32 %s21, 1
    %s62 = sadd.s32 %s28, 1
    %s63 = ssub.s32 %s20, %s32
    %s64 = ssub.s32 %s61, %s62
    %s65 = sor.u32 %s63, %s64
    %p66 = scmp.eq.s32.totalorder %s65, 0
    %s68 = sadd.s32 %s67, 1
    %s69 = scalar_select %p66, %s67, %s68
    %p72 = pneg %p66
    %p73 = scmp.eq.s32.totalorder %s13, 7
    %p74 = por %p72, %p73
    %p75 = scmp.ne.s32.totalorder %s67, %s70
    %p76 = scmp.eq.s32.totalorder %s13, 0
    %p77 = por %p75, %p76
    %p78 = scmp.ne.s32.totalorder %s67, %s70
    %p79 = scmp.eq.s32.totalorder %s18, 7
    %p80 = por %p78, %p79
    %p81 = scmp.ne.s32.totalorder %s70, %s71
    %p82 = scmp.eq.s32.totalorder %s18, 0
    %p83 = por %p81, %p82
    %p84 = scmp.ne.s32.totalorder %s70, %s71
    %p85 = scmp.eq.s32.totalorder %s19, 7
    %p86 = por %p84, %p85
    %p88 = scmp.ne.s32.totalorder %s71, %s87
    %p89 = scmp.eq.s32.totalorder %s19, 0
    %p90 = por %p88, %p89
    %s92 = sadd.s32 %s91, 1
    %p95 = scmp.eq.s32.totalorder %s13, 7
    %p96 = scmp.ne.s32.totalorder %s91, %s93
    %p97 = scmp.eq.s32.totalorder %s13, 0
    %p98 = por %p96, %p97
    %p99 = scmp.ne.s32.totalorder %s91, %s93
    %p100 = scmp.eq.s32.totalorder %s18, 7
    %p101 = por %p99, %p100
    %p102 = scmp.ne.s32.totalorder %s93, %s94
    %p103 = scmp.eq.s32.totalorder %s18, 0
    %p104 = por %p102, %p103
    %p105 = scmp.ne.s32.totalorder %s93, %s94
    %p106 = scmp.eq.s32.totalorder %s19, 7
    %p107 = por %p105, %p106
    %p109 = scmp.ne.s32.totalorder %s94, %s108
    %p110 = scmp.eq.s32.totalorder %s19, 0
    %p111 = por %p109, %p110
    %s113 = sadd.s32 %s112, 1
    %p116 = scmp.eq.s32.totalorder %s13, 7
    %p117 = scmp.ne.s32.totalorder %s112, %s114
    %p118 = scmp.eq.s32.totalorder %s13, 0
    %p119 = por %p117, %p118
    %p120 = scmp.ne.s32.totalorder %s112, %s114
    %p121 = scmp.eq.s32.totalorder %s18, 7
    %p122 = por %p120, %p121
    %p123 = scmp.ne.s32.totalorder %s114, %s115
    %p124 = scmp.eq.s32.totalorder %s18, 0
    %p125 = por %p123, %p124
    %p126 = scmp.ne.s32.totalorder %s114, %s115
    %p127 = scmp.eq.s32.totalorder %s19, 7
    %p128 = por %p126, %p127
    %p130 = scmp.ne.s32.totalorder %s115, %s129
    %p131 = scmp.eq.s32.totalorder %s19, 0
    %p132 = por %p130, %p131
    %s133 = ssub.s32 %s20, %s32
    %s134 = ssub.s32 %s21, %s28
    %s135 = sor.u32 %s133, %s134
    %p136 = scmp.eq.s32.totalorder %s135, 0
    %s138 = sadd.s32 %s137, 1
    %s139 = scalar_select %p136, %s137, %s138
    %p142 = pneg %p136
    %p143 = scmp.eq.s32.totalorder %s13, 7
    %p144 = por %p142, %p143
    %p145 = scmp.ne.s32.totalorder %s137, %s140
    %p146 = scmp.eq.s32.totalorder %s13, 0
    %p147 = por %p145, %p146
    %p148 = scmp.ne.s32.totalorder %s137, %s140
    %p149 = scmp.eq.s32.totalorder %s18, 7
    %p150 = por %p148, %p149
    %p151 = scmp.ne.s32.totalorder %s140, %s141
    %p152 = scmp.eq.s32.totalorder %s18, 0
    %p153 = por %p151, %p152
    %p154 = scmp.ne.s32.totalorder %s140, %s141
    %p155 = scmp.eq.s32.totalorder %s19, 7
    %p156 = por %p154, %p155
    %p158 = scmp.ne.s32.totalorder %s141, %s157
    %p159 = scmp.eq.s32.totalorder %s19, 0
    %p160 = por %p158, %p159
    %s162 = sadd.s32 %s161, 1
    %p165 = scmp.eq.s32.totalorder %s13, 7
    %p166 = scmp.ne.s32.totalorder %s161, %s163
    %p167 = scmp.eq.s32.totalorder %s13, 0
    %p168 = por %p166, %p167
    %p169 = scmp.ne.s32.totalorder %s161, %s163
    %p170 = scmp.eq.s32.totalorder %s18, 7
    %p171 = por %p169, %p170
    %p172 = scmp.ne.s32.totalorder %s163, %s164
    %p173 = scmp.eq.s32.totalorder %s18, 0
    %p174 = por %p172, %p173
    %p175 = scmp.ne.s32.totalorder %s163, %s164
    %p176 = scmp.eq.s32.totalorder %s19, 7
    %p177 = por %p175, %p176
    %p179 = scmp.ne.s32.totalorder %s164, %s178
    %p180 = scmp.eq.s32.totalorder %s19, 0
    %p181 = por %p179, %p180
    %s183 = sadd.s32 %s182, 1
    %p186 = scmp.eq.s32.totalorder %s13, 7
    %p187 = scmp.ne.s32.totalorder %s182, %s184
    %p188 = scmp.eq.s32.totalorder %s13, 0
    %p189 = por %p187, %p188
    %p190 = scmp.ne.s32.totalorder %s182, %s184
    %p191 = scmp.eq.s32.totalorder %s18, 7
    %p192 = por %p190, %p191
    %p193 = scmp.ne.s32.totalorder %s184, %s185
    %p194 = scmp.eq.s32.totalorder %s18, 0
    %p195 = por %p193, %p194
    %p196 = scmp.ne.s32.totalorder %s184, %s185
    %p197 = scmp.eq.s32.totalorder %s19, 7
    %p198 = por %p196, %p197
    %p200 = scmp.ne.s32.totalorder %s185, %s199
    %p201 = scmp.eq.s32.totalorder %s19, 0
    %p202 = por %p200, %p201
    %p203 = scmp.le.s32.totalorder 1, %s13
    %p204 = scmp.lt.s32.totalorder %s13, 9
    %p205 = pnand %p203, %p204
    %p206 = pneg %p205
    // Predicated region
    $region9: #{_lambda_.8} parent=5 // pred_check
      _
    $region10: #{_lambda_.8} parent=5 // pred_check_branch
      %208 = sbr.rel (%p205) target = $region12
    $region11: #{_lambda_.8} parent=5 // pred_region
      %s209 = ssub.s32 %s13, 1
      // Predicated region
      $region13: #{_lambda_.8} parent=11 // pred_check
        %p210 = pneg %p104
      $region14: #{_lambda_.8} parent=11 // pred_check_branch
        %212 = sbr.rel (%p210) target = $region16
      $region15: #{_lambda_.8} parent=11 // pred_region
        _
      $region16: #{_lambda_.8} parent=11 // pred_fallthru
        _
      // Predicated region
      $region17: #{_lambda_.8} parent=11 // pred_check
        %p213 = pneg %p125
      $region18: #{_lambda_.8} parent=11 // pred_check_branch
        %215 = sbr.rel (%p213) target = $region20
      $region19: #{_lambda_.8} parent=11 // pred_region
        _
      $region20: #{_lambda_.8} parent=11 // pred_fallthru
        _
    $region12: #{_lambda_.8} parent=5 // pred_fallthru
      _
    %p216 = scmp.lt.s32.totalorder %s13, 8
    // Predicated region
    $region21: #{_lambda_.8} parent=5 // pred_check
      %p217 = pneg %p216
    $region22: #{_lambda_.8} parent=5 // pred_check_branch
      %219 = sbr.rel (%p217) target = $region24
    $region23: #{_lambda_.8} parent=5 // pred_region
      // Predicated region
      $region25: #{_lambda_.8} parent=23 // pred_check
        %p220 = pneg %p47
      $region26: #{_lambda_.8} parent=23 // pred_check_branch
        %222 = sbr.rel (%p220) target = $region28
      $region27: #{_lambda_.8} parent=23 // pred_region
        %p223 = scmp.lt.s32.totalorder %s20, 1
        %s224 = scalar_select %p223, %s20, 1
        %p225 = scmp.lt.s32.totalorder %s21, 4
        %s226 = scalar_select %p225, %s21, 4
        %s227 = smul.addr %s224, 5
        %s228 = sadd.s32 %s226, %s227
        %s229 = smul.addr %s228, 4
        %s230 = scalar_lea.vmem %s0, %s229
      $region28: #{_lambda_.8} parent=23 // pred_fallthru
        _
      // Predicated region
      $region29: #{_lambda_.8} parent=23 // pred_check
        %p231 = pneg %p77
      $region30: #{_lambda_.8} parent=23 // pred_check_branch
        %233 = sbr.rel (%p231) target = $region32
      $region31: #{_lambda_.8} parent=23 // pred_region
        %s234 = sadd.s32 %s21, 1
        %p235 = scmp.lt.s32.totalorder %s20, 1
        %s236 = scalar_select %p235, %s20, 1
        %p237 = scmp.lt.s32.totalorder %s234, 4
        %s238 = scalar_select %p237, %s234, 4
        %s239 = smul.addr %s236, 5
        %s240 = sadd.s32 %s238, %s239
        %s241 = smul.addr %s240, 4
        %s242 = scalar_lea.vmem %s1, %s241
        %s243 = sadd.s32 %s21, 1
      $region32: #{_lambda_.8} parent=23 // pred_fallthru
        _
    $region24: #{_lambda_.8} parent=5 // pred_fallthru
      _
    %p244 = scmp.le.s32.totalorder 1, %s13
    %p245 = scmp.lt.s32.totalorder %s13, 9
    %p246 = pnand %p244, %p245
    %p247 = pneg %p246
    // Predicated region
    $region33: #{_lambda_.8} parent=5 // pred_check
      _
    $region34: #{_lambda_.8} parent=5 // pred_check_branch
      %249 = sbr.rel (%p246) target = $region36
    $region35: #{_lambda_.8} parent=5 // pred_region
      %s250 = ssub.s32 %s13, 1
      %p251 = scmp.lt.s32.totalorder %s22, 1
      %s252 = scalar_select %p251, %s22, 1
      %p253 = scmp.lt.s32.totalorder %s23, 4
      %s254 = scalar_select %p253, %s23, 4
      %s255 = smul.addr %s252, 5
      %s256 = sadd.s32 %s254, %s255
      %s257 = smul.addr %s256, 4
      %s258 = scalar_lea.vmem %s0, %s257
      %p259 = pneg %p53
      %p260 = pneg %p50
      %s261 = sadd.s32 %s23, 1
      %p262 = scmp.lt.s32.totalorder %s22, 1
      %s263 = scalar_select %p262, %s22, 1
      %p264 = scmp.lt.s32.totalorder %s261, 4
      %s265 = scalar_select %p264, %s261, 4
      %s266 = smul.addr %s263, 5
      %s267 = sadd.s32 %s265, %s266
      %s268 = smul.addr %s267, 4
      %s269 = scalar_lea.vmem %s1, %s268
      %p270 = pneg %p83
      %p271 = pneg %p80
      %p272 = pneg %p104
      %p273 = pneg %p101
      %p274 = pneg %p125
      %p275 = pneg %p122
      %p276 = pneg %p153
      %p277 = pneg %p150
      %p278 = scmp.lt.s32.totalorder %s22, 1
      %s279 = scalar_select %p278, %s22, 1
      %p280 = scmp.lt.s32.totalorder %s23, 3
      %s281 = scalar_select %p280, %s23, 3
      %s282 = smul.addr %s279, 4
      %s283 = sadd.s32 %s281, %s282
      %s284 = smul.addr %s283, 2
      %s285 = scalar_lea.vmem %s4, %s284
      %p286 = pneg %p174
      %p287 = pneg %p171
      %p288 = pneg %p195
      %p289 = pneg %p192
      %p290 = scmp.lt.s32.totalorder %s22, 1
      %s291 = scalar_select %p290, %s22, 1
      %p292 = scmp.lt.s32.totalorder %s23, 4
      %s293 = scalar_select %p292, %s23, 4
      %s294 = smul.addr %s291, 5
      %s295 = sadd.s32 %s293, %s294
      %s296 = smul.addr %s295, 4
      %s297 = scalar_lea.vmem %s0, %s296
      %s298 = sadd.s32 %s23, 1
      %p299 = scmp.lt.s32.totalorder %s22, 1
      %s300 = scalar_select %p299, %s22, 1
      %p301 = scmp.lt.s32.totalorder %s298, 4
      %s302 = scalar_select %p301, %s298, 4
      %s303 = smul.addr %s300, 5
      %s304 = sadd.s32 %s302, %s303
      %s305 = smul.addr %s304, 4
      %s306 = scalar_lea.vmem %s1, %s305
      %s307 = sadd.s32 %s23, 1
      %p308 = scmp.lt.s32.totalorder %s22, 1
      %s309 = scalar_select %p308, %s22, 1
      %p310 = scmp.lt.s32.totalorder %s23, 3
      %s311 = scalar_select %p310, %s23, 3
      %s312 = smul.addr %s309, 4
      %s313 = sadd.s32 %s311, %s312
      %s314 = smul.addr %s313, 2
      %s315 = scalar_lea.vmem %s4, %s314
      %v317 = vld [vmem:[%s297] sm:$0x3]
      %v318 = vunpack.c.l.bf16 %v317
      %vm319 = vcmp.gt.f32.partialorder %v318, 0.0
      %v320 = vmul.f32 %v318, 0.20019531
      %v321 = vpack.c.bf16 %v320, %v320
      %vm322 = vmpackc.low %vm319, %vm319
      %v323 = vsel %vm322, %v317, %v321
      %v324 = vld [vmem:[%s297] sm:$0x7]
      %v325 = vunpack.c.l.bf16 %v324
      %vm326 = vcmp.gt.f32.partialorder %v325, 0.0
      %v327 = vmul.f32 %v325, 0.20019531
      %v328 = vpack.c.bf16 %v327, %v327
      %vm329 = vmpackc.low %vm326, %vm326
      %v330 = vsel %vm329, %v324, %v328
      %v331 = vld [vmem:[%s306] sm:$0x3]
      %v332 = vunpack.c.l.bf16 %v331
      %vm333 = vcmp.gt.f32.partialorder %v332, 0.0
      %v334 = vmul.f32 %v332, 0.20019531
      %v335 = vpack.c.bf16 %v334, %v334
      %vm336 = vmpackc.low %vm333, %vm333
      %v337 = vsel %vm336, %v331, %v335
      %v338 = vld [vmem:[%s306] sm:$0x7]
      %v339 = vunpack.c.l.bf16 %v338
      %vm340 = vcmp.gt.f32.partialorder %v339, 0.0
      %v341 = vmul.f32 %v339, 0.20019531
      %v342 = vpack.c.bf16 %v341, %v341
      %vm343 = vmpackc.low %vm340, %vm340
      %v344 = vsel %vm343, %v338, %v342
      %v345 = vld [vmem:[%s2] sm:$0xf]
      %v346 = vld [vmem:[%s2 + $0x4] sm:$0xf]
      %v347 = vld [vmem:[%s2 + $0x8] sm:$0xf]
      %v348 = vld [vmem:[%s2 + $0xc] sm:$0xf]
      %s349 = scalar_lea.vmem %s2, 16
      %v350 = vld [vmem:[%s349] sm:$0xf]
      %v351 = vld [vmem:[%s349 + $0x4] sm:$0xf]
      %v352 = vld [vmem:[%s349 + $0x8] sm:$0xf]
      %v353 = vld [vmem:[%s349 + $0xc] sm:$0xf]
      %v355 = vunpack.c.l.b16 %v330
      %v356 = vpack.c.b16 %v355, %v355
      %v358 = vshrl.u32 %v356, 16
      %v360 = vshll.u32 %v356, 16
      %v362 = vrot.slane %v360, 1
      %v363 = vor.u32 %v358, %v362
      %v368 = vunpack.c.l.b16 %v350
      %v369 = vunpack.c.l.b16 %v351
      %v370 = vunpack.c.l.b16 %v352
      %v371 = vunpack.c.l.b16 %v353
      %v372 = vpack.c.b16 %v369, %v368
      %v373 = vpack.c.b16 %v371, %v370
      %vm376 = vcmask 261120
      %v378 = vsel %vm376, %v363, 0
      %380 = vmatpush.bf16.msra.mxu0 0
      %381 = vmatpush.bf16.msra.mxu0 0
      %382 = vmatpush.bf16.msra.mxu0 0
      %383 = vmatpush.bf16.msra.mxu0 0
      %384 = vmatpush.bf16.msra.mxu0 0
      %385 = vmatpush.bf16.msra.mxu0 0
      %386 = vmatpush.bf16.msra.mxu0 %v373
      %387 = vmatpush.bf16.msra.mxu0 %v372
      %388 = vmatmul.bf16.gmra.mxu0 %v378
      %v389 = vpop.f32.mrf.mxu0
      %v390 = vadd.f32 0.0, %v389
      %v391 = vpop.f32.mrf.mxu0
      %392 = vdwg.mxu0
      %v397 = vunpack.c.l.b16 %v345
      %v398 = vunpack.c.l.b16 %v346
      %v399 = vunpack.c.l.b16 %v347
      %v400 = vunpack.c.l.b16 %v348
      %v401 = vpack.c.b16 %v398, %v397
      %v402 = vpack.c.b16 %v400, %v399
      %v406 = vsel %vm376, %v323, 0
      %408 = vmatpush.bf16.msra.mxu0 0
      %409 = vmatpush.bf16.msra.mxu0 0
      %410 = vmatpush.bf16.msra.mxu0 0
      %411 = vmatpush.bf16.msra.mxu0 0
      %412 = vmatpush.bf16.msra.mxu0 0
      %413 = vmatpush.bf16.msra.mxu0 0
      %414 = vmatpush.bf16.msra.mxu0 %v402
      %415 = vmatpush.bf16.msra.mxu0 %v401
      %416 = vmatmul.bf16.gmra.mxu0 %v406
      %v417 = vpop.f32.mrf.mxu0
      %v418 = vadd.f32 %v390, %v417
      %v419 = vpop.f32.mrf.mxu0
      %420 = vdwg.mxu0
      %s421 = scalar_lea.vmem %s2, 32
      %v422 = vld [vmem:[%s421] sm:$0xf]
      %v423 = vld [vmem:[%s421 + $0x4] sm:$0xf]
      %v424 = vld [vmem:[%s421 + $0x8] sm:$0xf]
      %v425 = vld [vmem:[%s421 + $0xc] sm:$0xf]
      %v430 = vunpack.c.l.b16 %v422
      %v431 = vunpack.c.l.b16 %v423
      %v432 = vunpack.c.l.b16 %v424
      %v433 = vunpack.c.l.b16 %v425
      %v434 = vpack.c.b16 %v431, %v430
      %v435 = vpack.c.b16 %v433, %v432
      %v439 = vsel %vm376, %v337, 0
      %441 = vmatpush.bf16.msra.mxu0 0
      %442 = vmatpush.bf16.msra.mxu0 0
      %443 = vmatpush.bf16.msra.mxu0 0
      %444 = vmatpush.bf16.msra.mxu0 0
      %445 = vmatpush.bf16.msra.mxu0 0
      %446 = vmatpush.bf16.msra.mxu0 0
      %447 = vmatpush.bf16.msra.mxu0 %v435
      %448 = vmatpush.bf16.msra.mxu0 %v434
      %449 = vmatmul.bf16.gmra.mxu0 %v439
      %v450 = vpop.f32.mrf.mxu0
      %v451 = vadd.f32 0.0, %v450
      %v452 = vpop.f32.mrf.mxu0
      %453 = vdwg.mxu0
      %v454 = vadd.f32 %v418, %v451
      %s455 = scalar_lea.vmem %s2, 48
      %v456 = vld [vmem:[%s455] sm:$0xf]
      %v457 = vld [vmem:[%s455 + $0x4] sm:$0xf]
      %v458 = vld [vmem:[%s455 + $0x8] sm:$0xf]
      %v459 = vld [vmem:[%s455 + $0xc] sm:$0xf]
      %v461 = vunpack.c.l.b16 %v344
      %v462 = vpack.c.b16 %v461, %v461
      %v464 = vshrl.u32 %v462, 16
      %v466 = vshll.u32 %v462, 16
      %v468 = vrot.slane %v466, 1
      %v469 = vor.u32 %v464, %v468
      %v474 = vunpack.c.l.b16 %v456
      %v475 = vunpack.c.l.b16 %v457
      %v476 = vunpack.c.l.b16 %v458
      %v477 = vunpack.c.l.b16 %v459
      %v478 = vpack.c.b16 %v475, %v474
      %v479 = vpack.c.b16 %v477, %v476
      %v483 = vsel %vm376, %v469, 0
      %485 = vmatpush.bf16.msra.mxu0 0
      %486 = vmatpush.bf16.msra.mxu0 0
      %487 = vmatpush.bf16.msra.mxu0 0
      %488 = vmatpush.bf16.msra.mxu0 0
      %489 = vmatpush.bf16.msra.mxu0 0
      %490 = vmatpush.bf16.msra.mxu0 0
      %491 = vmatpush.bf16.msra.mxu0 %v479
      %492 = vmatpush.bf16.msra.mxu0 %v478
      %493 = vmatmul.bf16.gmra.mxu0 %v483
      %v494 = vpop.f32.mrf.mxu0
      %v495 = vadd.f32 0.0, %v494
      %v496 = vpop.f32.mrf.mxu0
      %497 = vdwg.mxu0
      %v498 = vadd.f32 %v454, %v495
      %v499 = vld [vmem:[%s3] sm:$0x1]
      %v501 = vperm.slane %v499, 0
      %v503 = vadd.f32 %v498, %v501
      %v504 = vpack.c.bf16 %v503, %v503
      %vm505 = vcmask 123904
      %506 = vst.msk [vmem:[%s315] sm:$0x3] %vm505, %v504
      %p507 = scmp.eq.s32.totalorder %s22, 0
      %p508 = scmp.eq.s32.totalorder %s23, 0
      %p509 = pnand %p507, %p508
      %p510 = pneg %p509
      // Predicated region
      $region37: #{_lambda_.8} parent=35 // pred_check
        _
      $region38: #{_lambda_.8} parent=35 // pred_check_branch
        %512 = sbr.rel (%p509) target = $region40
      $region39: #{_lambda_.8} parent=35 // pred_region
        %vm513 = vcmask 122880
        %514 = vst.msk [vmem:[%s5] sm:$0x1] %vm513, 0.0
        %515 = vst.msk [vmem:[%s6] sm:$0x1] %vm513, 0.0
      $region40: #{_lambda_.8} parent=35 // pred_fallthru
        _
      %v516 = vld [vmem:[%s5] sm:$0x1]
      %vm517 = vcmask 125952
      %v518 = vsel %vm517, %v498, 0.0
      %v519 = vrot.slane %v518, 4
      %v520 = vadd.f32 %v518, %v519
      %v521 = vrot.slane %v520, 2
      %v522 = vadd.f32 %v520, %v521
      %v523 = vrot.slane %v522, 1
      %v524 = vadd.f32 %v522, %v523
      %v525 = vadd.f32 %v516, %v524
      %vm526 = vcmask 122880
      %527 = vst.msk [vmem:[%s5] sm:$0x1] %vm526, %v525
      %v528 = vld [vmem:[%s6] sm:$0x1]
      %v529 = vmul.f32 %v498, %v498
      %v530 = vsel %vm517, %v529, 0.0
      %v531 = vrot.slane %v530, 4
      %v532 = vadd.f32 %v530, %v531
      %v533 = vrot.slane %v532, 2
      %v534 = vadd.f32 %v532, %v533
      %v535 = vrot.slane %v534, 1
      %v536 = vadd.f32 %v534, %v535
      %v537 = vadd.f32 %v528, %v536
      %538 = vst.msk [vmem:[%s6] sm:$0x1] %vm526, %v537
      %p539 = scmp.lt.s32.totalorder %s22, 1
      %s540 = scalar_select %p539, %s22, 1
      %p541 = scmp.lt.s32.totalorder %s23, 3
      %s542 = scalar_select %p541, %s23, 3
      %s543 = smul.addr %s540, 4
      %s544 = sadd.s32 %s542, %s543
      %s545 = smul.addr %s544, 2
      %s546 = scalar_lea.vmem %s4, %s545
      // Predicated region
      $region41: #{_lambda_.8} parent=35 // pred_check
        %p547 = pneg %p150
      $region42: #{_lambda_.8} parent=35 // pred_check_branch
        %549 = sbr.rel (%p547) target = $region44
      $region43: #{_lambda_.8} parent=35 // pred_region
        _
      $region44: #{_lambda_.8} parent=35 // pred_fallthru
        _
      // Predicated region
      $region45: #{_lambda_.8} parent=35 // pred_check
        %p550 = pneg %p171
      $region46: #{_lambda_.8} parent=35 // pred_check_branch
        %552 = sbr.rel (%p550) target = $region48
      $region47: #{_lambda_.8} parent=35 // pred_region
        _
      $region48: #{_lambda_.8} parent=35 // pred_fallthru
        _
      // Predicated region
      $region49: #{_lambda_.8} parent=35 // pred_check
        %p553 = pneg %p192
      $region50: #{_lambda_.8} parent=35 // pred_check_branch
        %555 = sbr.rel (%p553) target = $region52
      $region51: #{_lambda_.8} parent=35 // pred_region
        _
      $region52: #{_lambda_.8} parent=35 // pred_fallthru
        _
      // Predicated region
      $region53: #{_lambda_.8} parent=35 // pred_check
        %p556 = pneg %p171
      $region54: #{_lambda_.8} parent=35 // pred_check_branch
        %558 = sbr.rel (%p556) target = $region56
      $region55: #{_lambda_.8} parent=35 // pred_region
        _
      $region56: #{_lambda_.8} parent=35 // pred_fallthru
        _
      // Predicated region
      $region57: #{_lambda_.8} parent=35 // pred_check
        %p559 = pneg %p192
      $region58: #{_lambda_.8} parent=35 // pred_check_branch
        %561 = sbr.rel (%p559) target = $region60
      $region59: #{_lambda_.8} parent=35 // pred_region
        _
      $region60: #{_lambda_.8} parent=35 // pred_fallthru
        _
    $region36: #{_lambda_.8} parent=5 // pred_fallthru
      _
    %p562 = scmp.le.s32.totalorder 2, %s13
    // Predicated region
    $region61: #{_lambda_.8} parent=5 // pred_check
      %p563 = pneg %p562
    $region62: #{_lambda_.8} parent=5 // pred_check_branch
      %565 = sbr.rel (%p563) target = $region64
    $region63: #{_lambda_.8} parent=5 // pred_region
      %s566 = ssub.s32 %s13, 2
      // Predicated region
      $region65: #{_lambda_.8} parent=63 // pred_check
        %p567 = pneg %p156
      $region66: #{_lambda_.8} parent=63 // pred_check_branch
        %569 = sbr.rel (%p567) target = $region68
      $region67: #{_lambda_.8} parent=63 // pred_region
        %p570 = scmp.lt.s32.totalorder %s24, 1
        %s571 = scalar_select %p570, %s24, 1
        %p572 = scmp.lt.s32.totalorder %s25, 3
        %s573 = scalar_select %p572, %s25, 3
        %s574 = smul.addr %s571, 4
        %s575 = sadd.s32 %s573, %s574
        %s576 = smul.addr %s575, 2
        %s577 = scalar_lea.vmem %s4, %s576
      $region68: #{_lambda_.8} parent=63 // pred_fallthru
        _
    $region64: #{_lambda_.8} parent=5 // pred_fallthru
      _
  $region6: #{_lambda_.8} parent=0 // loop_footer
    %s17 = sadd.s32 1, %s13
  $region7: #{_lambda_.8} parent=0 // loop_footer_branch
    %12 = sbr.rel target = $region3
  $region8: #{_lambda_.8} parent=0 // loop_exit
    _

// kernel: _lambda_.9
$region0: #{_lambda_.9}
  #allocation0 [shape = 'u32[]', space=smem, size = 0x4, offset = 0x4, fixed_abs, tag = 'smem constant byte address 0x4 - core index']
  #allocation1 [shape = 'u32[72,128]{1,0:T(1,128)}', space=vmem, size = 0x9000, scoped, tag = 'internal scratch']
  %s0 = inlined_call_operand.vmem [shape: bf16[2,3,3,64], index: 0, kind: input, shape index: {}, may-alias: {0,1}]
  %s1 = inlined_call_operand.vmem [shape: bf16[2,3,3,64], index: 1, kind: input, shape index: {}, may-alias: {0,1}]
  %s2 = inlined_call_operand.vmem [shape: bf16[4,64,32], index: 2, kind: input, shape index: {}]
  %s3 = inlined_call_operand.vmem [shape: f32[1,32], index: 3, kind: input, shape index: {}]
  %s4 = inlined_call_operand.vmem [shape: bf16[2,2,2,32], index: 4, kind: output, shape index: {}]
  %s5 = sld [smem:[#allocation0]]
  $region49: #{_lambda_.9} parent=0
    _
  %s7 = ssub.s32 1, %s5
  %s8 = scalar_select 0, %s7, %s5
  loop: start=0, step=1, limit=6
  $region2: #{_lambda_.9} parent=0 // loop_pre_header
    _
  $region3: #{_lambda_.9} parent=0 // loop_header
    %s10 = sphi 0, %s14
    %p11 = scmp.ge.s32.totalorder %s10, 6
    %s17 = sphi 0, %s29
    %s18 = sphi 0, %s25
    %s19 = sphi 0, %s17
    %s20 = sphi 0, %s18
    %s21 = sphi 0, %s19
    %s22 = sphi 0, %s20
    %s34 = sphi 0, %s36
    %s37 = sphi 0, %s34
    %s38 = sphi 0, %s37
    %s54 = sphi 0, %s38
    %s64 = sphi 0, %s66
    %s67 = sphi 0, %s64
    %s68 = sphi 0, %s67
    %s84 = sphi 0, %s68
    %s88 = sphi 0, %s88
    %s90 = sphi 0, %s88
    %s91 = sphi 0, %s90
    %s105 = sphi 0, %s91
    %s109 = sphi 0, %s109
    %s111 = sphi 0, %s109
    %s112 = sphi 0, %s111
    %s126 = sphi 0, %s112
    %s134 = sphi 0, %s136
    %s137 = sphi 0, %s134
    %s138 = sphi 0, %s137
    %s154 = sphi 0, %s138
  $region4: #{_lambda_.9} parent=0 // loop_header_branch
    %13 = sbr.rel (%p11) target = $region8
  $region5: #{_lambda_.9} parent=0 // loop_body
    %s15 = ssub.s32 %s10, 1
    %s16 = ssub.s32 %s10, 2
    %s23 = sadd.s32 1, %s18
    %p24 = scmp.ge.s32.totalorder %s23, 2
    %s25 = scalar_select %p24, 0, %s23
    %s26 = sadd.s32 1, %s17
    %s27 = scalar_select %p24, %s26, %s17
    %p28 = scmp.ge.s32.totalorder %s27, 2
    %s29 = scalar_select %p28, 0, %s27
    %s30 = ssub.s32 %s17, %s29
    %s31 = ssub.s32 %s18, %s25
    %s32 = sor.u32 %s30, %s31
    %p33 = scmp.eq.s32.totalorder %s32, 0
    %s35 = sadd.s32 %s34, 1
    %s36 = scalar_select %p33, %s34, %s35
    %p39 = pneg %p33
    %p40 = scmp.eq.s32.totalorder %s10, 3
    %p41 = por %p39, %p40
    %p42 = scmp.ne.s32.totalorder %s34, %s37
    %p43 = scmp.eq.s32.totalorder %s10, 0
    %p44 = por %p42, %p43
    %p45 = scmp.ne.s32.totalorder %s34, %s37
    %p46 = scmp.eq.s32.totalorder %s15, 3
    %p47 = por %p45, %p46
    %p48 = scmp.ne.s32.totalorder %s37, %s38
    %p49 = scmp.eq.s32.totalorder %s15, 0
    %p50 = por %p48, %p49
    %p51 = scmp.ne.s32.totalorder %s37, %s38
    %p52 = scmp.eq.s32.totalorder %s16, 3
    %p53 = por %p51, %p52
    %p55 = scmp.ne.s32.totalorder %s38, %s54
    %p56 = scmp.eq.s32.totalorder %s16, 0
    %p57 = por %p55, %p56
    %s58 = sadd.s32 %s18, 1
    %s59 = sadd.s32 %s25, 1
    %s60 = ssub.s32 %s17, %s29
    %s61 = ssub.s32 %s58, %s59
    %s62 = sor.u32 %s60, %s61
    %p63 = scmp.eq.s32.totalorder %s62, 0
    %s65 = sadd.s32 %s64, 1
    %s66 = scalar_select %p63, %s64, %s65
    %p69 = pneg %p63
    %p70 = scmp.eq.s32.totalorder %s10, 3
    %p71 = por %p69, %p70
    %p72 = scmp.ne.s32.totalorder %s64, %s67
    %p73 = scmp.eq.s32.totalorder %s10, 0
    %p74 = por %p72, %p73
    %p75 = scmp.ne.s32.totalorder %s64, %s67
    %p76 = scmp.eq.s32.totalorder %s15, 3
    %p77 = por %p75, %p76
    %p78 = scmp.ne.s32.totalorder %s67, %s68
    %p79 = scmp.eq.s32.totalorder %s15, 0
    %p80 = por %p78, %p79
    %p81 = scmp.ne.s32.totalorder %s67, %s68
    %p82 = scmp.eq.s32.totalorder %s16, 3
    %p83 = por %p81, %p82
    %p85 = scmp.ne.s32.totalorder %s68, %s84
    %p86 = scmp.eq.s32.totalorder %s16, 0
    %p87 = por %p85, %p86
    %s89 = sadd.s32 %s88, 1
    %p92 = scmp.eq.s32.totalorder %s10, 3
    %p93 = scmp.ne.s32.totalorder %s88, %s90
    %p94 = scmp.eq.s32.totalorder %s10, 0
    %p95 = por %p93, %p94
    %p96 = scmp.ne.s32.totalorder %s88, %s90
    %p97 = scmp.eq.s32.totalorder %s15, 3
    %p98 = por %p96, %p97
    %p99 = scmp.ne.s32.totalorder %s90, %s91
    %p100 = scmp.eq.s32.totalorder %s15, 0
    %p101 = por %p99, %p100
    %p102 = scmp.ne.s32.totalorder %s90, %s91
    %p103 = scmp.eq.s32.totalorder %s16, 3
    %p104 = por %p102, %p103
    %p106 = scmp.ne.s32.totalorder %s91, %s105
    %p107 = scmp.eq.s32.totalorder %s16, 0
    %p108 = por %p106, %p107
    %s110 = sadd.s32 %s109, 1
    %p113 = scmp.eq.s32.totalorder %s10, 3
    %p114 = scmp.ne.s32.totalorder %s109, %s111
    %p115 = scmp.eq.s32.totalorder %s10, 0
    %p116 = por %p114, %p115
    %p117 = scmp.ne.s32.totalorder %s109, %s111
    %p118 = scmp.eq.s32.totalorder %s15, 3
    %p119 = por %p117, %p118
    %p120 = scmp.ne.s32.totalorder %s111, %s112
    %p121 = scmp.eq.s32.totalorder %s15, 0
    %p122 = por %p120, %p121
    %p123 = scmp.ne.s32.totalorder %s111, %s112
    %p124 = scmp.eq.s32.totalorder %s16, 3
    %p125 = por %p123, %p124
    %p127 = scmp.ne.s32.totalorder %s112, %s126
    %p128 = scmp.eq.s32.totalorder %s16, 0
    %p129 = por %p127, %p128
    %s130 = ssub.s32 %s17, %s29
    %s131 = ssub.s32 %s18, %s25
    %s132 = sor.u32 %s130, %s131
    %p133 = scmp.eq.s32.totalorder %s132, 0
    %s135 = sadd.s32 %s134, 1
    %s136 = scalar_select %p133, %s134, %s135
    %p139 = pneg %p133
    %p140 = scmp.eq.s32.totalorder %s10, 3
    %p141 = por %p139, %p140
    %p142 = scmp.ne.s32.totalorder %s134, %s137
    %p143 = scmp.eq.s32.totalorder %s10, 0
    %p144 = por %p142, %p143
    %p145 = scmp.ne.s32.totalorder %s134, %s137
    %p146 = scmp.eq.s32.totalorder %s15, 3
    %p147 = por %p145, %p146
    %p148 = scmp.ne.s32.totalorder %s137, %s138
    %p149 = scmp.eq.s32.totalorder %s15, 0
    %p150 = por %p148, %p149
    %p151 = scmp.ne.s32.totalorder %s137, %s138
    %p152 = scmp.eq.s32.totalorder %s16, 3
    %p153 = por %p151, %p152
    %p155 = scmp.ne.s32.totalorder %s138, %s154
    %p156 = scmp.eq.s32.totalorder %s16, 0
    %p157 = por %p155, %p156
    %p158 = scmp.le.s32.totalorder 1, %s10
    %p159 = scmp.lt.s32.totalorder %s10, 5
    %p160 = pnand %p158, %p159
    %p161 = pneg %p160
    // Predicated region
    $region9: #{_lambda_.9} parent=5 // pred_check
      _
    $region10: #{_lambda_.9} parent=5 // pred_check_branch
      %163 = sbr.rel (%p160) target = $region12
    $region11: #{_lambda_.9} parent=5 // pred_region
      %s164 = ssub.s32 %s10, 1
      // Predicated region
      $region13: #{_lambda_.9} parent=11 // pred_check
        %p165 = pneg %p101
      $region14: #{_lambda_.9} parent=11 // pred_check_branch
        %167 = sbr.rel (%p165) target = $region16
      $region15: #{_lambda_.9} parent=11 // pred_region
        _
      $region16: #{_lambda_.9} parent=11 // pred_fallthru
        _
      // Predicated region
      $region17: #{_lambda_.9} parent=11 // pred_check
        %p168 = pneg %p122
      $region18: #{_lambda_.9} parent=11 // pred_check_branch
        %170 = sbr.rel (%p168) target = $region20
      $region19: #{_lambda_.9} parent=11 // pred_region
        _
      $region20: #{_lambda_.9} parent=11 // pred_fallthru
        _
    $region12: #{_lambda_.9} parent=5 // pred_fallthru
      _
    %p171 = scmp.lt.s32.totalorder %s10, 4
    // Predicated region
    $region21: #{_lambda_.9} parent=5 // pred_check
      %p172 = pneg %p171
    $region22: #{_lambda_.9} parent=5 // pred_check_branch
      %174 = sbr.rel (%p172) target = $region24
    $region23: #{_lambda_.9} parent=5 // pred_region
      // Predicated region
      $region25: #{_lambda_.9} parent=23 // pred_check
        %p175 = pneg %p44
      $region26: #{_lambda_.9} parent=23 // pred_check_branch
        %177 = sbr.rel (%p175) target = $region28
      $region27: #{_lambda_.9} parent=23 // pred_region
        %p178 = scmp.lt.s32.totalorder %s17, 1
        %s179 = scalar_select %p178, %s17, 1
        %p180 = scmp.lt.s32.totalorder %s18, 2
        %s181 = scalar_select %p180, %s18, 2
        %s182 = smul.addr %s179, 3
        %s183 = sadd.s32 %s181, %s182
        %s184 = smul.addr %s183, 2
        %s185 = scalar_lea.vmem %s0, %s184
      $region28: #{_lambda_.9} parent=23 // pred_fallthru
        _
      // Predicated region
      $region29: #{_lambda_.9} parent=23 // pred_check
        %p186 = pneg %p74
      $region30: #{_lambda_.9} parent=23 // pred_check_branch
        %188 = sbr.rel (%p186) target = $region32
      $region31: #{_lambda_.9} parent=23 // pred_region
        %s189 = sadd.s32 %s18, 1
        %p190 = scmp.lt.s32.totalorder %s17, 1
        %s191 = scalar_select %p190, %s17, 1
        %p192 = scmp.lt.s32.totalorder %s189, 2
        %s193 = scalar_select %p192, %s189, 2
        %s194 = smul.addr %s191, 3
        %s195 = sadd.s32 %s193, %s194
        %s196 = smul.addr %s195, 2
        %s197 = scalar_lea.vmem %s1, %s196
        %s198 = sadd.s32 %s18, 1
      $region32: #{_lambda_.9} parent=23 // pred_fallthru
        _
    $region24: #{_lambda_.9} parent=5 // pred_fallthru
      _
    %p199 = scmp.le.s32.totalorder 1, %s10
    %p200 = scmp.lt.s32.totalorder %s10, 5
    %p201 = pnand %p199, %p200
    %p202 = pneg %p201
    // Predicated region
    $region33: #{_lambda_.9} parent=5 // pred_check
      _
    $region34: #{_lambda_.9} parent=5 // pred_check_branch
      %204 = sbr.rel (%p201) target = $region36
    $region35: #{_lambda_.9} parent=5 // pred_region
      %s205 = ssub.s32 %s10, 1
      %p206 = scmp.lt.s32.totalorder %s19, 1
      %s207 = scalar_select %p206, %s19, 1
      %p208 = scmp.lt.s32.totalorder %s20, 2
      %s209 = scalar_select %p208, %s20, 2
      %s210 = smul.addr %s207, 3
      %s211 = sadd.s32 %s209, %s210
      %s212 = smul.addr %s211, 2
      %s213 = scalar_lea.vmem %s0, %s212
      %p214 = pneg %p50
      %p215 = pneg %p47
      %s216 = sadd.s32 %s20, 1
      %p217 = scmp.lt.s32.totalorder %s19, 1
      %s218 = scalar_select %p217, %s19, 1
      %p219 = scmp.lt.s32.totalorder %s216, 2
      %s220 = scalar_select %p219, %s216, 2
      %s221 = smul.addr %s218, 3
      %s222 = sadd.s32 %s220, %s221
      %s223 = smul.addr %s222, 2
      %s224 = scalar_lea.vmem %s1, %s223
      %p225 = pneg %p80
      %p226 = pneg %p77
      %p227 = pneg %p101
      %p228 = pneg %p98
      %p229 = pneg %p122
      %p230 = pneg %p119
      %p231 = pneg %p150
      %p232 = pneg %p147
      %p233 = scmp.lt.s32.totalorder %s19, 1
      %s234 = scalar_select %p233, %s19, 1
      %p235 = scmp.lt.s32.totalorder %s20, 1
      %s236 = scalar_select %p235, %s20, 1
      %s237 = smul.addr %s234, 2
      %s238 = sadd.s32 %s236, %s237
      %s239 = scalar_lea.vmem %s4, %s238
      %p240 = scmp.lt.s32.totalorder %s19, 1
      %s241 = scalar_select %p240, %s19, 1
      %p242 = scmp.lt.s32.totalorder %s20, 2
      %s243 = scalar_select %p242, %s20, 2
      %s244 = smul.addr %s241, 3
      %s245 = sadd.s32 %s243, %s244
      %s246 = smul.addr %s245, 2
      %s247 = scalar_lea.vmem %s0, %s246
      %s248 = sadd.s32 %s20, 1
      %p249 = scmp.lt.s32.totalorder %s19, 1
      %s250 = scalar_select %p249, %s19, 1
      %p251 = scmp.lt.s32.totalorder %s248, 2
      %s252 = scalar_select %p251, %s248, 2
      %s253 = smul.addr %s250, 3
      %s254 = sadd.s32 %s252, %s253
      %s255 = smul.addr %s254, 2
      %s256 = scalar_lea.vmem %s1, %s255
      %s257 = sadd.s32 %s20, 1
      %p258 = scmp.lt.s32.totalorder %s19, 1
      %s259 = scalar_select %p258, %s19, 1
      %p260 = scmp.lt.s32.totalorder %s20, 1
      %s261 = scalar_select %p260, %s20, 1
      %s262 = smul.addr %s259, 2
      %s263 = sadd.s32 %s261, %s262
      %s264 = scalar_lea.vmem %s4, %s263
      %v267 = vld [vmem:[%s247] sm:$0x1]
      %v268 = vunpack.c.l.bf16 %v267
      %vm269 = vcmp.gt.f32.partialorder %v268, 0.0
      %v270 = vmul.f32 %v268, 0.20019531
      %v271 = vpack.c.bf16 %v270, %v270
      %v272 = vsel %vm269, 1, 0
      %v273 = vpack.c.b16 %v272, %v272
      %v274 = vunpack.c.l.b16 %v273
      %v275 = vunpack.c.h.b16 %v273
      %v276 = vunpack.c.l.b16 0
      %v277 = vunpack.c.h.b16 0
      %vm278 = vcmp.ne.s32.totalorder %v274, %v276
      %vm279 = vcmp.ne.s32.totalorder %v275, %v277
      %vm280 = vmpackc.low %vm279, %vm278
      %v281 = vsel %vm280, %v267, %v271
      %v282 = vld [vmem:[%s247] sm:$0x3]
      %v283 = vunpack.c.l.bf16 %v282
      %vm284 = vcmp.gt.f32.partialorder %v283, 0.0
      %v285 = vmul.f32 %v283, 0.20019531
      %v286 = vpack.c.bf16 %v285, %v285
      %v287 = vsel %vm284, 1, 0
      %v288 = vpack.c.b16 %v287, %v287
      %v289 = vunpack.c.l.b16 %v288
      %v290 = vunpack.c.h.b16 %v288
      %v291 = vunpack.c.l.b16 0
      %v292 = vunpack.c.h.b16 0
      %vm293 = vcmp.ne.s32.totalorder %v289, %v291
      %vm294 = vcmp.ne.s32.totalorder %v290, %v292
      %vm295 = vmpackc.low %vm294, %vm293
      %v296 = vsel %vm295, %v282, %v286
      %v297 = vld [vmem:[%s256] sm:$0x1]
      %v298 = vunpack.c.l.bf16 %v297
      %vm299 = vcmp.gt.f32.partialorder %v298, 0.0
      %v300 = vmul.f32 %v298, 0.20019531
      %v301 = vpack.c.bf16 %v300, %v300
      %v302 = vsel %vm299, 1, 0
      %v303 = vpack.c.b16 %v302, %v302
      %v304 = vunpack.c.l.b16 %v303
      %v305 = vunpack.c.h.b16 %v303
      %v306 = vunpack.c.l.b16 0
      %v307 = vunpack.c.h.b16 0
      %vm308 = vcmp.ne.s32.totalorder %v304, %v306
      %vm309 = vcmp.ne.s32.totalorder %v305, %v307
      %vm310 = vmpackc.low %vm309, %vm308
      %v311 = vsel %vm310, %v297, %v301
      %v312 = vld [vmem:[%s256] sm:$0x3]
      %v313 = vunpack.c.l.bf16 %v312
      %vm314 = vcmp.gt.f32.partialorder %v313, 0.0
      %v315 = vmul.f32 %v313, 0.20019531
      %v316 = vpack.c.bf16 %v315, %v315
      %v317 = vsel %vm314, 1, 0
      %v318 = vpack.c.b16 %v317, %v317
      %v319 = vunpack.c.l.b16 %v318
      %v320 = vunpack.c.h.b16 %v318
      %v321 = vunpack.c.l.b16 0
      %v322 = vunpack.c.h.b16 0
      %vm323 = vcmp.ne.s32.totalorder %v319, %v321
      %vm324 = vcmp.ne.s32.totalorder %v320, %v322
      %vm325 = vmpackc.low %vm324, %vm323
      %v326 = vsel %vm325, %v312, %v316
      %v327 = vld [vmem:[%s2] sm:$0xf]
      %v328 = vld [vmem:[%s2 + $0x4] sm:$0xf]
      %v329 = vld [vmem:[%s2 + $0x8] sm:$0xf]
      %v330 = vld [vmem:[%s2 + $0xc] sm:$0xf]
      %v331 = vld [vmem:[%s2 + $0x10] sm:$0xf]
      %v332 = vld [vmem:[%s2 + $0x14] sm:$0xf]
      %v333 = vld [vmem:[%s2 + $0x18] sm:$0xf]
      %v334 = vld [vmem:[%s2 + $0x1c] sm:$0xf]
      %s335 = scalar_lea.vmem %s2, 32
      %v336 = vld [vmem:[%s335] sm:$0xf]
      %v337 = vld [vmem:[%s335 + $0x4] sm:$0xf]
      %v338 = vld [vmem:[%s335 + $0x8] sm:$0xf]
      %v339 = vld [vmem:[%s335 + $0xc] sm:$0xf]
      %v340 = vld [vmem:[%s335 + $0x10] sm:$0xf]
      %v341 = vld [vmem:[%s335 + $0x14] sm:$0xf]
      %v342 = vld [vmem:[%s335 + $0x18] sm:$0xf]
      %v343 = vld [vmem:[%s335 + $0x1c] sm:$0xf]
      %345 = vst [vmem:[#allocation1] ss:$4 sm:$0xff] %v296
      %v346 = vld.sshfl [vmem:[#allocation1] sm:$0xff pattern:$0x73625140]
      %v347 = vshrl.u32 %v346, 16
      %v349 = vshll.u32 %v346, 16
      %v351 = vrot.slane %v349, 1
      %v352 = vor.u32 %v347, %v351
      %v361 = vunpack.c.l.b16 %v336
      %v362 = vunpack.c.l.b16 %v337
      %v363 = vunpack.c.l.b16 %v338
      %v364 = vunpack.c.l.b16 %v339
      %v365 = vunpack.c.l.b16 %v340
      %v366 = vunpack.c.l.b16 %v341
      %v367 = vunpack.c.l.b16 %v342
      %v368 = vunpack.c.l.b16 %v343
      %v369 = vpack.c.b16 %v362, %v361
      %v370 = vpack.c.b16 %v364, %v363
      %v371 = vpack.c.b16 %v366, %v365
      %v372 = vpack.c.b16 %v368, %v367
      %vm377 = vcmask 523264
      %v379 = vsel %vm377, %v352, 0
      %381 = vmatpush.bf16.msra.mxu0 0
      %382 = vmatpush.bf16.msra.mxu0 0
      %383 = vmatpush.bf16.msra.mxu0 0
      %384 = vmatpush.bf16.msra.mxu0 0
      %385 = vmatpush.bf16.msra.mxu0 %v372
      %386 = vmatpush.bf16.msra.mxu0 %v371
      %387 = vmatpush.bf16.msra.mxu0 %v370
      %388 = vmatpush.bf16.msra.mxu0 %v369
      %389 = vmatmul.bf16.gmra.mxu0 %v379
      %v390 = vpop.f32.mrf.mxu0
      %v391 = vadd.f32 0.0, %v390
      %v392 = vpop.f32.mrf.mxu0
      %393 = vdwg.mxu0
      %v402 = vunpack.c.l.b16 %v327
      %v403 = vunpack.c.l.b16 %v328
      %v404 = vunpack.c.l.b16 %v329
      %v405 = vunpack.c.l.b16 %v330
      %v406 = vunpack.c.l.b16 %v331
      %v407 = vunpack.c.l.b16 %v332
      %v408 = vunpack.c.l.b16 %v333
      %v409 = vunpack.c.l.b16 %v334
      %v410 = vpack.c.b16 %v403, %v402
      %v411 = vpack.c.b16 %v405, %v404
      %v412 = vpack.c.b16 %v407, %v406
      %v413 = vpack.c.b16 %v409, %v408
      %v419 = vsel %vm377, %v281, 0
      %421 = vmatpush.bf16.msra.mxu0 0
      %422 = vmatpush.bf16.msra.mxu0 0
      %423 = vmatpush.bf16.msra.mxu0 0
      %424 = vmatpush.bf16.msra.mxu0 0
      %425 = vmatpush.bf16.msra.mxu0 %v413
      %426 = vmatpush.bf16.msra.mxu0 %v412
      %427 = vmatpush.bf16.msra.mxu0 %v411
      %428 = vmatpush.bf16.msra.mxu0 %v410
      %429 = vmatmul.bf16.gmra.mxu0 %v419
      %v430 = vpop.f32.mrf.mxu0
      %v431 = vadd.f32 %v391, %v430
      %v432 = vpop.f32.mrf.mxu0
      %433 = vdwg.mxu0
      %s434 = scalar_lea.vmem %s2, 64
      %v435 = vld [vmem:[%s434] sm:$0xf]
      %v436 = vld [vmem:[%s434 + $0x4] sm:$0xf]
      %v437 = vld [vmem:[%s434 + $0x8] sm:$0xf]
      %v438 = vld [vmem:[%s434 + $0xc] sm:$0xf]
      %v439 = vld [vmem:[%s434 + $0x10] sm:$0xf]
      %v440 = vld [vmem:[%s434 + $0x14] sm:$0xf]
      %v441 = vld [vmem:[%s434 + $0x18] sm:$0xf]
      %v442 = vld [vmem:[%s434 + $0x1c] sm:$0xf]
      %v451 = vunpack.c.l.b16 %v435
      %v452 = vunpack.c.l.b16 %v436
      %v453 = vunpack.c.l.b16 %v437
      %v454 = vunpack.c.l.b16 %v438
      %v455 = vunpack.c.l.b16 %v439
      %v456 = vunpack.c.l.b16 %v440
      %v457 = vunpack.c.l.b16 %v441
      %v458 = vunpack.c.l.b16 %v442
      %v459 = vpack.c.b16 %v452, %v451
      %v460 = vpack.c.b16 %v454, %v453
      %v461 = vpack.c.b16 %v456, %v455
      %v462 = vpack.c.b16 %v458, %v457
      %v468 = vsel %vm377, %v311, 0
      %470 = vmatpush.bf16.msra.mxu0 0
      %471 = vmatpush.bf16.msra.mxu0 0
      %472 = vmatpush.bf16.msra.mxu0 0
      %473 = vmatpush.bf16.msra.mxu0 0
      %474 = vmatpush.bf16.msra.mxu0 %v462
      %475 = vmatpush.bf16.msra.mxu0 %v461
      %476 = vmatpush.bf16.msra.mxu0 %v460
      %477 = vmatpush.bf16.msra.mxu0 %v459
      %478 = vmatmul.bf16.gmra.mxu0 %v468
      %v479 = vpop.f32.mrf.mxu0
      %v480 = vadd.f32 0.0, %v479
      %v481 = vpop.f32.mrf.mxu0
      %482 = vdwg.mxu0
      %v483 = vadd.f32 %v431, %v480
      %s484 = scalar_lea.vmem %s2, 96
      %v485 = vld [vmem:[%s484] sm:$0xf]
      %v486 = vld [vmem:[%s484 + $0x4] sm:$0xf]
      %v487 = vld [vmem:[%s484 + $0x8] sm:$0xf]
      %v488 = vld [vmem:[%s484 + $0xc] sm:$0xf]
      %v489 = vld [vmem:[%s484 + $0x10] sm:$0xf]
      %v490 = vld [vmem:[%s484 + $0x14] sm:$0xf]
      %v491 = vld [vmem:[%s484 + $0x18] sm:$0xf]
      %v492 = vld [vmem:[%s484 + $0x1c] sm:$0xf]
      %494 = vst [vmem:[#allocation1] ss:$4 sm:$0xff] %v326
      %v495 = vld.sshfl [vmem:[#allocation1] sm:$0xff pattern:$0x73625140]
      %v496 = vshrl.u32 %v495, 16
      %v498 = vshll.u32 %v495, 16
      %v500 = vrot.slane %v498, 1
      %v501 = vor.u32 %v496, %v500
      %v510 = vunpack.c.l.b16 %v485
      %v511 = vunpack.c.l.b16 %v486
      %v512 = vunpack.c.l.b16 %v487
      %v513 = vunpack.c.l.b16 %v488
      %v514 = vunpack.c.l.b16 %v489
      %v515 = vunpack.c.l.b16 %v490
      %v516 = vunpack.c.l.b16 %v491
      %v517 = vunpack.c.l.b16 %v492
      %v518 = vpack.c.b16 %v511, %v510
      %v519 = vpack.c.b16 %v513, %v512
      %v520 = vpack.c.b16 %v515, %v514
      %v521 = vpack.c.b16 %v517, %v516
      %v527 = vsel %vm377, %v501, 0
      %529 = vmatpush.bf16.msra.mxu0 0
      %530 = vmatpush.bf16.msra.mxu0 0
      %531 = vmatpush.bf16.msra.mxu0 0
      %532 = vmatpush.bf16.msra.mxu0 0
      %533 = vmatpush.bf16.msra.mxu0 %v521
      %534 = vmatpush.bf16.msra.mxu0 %v520
      %535 = vmatpush.bf16.msra.mxu0 %v519
      %536 = vmatpush.bf16.msra.mxu0 %v518
      %537 = vmatmul.bf16.gmra.mxu0 %v527
      %v538 = vpop.f32.mrf.mxu0
      %v539 = vadd.f32 0.0, %v538
      %v540 = vpop.f32.mrf.mxu0
      %541 = vdwg.mxu0
      %v542 = vadd.f32 %v483, %v539
      %v543 = vld [vmem:[%s3] sm:$0x1]
      %v545 = vperm.slane %v543, 0
      %v547 = vadd.f32 %v542, %v545
      %v548 = vpack.c.bf16 %v547, %v547
      %vm549 = vcmask 253952
      %550 = vst.msk [vmem:[%s264] sm:$0x1] %vm549, %v548
      %p551 = scmp.lt.s32.totalorder %s19, 1
      %s552 = scalar_select %p551, %s19, 1
      %p553 = scmp.lt.s32.totalorder %s20, 1
      %s554 = scalar_select %p553, %s20, 1
      %s555 = smul.addr %s552, 2
      %s556 = sadd.s32 %s554, %s555
      %s557 = scalar_lea.vmem %s4, %s556
      // Predicated region
      $region37: #{_lambda_.9} parent=35 // pred_check
        %p558 = pneg %p147
      $region38: #{_lambda_.9} parent=35 // pred_check_branch
        %560 = sbr.rel (%p558) target = $region40
      $region39: #{_lambda_.9} parent=35 // pred_region
        _
      $region40: #{_lambda_.9} parent=35 // pred_fallthru
        _
    $region36: #{_lambda_.9} parent=5 // pred_fallthru
      _
    %p561 = scmp.le.s32.totalorder 2, %s10
    // Predicated region
    $region41: #{_lambda_.9} parent=5 // pred_check
      %p562 = pneg %p561
    $region42: #{_lambda_.9} parent=5 // pred_check_branch
      %564 = sbr.rel (%p562) target = $region44
    $region43: #{_lambda_.9} parent=5 // pred_region
      %s565 = ssub.s32 %s10, 2
      // Predicated region
      $region45: #{_lambda_.9} parent=43 // pred_check
        %p566 = pneg %p153
      $region46: #{_lambda_.9} parent=43 // pred_check_branch
        %568 = sbr.rel (%p566) target = $region48
      $region47: #{_lambda_.9} parent=43 // pred_region
        %p569 = scmp.lt.s32.totalorder %s21, 1
        %s570 = scalar_select %p569, %s21, 1
        %p571 = scmp.lt.s32.totalorder %s22, 1
        %s572 = scalar_select %p571, %s22, 1
        %s573 = smul.addr %s570, 2
        %s574 = sadd.s32 %s572, %s573
        %s575 = scalar_lea.vmem %s4, %s574
      $region48: #{_lambda_.9} parent=43 // pred_fallthru
        _
    $region44: #{_lambda_.9} parent=5 // pred_fallthru
      _
  $region6: #{_lambda_.9} parent=0 // loop_footer
    %s14 = sadd.s32 1, %s10
  $region7: #{_lambda_.9} parent=0 // loop_footer_branch
    %9 = sbr.rel target = $region3
  $region8: #{_lambda_.9} parent=0 // loop_exit
    _

// kernel: _lambda_.10
$region0: #{_lambda_.10}
  #allocation0 [shape = 'u32[]', space=smem, size = 0x4, offset = 0x4, fixed_abs, tag = 'smem constant byte address 0x4 - core index']
  #allocation1 [shape = 'u32[72,128]{1,0:T(1,128)}', space=vmem, size = 0x9000, scoped, tag = 'internal scratch']
  %s0 = inlined_call_operand.vmem [shape: bf16[1,2,4,4,32], index: 0, kind: input, shape index: {}, may-alias: {0,1,2}]
  %s1 = inlined_call_operand.vmem [shape: bf16[1,2,4,4,32], index: 1, kind: input, shape index: {}, may-alias: {0,1,2}]
  %s2 = inlined_call_operand.vmem [shape: bf16[1,2,4,4,32], index: 2, kind: input, shape index: {}, may-alias: {0,1,2}]
  %s3 = inlined_call_operand.vmem [shape: bf16[1,4,4,32,32], index: 3, kind: input, shape index: {}]
  %s4 = inlined_call_operand.vmem [shape: f32[1,1,32], index: 4, kind: input, shape index: {}]
  %s5 = inlined_call_operand.vmem [shape: bf16[1,2,2,4,2,32], index: 5, kind: output, shape index: {0}]
  %s6 = inlined_call_operand.vmem [shape: f32[1,1,32], index: 6, kind: output, shape index: {1}]
  %s7 = inlined_call_operand.vmem [shape: f32[1,1,32], index: 7, kind: output, shape index: {2}]
  %8 = xla_tuple %s5, %s6, %s7
  %s9 = sld [smem:[#allocation0]]
  $region73: #{_lambda_.10} parent=0
    _
  %s11 = ssub.s32 1, %s9
  %s12 = scalar_select 0, %s11, %s9
  loop: start=0, step=1, limit=6
  $region2: #{_lambda_.10} parent=0 // loop_pre_header
    _
  $region3: #{_lambda_.10} parent=0 // loop_header
    %s14 = sphi 0, %s18
    %p15 = scmp.ge.s32.totalorder %s14, 6
    %s21 = sphi 0, %s40
    %s22 = sphi 0, %s36
    %s23 = sphi 0, %s32
    %s24 = sphi 0, %s21
    %s25 = sphi 0, %s22
    %s26 = sphi 0, %s23
    %s27 = sphi 0, %s24
    %s28 = sphi 0, %s25
    %s29 = sphi 0, %s26
    %s47 = sphi 0, %s49
    %s50 = sphi 0, %s47
    %s51 = sphi 0, %s50
    %s67 = sphi 0, %s51
    %s79 = sphi 0, %s81
    %s82 = sphi 0, %s79
    %s83 = sphi 0, %s82
    %s99 = sphi 0, %s83
    %s111 = sphi 0, %s113
    %s114 = sphi 0, %s111
    %s115 = sphi 0, %s114
    %s131 = sphi 0, %s115
    %s137 = sphi 0, %s139
    %s140 = sphi 0, %s137
    %s141 = sphi 0, %s140
    %s157 = sphi 0, %s141
    %s163 = sphi 0, %s165
    %s166 = sphi 0, %s163
    %s167 = sphi 0, %s166
    %s183 = sphi 0, %s167
    %s193 = sphi 0, %s195
    %s196 = sphi 0, %s193
    %s197 = sphi 0, %s196
    %s213 = sphi 0, %s197
    %s219 = sphi 0, %s221
    %s222 = sphi 0, %s219
    %s223 = sphi 0, %s222
    %s239 = sphi 0, %s223
    %s245 = sphi 0, %s247
    %s248 = sphi 0, %s245
    %s249 = sphi 0, %s248
    %s265 = sphi 0, %s249
  $region4: #{_lambda_.10} parent=0 // loop_header_branch
    %17 = sbr.rel (%p15) target = $region8
  $region5: #{_lambda_.10} parent=0 // loop_body
    %s19 = ssub.s32 %s14, 1
    %s20 = ssub.s32 %s14, 2
    %s30 = sadd.s32 1, %s23
    %p31 = scmp.ge.s32.totalorder %s30, 2
    %s32 = scalar_select %p31, 0, %s30
    %s33 = sadd.s32 1, %s22
    %s34 = scalar_select %p31, %s33, %s22
    %p35 = scmp.ge.s32.totalorder %s34, 2
    %s36 = scalar_select %p35, 0, %s34
    %s37 = sadd.s32 1, %s21
    %s38 = scalar_select %p35, %s37, %s21
    %p39 = scmp.ge.s32.totalorder %s38, 1
    %s40 = scalar_select %p39, 0, %s38
    %s41 = ssub.s32 %s21, %s40
    %s42 = ssub.s32 %s22, %s36
    %s43 = sor.u32 %s41, %s42
    %s44 = ssub.s32 %s23, %s32
    %s45 = sor.u32 %s43, %s44
    %p46 = scmp.eq.s32.totalorder %s45, 0
    %s48 = sadd.s32 %s47, 1
    %s49 = scalar_select %p46, %s47, %s48
    %p52 = pneg %p46
    %p53 = scmp.eq.s32.totalorder %s14, 3
    %p54 = por %p52, %p53
    %p55 = scmp.ne.s32.totalorder %s47, %s50
    %p56 = scmp.eq.s32.totalorder %s14, 0
    %p57 = por %p55, %p56
    %p58 = scmp.ne.s32.totalorder %s47, %s50
    %p59 = scmp.eq.s32.totalorder %s19, 3
    %p60 = por %p58, %p59
    %p61 = scmp.ne.s32.totalorder %s50, %s51
    %p62 = scmp.eq.s32.totalorder %s19, 0
    %p63 = por %p61, %p62
    %p64 = scmp.ne.s32.totalorder %s50, %s51
    %p65 = scmp.eq.s32.totalorder %s20, 3
    %p66 = por %p64, %p65
    %p68 = scmp.ne.s32.totalorder %s51, %s67
    %p69 = scmp.eq.s32.totalorder %s20, 0
    %p70 = por %p68, %p69
    %s71 = sadd.s32 %s23, 1
    %s72 = sadd.s32 %s32, 1
    %s73 = ssub.s32 %s21, %s40
    %s74 = ssub.s32 %s22, %s36
    %s75 = sor.u32 %s73, %s74
    %s76 = ssub.s32 %s71, %s72
    %s77 = sor.u32 %s75, %s76
    %p78 = scmp.eq.s32.totalorder %s77, 0
    %s80 = sadd.s32 %s79, 1
    %s81 = scalar_select %p78, %s79, %s80
    %p84 = pneg %p78
    %p85 = scmp.eq.s32.totalorder %s14, 3
    %p86 = por %p84, %p85
    %p87 = scmp.ne.s32.totalorder %s79, %s82
    %p88 = scmp.eq.s32.totalorder %s14, 0
    %p89 = por %p87, %p88
    %p90 = scmp.ne.s32.totalorder %s79, %s82
    %p91 = scmp.eq.s32.totalorder %s19, 3
    %p92 = por %p90, %p91
    %p93 = scmp.ne.s32.totalorder %s82, %s83
    %p94 = scmp.eq.s32.totalorder %s19, 0
    %p95 = por %p93, %p94
    %p96 = scmp.ne.s32.totalorder %s82, %s83
    %p97 = scmp.eq.s32.totalorder %s20, 3
    %p98 = por %p96, %p97
    %p100 = scmp.ne.s32.totalorder %s83, %s99
    %p101 = scmp.eq.s32.totalorder %s20, 0
    %p102 = por %p100, %p101
    %s103 = sadd.s32 %s23, 2
    %s104 = sadd.s32 %s32, 2
    %s105 = ssub.s32 %s21, %s40
    %s106 = ssub.s32 %s22, %s36
    %s107 = sor.u32 %s105, %s106
    %s108 = ssub.s32 %s103, %s104
    %s109 = sor.u32 %s107, %s108
    %p110 = scmp.eq.s32.totalorder %s109, 0
    %s112 = sadd.s32 %s111, 1
    %s113 = scalar_select %p110, %s111, %s112
    %p116 = pneg %p110
    %p117 = scmp.eq.s32.totalorder %s14, 3
    %p118 = por %p116, %p117
    %p119 = scmp.ne.s32.totalorder %s111, %s114
    %p120 = scmp.eq.s32.totalorder %s14, 0
    %p121 = por %p119, %p120
    %p122 = scmp.ne.s32.totalorder %s111, %s114
    %p123 = scmp.eq.s32.totalorder %s19, 3
    %p124 = por %p122, %p123
    %p125 = scmp.ne.s32.totalorder %s114, %s115
    %p126 = scmp.eq.s32.totalorder %s19, 0
    %p127 = por %p125, %p126
    %p128 = scmp.ne.s32.totalorder %s114, %s115
    %p129 = scmp.eq.s32.totalorder %s20, 3
    %p130 = por %p128, %p129
    %p132 = scmp.ne.s32.totalorder %s115, %s131
    %p133 = scmp.eq.s32.totalorder %s20, 0
    %p134 = por %p132, %p133
    %s135 = ssub.s32 %s21, %s40
    %p136 = scmp.eq.s32.totalorder %s135, 0
    %s138 = sadd.s32 %s137, 1
    %s139 = scalar_select %p136, %s137, %s138
    %p142 = pneg %p136
    %p143 = scmp.eq.s32.totalorder %s14, 3
    %p144 = por %p142, %p143
    %p145 = scmp.ne.s32.totalorder %s137, %s140
    %p146 = scmp.eq.s32.totalorder %s14, 0
    %p147 = por %p145, %p146
    %p148 = scmp.ne.s32.totalorder %s137, %s140
    %p149 = scmp.eq.s32.totalorder %s19, 3
    %p150 = por %p148, %p149
    %p151 = scmp.ne.s32.totalorder %s140, %s141
    %p152 = scmp.eq.s32.totalorder %s19, 0
    %p153 = por %p151, %p152
    %p154 = scmp.ne.s32.totalorder %s140, %s141
    %p155 = scmp.eq.s32.totalorder %s20, 3
    %p156 = por %p154, %p155
    %p158 = scmp.ne.s32.totalorder %s141, %s157
    %p159 = scmp.eq.s32.totalorder %s20, 0
    %p160 = por %p158, %p159
    %s161 = ssub.s32 %s21, %s40
    %p162 = scmp.eq.s32.totalorder %s161, 0
    %s164 = sadd.s32 %s163, 1
    %s165 = scalar_select %p162, %s163, %s164
    %p168 = pneg %p162
    %p169 = scmp.eq.s32.totalorder %s14, 3
    %p170 = por %p168, %p169
    %p171 = scmp.ne.s32.totalorder %s163, %s166
    %p172 = scmp.eq.s32.totalorder %s14, 0
    %p173 = por %p171, %p172
    %p174 = scmp.ne.s32.totalorder %s163, %s166
    %p175 = scmp.eq.s32.totalorder %s19, 3
    %p176 = por %p174, %p175
    %p177 = scmp.ne.s32.totalorder %s166, %s167
    %p178 = scmp.eq.s32.totalorder %s19, 0
    %p179 = por %p177, %p178
    %p180 = scmp.ne.s32.totalorder %s166, %s167
    %p181 = scmp.eq.s32.totalorder %s20, 3
    %p182 = por %p180, %p181
    %p184 = scmp.ne.s32.totalorder %s167, %s183
    %p185 = scmp.eq.s32.totalorder %s20, 0
    %p186 = por %p184, %p185
    %s187 = ssub.s32 %s21, %s40
    %s188 = ssub.s32 %s22, %s36
    %s189 = sor.u32 %s187, %s188
    %s190 = ssub.s32 %s23, %s32
    %s191 = sor.u32 %s189, %s190
    %p192 = scmp.eq.s32.totalorder %s191, 0
    %s194 = sadd.s32 %s193, 1
    %s195 = scalar_select %p192, %s193, %s194
    %p198 = pneg %p192
    %p199 = scmp.eq.s32.totalorder %s14, 3
    %p200 = por %p198, %p199
    %p201 = scmp.ne.s32.totalorder %s193, %s196
    %p202 = scmp.eq.s32.totalorder %s14, 0
    %p203 = por %p201, %p202
    %p204 = scmp.ne.s32.totalorder %s193, %s196
    %p205 = scmp.eq.s32.totalorder %s19, 3
    %p206 = por %p204, %p205
    %p207 = scmp.ne.s32.totalorder %s196, %s197
    %p208 = scmp.eq.s32.totalorder %s19, 0
    %p209 = por %p207, %p208
    %p210 = scmp.ne.s32.totalorder %s196, %s197
    %p211 = scmp.eq.s32.totalorder %s20, 3
    %p212 = por %p210, %p211
    %p214 = scmp.ne.s32.totalorder %s197, %s213
    %p215 = scmp.eq.s32.totalorder %s20, 0
    %p216 = por %p214, %p215
    %s217 = ssub.s32 %s21, %s40
    %p218 = scmp.eq.s32.totalorder %s217, 0
    %s220 = sadd.s32 %s219, 1
    %s221 = scalar_select %p218, %s219, %s220
    %p224 = pneg %p218
    %p225 = scmp.eq.s32.totalorder %s14, 3
    %p226 = por %p224, %p225
    %p227 = scmp.ne.s32.totalorder %s219, %s222
    %p228 = scmp.eq.s32.totalorder %s14, 0
    %p229 = por %p227, %p228
    %p230 = scmp.ne.s32.totalorder %s219, %s222
    %p231 = scmp.eq.s32.totalorder %s19, 3
    %p232 = por %p230, %p231
    %p233 = scmp.ne.s32.totalorder %s222, %s223
    %p234 = scmp.eq.s32.totalorder %s19, 0
    %p235 = por %p233, %p234
    %p236 = scmp.ne.s32.totalorder %s222, %s223
    %p237 = scmp.eq.s32.totalorder %s20, 3
    %p238 = por %p236, %p237
    %p240 = scmp.ne.s32.totalorder %s223, %s239
    %p241 = scmp.eq.s32.totalorder %s20, 0
    %p242 = por %p240, %p241
    %s243 = ssub.s32 %s21, %s40
    %p244 = scmp.eq.s32.totalorder %s243, 0
    %s246 = sadd.s32 %s245, 1
    %s247 = scalar_select %p244, %s245, %s246
    %p250 = pneg %p244
    %p251 = scmp.eq.s32.totalorder %s14, 3
    %p252 = por %p250, %p251
    %p253 = scmp.ne.s32.totalorder %s245, %s248
    %p254 = scmp.eq.s32.totalorder %s14, 0
    %p255 = por %p253, %p254
    %p256 = scmp.ne.s32.totalorder %s245, %s248
    %p257 = scmp.eq.s32.totalorder %s19, 3
    %p258 = por %p256, %p257
    %p259 = scmp.ne.s32.totalorder %s248, %s249
    %p260 = scmp.eq.s32.totalorder %s19, 0
    %p261 = por %p259, %p260
    %p262 = scmp.ne.s32.totalorder %s248, %s249
    %p263 = scmp.eq.s32.totalorder %s20, 3
    %p264 = por %p262, %p263
    %p266 = scmp.ne.s32.totalorder %s249, %s265
    %p267 = scmp.eq.s32.totalorder %s20, 0
    %p268 = por %p266, %p267
    %p269 = scmp.le.s32.totalorder 1, %s14
    %p270 = scmp.lt.s32.totalorder %s14, 5
    %p271 = pnand %p269, %p270
    %p272 = pneg %p271
    // Predicated region
    $region9: #{_lambda_.10} parent=5 // pred_check
      _
    $region10: #{_lambda_.10} parent=5 // pred_check_branch
      %274 = sbr.rel (%p271) target = $region12
    $region11: #{_lambda_.10} parent=5 // pred_region
      %s275 = ssub.s32 %s14, 1
      // Predicated region
      $region13: #{_lambda_.10} parent=11 // pred_check
        %p276 = pneg %p153
      $region14: #{_lambda_.10} parent=11 // pred_check_branch
        %278 = sbr.rel (%p276) target = $region16
      $region15: #{_lambda_.10} parent=11 // pred_region
        %p279 = scmp.lt.s32.totalorder %s24, 0
        %s280 = scalar_select %p279, %s24, 0
        %s281 = smul.addr %s280, 64
        %s282 = smul.addr %s281, 4
        %s283 = scalar_lea.vmem %s3, %s282
      $region16: #{_lambda_.10} parent=11 // pred_fallthru
        _
      // Predicated region
      $region17: #{_lambda_.10} parent=11 // pred_check
        %p284 = pneg %p179
      $region18: #{_lambda_.10} parent=11 // pred_check_branch
        %286 = sbr.rel (%p284) target = $region20
      $region19: #{_lambda_.10} parent=11 // pred_region
        %p287 = scmp.lt.s32.totalorder %s24, 0
        %s288 = scalar_select %p287, %s24, 0
        %s289 = scalar_lea.vmem %s4, %s288
      $region20: #{_lambda_.10} parent=11 // pred_fallthru
        _
    $region12: #{_lambda_.10} parent=5 // pred_fallthru
      _
    %p290 = scmp.lt.s32.totalorder %s14, 4
    // Predicated region
    $region21: #{_lambda_.10} parent=5 // pred_check
      %p291 = pneg %p290
    $region22: #{_lambda_.10} parent=5 // pred_check_branch
      %293 = sbr.rel (%p291) target = $region24
    $region23: #{_lambda_.10} parent=5 // pred_region
      // Predicated region
      $region25: #{_lambda_.10} parent=23 // pred_check
        %p294 = pneg %p57
      $region26: #{_lambda_.10} parent=23 // pred_check_branch
        %296 = sbr.rel (%p294) target = $region28
      $region27: #{_lambda_.10} parent=23 // pred_region
        %p297 = scmp.lt.s32.totalorder %s21, 0
        %s298 = scalar_select %p297, %s21, 0
        %p299 = scmp.lt.s32.totalorder %s22, 1
        %s300 = scalar_select %p299, %s22, 1
        %p301 = scmp.lt.s32.totalorder %s23, 3
        %s302 = scalar_select %p301, %s23, 3
        %s303 = smul.addr %s300, 4
        %s304 = sadd.s32 %s302, %s303
        %s305 = smul.addr %s298, 8
        %s306 = sadd.s32 %s304, %s305
        %s307 = smul.addr %s306, 2
        %s308 = scalar_lea.vmem %s0, %s307
      $region28: #{_lambda_.10} parent=23 // pred_fallthru
        _
      // Predicated region
      $region29: #{_lambda_.10} parent=23 // pred_check
        %p309 = pneg %p89
      $region30: #{_lambda_.10} parent=23 // pred_check_branch
        %311 = sbr.rel (%p309) target = $region32
      $region31: #{_lambda_.10} parent=23 // pred_region
        %s312 = sadd.s32 %s23, 1
        %p313 = scmp.lt.s32.totalorder %s21, 0
        %s314 = scalar_select %p313, %s21, 0
        %p315 = scmp.lt.s32.totalorder %s22, 1
        %s316 = scalar_select %p315, %s22, 1
        %p317 = scmp.lt.s32.totalorder %s312, 3
        %s318 = scalar_select %p317, %s312, 3
        %s319 = smul.addr %s316, 4
        %s320 = sadd.s32 %s318, %s319
        %s321 = smul.addr %s314, 8
        %s322 = sadd.s32 %s320, %s321
        %s323 = smul.addr %s322, 2
        %s324 = scalar_lea.vmem %s1, %s323
        %s325 = sadd.s32 %s23, 1
      $region32: #{_lambda_.10} parent=23 // pred_fallthru
        _
      // Predicated region
      $region33: #{_lambda_.10} parent=23 // pred_check
        %p326 = pneg %p121
      $region34: #{_lambda_.10} parent=23 // pred_check_branch
        %328 = sbr.rel (%p326) target = $region36
      $region35: #{_lambda_.10} parent=23 // pred_region
        %s329 = sadd.s32 %s23, 2
        %p330 = scmp.lt.s32.totalorder %s21, 0
        %s331 = scalar_select %p330, %s21, 0
        %p332 = scmp.lt.s32.totalorder %s22, 1
        %s333 = scalar_select %p332, %s22, 1
        %p334 = scmp.lt.s32.totalorder %s329, 3
        %s335 = scalar_select %p334, %s329, 3
        %s336 = smul.addr %s333, 4
        %s337 = sadd.s32 %s335, %s336
        %s338 = smul.addr %s331, 8
        %s339 = sadd.s32 %s337, %s338
        %s340 = smul.addr %s339, 2
        %s341 = scalar_lea.vmem %s2, %s340
        %s342 = sadd.s32 %s23, 2
      $region36: #{_lambda_.10} parent=23 // pred_fallthru
        _
    $region24: #{_lambda_.10} parent=5 // pred_fallthru
      _
    %p343 = scmp.le.s32.totalorder 1, %s14
    %p344 = scmp.lt.s32.totalorder %s14, 5
    %p345 = pnand %p343, %p344
    %p346 = pneg %p345
    // Predicated region
    $region37: #{_lambda_.10} parent=5 // pred_check
      _
    $region38: #{_lambda_.10} parent=5 // pred_check_branch
      %348 = sbr.rel (%p345) target = $region40
    $region39: #{_lambda_.10} parent=5 // pred_region
      %s349 = ssub.s32 %s14, 1
      %p350 = scmp.lt.s32.totalorder %s24, 0
      %s351 = scalar_select %p350, %s24, 0
      %p352 = scmp.lt.s32.totalorder %s25, 1
      %s353 = scalar_select %p352, %s25, 1
      %p354 = scmp.lt.s32.totalorder %s26, 3
      %s355 = scalar_select %p354, %s26, 3
      %s356 = smul.addr %s353, 4
      %s357 = sadd.s32 %s355, %s356
      %s358 = smul.addr %s351, 8
      %s359 = sadd.s32 %s357, %s358
      %s360 = smul.addr %s359, 2
      %s361 = scalar_lea.vmem %s0, %s360
      %p362 = pneg %p63
      %p363 = pneg %p60
      %s364 = sadd.s32 %s26, 1
      %p365 = scmp.lt.s32.totalorder %s24, 0
      %s366 = scalar_select %p365, %s24, 0
      %p367 = scmp.lt.s32.totalorder %s25, 1
      %s368 = scalar_select %p367, %s25, 1
      %p369 = scmp.lt.s32.totalorder %s364, 3
      %s370 = scalar_select %p369, %s364, 3
      %s371 = smul.addr %s368, 4
      %s372 = sadd.s32 %s370, %s371
      %s373 = smul.addr %s366, 8
      %s374 = sadd.s32 %s372, %s373
      %s375 = smul.addr %s374, 2
      %s376 = scalar_lea.vmem %s1, %s375
      %p377 = pneg %p95
      %p378 = pneg %p92
      %s379 = sadd.s32 %s26, 2
      %p380 = scmp.lt.s32.totalorder %s24, 0
      %s381 = scalar_select %p380, %s24, 0
      %p382 = scmp.lt.s32.totalorder %s25, 1
      %s383 = scalar_select %p382, %s25, 1
      %p384 = scmp.lt.s32.totalorder %s379, 3
      %s385 = scalar_select %p384, %s379, 3
      %s386 = smul.addr %s383, 4
      %s387 = sadd.s32 %s385, %s386
      %s388 = smul.addr %s381, 8
      %s389 = sadd.s32 %s387, %s388
      %s390 = smul.addr %s389, 2
      %s391 = scalar_lea.vmem %s2, %s390
      %p392 = pneg %p127
      %p393 = pneg %p124
      %p394 = scmp.lt.s32.totalorder %s24, 0
      %s395 = scalar_select %p394, %s24, 0
      %s396 = smul.addr %s395, 64
      %s397 = smul.addr %s396, 4
      %s398 = scalar_lea.vmem %s3, %s397
      %p399 = pneg %p153
      %p400 = pneg %p150
      %p401 = scmp.lt.s32.totalorder %s24, 0
      %s402 = scalar_select %p401, %s24, 0
      %s403 = scalar_lea.vmem %s4, %s402
      %p404 = pneg %p179
      %p405 = pneg %p176
      %p406 = pneg %p209
      %p407 = pneg %p206
      %p408 = scmp.lt.s32.totalorder %s24, 0
      %s409 = scalar_select %p408, %s24, 0
      %p410 = scmp.lt.s32.totalorder %s25, 1
      %s411 = scalar_select %p410, %s25, 1
      %p412 = scmp.lt.s32.totalorder %s26, 1
      %s413 = scalar_select %p412, %s26, 1
      %s414 = smul.addr %s413, 4
      %s415 = smul.addr %s411, 8
      %s416 = sadd.s32 %s414, %s415
      %s417 = smul.addr %s409, 16
      %s418 = sadd.s32 %s416, %s417
      %s419 = scalar_lea.vmem %s5, %s418
      %p420 = pneg %p235
      %p421 = pneg %p232
      %p422 = scmp.lt.s32.totalorder %s24, 0
      %s423 = scalar_select %p422, %s24, 0
      %s424 = scalar_lea.vmem %s6, %s423
      %p425 = pneg %p261
      %p426 = pneg %p258
      %p427 = scmp.lt.s32.totalorder %s24, 0
      %s428 = scalar_select %p427, %s24, 0
      %s429 = scalar_lea.vmem %s7, %s428
      %p430 = scmp.lt.s32.totalorder %s24, 0
      %s431 = scalar_select %p430, %s24, 0
      %p432 = scmp.lt.s32.totalorder %s25, 1
      %s433 = scalar_select %p432, %s25, 1
      %p434 = scmp.lt.s32.totalorder %s26, 3
      %s435 = scalar_select %p434, %s26, 3
      %s436 = smul.addr %s433, 4
      %s437 = sadd.s32 %s435, %s436
      %s438 = smul.addr %s431, 8
      %s439 = sadd.s32 %s437, %s438
      %s440 = smul.addr %s439, 2
      %s441 = scalar_lea.vmem %s0, %s440
      %s442 = sadd.s32 %s26, 1
      %p443 = scmp.lt.s32.totalorder %s24, 0
      %s444 = scalar_select %p443, %s24, 0
      %p445 = scmp.lt.s32.totalorder %s25, 1
      %s446 = scalar_select %p445, %s25, 1
      %p447 = scmp.lt.s32.totalorder %s442, 3
      %s448 = scalar_select %p447, %s442, 3
      %s449 = smul.addr %s446, 4
      %s450 = sadd.s32 %s448, %s449
      %s451 = smul.addr %s444, 8
      %s452 = sadd.s32 %s450, %s451
      %s453 = smul.addr %s452, 2
      %s454 = scalar_lea.vmem %s1, %s453
      %s455 = sadd.s32 %s26, 1
      %s456 = sadd.s32 %s26, 2
      %p457 = scmp.lt.s32.totalorder %s24, 0
      %s458 = scalar_select %p457, %s24, 0
      %p459 = scmp.lt.s32.totalorder %s25, 1
      %s460 = scalar_select %p459, %s25, 1
      %p461 = scmp.lt.s32.totalorder %s456, 3
      %s462 = scalar_select %p461, %s456, 3
      %s463 = smul.addr %s460, 4
      %s464 = sadd.s32 %s462, %s463
      %s465 = smul.addr %s458, 8
      %s466 = sadd.s32 %s464, %s465
      %s467 = smul.addr %s466, 2
      %s468 = scalar_lea.vmem %s2, %s467
      %s469 = sadd.s32 %s26, 2
      %p470 = scmp.lt.s32.totalorder %s24, 0
      %s471 = scalar_select %p470, %s24, 0
      %s472 = smul.addr %s471, 64
      %s473 = smul.addr %s472, 4
      %s474 = scalar_lea.vmem %s3, %s473
      %p475 = scmp.lt.s32.totalorder %s24, 0
      %s476 = scalar_select %p475, %s24, 0
      %s477 = scalar_lea.vmem %s4, %s476
      %p478 = scmp.lt.s32.totalorder %s24, 0
      %s479 = scalar_select %p478, %s24, 0
      %p480 = scmp.lt.s32.totalorder %s25, 1
      %s481 = scalar_select %p480, %s25, 1
      %p482 = scmp.lt.s32.totalorder %s26, 1
      %s483 = scalar_select %p482, %s26, 1
      %s484 = smul.addr %s483, 4
      %s485 = smul.addr %s481, 8
      %s486 = sadd.s32 %s484, %s485
      %s487 = smul.addr %s479, 16
      %s488 = sadd.s32 %s486, %s487
      %s489 = scalar_lea.vmem %s5, %s488
      %p490 = scmp.lt.s32.totalorder %s24, 0
      %s491 = scalar_select %p490, %s24, 0
      %s492 = scalar_lea.vmem %s6, %s491
      %p493 = scmp.lt.s32.totalorder %s24, 0
      %s494 = scalar_select %p493, %s24, 0
      %s495 = scalar_lea.vmem %s7, %s494
      %v497 = vld [vmem:[%s441] sm:$0x1]
      %v498 = vunpack.c.l.bf16 %v497
      %v499 = vmax.f32 %v498, 0.0
      %v500 = vpack.c.bf16 %v499, %v499
      %v501 = vld [vmem:[%s441] sm:$0x3]
      %v502 = vunpack.c.l.bf16 %v501
      %v503 = vmax.f32 %v502, 0.0
      %v504 = vpack.c.bf16 %v503, %v503
      %v505 = vld [vmem:[%s441] sm:$0x2]
      %v506 = vunpack.c.l.bf16 %v505
      %v507 = vmax.f32 %v506, 0.0
      %v508 = vpack.c.bf16 %v507, %v507
      %v509 = vld [vmem:[%s454] sm:$0x1]
      %v510 = vunpack.c.l.bf16 %v509
      %v511 = vmax.f32 %v510, 0.0
      %v512 = vpack.c.bf16 %v511, %v511
      %v513 = vld [vmem:[%s454] sm:$0x3]
      %v514 = vunpack.c.l.bf16 %v513
      %v515 = vmax.f32 %v514, 0.0
      %v516 = vpack.c.bf16 %v515, %v515
      %v517 = vld [vmem:[%s454] sm:$0x2]
      %v518 = vunpack.c.l.bf16 %v517
      %v519 = vmax.f32 %v518, 0.0
      %v520 = vpack.c.bf16 %v519, %v519
      %v521 = vld [vmem:[%s468] sm:$0x1]
      %v522 = vunpack.c.l.bf16 %v521
      %v523 = vmax.f32 %v522, 0.0
      %v524 = vpack.c.bf16 %v523, %v523
      %v525 = vld [vmem:[%s468] sm:$0x3]
      %v526 = vunpack.c.l.bf16 %v525
      %v527 = vmax.f32 %v526, 0.0
      %v528 = vpack.c.bf16 %v527, %v527
      %v529 = vld [vmem:[%s468] sm:$0x2]
      %v530 = vunpack.c.l.bf16 %v529
      %v531 = vmax.f32 %v530, 0.0
      %v532 = vpack.c.bf16 %v531, %v531
      %p533 = scmp.eq.s32.totalorder %s25, 0
      %p534 = scmp.eq.s32.totalorder %s26, 0
      %p535 = pnand %p533, %p534
      %p536 = pneg %p535
      // Predicated region
      $region41: #{_lambda_.10} parent=39 // pred_check
        _
      $region42: #{_lambda_.10} parent=39 // pred_check_branch
        %538 = sbr.rel (%p535) target = $region44
      $region43: #{_lambda_.10} parent=39 // pred_region
        %vm539 = vcmask 253952
        %540 = vst.msk [vmem:[%s492] sm:$0x1] %vm539, 0.0
        %541 = vst.msk [vmem:[%s495] sm:$0x1] %vm539, 0.0
      $region44: #{_lambda_.10} parent=39 // pred_fallthru
        _
      %v542 = vld [vmem:[%s474] sm:$0xf]
      %v543 = vld [vmem:[%s474 + $0x4] sm:$0xf]
      %v544 = vld [vmem:[%s474 + $0x8] sm:$0xf]
      %v545 = vld [vmem:[%s474 + $0xc] sm:$0xf]
      %s546 = scalar_lea.vmem %s474, 16
      %v547 = vld [vmem:[%s546] sm:$0xf]
      %v548 = vld [vmem:[%s546 + $0x4] sm:$0xf]
      %v549 = vld [vmem:[%s546 + $0x8] sm:$0xf]
      %v550 = vld [vmem:[%s546 + $0xc] sm:$0xf]
      %v552 = vshrl.u32 %v504, 16
      %v554 = vshll.u32 %v504, 16
      %v556 = vrot.slane %v554, 1
      %v557 = vor.u32 %v552, %v556
      %v562 = vunpack.c.l.b16 %v547
      %v563 = vunpack.c.l.b16 %v548
      %v564 = vunpack.c.l.b16 %v549
      %v565 = vunpack.c.l.b16 %v550
      %v566 = vpack.c.b16 %v563, %v562
      %v567 = vpack.c.b16 %v565, %v564
      %vm570 = vcmask 261120
      %v572 = vsel %vm570, %v557, 0
      %574 = vmatpush.bf16.msra.mxu0 0
      %575 = vmatpush.bf16.msra.mxu0 0
      %576 = vmatpush.bf16.msra.mxu0 0
      %577 = vmatpush.bf16.msra.mxu0 0
      %578 = vmatpush.bf16.msra.mxu0 0
      %579 = vmatpush.bf16.msra.mxu0 0
      %580 = vmatpush.bf16.msra.mxu0 %v567
      %581 = vmatpush.bf16.msra.mxu0 %v566
      %582 = vmatmul.bf16.gmra.mxu0 %v572
      %v583 = vpop.f32.mrf.mxu0
      %v584 = vadd.f32 0.0, %v583
      %v585 = vpop.f32.mrf.mxu0
      %586 = vdwg.mxu0
      %v591 = vunpack.c.l.b16 %v542
      %v592 = vunpack.c.l.b16 %v543
      %v593 = vunpack.c.l.b16 %v544
      %v594 = vunpack.c.l.b16 %v545
      %v595 = vpack.c.b16 %v592, %v591
      %v596 = vpack.c.b16 %v594, %v593
      %v600 = vsel %vm570, %v500, 0
      %602 = vmatpush.bf16.msra.mxu0 0
      %603 = vmatpush.bf16.msra.mxu0 0
      %604 = vmatpush.bf16.msra.mxu0 0
      %605 = vmatpush.bf16.msra.mxu0 0
      %606 = vmatpush.bf16.msra.mxu0 0
      %607 = vmatpush.bf16.msra.mxu0 0
      %608 = vmatpush.bf16.msra.mxu0 %v596
      %609 = vmatpush.bf16.msra.mxu0 %v595
      %610 = vmatmul.bf16.gmra.mxu0 %v600
      %v611 = vpop.f32.mrf.mxu0
      %v612 = vadd.f32 %v584, %v611
      %v613 = vpop.f32.mrf.mxu0
      %614 = vdwg.mxu0
      %s615 = scalar_lea.vmem %s474, 32
      %v616 = vld [vmem:[%s615] sm:$0xf]
      %v617 = vld [vmem:[%s615 + $0x4] sm:$0xf]
      %v618 = vld [vmem:[%s615 + $0x8] sm:$0xf]
      %v619 = vld [vmem:[%s615 + $0xc] sm:$0xf]
      %v624 = vunpack.c.l.b16 %v616
      %v625 = vunpack.c.l.b16 %v617
      %v626 = vunpack.c.l.b16 %v618
      %v627 = vunpack.c.l.b16 %v619
      %v628 = vpack.c.b16 %v625, %v624
      %v629 = vpack.c.b16 %v627, %v626
      %v633 = vsel %vm570, %v512, 0
      %635 = vmatpush.bf16.msra.mxu0 0
      %636 = vmatpush.bf16.msra.mxu0 0
      %637 = vmatpush.bf16.msra.mxu0 0
      %638 = vmatpush.bf16.msra.mxu0 0
      %639 = vmatpush.bf16.msra.mxu0 0
      %640 = vmatpush.bf16.msra.mxu0 0
      %641 = vmatpush.bf16.msra.mxu0 %v629
      %642 = vmatpush.bf16.msra.mxu0 %v628
      %643 = vmatmul.bf16.gmra.mxu0 %v633
      %v644 = vpop.f32.mrf.mxu0
      %v645 = vadd.f32 0.0, %v644
      %v646 = vpop.f32.mrf.mxu0
      %647 = vdwg.mxu0
      %v648 = vadd.f32 %v612, %v645
      %s649 = scalar_lea.vmem %s474, 48
      %v650 = vld [vmem:[%s649] sm:$0xf]
      %v651 = vld [vmem:[%s649 + $0x4] sm:$0xf]
      %v652 = vld [vmem:[%s649 + $0x8] sm:$0xf]
      %v653 = vld [vmem:[%s649 + $0xc] sm:$0xf]
      %v655 = vshrl.u32 %v516, 16
      %v657 = vshll.u32 %v516, 16
      %v659 = vrot.slane %v657, 1
      %v660 = vor.u32 %v655, %v659
      %v665 = vunpack.c.l.b16 %v650
      %v666 = vunpack.c.l.b16 %v651
      %v667 = vunpack.c.l.b16 %v652
      %v668 = vunpack.c.l.b16 %v653
      %v669 = vpack.c.b16 %v666, %v665
      %v670 = vpack.c.b16 %v668, %v667
      %v674 = vsel %vm570, %v660, 0
      %676 = vmatpush.bf16.msra.mxu0 0
      %677 = vmatpush.bf16.msra.mxu0 0
      %678 = vmatpush.bf16.msra.mxu0 0
      %679 = vmatpush.bf16.msra.mxu0 0
      %680 = vmatpush.bf16.msra.mxu0 0
      %681 = vmatpush.bf16.msra.mxu0 0
      %682 = vmatpush.bf16.msra.mxu0 %v670
      %683 = vmatpush.bf16.msra.mxu0 %v669
      %684 = vmatmul.bf16.gmra.mxu0 %v674
      %v685 = vpop.f32.mrf.mxu0
      %v686 = vadd.f32 0.0, %v685
      %v687 = vpop.f32.mrf.mxu0
      %688 = vdwg.mxu0
      %v689 = vadd.f32 %v648, %v686
      %vm690 = vcmask 254976
      %v691 = vsel %vm690, %v689, 0.0
      %v692 = vrot.slane %v691, 4
      %v693 = vadd.f32 %v691, %v692
      %v694 = vrot.slane %v693, 2
      %v695 = vadd.f32 %v693, %v694
      %v696 = vrot.slane %v695, 1
      %v697 = vadd.f32 %v695, %v696
      %v698 = vadd.f32 %v697, 0.0
      %v699 = vmul.f32 %v689, %v689
      %v700 = vsel %vm690, %v699, 0.0
      %v701 = vrot.slane %v700, 4
      %v702 = vadd.f32 %v700, %v701
      %v703 = vrot.slane %v702, 2
      %v704 = vadd.f32 %v702, %v703
      %v705 = vrot.slane %v704, 1
      %v706 = vadd.f32 %v704, %v705
      %v707 = vadd.f32 %v706, 0.0
      %v708 = vld [vmem:[%s477] sm:$0x1]
      %v710 = vperm.slane %v708, 0
      %v712 = vadd.f32 %v689, %v710
      %v713 = vpack.c.bf16 %v712, %v712
      %vm714 = vcmask 253952
      %715 = vst.msk [vmem:[%s489] sm:$0x1] %vm714, %v713
      %s716 = scalar_lea.vmem %s474, 64
      %v717 = vld [vmem:[%s716] sm:$0xf]
      %v718 = vld [vmem:[%s716 + $0x4] sm:$0xf]
      %v719 = vld [vmem:[%s716 + $0x8] sm:$0xf]
      %v720 = vld [vmem:[%s716 + $0xc] sm:$0xf]
      %s721 = scalar_lea.vmem %s474, 80
      %v722 = vld [vmem:[%s721] sm:$0xf]
      %v723 = vld [vmem:[%s721 + $0x4] sm:$0xf]
      %v724 = vld [vmem:[%s721 + $0x8] sm:$0xf]
      %v725 = vld [vmem:[%s721 + $0xc] sm:$0xf]
      %v727 = vrot.slane %v508, 1
      %v732 = vunpack.c.l.b16 %v722
      %v733 = vunpack.c.l.b16 %v723
      %v734 = vunpack.c.l.b16 %v724
      %v735 = vunpack.c.l.b16 %v725
      %v736 = vpack.c.b16 %v733, %v732
      %v737 = vpack.c.b16 %v735, %v734
      %v741 = vsel %vm570, %v727, 0
      %743 = vmatpush.bf16.msra.mxu0 0
      %744 = vmatpush.bf16.msra.mxu0 0
      %745 = vmatpush.bf16.msra.mxu0 0
      %746 = vmatpush.bf16.msra.mxu0 0
      %747 = vmatpush.bf16.msra.mxu0 0
      %748 = vmatpush.bf16.msra.mxu0 0
      %749 = vmatpush.bf16.msra.mxu0 %v737
      %750 = vmatpush.bf16.msra.mxu0 %v736
      %751 = vmatmul.bf16.gmra.mxu0 %v741
      %v752 = vpop.f32.mrf.mxu0
      %v753 = vadd.f32 0.0, %v752
      %v754 = vpop.f32.mrf.mxu0
      %755 = vdwg.mxu0
      %v760 = vunpack.c.l.b16 %v717
      %v761 = vunpack.c.l.b16 %v718
      %v762 = vunpack.c.l.b16 %v719
      %v763 = vunpack.c.l.b16 %v720
      %v764 = vpack.c.b16 %v761, %v760
      %v765 = vpack.c.b16 %v763, %v762
      %768 = vmatpush.bf16.msra.mxu0 0
      %769 = vmatpush.bf16.msra.mxu0 0
      %770 = vmatpush.bf16.msra.mxu0 0
      %771 = vmatpush.bf16.msra.mxu0 0
      %772 = vmatpush.bf16.msra.mxu0 0
      %773 = vmatpush.bf16.msra.mxu0 0
      %774 = vmatpush.bf16.msra.mxu0 %v765
      %775 = vmatpush.bf16.msra.mxu0 %v764
      %776 = vmatmul.bf16.gmra.mxu0 %v572
      %v777 = vpop.f32.mrf.mxu0
      %v778 = vadd.f32 %v753, %v777
      %v779 = vpop.f32.mrf.mxu0
      %780 = vdwg.mxu0
      %s781 = scalar_lea.vmem %s474, 96
      %v782 = vld [vmem:[%s781] sm:$0xf]
      %v783 = vld [vmem:[%s781 + $0x4] sm:$0xf]
      %v784 = vld [vmem:[%s781 + $0x8] sm:$0xf]
      %v785 = vld [vmem:[%s781 + $0xc] sm:$0xf]
      %v790 = vunpack.c.l.b16 %v782
      %v791 = vunpack.c.l.b16 %v783
      %v792 = vunpack.c.l.b16 %v784
      %v793 = vunpack.c.l.b16 %v785
      %v794 = vpack.c.b16 %v791, %v790
      %v795 = vpack.c.b16 %v793, %v792
      %798 = vmatpush.bf16.msra.mxu0 0
      %799 = vmatpush.bf16.msra.mxu0 0
      %800 = vmatpush.bf16.msra.mxu0 0
      %801 = vmatpush.bf16.msra.mxu0 0
      %802 = vmatpush.bf16.msra.mxu0 0
      %803 = vmatpush.bf16.msra.mxu0 0
      %804 = vmatpush.bf16.msra.mxu0 %v795
      %805 = vmatpush.bf16.msra.mxu0 %v794
      %806 = vmatmul.bf16.gmra.mxu0 %v674
      %v807 = vpop.f32.mrf.mxu0
      %v808 = vadd.f32 0.0, %v807
      %v809 = vpop.f32.mrf.mxu0
      %810 = vdwg.mxu0
      %v811 = vadd.f32 %v778, %v808
      %s812 = scalar_lea.vmem %s474, 112
      %v813 = vld [vmem:[%s812] sm:$0xf]
      %v814 = vld [vmem:[%s812 + $0x4] sm:$0xf]
      %v815 = vld [vmem:[%s812 + $0x8] sm:$0xf]
      %v816 = vld [vmem:[%s812 + $0xc] sm:$0xf]
      %v818 = vrot.slane %v520, 1
      %v823 = vunpack.c.l.b16 %v813
      %v824 = vunpack.c.l.b16 %v814
      %v825 = vunpack.c.l.b16 %v815
      %v826 = vunpack.c.l.b16 %v816
      %v827 = vpack.c.b16 %v824, %v823
      %v828 = vpack.c.b16 %v826, %v825
      %v832 = vsel %vm570, %v818, 0
      %834 = vmatpush.bf16.msra.mxu0 0
      %835 = vmatpush.bf16.msra.mxu0 0
      %836 = vmatpush.bf16.msra.mxu0 0
      %837 = vmatpush.bf16.msra.mxu0 0
      %838 = vmatpush.bf16.msra.mxu0 0
      %839 = vmatpush.bf16.msra.mxu0 0
      %840 = vmatpush.bf16.msra.mxu0 %v828
      %841 = vmatpush.bf16.msra.mxu0 %v827
      %842 = vmatmul.bf16.gmra.mxu0 %v832
      %v843 = vpop.f32.mrf.mxu0
      %v844 = vadd.f32 0.0, %v843
      %v845 = vpop.f32.mrf.mxu0
      %846 = vdwg.mxu0
      %v847 = vadd.f32 %v811, %v844
      %v848 = vsel %vm690, %v847, 0.0
      %v849 = vrot.slane %v848, 4
      %v850 = vadd.f32 %v848, %v849
      %v851 = vrot.slane %v850, 2
      %v852 = vadd.f32 %v850, %v851
      %v853 = vrot.slane %v852, 1
      %v854 = vadd.f32 %v852, %v853
      %v855 = vadd.f32 %v698, %v854
      %v856 = vmul.f32 %v847, %v847
      %v857 = vsel %vm690, %v856, 0.0
      %v858 = vrot.slane %v857, 4
      %v859 = vadd.f32 %v857, %v858
      %v860 = vrot.slane %v859, 2
      %v861 = vadd.f32 %v859, %v860
      %v862 = vrot.slane %v861, 1
      %v863 = vadd.f32 %v861, %v862
      %v864 = vadd.f32 %v707, %v863
      %v865 = vld [vmem:[%s477] sm:$0x1]
      %v867 = vperm.slane %v865, 0
      %v869 = vadd.f32 %v847, %v867
      %v870 = vpack.c.bf16 %v869, %v869
      %s871 = scalar_lea.vmem %s489, 1
      %872 = vst.msk [vmem:[%s871] sm:$0x1] %vm714, %v870
      %s873 = scalar_lea.vmem %s474, 128
      %v874 = vld [vmem:[%s873] sm:$0xf]
      %v875 = vld [vmem:[%s873 + $0x4] sm:$0xf]
      %v876 = vld [vmem:[%s873 + $0x8] sm:$0xf]
      %v877 = vld [vmem:[%s873 + $0xc] sm:$0xf]
      %s878 = scalar_lea.vmem %s474, 144
      %v879 = vld [vmem:[%s878] sm:$0xf]
      %v880 = vld [vmem:[%s878 + $0x4] sm:$0xf]
      %v881 = vld [vmem:[%s878 + $0x8] sm:$0xf]
      %v882 = vld [vmem:[%s878 + $0xc] sm:$0xf]
      %v887 = vunpack.c.l.b16 %v879
      %v888 = vunpack.c.l.b16 %v880
      %v889 = vunpack.c.l.b16 %v881
      %v890 = vunpack.c.l.b16 %v882
      %v891 = vpack.c.b16 %v888, %v887
      %v892 = vpack.c.b16 %v890, %v889
      %895 = vmatpush.bf16.msra.mxu0 0
      %896 = vmatpush.bf16.msra.mxu0 0
      %897 = vmatpush.bf16.msra.mxu0 0
      %898 = vmatpush.bf16.msra.mxu0 0
      %899 = vmatpush.bf16.msra.mxu0 0
      %900 = vmatpush.bf16.msra.mxu0 0
      %901 = vmatpush.bf16.msra.mxu0 %v892
      %902 = vmatpush.bf16.msra.mxu0 %v891
      %903 = vmatmul.bf16.gmra.mxu0 %v674
      %v904 = vpop.f32.mrf.mxu0
      %v905 = vadd.f32 0.0, %v904
      %v906 = vpop.f32.mrf.mxu0
      %907 = vdwg.mxu0
      %v912 = vunpack.c.l.b16 %v874
      %v913 = vunpack.c.l.b16 %v875
      %v914 = vunpack.c.l.b16 %v876
      %v915 = vunpack.c.l.b16 %v877
      %v916 = vpack.c.b16 %v913, %v912
      %v917 = vpack.c.b16 %v915, %v914
      %920 = vmatpush.bf16.msra.mxu0 0
      %921 = vmatpush.bf16.msra.mxu0 0
      %922 = vmatpush.bf16.msra.mxu0 0
      %923 = vmatpush.bf16.msra.mxu0 0
      %924 = vmatpush.bf16.msra.mxu0 0
      %925 = vmatpush.bf16.msra.mxu0 0
      %926 = vmatpush.bf16.msra.mxu0 %v917
      %927 = vmatpush.bf16.msra.mxu0 %v916
      %928 = vmatmul.bf16.gmra.mxu0 %v633
      %v929 = vpop.f32.mrf.mxu0
      %v930 = vadd.f32 %v905, %v929
      %v931 = vpop.f32.mrf.mxu0
      %932 = vdwg.mxu0
      %s933 = scalar_lea.vmem %s474, 160
      %v934 = vld [vmem:[%s933] sm:$0xf]
      %v935 = vld [vmem:[%s933 + $0x4] sm:$0xf]
      %v936 = vld [vmem:[%s933 + $0x8] sm:$0xf]
      %v937 = vld [vmem:[%s933 + $0xc] sm:$0xf]
      %v942 = vunpack.c.l.b16 %v934
      %v943 = vunpack.c.l.b16 %v935
      %v944 = vunpack.c.l.b16 %v936
      %v945 = vunpack.c.l.b16 %v937
      %v946 = vpack.c.b16 %v943, %v942
      %v947 = vpack.c.b16 %v945, %v944
      %v951 = vsel %vm570, %v524, 0
      %953 = vmatpush.bf16.msra.mxu0 0
      %954 = vmatpush.bf16.msra.mxu0 0
      %955 = vmatpush.bf16.msra.mxu0 0
      %956 = vmatpush.bf16.msra.mxu0 0
      %957 = vmatpush.bf16.msra.mxu0 0
      %958 = vmatpush.bf16.msra.mxu0 0
      %959 = vmatpush.bf16.msra.mxu0 %v947
      %960 = vmatpush.bf16.msra.mxu0 %v946
      %961 = vmatmul.bf16.gmra.mxu0 %v951
      %v962 = vpop.f32.mrf.mxu0
      %v963 = vadd.f32 0.0, %v962
      %v964 = vpop.f32.mrf.mxu0
      %965 = vdwg.mxu0
      %v966 = vadd.f32 %v930, %v963
      %s967 = scalar_lea.vmem %s474, 176
      %v968 = vld [vmem:[%s967] sm:$0xf]
      %v969 = vld [vmem:[%s967 + $0x4] sm:$0xf]
      %v970 = vld [vmem:[%s967 + $0x8] sm:$0xf]
      %v971 = vld [vmem:[%s967 + $0xc] sm:$0xf]
      %v973 = vshrl.u32 %v528, 16
      %v975 = vshll.u32 %v528, 16
      %v977 = vrot.slane %v975, 1
      %v978 = vor.u32 %v973, %v977
      %v983 = vunpack.c.l.b16 %v968
      %v984 = vunpack.c.l.b16 %v969
      %v985 = vunpack.c.l.b16 %v970
      %v986 = vunpack.c.l.b16 %v971
      %v987 = vpack.c.b16 %v984, %v983
      %v988 = vpack.c.b16 %v986, %v985
      %v992 = vsel %vm570, %v978, 0
      %994 = vmatpush.bf16.msra.mxu0 0
      %995 = vmatpush.bf16.msra.mxu0 0
      %996 = vmatpush.bf16.msra.mxu0 0
      %997 = vmatpush.bf16.msra.mxu0 0
      %998 = vmatpush.bf16.msra.mxu0 0
      %999 = vmatpush.bf16.msra.mxu0 0
      %1000 = vmatpush.bf16.msra.mxu0 %v988
      %1001 = vmatpush.bf16.msra.mxu0 %v987
      %1002 = vmatmul.bf16.gmra.mxu0 %v992
      %v1003 = vpop.f32.mrf.mxu0
      %v1004 = vadd.f32 0.0, %v1003
      %v1005 = vpop.f32.mrf.mxu0
      %1006 = vdwg.mxu0
      %v1007 = vadd.f32 %v966, %v1004
      %v1008 = vsel %vm690, %v1007, 0.0
      %v1009 = vrot.slane %v1008, 4
      %v1010 = vadd.f32 %v1008, %v1009
      %v1011 = vrot.slane %v1010, 2
      %v1012 = vadd.f32 %v1010, %v1011
      %v1013 = vrot.slane %v1012, 1
      %v1014 = vadd.f32 %v1012, %v1013
      %v1015 = vadd.f32 %v855, %v1014
      %v1016 = vmul.f32 %v1007, %v1007
      %v1017 = vsel %vm690, %v1016, 0.0
      %v1018 = vrot.slane %v1017, 4
      %v1019 = vadd.f32 %v1017, %v1018
      %v1020 = vrot.slane %v1019, 2
      %v1021 = vadd.f32 %v1019, %v1020
      %v1022 = vrot.slane %v1021, 1
      %v1023 = vadd.f32 %v1021, %v1022
      %v1024 = vadd.f32 %v864, %v1023
      %v1025 = vld [vmem:[%s477] sm:$0x1]
      %v1027 = vperm.slane %v1025, 0
      %v1029 = vadd.f32 %v1007, %v1027
      %v1030 = vpack.c.bf16 %v1029, %v1029
      %s1031 = scalar_lea.vmem %s489, 2
      %1032 = vst.msk [vmem:[%s1031] sm:$0x1] %vm714, %v1030
      %s1033 = scalar_lea.vmem %s474, 192
      %v1034 = vld [vmem:[%s1033] sm:$0xf]
      %v1035 = vld [vmem:[%s1033 + $0x4] sm:$0xf]
      %v1036 = vld [vmem:[%s1033 + $0x8] sm:$0xf]
      %v1037 = vld [vmem:[%s1033 + $0xc] sm:$0xf]
      %s1038 = scalar_lea.vmem %s474, 208
      %v1039 = vld [vmem:[%s1038] sm:$0xf]
      %v1040 = vld [vmem:[%s1038 + $0x4] sm:$0xf]
      %v1041 = vld [vmem:[%s1038 + $0x8] sm:$0xf]
      %v1042 = vld [vmem:[%s1038 + $0xc] sm:$0xf]
      %v1047 = vunpack.c.l.b16 %v1039
      %v1048 = vunpack.c.l.b16 %v1040
      %v1049 = vunpack.c.l.b16 %v1041
      %v1050 = vunpack.c.l.b16 %v1042
      %v1051 = vpack.c.b16 %v1048, %v1047
      %v1052 = vpack.c.b16 %v1050, %v1049
      %1055 = vmatpush.bf16.msra.mxu0 0
      %1056 = vmatpush.bf16.msra.mxu0 0
      %1057 = vmatpush.bf16.msra.mxu0 0
      %1058 = vmatpush.bf16.msra.mxu0 0
      %1059 = vmatpush.bf16.msra.mxu0 0
      %1060 = vmatpush.bf16.msra.mxu0 0
      %1061 = vmatpush.bf16.msra.mxu0 %v1052
      %1062 = vmatpush.bf16.msra.mxu0 %v1051
      %1063 = vmatmul.bf16.gmra.mxu0 %v832
      %v1064 = vpop.f32.mrf.mxu0
      %v1065 = vadd.f32 0.0, %v1064
      %v1066 = vpop.f32.mrf.mxu0
      %1067 = vdwg.mxu0
      %v1072 = vunpack.c.l.b16 %v1034
      %v1073 = vunpack.c.l.b16 %v1035
      %v1074 = vunpack.c.l.b16 %v1036
      %v1075 = vunpack.c.l.b16 %v1037
      %v1076 = vpack.c.b16 %v1073, %v1072
      %v1077 = vpack.c.b16 %v1075, %v1074
      %1080 = vmatpush.bf16.msra.mxu0 0
      %1081 = vmatpush.bf16.msra.mxu0 0
      %1082 = vmatpush.bf16.msra.mxu0 0
      %1083 = vmatpush.bf16.msra.mxu0 0
      %1084 = vmatpush.bf16.msra.mxu0 0
      %1085 = vmatpush.bf16.msra.mxu0 0
      %1086 = vmatpush.bf16.msra.mxu0 %v1077
      %1087 = vmatpush.bf16.msra.mxu0 %v1076
      %1088 = vmatmul.bf16.gmra.mxu0 %v674
      %v1089 = vpop.f32.mrf.mxu0
      %v1090 = vadd.f32 %v1065, %v1089
      %v1091 = vpop.f32.mrf.mxu0
      %1092 = vdwg.mxu0
      %s1093 = scalar_lea.vmem %s474, 224
      %v1094 = vld [vmem:[%s1093] sm:$0xf]
      %v1095 = vld [vmem:[%s1093 + $0x4] sm:$0xf]
      %v1096 = vld [vmem:[%s1093 + $0x8] sm:$0xf]
      %v1097 = vld [vmem:[%s1093 + $0xc] sm:$0xf]
      %v1102 = vunpack.c.l.b16 %v1094
      %v1103 = vunpack.c.l.b16 %v1095
      %v1104 = vunpack.c.l.b16 %v1096
      %v1105 = vunpack.c.l.b16 %v1097
      %v1106 = vpack.c.b16 %v1103, %v1102
      %v1107 = vpack.c.b16 %v1105, %v1104
      %1110 = vmatpush.bf16.msra.mxu0 0
      %1111 = vmatpush.bf16.msra.mxu0 0
      %1112 = vmatpush.bf16.msra.mxu0 0
      %1113 = vmatpush.bf16.msra.mxu0 0
      %1114 = vmatpush.bf16.msra.mxu0 0
      %1115 = vmatpush.bf16.msra.mxu0 0
      %1116 = vmatpush.bf16.msra.mxu0 %v1107
      %1117 = vmatpush.bf16.msra.mxu0 %v1106
      %1118 = vmatmul.bf16.gmra.mxu0 %v992
      %v1119 = vpop.f32.mrf.mxu0
      %v1120 = vadd.f32 0.0, %v1119
      %v1121 = vpop.f32.mrf.mxu0
      %1122 = vdwg.mxu0
      %v1123 = vadd.f32 %v1090, %v1120
      %s1124 = scalar_lea.vmem %s474, 240
      %v1125 = vld [vmem:[%s1124] sm:$0xf]
      %v1126 = vld [vmem:[%s1124 + $0x4] sm:$0xf]
      %v1127 = vld [vmem:[%s1124 + $0x8] sm:$0xf]
      %v1128 = vld [vmem:[%s1124 + $0xc] sm:$0xf]
      %v1130 = vrot.slane %v532, 1
      %v1135 = vunpack.c.l.b16 %v1125
      %v1136 = vunpack.c.l.b16 %v1126
      %v1137 = vunpack.c.l.b16 %v1127
      %v1138 = vunpack.c.l.b16 %v1128
      %v1139 = vpack.c.b16 %v1136, %v1135
      %v1140 = vpack.c.b16 %v1138, %v1137
      %v1144 = vsel %vm570, %v1130, 0
      %1146 = vmatpush.bf16.msra.mxu0 0
      %1147 = vmatpush.bf16.msra.mxu0 0
      %1148 = vmatpush.bf16.msra.mxu0 0
      %1149 = vmatpush.bf16.msra.mxu0 0
      %1150 = vmatpush.bf16.msra.mxu0 0
      %1151 = vmatpush.bf16.msra.mxu0 0
      %1152 = vmatpush.bf16.msra.mxu0 %v1140
      %1153 = vmatpush.bf16.msra.mxu0 %v1139
      %1154 = vmatmul.bf16.gmra.mxu0 %v1144
      %v1155 = vpop.f32.mrf.mxu0
      %v1156 = vadd.f32 0.0, %v1155
      %v1157 = vpop.f32.mrf.mxu0
      %1158 = vdwg.mxu0
      %v1159 = vadd.f32 %v1123, %v1156
      %v1160 = vsel %vm690, %v1159, 0.0
      %v1161 = vrot.slane %v1160, 4
      %v1162 = vadd.f32 %v1160, %v1161
      %v1163 = vrot.slane %v1162, 2
      %v1164 = vadd.f32 %v1162, %v1163
      %v1165 = vrot.slane %v1164, 1
      %v1166 = vadd.f32 %v1164, %v1165
      %v1167 = vadd.f32 %v1015, %v1166
      %v1168 = vmul.f32 %v1159, %v1159
      %v1169 = vsel %vm690, %v1168, 0.0
      %v1170 = vrot.slane %v1169, 4
      %v1171 = vadd.f32 %v1169, %v1170
      %v1172 = vrot.slane %v1171, 2
      %v1173 = vadd.f32 %v1171, %v1172
      %v1174 = vrot.slane %v1173, 1
      %v1175 = vadd.f32 %v1173, %v1174
      %v1176 = vadd.f32 %v1024, %v1175
      %v1177 = vld [vmem:[%s477] sm:$0x1]
      %v1179 = vperm.slane %v1177, 0
      %v1181 = vadd.f32 %v1159, %v1179
      %v1182 = vpack.c.bf16 %v1181, %v1181
      %s1183 = scalar_lea.vmem %s489, 3
      %1184 = vst.msk [vmem:[%s1183] sm:$0x1] %vm714, %v1182
      %v1185 = vld [vmem:[%s492] sm:$0x1]
      %v1186 = vadd.f32 %v1185, %v1167
      %1187 = vst.msk [vmem:[%s492] sm:$0x1] %vm714, %v1186
      %v1188 = vld [vmem:[%s495] sm:$0x1]
      %v1189 = vadd.f32 %v1188, %v1176
      %1190 = vst.msk [vmem:[%s495] sm:$0x1] %vm714, %v1189
      %p1191 = scmp.lt.s32.totalorder %s24, 0
      %s1192 = scalar_select %p1191, %s24, 0
      %p1193 = scmp.lt.s32.totalorder %s25, 1
      %s1194 = scalar_select %p1193, %s25, 1
      %p1195 = scmp.lt.s32.totalorder %s26, 1
      %s1196 = scalar_select %p1195, %s26, 1
      %s1197 = smul.addr %s1196, 4
      %s1198 = smul.addr %s1194, 8
      %s1199 = sadd.s32 %s1197, %s1198
      %s1200 = smul.addr %s1192, 16
      %s1201 = sadd.s32 %s1199, %s1200
      %s1202 = scalar_lea.vmem %s5, %s1201
      %p1203 = scmp.lt.s32.totalorder %s24, 0
      %s1204 = scalar_select %p1203, %s24, 0
      %s1205 = scalar_lea.vmem %s6, %s1204
      %p1206 = scmp.lt.s32.totalorder %s24, 0
      %s1207 = scalar_select %p1206, %s24, 0
      %s1208 = scalar_lea.vmem %s7, %s1207
      // Predicated region
      $region45: #{_lambda_.10} parent=39 // pred_check
        %p1209 = pneg %p206
      $region46: #{_lambda_.10} parent=39 // pred_check_branch
        %1211 = sbr.rel (%p1209) target = $region48
      $region47: #{_lambda_.10} parent=39 // pred_region
        _
      $region48: #{_lambda_.10} parent=39 // pred_fallthru
        _
      // Predicated region
      $region49: #{_lambda_.10} parent=39 // pred_check
        %p1212 = pneg %p232
      $region50: #{_lambda_.10} parent=39 // pred_check_branch
        %1214 = sbr.rel (%p1212) target = $region52
      $region51: #{_lambda_.10} parent=39 // pred_region
        _
      $region52: #{_lambda_.10} parent=39 // pred_fallthru
        _
      // Predicated region
      $region53: #{_lambda_.10} parent=39 // pred_check
        %p1215 = pneg %p258
      $region54: #{_lambda_.10} parent=39 // pred_check_branch
        %1217 = sbr.rel (%p1215) target = $region56
      $region55: #{_lambda_.10} parent=39 // pred_region
        _
      $region56: #{_lambda_.10} parent=39 // pred_fallthru
        _
      // Predicated region
      $region57: #{_lambda_.10} parent=39 // pred_check
        %p1218 = pneg %p232
      $region58: #{_lambda_.10} parent=39 // pred_check_branch
        %1220 = sbr.rel (%p1218) target = $region60
      $region59: #{_lambda_.10} parent=39 // pred_region
        %p1221 = scmp.lt.s32.totalorder %s24, 0
        %s1222 = scalar_select %p1221, %s24, 0
        %s1223 = scalar_lea.vmem %s6, %s1222
      $region60: #{_lambda_.10} parent=39 // pred_fallthru
        _
      // Predicated region
      $region61: #{_lambda_.10} parent=39 // pred_check
        %p1224 = pneg %p258
      $region62: #{_lambda_.10} parent=39 // pred_check_branch
        %1226 = sbr.rel (%p1224) target = $region64
      $region63: #{_lambda_.10} parent=39 // pred_region
        %p1227 = scmp.lt.s32.totalorder %s24, 0
        %s1228 = scalar_select %p1227, %s24, 0
        %s1229 = scalar_lea.vmem %s7, %s1228
      $region64: #{_lambda_.10} parent=39 // pred_fallthru
        _
    $region40: #{_lambda_.10} parent=5 // pred_fallthru
      _
    %p1230 = scmp.le.s32.totalorder 2, %s14
    // Predicated region
    $region65: #{_lambda_.10} parent=5 // pred_check
      %p1231 = pneg %p1230
    $region66: #{_lambda_.10} parent=5 // pred_check_branch
      %1233 = sbr.rel (%p1231) target = $region68
    $region67: #{_lambda_.10} parent=5 // pred_region
      %s1234 = ssub.s32 %s14, 2
      // Predicated region
      $region69: #{_lambda_.10} parent=67 // pred_check
        %p1235 = pneg %p212
      $region70: #{_lambda_.10} parent=67 // pred_check_branch
        %1237 = sbr.rel (%p1235) target = $region72
      $region71: #{_lambda_.10} parent=67 // pred_region
        %p1238 = scmp.lt.s32.totalorder %s27, 0
        %s1239 = scalar_select %p1238, %s27, 0
        %p1240 = scmp.lt.s32.totalorder %s28, 1
        %s1241 = scalar_select %p1240, %s28, 1
        %p1242 = scmp.lt.s32.totalorder %s29, 1
        %s1243 = scalar_select %p1242, %s29, 1
        %s1244 = smul.addr %s1243, 4
        %s1245 = smul.addr %s1241, 8
        %s1246 = sadd.s32 %s1244, %s1245
        %s1247 = smul.addr %s1239, 16
        %s1248 = sadd.s32 %s1246, %s1247
        %s1249 = scalar_lea.vmem %s5, %s1248
      $region72: #{_lambda_.10} parent=67 // pred_fallthru
        _
    $region68: #{_lambda_.10} parent=5 // pred_fallthru
      _
  $region6: #{_lambda_.10} parent=0 // loop_footer
    %s18 = sadd.s32 1, %s14
  $region7: #{_lambda_.10} parent=0 // loop_footer_branch
    %13 = sbr.rel target = $region3
  $region8: #{_lambda_.10} parent=0 // loop_exit
    _

// kernel: _lambda_.11
$region0: #{_lambda_.11}
  #allocation0 [shape = 'u32[]', space=smem, size = 0x4, offset = 0x4, fixed_abs, tag = 'smem constant byte address 0x4 - core index']
  #allocation1 [shape = 'u32[72,128]{1,0:T(1,128)}', space=vmem, size = 0x9000, scoped, tag = 'internal scratch']
  %s0 = inlined_call_operand.vmem [shape: bf16[2,2,6,6,32], index: 0, kind: input, shape index: {}, may-alias: {0,1,2}]
  %s1 = inlined_call_operand.vmem [shape: bf16[2,2,6,6,32], index: 1, kind: input, shape index: {}, may-alias: {0,1,2}]
  %s2 = inlined_call_operand.vmem [shape: bf16[2,2,6,6,32], index: 2, kind: input, shape index: {}, may-alias: {0,1,2}]
  %s3 = inlined_call_operand.vmem [shape: bf16[2,4,4,32,8], index: 3, kind: input, shape index: {}]
  %s4 = inlined_call_operand.vmem [shape: f32[2,1,8], index: 4, kind: input, shape index: {}]
  %s5 = inlined_call_operand.vmem [shape: bf16[2,2,4,4,4,8], index: 5, kind: output, shape index: {0}]
  %s6 = inlined_call_operand.vmem [shape: f32[2,1,8], index: 6, kind: output, shape index: {1}]
  %s7 = inlined_call_operand.vmem [shape: f32[2,1,8], index: 7, kind: output, shape index: {2}]
  %8 = xla_tuple %s5, %s6, %s7
  %s9 = sld [smem:[#allocation0]]
  $region73: #{_lambda_.11} parent=0
    _
  %s11 = ssub.s32 1, %s9
  %s12 = scalar_select 0, %s11, %s9
  loop: start=0, step=1, limit=18
  $region2: #{_lambda_.11} parent=0 // loop_pre_header
    _
  $region3: #{_lambda_.11} parent=0 // loop_header
    %s14 = sphi 0, %s18
    %p15 = scmp.ge.s32.totalorder %s14, 18
    %s21 = sphi 0, %s40
    %s22 = sphi 0, %s36
    %s23 = sphi 0, %s32
    %s24 = sphi 0, %s21
    %s25 = sphi 0, %s22
    %s26 = sphi 0, %s23
    %s27 = sphi 0, %s24
    %s28 = sphi 0, %s25
    %s29 = sphi 0, %s26
    %s47 = sphi 0, %s49
    %s50 = sphi 0, %s47
    %s51 = sphi 0, %s50
    %s67 = sphi 0, %s51
    %s79 = sphi 0, %s81
    %s82 = sphi 0, %s79
    %s83 = sphi 0, %s82
    %s99 = sphi 0, %s83
    %s111 = sphi 0, %s113
    %s114 = sphi 0, %s111
    %s115 = sphi 0, %s114
    %s131 = sphi 0, %s115
    %s137 = sphi 0, %s139
    %s140 = sphi 0, %s137
    %s141 = sphi 0, %s140
    %s157 = sphi 0, %s141
    %s163 = sphi 0, %s165
    %s166 = sphi 0, %s163
    %s167 = sphi 0, %s166
    %s183 = sphi 0, %s167
    %s193 = sphi 0, %s195
    %s196 = sphi 0, %s193
    %s197 = sphi 0, %s196
    %s213 = sphi 0, %s197
    %s219 = sphi 0, %s221
    %s222 = sphi 0, %s219
    %s223 = sphi 0, %s222
    %s239 = sphi 0, %s223
    %s245 = sphi 0, %s247
    %s248 = sphi 0, %s245
    %s249 = sphi 0, %s248
    %s265 = sphi 0, %s249
  $region4: #{_lambda_.11} parent=0 // loop_header_branch
    %17 = sbr.rel (%p15) target = $region8
  $region5: #{_lambda_.11} parent=0 // loop_body
    %s19 = ssub.s32 %s14, 1
    %s20 = ssub.s32 %s14, 2
    %s30 = sadd.s32 1, %s23
    %p31 = scmp.ge.s32.totalorder %s30, 4
    %s32 = scalar_select %p31, 0, %s30
    %s33 = sadd.s32 1, %s22
    %s34 = scalar_select %p31, %s33, %s22
    %p35 = scmp.ge.s32.totalorder %s34, 2
    %s36 = scalar_select %p35, 0, %s34
    %s37 = sadd.s32 1, %s21
    %s38 = scalar_select %p35, %s37, %s21
    %p39 = scmp.ge.s32.totalorder %s38, 2
    %s40 = scalar_select %p39, 0, %s38
    %s41 = ssub.s32 %s21, %s40
    %s42 = ssub.s32 %s22, %s36
    %s43 = sor.u32 %s41, %s42
    %s44 = ssub.s32 %s23, %s32
    %s45 = sor.u32 %s43, %s44
    %p46 = scmp.eq.s32.totalorder %s45, 0
    %s48 = sadd.s32 %s47, 1
    %s49 = scalar_select %p46, %s47, %s48
    %p52 = pneg %p46
    %p53 = scmp.eq.s32.totalorder %s14, 15
    %p54 = por %p52, %p53
    %p55 = scmp.ne.s32.totalorder %s47, %s50
    %p56 = scmp.eq.s32.totalorder %s14, 0
    %p57 = por %p55, %p56
    %p58 = scmp.ne.s32.totalorder %s47, %s50
    %p59 = scmp.eq.s32.totalorder %s19, 15
    %p60 = por %p58, %p59
    %p61 = scmp.ne.s32.totalorder %s50, %s51
    %p62 = scmp.eq.s32.totalorder %s19, 0
    %p63 = por %p61, %p62
    %p64 = scmp.ne.s32.totalorder %s50, %s51
    %p65 = scmp.eq.s32.totalorder %s20, 15
    %p66 = por %p64, %p65
    %p68 = scmp.ne.s32.totalorder %s51, %s67
    %p69 = scmp.eq.s32.totalorder %s20, 0
    %p70 = por %p68, %p69
    %s71 = sadd.s32 %s23, 1
    %s72 = sadd.s32 %s32, 1
    %s73 = ssub.s32 %s21, %s40
    %s74 = ssub.s32 %s22, %s36
    %s75 = sor.u32 %s73, %s74
    %s76 = ssub.s32 %s71, %s72
    %s77 = sor.u32 %s75, %s76
    %p78 = scmp.eq.s32.totalorder %s77, 0
    %s80 = sadd.s32 %s79, 1
    %s81 = scalar_select %p78, %s79, %s80
    %p84 = pneg %p78
    %p85 = scmp.eq.s32.totalorder %s14, 15
    %p86 = por %p84, %p85
    %p87 = scmp.ne.s32.totalorder %s79, %s82
    %p88 = scmp.eq.s32.totalorder %s14, 0
    %p89 = por %p87, %p88
    %p90 = scmp.ne.s32.totalorder %s79, %s82
    %p91 = scmp.eq.s32.totalorder %s19, 15
    %p92 = por %p90, %p91
    %p93 = scmp.ne.s32.totalorder %s82, %s83
    %p94 = scmp.eq.s32.totalorder %s19, 0
    %p95 = por %p93, %p94
    %p96 = scmp.ne.s32.totalorder %s82, %s83
    %p97 = scmp.eq.s32.totalorder %s20, 15
    %p98 = por %p96, %p97
    %p100 = scmp.ne.s32.totalorder %s83, %s99
    %p101 = scmp.eq.s32.totalorder %s20, 0
    %p102 = por %p100, %p101
    %s103 = sadd.s32 %s23, 2
    %s104 = sadd.s32 %s32, 2
    %s105 = ssub.s32 %s21, %s40
    %s106 = ssub.s32 %s22, %s36
    %s107 = sor.u32 %s105, %s106
    %s108 = ssub.s32 %s103, %s104
    %s109 = sor.u32 %s107, %s108
    %p110 = scmp.eq.s32.totalorder %s109, 0
    %s112 = sadd.s32 %s111, 1
    %s113 = scalar_select %p110, %s111, %s112
    %p116 = pneg %p110
    %p117 = scmp.eq.s32.totalorder %s14, 15
    %p118 = por %p116, %p117
    %p119 = scmp.ne.s32.totalorder %s111, %s114
    %p120 = scmp.eq.s32.totalorder %s14, 0
    %p121 = por %p119, %p120
    %p122 = scmp.ne.s32.totalorder %s111, %s114
    %p123 = scmp.eq.s32.totalorder %s19, 15
    %p124 = por %p122, %p123
    %p125 = scmp.ne.s32.totalorder %s114, %s115
    %p126 = scmp.eq.s32.totalorder %s19, 0
    %p127 = por %p125, %p126
    %p128 = scmp.ne.s32.totalorder %s114, %s115
    %p129 = scmp.eq.s32.totalorder %s20, 15
    %p130 = por %p128, %p129
    %p132 = scmp.ne.s32.totalorder %s115, %s131
    %p133 = scmp.eq.s32.totalorder %s20, 0
    %p134 = por %p132, %p133
    %s135 = ssub.s32 %s21, %s40
    %p136 = scmp.eq.s32.totalorder %s135, 0
    %s138 = sadd.s32 %s137, 1
    %s139 = scalar_select %p136, %s137, %s138
    %p142 = pneg %p136
    %p143 = scmp.eq.s32.totalorder %s14, 15
    %p144 = por %p142, %p143
    %p145 = scmp.ne.s32.totalorder %s137, %s140
    %p146 = scmp.eq.s32.totalorder %s14, 0
    %p147 = por %p145, %p146
    %p148 = scmp.ne.s32.totalorder %s137, %s140
    %p149 = scmp.eq.s32.totalorder %s19, 15
    %p150 = por %p148, %p149
    %p151 = scmp.ne.s32.totalorder %s140, %s141
    %p152 = scmp.eq.s32.totalorder %s19, 0
    %p153 = por %p151, %p152
    %p154 = scmp.ne.s32.totalorder %s140, %s141
    %p155 = scmp.eq.s32.totalorder %s20, 15
    %p156 = por %p154, %p155
    %p158 = scmp.ne.s32.totalorder %s141, %s157
    %p159 = scmp.eq.s32.totalorder %s20, 0
    %p160 = por %p158, %p159
    %s161 = ssub.s32 %s21, %s40
    %p162 = scmp.eq.s32.totalorder %s161, 0
    %s164 = sadd.s32 %s163, 1
    %s165 = scalar_select %p162, %s163, %s164
    %p168 = pneg %p162
    %p169 = scmp.eq.s32.totalorder %s14, 15
    %p170 = por %p168, %p169
    %p171 = scmp.ne.s32.totalorder %s163, %s166
    %p172 = scmp.eq.s32.totalorder %s14, 0
    %p173 = por %p171, %p172
    %p174 = scmp.ne.s32.totalorder %s163, %s166
    %p175 = scmp.eq.s32.totalorder %s19, 15
    %p176 = por %p174, %p175
    %p177 = scmp.ne.s32.totalorder %s166, %s167
    %p178 = scmp.eq.s32.totalorder %s19, 0
    %p179 = por %p177, %p178
    %p180 = scmp.ne.s32.totalorder %s166, %s167
    %p181 = scmp.eq.s32.totalorder %s20, 15
    %p182 = por %p180, %p181
    %p184 = scmp.ne.s32.totalorder %s167, %s183
    %p185 = scmp.eq.s32.totalorder %s20, 0
    %p186 = por %p184, %p185
    %s187 = ssub.s32 %s21, %s40
    %s188 = ssub.s32 %s22, %s36
    %s189 = sor.u32 %s187, %s188
    %s190 = ssub.s32 %s23, %s32
    %s191 = sor.u32 %s189, %s190
    %p192 = scmp.eq.s32.totalorder %s191, 0
    %s194 = sadd.s32 %s193, 1
    %s195 = scalar_select %p192, %s193, %s194
    %p198 = pneg %p192
    %p199 = scmp.eq.s32.totalorder %s14, 15
    %p200 = por %p198, %p199
    %p201 = scmp.ne.s32.totalorder %s193, %s196
    %p202 = scmp.eq.s32.totalorder %s14, 0
    %p203 = por %p201, %p202
    %p204 = scmp.ne.s32.totalorder %s193, %s196
    %p205 = scmp.eq.s32.totalorder %s19, 15
    %p206 = por %p204, %p205
    %p207 = scmp.ne.s32.totalorder %s196, %s197
    %p208 = scmp.eq.s32.totalorder %s19, 0
    %p209 = por %p207, %p208
    %p210 = scmp.ne.s32.totalorder %s196, %s197
    %p211 = scmp.eq.s32.totalorder %s20, 15
    %p212 = por %p210, %p211
    %p214 = scmp.ne.s32.totalorder %s197, %s213
    %p215 = scmp.eq.s32.totalorder %s20, 0
    %p216 = por %p214, %p215
    %s217 = ssub.s32 %s21, %s40
    %p218 = scmp.eq.s32.totalorder %s217, 0
    %s220 = sadd.s32 %s219, 1
    %s221 = scalar_select %p218, %s219, %s220
    %p224 = pneg %p218
    %p225 = scmp.eq.s32.totalorder %s14, 15
    %p226 = por %p224, %p225
    %p227 = scmp.ne.s32.totalorder %s219, %s222
    %p228 = scmp.eq.s32.totalorder %s14, 0
    %p229 = por %p227, %p228
    %p230 = scmp.ne.s32.totalorder %s219, %s222
    %p231 = scmp.eq.s32.totalorder %s19, 15
    %p232 = por %p230, %p231
    %p233 = scmp.ne.s32.totalorder %s222, %s223
    %p234 = scmp.eq.s32.totalorder %s19, 0
    %p235 = por %p233, %p234
    %p236 = scmp.ne.s32.totalorder %s222, %s223
    %p237 = scmp.eq.s32.totalorder %s20, 15
    %p238 = por %p236, %p237
    %p240 = scmp.ne.s32.totalorder %s223, %s239
    %p241 = scmp.eq.s32.totalorder %s20, 0
    %p242 = por %p240, %p241
    %s243 = ssub.s32 %s21, %s40
    %p244 = scmp.eq.s32.totalorder %s243, 0
    %s246 = sadd.s32 %s245, 1
    %s247 = scalar_select %p244, %s245, %s246
    %p250 = pneg %p244
    %p251 = scmp.eq.s32.totalorder %s14, 15
    %p252 = por %p250, %p251
    %p253 = scmp.ne.s32.totalorder %s245, %s248
    %p254 = scmp.eq.s32.totalorder %s14, 0
    %p255 = por %p253, %p254
    %p256 = scmp.ne.s32.totalorder %s245, %s248
    %p257 = scmp.eq.s32.totalorder %s19, 15
    %p258 = por %p256, %p257
    %p259 = scmp.ne.s32.totalorder %s248, %s249
    %p260 = scmp.eq.s32.totalorder %s19, 0
    %p261 = por %p259, %p260
    %p262 = scmp.ne.s32.totalorder %s248, %s249
    %p263 = scmp.eq.s32.totalorder %s20, 15
    %p264 = por %p262, %p263
    %p266 = scmp.ne.s32.totalorder %s249, %s265
    %p267 = scmp.eq.s32.totalorder %s20, 0
    %p268 = por %p266, %p267
    %p269 = scmp.le.s32.totalorder 1, %s14
    %p270 = scmp.lt.s32.totalorder %s14, 17
    %p271 = pnand %p269, %p270
    %p272 = pneg %p271
    // Predicated region
    $region9: #{_lambda_.11} parent=5 // pred_check
      _
    $region10: #{_lambda_.11} parent=5 // pred_check_branch
      %274 = sbr.rel (%p271) target = $region12
    $region11: #{_lambda_.11} parent=5 // pred_region
      %s275 = ssub.s32 %s14, 1
    $region12: #{_lambda_.11} parent=5 // pred_fallthru
      _
    %p276 = scmp.lt.s32.totalorder %s14, 16
    // Predicated region
    $region13: #{_lambda_.11} parent=5 // pred_check
      %p277 = pneg %p276
    $region14: #{_lambda_.11} parent=5 // pred_check_branch
      %279 = sbr.rel (%p277) target = $region16
    $region15: #{_lambda_.11} parent=5 // pred_region
      // Predicated region
      $region17: #{_lambda_.11} parent=15 // pred_check
        %p280 = pneg %p57
      $region18: #{_lambda_.11} parent=15 // pred_check_branch
        %282 = sbr.rel (%p280) target = $region20
      $region19: #{_lambda_.11} parent=15 // pred_region
        %p283 = scmp.lt.s32.totalorder %s21, 1
        %s284 = scalar_select %p283, %s21, 1
        %p285 = scmp.lt.s32.totalorder %s22, 1
        %s286 = scalar_select %p285, %s22, 1
        %p287 = scmp.lt.s32.totalorder %s23, 5
        %s288 = scalar_select %p287, %s23, 5
        %s289 = smul.addr %s286, 6
        %s290 = sadd.s32 %s288, %s289
        %s291 = smul.addr %s284, 12
        %s292 = sadd.s32 %s290, %s291
        %s293 = smul.addr %s292, 4
        %s294 = scalar_lea.vmem %s0, %s293
      $region20: #{_lambda_.11} parent=15 // pred_fallthru
        _
      // Predicated region
      $region21: #{_lambda_.11} parent=15 // pred_check
        %p295 = pneg %p89
      $region22: #{_lambda_.11} parent=15 // pred_check_branch
        %297 = sbr.rel (%p295) target = $region24
      $region23: #{_lambda_.11} parent=15 // pred_region
        %s298 = sadd.s32 %s23, 1
        %p299 = scmp.lt.s32.totalorder %s21, 1
        %s300 = scalar_select %p299, %s21, 1
        %p301 = scmp.lt.s32.totalorder %s22, 1
        %s302 = scalar_select %p301, %s22, 1
        %p303 = scmp.lt.s32.totalorder %s298, 5
        %s304 = scalar_select %p303, %s298, 5
        %s305 = smul.addr %s302, 6
        %s306 = sadd.s32 %s304, %s305
        %s307 = smul.addr %s300, 12
        %s308 = sadd.s32 %s306, %s307
        %s309 = smul.addr %s308, 4
        %s310 = scalar_lea.vmem %s1, %s309
        %s311 = sadd.s32 %s23, 1
      $region24: #{_lambda_.11} parent=15 // pred_fallthru
        _
      // Predicated region
      $region25: #{_lambda_.11} parent=15 // pred_check
        %p312 = pneg %p121
      $region26: #{_lambda_.11} parent=15 // pred_check_branch
        %314 = sbr.rel (%p312) target = $region28
      $region27: #{_lambda_.11} parent=15 // pred_region
        %s315 = sadd.s32 %s23, 2
        %p316 = scmp.lt.s32.totalorder %s21, 1
        %s317 = scalar_select %p316, %s21, 1
        %p318 = scmp.lt.s32.totalorder %s22, 1
        %s319 = scalar_select %p318, %s22, 1
        %p320 = scmp.lt.s32.totalorder %s315, 5
        %s321 = scalar_select %p320, %s315, 5
        %s322 = smul.addr %s319, 6
        %s323 = sadd.s32 %s321, %s322
        %s324 = smul.addr %s317, 12
        %s325 = sadd.s32 %s323, %s324
        %s326 = smul.addr %s325, 4
        %s327 = scalar_lea.vmem %s2, %s326
        %s328 = sadd.s32 %s23, 2
      $region28: #{_lambda_.11} parent=15 // pred_fallthru
        _
      // Predicated region
      $region29: #{_lambda_.11} parent=15 // pred_check
        %p329 = pneg %p147
      $region30: #{_lambda_.11} parent=15 // pred_check_branch
        %331 = sbr.rel (%p329) target = $region32
      $region31: #{_lambda_.11} parent=15 // pred_region
        %p332 = scmp.lt.s32.totalorder %s21, 1
        %s333 = scalar_select %p332, %s21, 1
        %s334 = smul.addr %s333, 64
        %s335 = smul.addr %s334, 4
        %s336 = scalar_lea.vmem %s3, %s335
      $region32: #{_lambda_.11} parent=15 // pred_fallthru
        _
      // Predicated region
      $region33: #{_lambda_.11} parent=15 // pred_check
        %p337 = pneg %p173
      $region34: #{_lambda_.11} parent=15 // pred_check_branch
        %339 = sbr.rel (%p337) target = $region36
      $region35: #{_lambda_.11} parent=15 // pred_region
        %p340 = scmp.lt.s32.totalorder %s21, 1
        %s341 = scalar_select %p340, %s21, 1
        %s342 = scalar_lea.vmem %s4, %s341
      $region36: #{_lambda_.11} parent=15 // pred_fallthru
        _
    $region16: #{_lambda_.11} parent=5 // pred_fallthru
      _
    %p343 = scmp.le.s32.totalorder 1, %s14
    %p344 = scmp.lt.s32.totalorder %s14, 17
    %p345 = pnand %p343, %p344
    %p346 = pneg %p345
    // Predicated region
    $region37: #{_lambda_.11} parent=5 // pred_check
      _
    $region38: #{_lambda_.11} parent=5 // pred_check_branch
      %348 = sbr.rel (%p345) target = $region40
    $region39: #{_lambda_.11} parent=5 // pred_region
      %s349 = ssub.s32 %s14, 1
      %p350 = scmp.lt.s32.totalorder %s24, 1
      %s351 = scalar_select %p350, %s24, 1
      %p352 = scmp.lt.s32.totalorder %s25, 1
      %s353 = scalar_select %p352, %s25, 1
      %p354 = scmp.lt.s32.totalorder %s26, 5
      %s355 = scalar_select %p354, %s26, 5
      %s356 = smul.addr %s353, 6
      %s357 = sadd.s32 %s355, %s356
      %s358 = smul.addr %s351, 12
      %s359 = sadd.s32 %s357, %s358
      %s360 = smul.addr %s359, 4
      %s361 = scalar_lea.vmem %s0, %s360
      %p362 = pneg %p63
      %p363 = pneg %p60
      %s364 = sadd.s32 %s26, 1
      %p365 = scmp.lt.s32.totalorder %s24, 1
      %s366 = scalar_select %p365, %s24, 1
      %p367 = scmp.lt.s32.totalorder %s25, 1
      %s368 = scalar_select %p367, %s25, 1
      %p369 = scmp.lt.s32.totalorder %s364, 5
      %s370 = scalar_select %p369, %s364, 5
      %s371 = smul.addr %s368, 6
      %s372 = sadd.s32 %s370, %s371
      %s373 = smul.addr %s366, 12
      %s374 = sadd.s32 %s372, %s373
      %s375 = smul.addr %s374, 4
      %s376 = scalar_lea.vmem %s1, %s375
      %p377 = pneg %p95
      %p378 = pneg %p92
      %s379 = sadd.s32 %s26, 2
      %p380 = scmp.lt.s32.totalorder %s24, 1
      %s381 = scalar_select %p380, %s24, 1
      %p382 = scmp.lt.s32.totalorder %s25, 1
      %s383 = scalar_select %p382, %s25, 1
      %p384 = scmp.lt.s32.totalorder %s379, 5
      %s385 = scalar_select %p384, %s379, 5
      %s386 = smul.addr %s383, 6
      %s387 = sadd.s32 %s385, %s386
      %s388 = smul.addr %s381, 12
      %s389 = sadd.s32 %s387, %s388
      %s390 = smul.addr %s389, 4
      %s391 = scalar_lea.vmem %s2, %s390
      %p392 = pneg %p127
      %p393 = pneg %p124
      %p394 = scmp.lt.s32.totalorder %s24, 1
      %s395 = scalar_select %p394, %s24, 1
      %s396 = smul.addr %s395, 64
      %s397 = smul.addr %s396, 4
      %s398 = scalar_lea.vmem %s3, %s397
      %p399 = pneg %p153
      %p400 = pneg %p150
      %p401 = scmp.lt.s32.totalorder %s24, 1
      %s402 = scalar_select %p401, %s24, 1
      %s403 = scalar_lea.vmem %s4, %s402
      %p404 = pneg %p179
      %p405 = pneg %p176
      %p406 = pneg %p209
      %p407 = pneg %p206
      %p408 = scmp.lt.s32.totalorder %s24, 1
      %s409 = scalar_select %p408, %s24, 1
      %p410 = scmp.lt.s32.totalorder %s25, 1
      %s411 = scalar_select %p410, %s25, 1
      %p412 = scmp.lt.s32.totalorder %s26, 3
      %s413 = scalar_select %p412, %s26, 3
      %s414 = smul.addr %s413, 4
      %s415 = smul.addr %s411, 16
      %s416 = sadd.s32 %s414, %s415
      %s417 = smul.addr %s409, 32
      %s418 = sadd.s32 %s416, %s417
      %s419 = smul.addr %s418, 2
      %s420 = scalar_lea.vmem %s5, %s419
      %p421 = pneg %p235
      %p422 = pneg %p232
      %p423 = scmp.lt.s32.totalorder %s24, 1
      %s424 = scalar_select %p423, %s24, 1
      %s425 = scalar_lea.vmem %s6, %s424
      %p426 = pneg %p261
      %p427 = pneg %p258
      %p428 = scmp.lt.s32.totalorder %s24, 1
      %s429 = scalar_select %p428, %s24, 1
      %s430 = scalar_lea.vmem %s7, %s429
      %p431 = scmp.lt.s32.totalorder %s24, 1
      %s432 = scalar_select %p431, %s24, 1
      %p433 = scmp.lt.s32.totalorder %s25, 1
      %s434 = scalar_select %p433, %s25, 1
      %p435 = scmp.lt.s32.totalorder %s26, 5
      %s436 = scalar_select %p435, %s26, 5
      %s437 = smul.addr %s434, 6
      %s438 = sadd.s32 %s436, %s437
      %s439 = smul.addr %s432, 12
      %s440 = sadd.s32 %s438, %s439
      %s441 = smul.addr %s440, 4
      %s442 = scalar_lea.vmem %s0, %s441
      %s443 = sadd.s32 %s26, 1
      %p444 = scmp.lt.s32.totalorder %s24, 1
      %s445 = scalar_select %p444, %s24, 1
      %p446 = scmp.lt.s32.totalorder %s25, 1
      %s447 = scalar_select %p446, %s25, 1
      %p448 = scmp.lt.s32.totalorder %s443, 5
      %s449 = scalar_select %p448, %s443, 5
      %s450 = smul.addr %s447, 6
      %s451 = sadd.s32 %s449, %s450
      %s452 = smul.addr %s445, 12
      %s453 = sadd.s32 %s451, %s452
      %s454 = smul.addr %s453, 4
      %s455 = scalar_lea.vmem %s1, %s454
      %s456 = sadd.s32 %s26, 1
      %s457 = sadd.s32 %s26, 2
      %p458 = scmp.lt.s32.totalorder %s24, 1
      %s459 = scalar_select %p458, %s24, 1
      %p460 = scmp.lt.s32.totalorder %s25, 1
      %s461 = scalar_select %p460, %s25, 1
      %p462 = scmp.lt.s32.totalorder %s457, 5
      %s463 = scalar_select %p462, %s457, 5
      %s464 = smul.addr %s461, 6
      %s465 = sadd.s32 %s463, %s464
      %s466 = smul.addr %s459, 12
      %s467 = sadd.s32 %s465, %s466
      %s468 = smul.addr %s467, 4
      %s469 = scalar_lea.vmem %s2, %s468
      %s470 = sadd.s32 %s26, 2
      %p471 = scmp.lt.s32.totalorder %s24, 1
      %s472 = scalar_select %p471, %s24, 1
      %s473 = smul.addr %s472, 64
      %s474 = smul.addr %s473, 4
      %s475 = scalar_lea.vmem %s3, %s474
      %p476 = scmp.lt.s32.totalorder %s24, 1
      %s477 = scalar_select %p476, %s24, 1
      %s478 = scalar_lea.vmem %s4, %s477
      %p479 = scmp.lt.s32.totalorder %s24, 1
      %s480 = scalar_select %p479, %s24, 1
      %p481 = scmp.lt.s32.totalorder %s25, 1
      %s482 = scalar_select %p481, %s25, 1
      %p483 = scmp.lt.s32.totalorder %s26, 3
      %s484 = scalar_select %p483, %s26, 3
      %s485 = smul.addr %s484, 4
      %s486 = smul.addr %s482, 16
      %s487 = sadd.s32 %s485, %s486
      %s488 = smul.addr %s480, 32
      %s489 = sadd.s32 %s487, %s488
      %s490 = smul.addr %s489, 2
      %s491 = scalar_lea.vmem %s5, %s490
      %p492 = scmp.lt.s32.totalorder %s24, 1
      %s493 = scalar_select %p492, %s24, 1
      %s494 = scalar_lea.vmem %s6, %s493
      %p495 = scmp.lt.s32.totalorder %s24, 1
      %s496 = scalar_select %p495, %s24, 1
      %s497 = scalar_lea.vmem %s7, %s496
      %v499 = vld [vmem:[%s442] sm:$0x3]
      %v500 = vunpack.c.l.bf16 %v499
      %v501 = vmax.f32 %v500, 0.0
      %v502 = vpack.c.bf16 %v501, %v501
      %v503 = vld [vmem:[%s442] sm:$0x7]
      %v504 = vunpack.c.l.bf16 %v503
      %v505 = vmax.f32 %v504, 0.0
      %v506 = vpack.c.bf16 %v505, %v505
      %v507 = vld [vmem:[%s442] sm:$0x6]
      %v508 = vunpack.c.l.bf16 %v507
      %v509 = vmax.f32 %v508, 0.0
      %v510 = vpack.c.bf16 %v509, %v509
      %v511 = vld [vmem:[%s455] sm:$0x3]
      %v512 = vunpack.c.l.bf16 %v511
      %v513 = vmax.f32 %v512, 0.0
      %v514 = vpack.c.bf16 %v513, %v513
      %v515 = vld [vmem:[%s455] sm:$0x7]
      %v516 = vunpack.c.l.bf16 %v515
      %v517 = vmax.f32 %v516, 0.0
      %v518 = vpack.c.bf16 %v517, %v517
      %v519 = vld [vmem:[%s455] sm:$0x6]
      %v520 = vunpack.c.l.bf16 %v519
      %v521 = vmax.f32 %v520, 0.0
      %v522 = vpack.c.bf16 %v521, %v521
      %v523 = vld [vmem:[%s469] sm:$0x3]
      %v524 = vunpack.c.l.bf16 %v523
      %v525 = vmax.f32 %v524, 0.0
      %v526 = vpack.c.bf16 %v525, %v525
      %v527 = vld [vmem:[%s469] sm:$0x7]
      %v528 = vunpack.c.l.bf16 %v527
      %v529 = vmax.f32 %v528, 0.0
      %v530 = vpack.c.bf16 %v529, %v529
      %v531 = vld [vmem:[%s469] sm:$0x6]
      %v532 = vunpack.c.l.bf16 %v531
      %v533 = vmax.f32 %v532, 0.0
      %v534 = vpack.c.bf16 %v533, %v533
      %p535 = scmp.eq.s32.totalorder %s25, 0
      %p536 = scmp.eq.s32.totalorder %s26, 0
      %p537 = pnand %p535, %p536
      %p538 = pneg %p537
      // Predicated region
      $region41: #{_lambda_.11} parent=39 // pred_check
        _
      $region42: #{_lambda_.11} parent=39 // pred_check_branch
        %540 = sbr.rel (%p537) target = $region44
      $region43: #{_lambda_.11} parent=39 // pred_region
        %vm541 = vcmask 57344
        %542 = vst.msk [vmem:[%s494] sm:$0x1] %vm541, 0.0
        %543 = vst.msk [vmem:[%s497] sm:$0x1] %vm541, 0.0
      $region44: #{_lambda_.11} parent=39 // pred_fallthru
        _
      %v544 = vld [vmem:[%s475] sm:$0xf]
      %v545 = vld [vmem:[%s475 + $0x4] sm:$0xf]
      %v546 = vld [vmem:[%s475 + $0x8] sm:$0xf]
      %v547 = vld [vmem:[%s475 + $0xc] sm:$0xf]
      %s548 = scalar_lea.vmem %s475, 16
      %v549 = vld [vmem:[%s548] sm:$0xf]
      %v550 = vld [vmem:[%s548 + $0x4] sm:$0xf]
      %v551 = vld [vmem:[%s548 + $0x8] sm:$0xf]
      %v552 = vld [vmem:[%s548 + $0xc] sm:$0xf]
      %v554 = vshrl.u32 %v506, 16
      %v556 = vshll.u32 %v506, 16
      %v558 = vrot.slane %v556, 1
      %v559 = vor.u32 %v554, %v558
      %v564 = vunpack.c.l.b16 %v549
      %v565 = vunpack.c.l.b16 %v550
      %v566 = vunpack.c.l.b16 %v551
      %v567 = vunpack.c.l.b16 %v552
      %v568 = vpack.c.b16 %v565, %v564
      %v569 = vpack.c.b16 %v567, %v566
      %vm572 = vcmask 261120
      %v574 = vsel %vm572, %v559, 0
      %576 = vmatpush.bf16.msra.mxu0 0
      %577 = vmatpush.bf16.msra.mxu0 0
      %578 = vmatpush.bf16.msra.mxu0 0
      %579 = vmatpush.bf16.msra.mxu0 0
      %580 = vmatpush.bf16.msra.mxu0 0
      %581 = vmatpush.bf16.msra.mxu0 0
      %582 = vmatpush.bf16.msra.mxu0 %v569
      %583 = vmatpush.bf16.msra.mxu0 %v568
      %584 = vmatmul.bf16.gmra.mxu0 %v574
      %v585 = vpop.f32.mrf.mxu0
      %v586 = vadd.f32 0.0, %v585
      %v587 = vpop.f32.mrf.mxu0
      %588 = vdwg.mxu0
      %v593 = vunpack.c.l.b16 %v544
      %v594 = vunpack.c.l.b16 %v545
      %v595 = vunpack.c.l.b16 %v546
      %v596 = vunpack.c.l.b16 %v547
      %v597 = vpack.c.b16 %v594, %v593
      %v598 = vpack.c.b16 %v596, %v595
      %v602 = vsel %vm572, %v502, 0
      %604 = vmatpush.bf16.msra.mxu0 0
      %605 = vmatpush.bf16.msra.mxu0 0
      %606 = vmatpush.bf16.msra.mxu0 0
      %607 = vmatpush.bf16.msra.mxu0 0
      %608 = vmatpush.bf16.msra.mxu0 0
      %609 = vmatpush.bf16.msra.mxu0 0
      %610 = vmatpush.bf16.msra.mxu0 %v598
      %611 = vmatpush.bf16.msra.mxu0 %v597
      %612 = vmatmul.bf16.gmra.mxu0 %v602
      %v613 = vpop.f32.mrf.mxu0
      %v614 = vadd.f32 %v586, %v613
      %v615 = vpop.f32.mrf.mxu0
      %616 = vdwg.mxu0
      %s617 = scalar_lea.vmem %s475, 32
      %v618 = vld [vmem:[%s617] sm:$0xf]
      %v619 = vld [vmem:[%s617 + $0x4] sm:$0xf]
      %v620 = vld [vmem:[%s617 + $0x8] sm:$0xf]
      %v621 = vld [vmem:[%s617 + $0xc] sm:$0xf]
      %v626 = vunpack.c.l.b16 %v618
      %v627 = vunpack.c.l.b16 %v619
      %v628 = vunpack.c.l.b16 %v620
      %v629 = vunpack.c.l.b16 %v621
      %v630 = vpack.c.b16 %v627, %v626
      %v631 = vpack.c.b16 %v629, %v628
      %v635 = vsel %vm572, %v514, 0
      %637 = vmatpush.bf16.msra.mxu0 0
      %638 = vmatpush.bf16.msra.mxu0 0
      %639 = vmatpush.bf16.msra.mxu0 0
      %640 = vmatpush.bf16.msra.mxu0 0
      %641 = vmatpush.bf16.msra.mxu0 0
      %642 = vmatpush.bf16.msra.mxu0 0
      %643 = vmatpush.bf16.msra.mxu0 %v631
      %644 = vmatpush.bf16.msra.mxu0 %v630
      %645 = vmatmul.bf16.gmra.mxu0 %v635
      %v646 = vpop.f32.mrf.mxu0
      %v647 = vadd.f32 0.0, %v646
      %v648 = vpop.f32.mrf.mxu0
      %649 = vdwg.mxu0
      %v650 = vadd.f32 %v614, %v647
      %s651 = scalar_lea.vmem %s475, 48
      %v652 = vld [vmem:[%s651] sm:$0xf]
      %v653 = vld [vmem:[%s651 + $0x4] sm:$0xf]
      %v654 = vld [vmem:[%s651 + $0x8] sm:$0xf]
      %v655 = vld [vmem:[%s651 + $0xc] sm:$0xf]
      %v657 = vshrl.u32 %v518, 16
      %v659 = vshll.u32 %v518, 16
      %v661 = vrot.slane %v659, 1
      %v662 = vor.u32 %v657, %v661
      %v667 = vunpack.c.l.b16 %v652
      %v668 = vunpack.c.l.b16 %v653
      %v669 = vunpack.c.l.b16 %v654
      %v670 = vunpack.c.l.b16 %v655
      %v671 = vpack.c.b16 %v668, %v667
      %v672 = vpack.c.b16 %v670, %v669
      %v676 = vsel %vm572, %v662, 0
      %678 = vmatpush.bf16.msra.mxu0 0
      %679 = vmatpush.bf16.msra.mxu0 0
      %680 = vmatpush.bf16.msra.mxu0 0
      %681 = vmatpush.bf16.msra.mxu0 0
      %682 = vmatpush.bf16.msra.mxu0 0
      %683 = vmatpush.bf16.msra.mxu0 0
      %684 = vmatpush.bf16.msra.mxu0 %v672
      %685 = vmatpush.bf16.msra.mxu0 %v671
      %686 = vmatmul.bf16.gmra.mxu0 %v676
      %v687 = vpop.f32.mrf.mxu0
      %v688 = vadd.f32 0.0, %v687
      %v689 = vpop.f32.mrf.mxu0
      %690 = vdwg.mxu0
      %v691 = vadd.f32 %v650, %v688
      %vm692 = vcmask 60416
      %v693 = vsel %vm692, %v691, 0.0
      %v694 = vrot.slane %v693, 4
      %v695 = vadd.f32 %v693, %v694
      %v696 = vrot.slane %v695, 2
      %v697 = vadd.f32 %v695, %v696
      %v698 = vrot.slane %v697, 1
      %v699 = vadd.f32 %v697, %v698
      %v700 = vadd.f32 %v699, 0.0
      %v701 = vmul.f32 %v691, %v691
      %v702 = vsel %vm692, %v701, 0.0
      %v703 = vrot.slane %v702, 4
      %v704 = vadd.f32 %v702, %v703
      %v705 = vrot.slane %v704, 2
      %v706 = vadd.f32 %v704, %v705
      %v707 = vrot.slane %v706, 1
      %v708 = vadd.f32 %v706, %v707
      %v709 = vadd.f32 %v708, 0.0
      %v710 = vld [vmem:[%s478] sm:$0x1]
      %v712 = vperm.slane %v710, 0
      %v714 = vadd.f32 %v691, %v712
      %v715 = vpack.c.bf16 %v714, %v714
      %vm716 = vcmask 58368
      %717 = vst.msk [vmem:[%s491] sm:$0x3] %vm716, %v715
      %s718 = scalar_lea.vmem %s475, 64
      %v719 = vld [vmem:[%s718] sm:$0xf]
      %v720 = vld [vmem:[%s718 + $0x4] sm:$0xf]
      %v721 = vld [vmem:[%s718 + $0x8] sm:$0xf]
      %v722 = vld [vmem:[%s718 + $0xc] sm:$0xf]
      %s723 = scalar_lea.vmem %s475, 80
      %v724 = vld [vmem:[%s723] sm:$0xf]
      %v725 = vld [vmem:[%s723 + $0x4] sm:$0xf]
      %v726 = vld [vmem:[%s723 + $0x8] sm:$0xf]
      %v727 = vld [vmem:[%s723 + $0xc] sm:$0xf]
      %v729 = vrot.slane %v510, 1
      %v734 = vunpack.c.l.b16 %v724
      %v735 = vunpack.c.l.b16 %v725
      %v736 = vunpack.c.l.b16 %v726
      %v737 = vunpack.c.l.b16 %v727
      %v738 = vpack.c.b16 %v735, %v734
      %v739 = vpack.c.b16 %v737, %v736
      %v743 = vsel %vm572, %v729, 0
      %745 = vmatpush.bf16.msra.mxu0 0
      %746 = vmatpush.bf16.msra.mxu0 0
      %747 = vmatpush.bf16.msra.mxu0 0
      %748 = vmatpush.bf16.msra.mxu0 0
      %749 = vmatpush.bf16.msra.mxu0 0
      %750 = vmatpush.bf16.msra.mxu0 0
      %751 = vmatpush.bf16.msra.mxu0 %v739
      %752 = vmatpush.bf16.msra.mxu0 %v738
      %753 = vmatmul.bf16.gmra.mxu0 %v743
      %v754 = vpop.f32.mrf.mxu0
      %v755 = vadd.f32 0.0, %v754
      %v756 = vpop.f32.mrf.mxu0
      %757 = vdwg.mxu0
      %v762 = vunpack.c.l.b16 %v719
      %v763 = vunpack.c.l.b16 %v720
      %v764 = vunpack.c.l.b16 %v721
      %v765 = vunpack.c.l.b16 %v722
      %v766 = vpack.c.b16 %v763, %v762
      %v767 = vpack.c.b16 %v765, %v764
      %770 = vmatpush.bf16.msra.mxu0 0
      %771 = vmatpush.bf16.msra.mxu0 0
      %772 = vmatpush.bf16.msra.mxu0 0
      %773 = vmatpush.bf16.msra.mxu0 0
      %774 = vmatpush.bf16.msra.mxu0 0
      %775 = vmatpush.bf16.msra.mxu0 0
      %776 = vmatpush.bf16.msra.mxu0 %v767
      %777 = vmatpush.bf16.msra.mxu0 %v766
      %778 = vmatmul.bf16.gmra.mxu0 %v574
      %v779 = vpop.f32.mrf.mxu0
      %v780 = vadd.f32 %v755, %v779
      %v781 = vpop.f32.mrf.mxu0
      %782 = vdwg.mxu0
      %s783 = scalar_lea.vmem %s475, 96
      %v784 = vld [vmem:[%s783] sm:$0xf]
      %v785 = vld [vmem:[%s783 + $0x4] sm:$0xf]
      %v786 = vld [vmem:[%s783 + $0x8] sm:$0xf]
      %v787 = vld [vmem:[%s783 + $0xc] sm:$0xf]
      %v792 = vunpack.c.l.b16 %v784
      %v793 = vunpack.c.l.b16 %v785
      %v794 = vunpack.c.l.b16 %v786
      %v795 = vunpack.c.l.b16 %v787
      %v796 = vpack.c.b16 %v793, %v792
      %v797 = vpack.c.b16 %v795, %v794
      %800 = vmatpush.bf16.msra.mxu0 0
      %801 = vmatpush.bf16.msra.mxu0 0
      %802 = vmatpush.bf16.msra.mxu0 0
      %803 = vmatpush.bf16.msra.mxu0 0
      %804 = vmatpush.bf16.msra.mxu0 0
      %805 = vmatpush.bf16.msra.mxu0 0
      %806 = vmatpush.bf16.msra.mxu0 %v797
      %807 = vmatpush.bf16.msra.mxu0 %v796
      %808 = vmatmul.bf16.gmra.mxu0 %v676
      %v809 = vpop.f32.mrf.mxu0
      %v810 = vadd.f32 0.0, %v809
      %v811 = vpop.f32.mrf.mxu0
      %812 = vdwg.mxu0
      %v813 = vadd.f32 %v780, %v810
      %s814 = scalar_lea.vmem %s475, 112
      %v815 = vld [vmem:[%s814] sm:$0xf]
      %v816 = vld [vmem:[%s814 + $0x4] sm:$0xf]
      %v817 = vld [vmem:[%s814 + $0x8] sm:$0xf]
      %v818 = vld [vmem:[%s814 + $0xc] sm:$0xf]
      %v820 = vrot.slane %v522, 1
      %v825 = vunpack.c.l.b16 %v815
      %v826 = vunpack.c.l.b16 %v816
      %v827 = vunpack.c.l.b16 %v817
      %v828 = vunpack.c.l.b16 %v818
      %v829 = vpack.c.b16 %v826, %v825
      %v830 = vpack.c.b16 %v828, %v827
      %v834 = vsel %vm572, %v820, 0
      %836 = vmatpush.bf16.msra.mxu0 0
      %837 = vmatpush.bf16.msra.mxu0 0
      %838 = vmatpush.bf16.msra.mxu0 0
      %839 = vmatpush.bf16.msra.mxu0 0
      %840 = vmatpush.bf16.msra.mxu0 0
      %841 = vmatpush.bf16.msra.mxu0 0
      %842 = vmatpush.bf16.msra.mxu0 %v830
      %843 = vmatpush.bf16.msra.mxu0 %v829
      %844 = vmatmul.bf16.gmra.mxu0 %v834
      %v845 = vpop.f32.mrf.mxu0
      %v846 = vadd.f32 0.0, %v845
      %v847 = vpop.f32.mrf.mxu0
      %848 = vdwg.mxu0
      %v849 = vadd.f32 %v813, %v846
      %v850 = vsel %vm692, %v849, 0.0
      %v851 = vrot.slane %v850, 4
      %v852 = vadd.f32 %v850, %v851
      %v853 = vrot.slane %v852, 2
      %v854 = vadd.f32 %v852, %v853
      %v855 = vrot.slane %v854, 1
      %v856 = vadd.f32 %v854, %v855
      %v857 = vadd.f32 %v700, %v856
      %v858 = vmul.f32 %v849, %v849
      %v859 = vsel %vm692, %v858, 0.0
      %v860 = vrot.slane %v859, 4
      %v861 = vadd.f32 %v859, %v860
      %v862 = vrot.slane %v861, 2
      %v863 = vadd.f32 %v861, %v862
      %v864 = vrot.slane %v863, 1
      %v865 = vadd.f32 %v863, %v864
      %v866 = vadd.f32 %v709, %v865
      %v867 = vld [vmem:[%s478] sm:$0x1]
      %v869 = vperm.slane %v867, 0
      %v871 = vadd.f32 %v849, %v869
      %v872 = vpack.c.bf16 %v871, %v871
      %s873 = scalar_lea.vmem %s491, 2
      %874 = vst.msk [vmem:[%s873] sm:$0x3] %vm716, %v872
      %s875 = scalar_lea.vmem %s475, 128
      %v876 = vld [vmem:[%s875] sm:$0xf]
      %v877 = vld [vmem:[%s875 + $0x4] sm:$0xf]
      %v878 = vld [vmem:[%s875 + $0x8] sm:$0xf]
      %v879 = vld [vmem:[%s875 + $0xc] sm:$0xf]
      %s880 = scalar_lea.vmem %s475, 144
      %v881 = vld [vmem:[%s880] sm:$0xf]
      %v882 = vld [vmem:[%s880 + $0x4] sm:$0xf]
      %v883 = vld [vmem:[%s880 + $0x8] sm:$0xf]
      %v884 = vld [vmem:[%s880 + $0xc] sm:$0xf]
      %v889 = vunpack.c.l.b16 %v881
      %v890 = vunpack.c.l.b16 %v882
      %v891 = vunpack.c.l.b16 %v883
      %v892 = vunpack.c.l.b16 %v884
      %v893 = vpack.c.b16 %v890, %v889
      %v894 = vpack.c.b16 %v892, %v891
      %897 = vmatpush.bf16.msra.mxu0 0
      %898 = vmatpush.bf16.msra.mxu0 0
      %899 = vmatpush.bf16.msra.mxu0 0
      %900 = vmatpush.bf16.msra.mxu0 0
      %901 = vmatpush.bf16.msra.mxu0 0
      %902 = vmatpush.bf16.msra.mxu0 0
      %903 = vmatpush.bf16.msra.mxu0 %v894
      %904 = vmatpush.bf16.msra.mxu0 %v893
      %905 = vmatmul.bf16.gmra.mxu0 %v676
      %v906 = vpop.f32.mrf.mxu0
      %v907 = vadd.f32 0.0, %v906
      %v908 = vpop.f32.mrf.mxu0
      %909 = vdwg.mxu0
      %v914 = vunpack.c.l.b16 %v876
      %v915 = vunpack.c.l.b16 %v877
      %v916 = vunpack.c.l.b16 %v878
      %v917 = vunpack.c.l.b16 %v879
      %v918 = vpack.c.b16 %v915, %v914
      %v919 = vpack.c.b16 %v917, %v916
      %922 = vmatpush.bf16.msra.mxu0 0
      %923 = vmatpush.bf16.msra.mxu0 0
      %924 = vmatpush.bf16.msra.mxu0 0
      %925 = vmatpush.bf16.msra.mxu0 0
      %926 = vmatpush.bf16.msra.mxu0 0
      %927 = vmatpush.bf16.msra.mxu0 0
      %928 = vmatpush.bf16.msra.mxu0 %v919
      %929 = vmatpush.bf16.msra.mxu0 %v918
      %930 = vmatmul.bf16.gmra.mxu0 %v635
      %v931 = vpop.f32.mrf.mxu0
      %v932 = vadd.f32 %v907, %v931
      %v933 = vpop.f32.mrf.mxu0
      %934 = vdwg.mxu0
      %s935 = scalar_lea.vmem %s475, 160
      %v936 = vld [vmem:[%s935] sm:$0xf]
      %v937 = vld [vmem:[%s935 + $0x4] sm:$0xf]
      %v938 = vld [vmem:[%s935 + $0x8] sm:$0xf]
      %v939 = vld [vmem:[%s935 + $0xc] sm:$0xf]
      %v944 = vunpack.c.l.b16 %v936
      %v945 = vunpack.c.l.b16 %v937
      %v946 = vunpack.c.l.b16 %v938
      %v947 = vunpack.c.l.b16 %v939
      %v948 = vpack.c.b16 %v945, %v944
      %v949 = vpack.c.b16 %v947, %v946
      %v953 = vsel %vm572, %v526, 0
      %955 = vmatpush.bf16.msra.mxu0 0
      %956 = vmatpush.bf16.msra.mxu0 0
      %957 = vmatpush.bf16.msra.mxu0 0
      %958 = vmatpush.bf16.msra.mxu0 0
      %959 = vmatpush.bf16.msra.mxu0 0
      %960 = vmatpush.bf16.msra.mxu0 0
      %961 = vmatpush.bf16.msra.mxu0 %v949
      %962 = vmatpush.bf16.msra.mxu0 %v948
      %963 = vmatmul.bf16.gmra.mxu0 %v953
      %v964 = vpop.f32.mrf.mxu0
      %v965 = vadd.f32 0.0, %v964
      %v966 = vpop.f32.mrf.mxu0
      %967 = vdwg.mxu0
      %v968 = vadd.f32 %v932, %v965
      %s969 = scalar_lea.vmem %s475, 176
      %v970 = vld [vmem:[%s969] sm:$0xf]
      %v971 = vld [vmem:[%s969 + $0x4] sm:$0xf]
      %v972 = vld [vmem:[%s969 + $0x8] sm:$0xf]
      %v973 = vld [vmem:[%s969 + $0xc] sm:$0xf]
      %v975 = vshrl.u32 %v530, 16
      %v977 = vshll.u32 %v530, 16
      %v979 = vrot.slane %v977, 1
      %v980 = vor.u32 %v975, %v979
      %v985 = vunpack.c.l.b16 %v970
      %v986 = vunpack.c.l.b16 %v971
      %v987 = vunpack.c.l.b16 %v972
      %v988 = vunpack.c.l.b16 %v973
      %v989 = vpack.c.b16 %v986, %v985
      %v990 = vpack.c.b16 %v988, %v987
      %v994 = vsel %vm572, %v980, 0
      %996 = vmatpush.bf16.msra.mxu0 0
      %997 = vmatpush.bf16.msra.mxu0 0
      %998 = vmatpush.bf16.msra.mxu0 0
      %999 = vmatpush.bf16.msra.mxu0 0
      %1000 = vmatpush.bf16.msra.mxu0 0
      %1001 = vmatpush.bf16.msra.mxu0 0
      %1002 = vmatpush.bf16.msra.mxu0 %v990
      %1003 = vmatpush.bf16.msra.mxu0 %v989
      %1004 = vmatmul.bf16.gmra.mxu0 %v994
      %v1005 = vpop.f32.mrf.mxu0
      %v1006 = vadd.f32 0.0, %v1005
      %v1007 = vpop.f32.mrf.mxu0
      %1008 = vdwg.mxu0
      %v1009 = vadd.f32 %v968, %v1006
      %v1010 = vsel %vm692, %v1009, 0.0
      %v1011 = vrot.slane %v1010, 4
      %v1012 = vadd.f32 %v1010, %v1011
      %v1013 = vrot.slane %v1012, 2
      %v1014 = vadd.f32 %v1012, %v1013
      %v1015 = vrot.slane %v1014, 1
      %v1016 = vadd.f32 %v1014, %v1015
      %v1017 = vadd.f32 %v857, %v1016
      %v1018 = vmul.f32 %v1009, %v1009
      %v1019 = vsel %vm692, %v1018, 0.0
      %v1020 = vrot.slane %v1019, 4
      %v1021 = vadd.f32 %v1019, %v1020
      %v1022 = vrot.slane %v1021, 2
      %v1023 = vadd.f32 %v1021, %v1022
      %v1024 = vrot.slane %v1023, 1
      %v1025 = vadd.f32 %v1023, %v1024
      %v1026 = vadd.f32 %v866, %v1025
      %v1027 = vld [vmem:[%s478] sm:$0x1]
      %v1029 = vperm.slane %v1027, 0
      %v1031 = vadd.f32 %v1009, %v1029
      %v1032 = vpack.c.bf16 %v1031, %v1031
      %s1033 = scalar_lea.vmem %s491, 4
      %1034 = vst.msk [vmem:[%s1033] sm:$0x3] %vm716, %v1032
      %s1035 = scalar_lea.vmem %s475, 192
      %v1036 = vld [vmem:[%s1035] sm:$0xf]
      %v1037 = vld [vmem:[%s1035 + $0x4] sm:$0xf]
      %v1038 = vld [vmem:[%s1035 + $0x8] sm:$0xf]
      %v1039 = vld [vmem:[%s1035 + $0xc] sm:$0xf]
      %s1040 = scalar_lea.vmem %s475, 208
      %v1041 = vld [vmem:[%s1040] sm:$0xf]
      %v1042 = vld [vmem:[%s1040 + $0x4] sm:$0xf]
      %v1043 = vld [vmem:[%s1040 + $0x8] sm:$0xf]
      %v1044 = vld [vmem:[%s1040 + $0xc] sm:$0xf]
      %v1049 = vunpack.c.l.b16 %v1041
      %v1050 = vunpack.c.l.b16 %v1042
      %v1051 = vunpack.c.l.b16 %v1043
      %v1052 = vunpack.c.l.b16 %v1044
      %v1053 = vpack.c.b16 %v1050, %v1049
      %v1054 = vpack.c.b16 %v1052, %v1051
      %1057 = vmatpush.bf16.msra.mxu0 0
      %1058 = vmatpush.bf16.msra.mxu0 0
      %1059 = vmatpush.bf16.msra.mxu0 0
      %1060 = vmatpush.bf16.msra.mxu0 0
      %1061 = vmatpush.bf16.msra.mxu0 0
      %1062 = vmatpush.bf16.msra.mxu0 0
      %1063 = vmatpush.bf16.msra.mxu0 %v1054
      %1064 = vmatpush.bf16.msra.mxu0 %v1053
      %1065 = vmatmul.bf16.gmra.mxu0 %v834
      %v1066 = vpop.f32.mrf.mxu0
      %v1067 = vadd.f32 0.0, %v1066
      %v1068 = vpop.f32.mrf.mxu0
      %1069 = vdwg.mxu0
      %v1074 = vunpack.c.l.b16 %v1036
      %v1075 = vunpack.c.l.b16 %v1037
      %v1076 = vunpack.c.l.b16 %v1038
      %v1077 = vunpack.c.l.b16 %v1039
      %v1078 = vpack.c.b16 %v1075, %v1074
      %v1079 = vpack.c.b16 %v1077, %v1076
      %1082 = vmatpush.bf16.msra.mxu0 0
      %1083 = vmatpush.bf16.msra.mxu0 0
      %1084 = vmatpush.bf16.msra.mxu0 0
      %1085 = vmatpush.bf16.msra.mxu0 0
      %1086 = vmatpush.bf16.msra.mxu0 0
      %1087 = vmatpush.bf16.msra.mxu0 0
      %1088 = vmatpush.bf16.msra.mxu0 %v1079
      %1089 = vmatpush.bf16.msra.mxu0 %v1078
      %1090 = vmatmul.bf16.gmra.mxu0 %v676
      %v1091 = vpop.f32.mrf.mxu0
      %v1092 = vadd.f32 %v1067, %v1091
      %v1093 = vpop.f32.mrf.mxu0
      %1094 = vdwg.mxu0
      %s1095 = scalar_lea.vmem %s475, 224
      %v1096 = vld [vmem:[%s1095] sm:$0xf]
      %v1097 = vld [vmem:[%s1095 + $0x4] sm:$0xf]
      %v1098 = vld [vmem:[%s1095 + $0x8] sm:$0xf]
      %v1099 = vld [vmem:[%s1095 + $0xc] sm:$0xf]
      %v1104 = vunpack.c.l.b16 %v1096
      %v1105 = vunpack.c.l.b16 %v1097
      %v1106 = vunpack.c.l.b16 %v1098
      %v1107 = vunpack.c.l.b16 %v1099
      %v1108 = vpack.c.b16 %v1105, %v1104
      %v1109 = vpack.c.b16 %v1107, %v1106
      %1112 = vmatpush.bf16.msra.mxu0 0
      %1113 = vmatpush.bf16.msra.mxu0 0
      %1114 = vmatpush.bf16.msra.mxu0 0
      %1115 = vmatpush.bf16.msra.mxu0 0
      %1116 = vmatpush.bf16.msra.mxu0 0
      %1117 = vmatpush.bf16.msra.mxu0 0
      %1118 = vmatpush.bf16.msra.mxu0 %v1109
      %1119 = vmatpush.bf16.msra.mxu0 %v1108
      %1120 = vmatmul.bf16.gmra.mxu0 %v994
      %v1121 = vpop.f32.mrf.mxu0
      %v1122 = vadd.f32 0.0, %v1121
      %v1123 = vpop.f32.mrf.mxu0
      %1124 = vdwg.mxu0
      %v1125 = vadd.f32 %v1092, %v1122
      %s1126 = scalar_lea.vmem %s475, 240
      %v1127 = vld [vmem:[%s1126] sm:$0xf]
      %v1128 = vld [vmem:[%s1126 + $0x4] sm:$0xf]
      %v1129 = vld [vmem:[%s1126 + $0x8] sm:$0xf]
      %v1130 = vld [vmem:[%s1126 + $0xc] sm:$0xf]
      %v1132 = vrot.slane %v534, 1
      %v1137 = vunpack.c.l.b16 %v1127
      %v1138 = vunpack.c.l.b16 %v1128
      %v1139 = vunpack.c.l.b16 %v1129
      %v1140 = vunpack.c.l.b16 %v1130
      %v1141 = vpack.c.b16 %v1138, %v1137
      %v1142 = vpack.c.b16 %v1140, %v1139
      %v1146 = vsel %vm572, %v1132, 0
      %1148 = vmatpush.bf16.msra.mxu0 0
      %1149 = vmatpush.bf16.msra.mxu0 0
      %1150 = vmatpush.bf16.msra.mxu0 0
      %1151 = vmatpush.bf16.msra.mxu0 0
      %1152 = vmatpush.bf16.msra.mxu0 0
      %1153 = vmatpush.bf16.msra.mxu0 0
      %1154 = vmatpush.bf16.msra.mxu0 %v1142
      %1155 = vmatpush.bf16.msra.mxu0 %v1141
      %1156 = vmatmul.bf16.gmra.mxu0 %v1146
      %v1157 = vpop.f32.mrf.mxu0
      %v1158 = vadd.f32 0.0, %v1157
      %v1159 = vpop.f32.mrf.mxu0
      %1160 = vdwg.mxu0
      %v1161 = vadd.f32 %v1125, %v1158
      %v1162 = vsel %vm692, %v1161, 0.0
      %v1163 = vrot.slane %v1162, 4
      %v1164 = vadd.f32 %v1162, %v1163
      %v1165 = vrot.slane %v1164, 2
      %v1166 = vadd.f32 %v1164, %v1165
      %v1167 = vrot.slane %v1166, 1
      %v1168 = vadd.f32 %v1166, %v1167
      %v1169 = vadd.f32 %v1017, %v1168
      %v1170 = vmul.f32 %v1161, %v1161
      %v1171 = vsel %vm692, %v1170, 0.0
      %v1172 = vrot.slane %v1171, 4
      %v1173 = vadd.f32 %v1171, %v1172
      %v1174 = vrot.slane %v1173, 2
      %v1175 = vadd.f32 %v1173, %v1174
      %v1176 = vrot.slane %v1175, 1
      %v1177 = vadd.f32 %v1175, %v1176
      %v1178 = vadd.f32 %v1026, %v1177
      %v1179 = vld [vmem:[%s478] sm:$0x1]
      %v1181 = vperm.slane %v1179, 0
      %v1183 = vadd.f32 %v1161, %v1181
      %v1184 = vpack.c.bf16 %v1183, %v1183
      %s1185 = scalar_lea.vmem %s491, 6
      %1186 = vst.msk [vmem:[%s1185] sm:$0x3] %vm716, %v1184
      %v1187 = vld [vmem:[%s494] sm:$0x1]
      %v1188 = vadd.f32 %v1187, %v1169
      %vm1189 = vcmask 57344
      %1190 = vst.msk [vmem:[%s494] sm:$0x1] %vm1189, %v1188
      %v1191 = vld [vmem:[%s497] sm:$0x1]
      %v1192 = vadd.f32 %v1191, %v1178
      %1193 = vst.msk [vmem:[%s497] sm:$0x1] %vm1189, %v1192
      %p1194 = scmp.lt.s32.totalorder %s24, 1
      %s1195 = scalar_select %p1194, %s24, 1
      %p1196 = scmp.lt.s32.totalorder %s25, 1
      %s1197 = scalar_select %p1196, %s25, 1
      %p1198 = scmp.lt.s32.totalorder %s26, 3
      %s1199 = scalar_select %p1198, %s26, 3
      %s1200 = smul.addr %s1199, 4
      %s1201 = smul.addr %s1197, 16
      %s1202 = sadd.s32 %s1200, %s1201
      %s1203 = smul.addr %s1195, 32
      %s1204 = sadd.s32 %s1202, %s1203
      %s1205 = smul.addr %s1204, 2
      %s1206 = scalar_lea.vmem %s5, %s1205
      %p1207 = scmp.lt.s32.totalorder %s24, 1
      %s1208 = scalar_select %p1207, %s24, 1
      %s1209 = scalar_lea.vmem %s6, %s1208
      %p1210 = scmp.lt.s32.totalorder %s24, 1
      %s1211 = scalar_select %p1210, %s24, 1
      %s1212 = scalar_lea.vmem %s7, %s1211
      // Predicated region
      $region45: #{_lambda_.11} parent=39 // pred_check
        %p1213 = pneg %p206
      $region46: #{_lambda_.11} parent=39 // pred_check_branch
        %1215 = sbr.rel (%p1213) target = $region48
      $region47: #{_lambda_.11} parent=39 // pred_region
        _
      $region48: #{_lambda_.11} parent=39 // pred_fallthru
        _
      // Predicated region
      $region49: #{_lambda_.11} parent=39 // pred_check
        %p1216 = pneg %p232
      $region50: #{_lambda_.11} parent=39 // pred_check_branch
        %1218 = sbr.rel (%p1216) target = $region52
      $region51: #{_lambda_.11} parent=39 // pred_region
        _
      $region52: #{_lambda_.11} parent=39 // pred_fallthru
        _
      // Predicated region
      $region53: #{_lambda_.11} parent=39 // pred_check
        %p1219 = pneg %p258
      $region54: #{_lambda_.11} parent=39 // pred_check_branch
        %1221 = sbr.rel (%p1219) target = $region56
      $region55: #{_lambda_.11} parent=39 // pred_region
        _
      $region56: #{_lambda_.11} parent=39 // pred_fallthru
        _
    $region40: #{_lambda_.11} parent=5 // pred_fallthru
      _
    %p1222 = scmp.le.s32.totalorder 2, %s14
    // Predicated region
    $region57: #{_lambda_.11} parent=5 // pred_check
      %p1223 = pneg %p1222
    $region58: #{_lambda_.11} parent=5 // pred_check_branch
      %1225 = sbr.rel (%p1223) target = $region60
    $region59: #{_lambda_.11} parent=5 // pred_region
      %s1226 = ssub.s32 %s14, 2
      // Predicated region
      $region61: #{_lambda_.11} parent=59 // pred_check
        %p1227 = pneg %p212
      $region62: #{_lambda_.11} parent=59 // pred_check_branch
        %1229 = sbr.rel (%p1227) target = $region64
      $region63: #{_lambda_.11} parent=59 // pred_region
        %p1230 = scmp.lt.s32.totalorder %s27, 1
        %s1231 = scalar_select %p1230, %s27, 1
        %p1232 = scmp.lt.s32.totalorder %s28, 1
        %s1233 = scalar_select %p1232, %s28, 1
        %p1234 = scmp.lt.s32.totalorder %s29, 3
        %s1235 = scalar_select %p1234, %s29, 3
        %s1236 = smul.addr %s1235, 4
        %s1237 = smul.addr %s1233, 16
        %s1238 = sadd.s32 %s1236, %s1237
        %s1239 = smul.addr %s1231, 32
        %s1240 = sadd.s32 %s1238, %s1239
        %s1241 = smul.addr %s1240, 2
        %s1242 = scalar_lea.vmem %s5, %s1241
      $region64: #{_lambda_.11} parent=59 // pred_fallthru
        _
      // Predicated region
      $region65: #{_lambda_.11} parent=59 // pred_check
        %p1243 = pneg %p238
      $region66: #{_lambda_.11} parent=59 // pred_check_branch
        %1245 = sbr.rel (%p1243) target = $region68
      $region67: #{_lambda_.11} parent=59 // pred_region
        %p1246 = scmp.lt.s32.totalorder %s27, 1
        %s1247 = scalar_select %p1246, %s27, 1
        %s1248 = scalar_lea.vmem %s6, %s1247
      $region68: #{_lambda_.11} parent=59 // pred_fallthru
        _
      // Predicated region
      $region69: #{_lambda_.11} parent=59 // pred_check
        %p1249 = pneg %p264
      $region70: #{_lambda_.11} parent=59 // pred_check_branch
        %1251 = sbr.rel (%p1249) target = $region72
      $region71: #{_lambda_.11} parent=59 // pred_region
        %p1252 = scmp.lt.s32.totalorder %s27, 1
        %s1253 = scalar_select %p1252, %s27, 1
        %s1254 = scalar_lea.vmem %s7, %s1253
      $region72: #{_lambda_.11} parent=59 // pred_fallthru
        _
    $region60: #{_lambda_.11} parent=5 // pred_fallthru
      _
  $region6: #{_lambda_.11} parent=0 // loop_footer
    %s18 = sadd.s32 1, %s14
  $region7: #{_lambda_.11} parent=0 // loop_footer_branch
    %13 = sbr.rel target = $region3
  $region8: #{_lambda_.11} parent=0 // loop_exit
    _

// kernel: _lambda_.13
$region0: #{_lambda_.13}
  #allocation0 [shape = 'u32[]', space=smem, size = 0x4, offset = 0x4, fixed_abs, tag = 'smem constant byte address 0x4 - core index']
  #allocation1 [shape = 'u32[72,128]{1,0:T(1,128)}', space=vmem, size = 0x9000, scoped, tag = 'internal scratch']
  %s0 = inlined_call_operand.vmem [shape: bf16[2,2,8,4,8,8], index: 0, kind: input, shape index: {}]
  %s1 = inlined_call_operand.vmem [shape: f32[2,1,1,8], index: 1, kind: input, shape index: {}]
  %s2 = inlined_call_operand.vmem [shape: f32[2,1,1,8], index: 2, kind: input, shape index: {}]
  %s3 = inlined_call_operand.vmem [shape: f32[2,1,1,8], index: 3, kind: input, shape index: {}]
  %s4 = inlined_call_operand.vmem [shape: f32[2,1,1], index: 4, kind: input, shape index: {}]
  %s5 = inlined_call_operand.vmem [shape: f32[2,2,8,4,8], index: 5, kind: output, shape index: {}]
  %s6 = sld [smem:[#allocation0]]
  $region53: #{_lambda_.13} parent=0
    _
  %s8 = ssub.s32 1, %s6
  %s9 = scalar_select 0, %s8, %s6
  loop: start=0, step=1, limit=34
  $region2: #{_lambda_.13} parent=0 // loop_pre_header
    _
  $region3: #{_lambda_.13} parent=0 // loop_header
    %s11 = sphi 0, %s15
    %p12 = scmp.ge.s32.totalorder %s11, 34
    %s18 = sphi 0, %s37
    %s19 = sphi 0, %s33
    %s20 = sphi 0, %s29
    %s21 = sphi 0, %s18
    %s22 = sphi 0, %s19
    %s23 = sphi 0, %s20
    %s24 = sphi 0, %s21
    %s25 = sphi 0, %s22
    %s26 = sphi 0, %s23
    %s44 = sphi 0, %s46
    %s47 = sphi 0, %s44
    %s48 = sphi 0, %s47
    %s64 = sphi 0, %s48
    %s70 = sphi 0, %s72
    %s73 = sphi 0, %s70
    %s74 = sphi 0, %s73
    %s90 = sphi 0, %s74
    %s96 = sphi 0, %s98
    %s99 = sphi 0, %s96
    %s100 = sphi 0, %s99
    %s116 = sphi 0, %s100
    %s122 = sphi 0, %s124
    %s125 = sphi 0, %s122
    %s126 = sphi 0, %s125
    %s142 = sphi 0, %s126
    %s148 = sphi 0, %s150
    %s151 = sphi 0, %s148
    %s152 = sphi 0, %s151
    %s168 = sphi 0, %s152
    %s178 = sphi 0, %s180
    %s181 = sphi 0, %s178
    %s182 = sphi 0, %s181
    %s198 = sphi 0, %s182
  $region4: #{_lambda_.13} parent=0 // loop_header_branch
    %14 = sbr.rel (%p12) target = $region8
  $region5: #{_lambda_.13} parent=0 // loop_body
    %s16 = ssub.s32 %s11, 1
    %s17 = ssub.s32 %s11, 2
    %s27 = sadd.s32 1, %s20
    %p28 = scmp.ge.s32.totalorder %s27, 8
    %s29 = scalar_select %p28, 0, %s27
    %s30 = sadd.s32 1, %s19
    %s31 = scalar_select %p28, %s30, %s19
    %p32 = scmp.ge.s32.totalorder %s31, 2
    %s33 = scalar_select %p32, 0, %s31
    %s34 = sadd.s32 1, %s18
    %s35 = scalar_select %p32, %s34, %s18
    %p36 = scmp.ge.s32.totalorder %s35, 2
    %s37 = scalar_select %p36, 0, %s35
    %s38 = ssub.s32 %s18, %s37
    %s39 = ssub.s32 %s19, %s33
    %s40 = sor.u32 %s38, %s39
    %s41 = ssub.s32 %s20, %s29
    %s42 = sor.u32 %s40, %s41
    %p43 = scmp.eq.s32.totalorder %s42, 0
    %s45 = sadd.s32 %s44, 1
    %s46 = scalar_select %p43, %s44, %s45
    %p49 = pneg %p43
    %p50 = scmp.eq.s32.totalorder %s11, 31
    %p51 = por %p49, %p50
    %p52 = scmp.ne.s32.totalorder %s44, %s47
    %p53 = scmp.eq.s32.totalorder %s11, 0
    %p54 = por %p52, %p53
    %p55 = scmp.ne.s32.totalorder %s44, %s47
    %p56 = scmp.eq.s32.totalorder %s16, 31
    %p57 = por %p55, %p56
    %p58 = scmp.ne.s32.totalorder %s47, %s48
    %p59 = scmp.eq.s32.totalorder %s16, 0
    %p60 = por %p58, %p59
    %p61 = scmp.ne.s32.totalorder %s47, %s48
    %p62 = scmp.eq.s32.totalorder %s17, 31
    %p63 = por %p61, %p62
    %p65 = scmp.ne.s32.totalorder %s48, %s64
    %p66 = scmp.eq.s32.totalorder %s17, 0
    %p67 = por %p65, %p66
    %s68 = ssub.s32 %s18, %s37
    %p69 = scmp.eq.s32.totalorder %s68, 0
    %s71 = sadd.s32 %s70, 1
    %s72 = scalar_select %p69, %s70, %s71
    %p75 = pneg %p69
    %p76 = scmp.eq.s32.totalorder %s11, 31
    %p77 = por %p75, %p76
    %p78 = scmp.ne.s32.totalorder %s70, %s73
    %p79 = scmp.eq.s32.totalorder %s11, 0
    %p80 = por %p78, %p79
    %p81 = scmp.ne.s32.totalorder %s70, %s73
    %p82 = scmp.eq.s32.totalorder %s16, 31
    %p83 = por %p81, %p82
    %p84 = scmp.ne.s32.totalorder %s73, %s74
    %p85 = scmp.eq.s32.totalorder %s16, 0
    %p86 = por %p84, %p85
    %p87 = scmp.ne.s32.totalorder %s73, %s74
    %p88 = scmp.eq.s32.totalorder %s17, 31
    %p89 = por %p87, %p88
    %p91 = scmp.ne.s32.totalorder %s74, %s90
    %p92 = scmp.eq.s32.totalorder %s17, 0
    %p93 = por %p91, %p92
    %s94 = ssub.s32 %s18, %s37
    %p95 = scmp.eq.s32.totalorder %s94, 0
    %s97 = sadd.s32 %s96, 1
    %s98 = scalar_select %p95, %s96, %s97
    %p101 = pneg %p95
    %p102 = scmp.eq.s32.totalorder %s11, 31
    %p103 = por %p101, %p102
    %p104 = scmp.ne.s32.totalorder %s96, %s99
    %p105 = scmp.eq.s32.totalorder %s11, 0
    %p106 = por %p104, %p105
    %p107 = scmp.ne.s32.totalorder %s96, %s99
    %p108 = scmp.eq.s32.totalorder %s16, 31
    %p109 = por %p107, %p108
    %p110 = scmp.ne.s32.totalorder %s99, %s100
    %p111 = scmp.eq.s32.totalorder %s16, 0
    %p112 = por %p110, %p111
    %p113 = scmp.ne.s32.totalorder %s99, %s100
    %p114 = scmp.eq.s32.totalorder %s17, 31
    %p115 = por %p113, %p114
    %p117 = scmp.ne.s32.totalorder %s100, %s116
    %p118 = scmp.eq.s32.totalorder %s17, 0
    %p119 = por %p117, %p118
    %s120 = ssub.s32 %s18, %s37
    %p121 = scmp.eq.s32.totalorder %s120, 0
    %s123 = sadd.s32 %s122, 1
    %s124 = scalar_select %p121, %s122, %s123
    %p127 = pneg %p121
    %p128 = scmp.eq.s32.totalorder %s11, 31
    %p129 = por %p127, %p128
    %p130 = scmp.ne.s32.totalorder %s122, %s125
    %p131 = scmp.eq.s32.totalorder %s11, 0
    %p132 = por %p130, %p131
    %p133 = scmp.ne.s32.totalorder %s122, %s125
    %p134 = scmp.eq.s32.totalorder %s16, 31
    %p135 = por %p133, %p134
    %p136 = scmp.ne.s32.totalorder %s125, %s126
    %p137 = scmp.eq.s32.totalorder %s16, 0
    %p138 = por %p136, %p137
    %p139 = scmp.ne.s32.totalorder %s125, %s126
    %p140 = scmp.eq.s32.totalorder %s17, 31
    %p141 = por %p139, %p140
    %p143 = scmp.ne.s32.totalorder %s126, %s142
    %p144 = scmp.eq.s32.totalorder %s17, 0
    %p145 = por %p143, %p144
    %s146 = ssub.s32 %s18, %s37
    %p147 = scmp.eq.s32.totalorder %s146, 0
    %s149 = sadd.s32 %s148, 1
    %s150 = scalar_select %p147, %s148, %s149
    %p153 = pneg %p147
    %p154 = scmp.eq.s32.totalorder %s11, 31
    %p155 = por %p153, %p154
    %p156 = scmp.ne.s32.totalorder %s148, %s151
    %p157 = scmp.eq.s32.totalorder %s11, 0
    %p158 = por %p156, %p157
    %p159 = scmp.ne.s32.totalorder %s148, %s151
    %p160 = scmp.eq.s32.totalorder %s16, 31
    %p161 = por %p159, %p160
    %p162 = scmp.ne.s32.totalorder %s151, %s152
    %p163 = scmp.eq.s32.totalorder %s16, 0
    %p164 = por %p162, %p163
    %p165 = scmp.ne.s32.totalorder %s151, %s152
    %p166 = scmp.eq.s32.totalorder %s17, 31
    %p167 = por %p165, %p166
    %p169 = scmp.ne.s32.totalorder %s152, %s168
    %p170 = scmp.eq.s32.totalorder %s17, 0
    %p171 = por %p169, %p170
    %s172 = ssub.s32 %s18, %s37
    %s173 = ssub.s32 %s19, %s33
    %s174 = sor.u32 %s172, %s173
    %s175 = ssub.s32 %s20, %s29
    %s176 = sor.u32 %s174, %s175
    %p177 = scmp.eq.s32.totalorder %s176, 0
    %s179 = sadd.s32 %s178, 1
    %s180 = scalar_select %p177, %s178, %s179
    %p183 = pneg %p177
    %p184 = scmp.eq.s32.totalorder %s11, 31
    %p185 = por %p183, %p184
    %p186 = scmp.ne.s32.totalorder %s178, %s181
    %p187 = scmp.eq.s32.totalorder %s11, 0
    %p188 = por %p186, %p187
    %p189 = scmp.ne.s32.totalorder %s178, %s181
    %p190 = scmp.eq.s32.totalorder %s16, 31
    %p191 = por %p189, %p190
    %p192 = scmp.ne.s32.totalorder %s181, %s182
    %p193 = scmp.eq.s32.totalorder %s16, 0
    %p194 = por %p192, %p193
    %p195 = scmp.ne.s32.totalorder %s181, %s182
    %p196 = scmp.eq.s32.totalorder %s17, 31
    %p197 = por %p195, %p196
    %p199 = scmp.ne.s32.totalorder %s182, %s198
    %p200 = scmp.eq.s32.totalorder %s17, 0
    %p201 = por %p199, %p200
    %p202 = scmp.le.s32.totalorder 1, %s11
    %p203 = scmp.lt.s32.totalorder %s11, 33
    %p204 = pnand %p202, %p203
    %p205 = pneg %p204
    // Predicated region
    $region9: #{_lambda_.13} parent=5 // pred_check
      _
    $region10: #{_lambda_.13} parent=5 // pred_check_branch
      %207 = sbr.rel (%p204) target = $region12
    $region11: #{_lambda_.13} parent=5 // pred_region
      %s208 = ssub.s32 %s11, 1
    $region12: #{_lambda_.13} parent=5 // pred_fallthru
      _
    %p209 = scmp.lt.s32.totalorder %s11, 32
    // Predicated region
    $region13: #{_lambda_.13} parent=5 // pred_check
      %p210 = pneg %p209
    $region14: #{_lambda_.13} parent=5 // pred_check_branch
      %212 = sbr.rel (%p210) target = $region16
    $region15: #{_lambda_.13} parent=5 // pred_region
      // Predicated region
      $region17: #{_lambda_.13} parent=15 // pred_check
        %p213 = pneg %p54
      $region18: #{_lambda_.13} parent=15 // pred_check_branch
        %215 = sbr.rel (%p213) target = $region20
      $region19: #{_lambda_.13} parent=15 // pred_region
        %p216 = scmp.lt.s32.totalorder %s18, 1
        %s217 = scalar_select %p216, %s18, 1
        %p218 = scmp.lt.s32.totalorder %s19, 1
        %s219 = scalar_select %p218, %s19, 1
        %p220 = scmp.lt.s32.totalorder %s20, 7
        %s221 = scalar_select %p220, %s20, 7
        %s222 = smul.addr %s221, 4
        %s223 = smul.addr %s219, 32
        %s224 = sadd.s32 %s222, %s223
        %s225 = smul.addr %s217, 64
        %s226 = sadd.s32 %s224, %s225
        %s227 = smul.addr %s226, 4
        %s228 = scalar_lea.vmem %s0, %s227
      $region20: #{_lambda_.13} parent=15 // pred_fallthru
        _
      // Predicated region
      $region21: #{_lambda_.13} parent=15 // pred_check
        %p229 = pneg %p80
      $region22: #{_lambda_.13} parent=15 // pred_check_branch
        %231 = sbr.rel (%p229) target = $region24
      $region23: #{_lambda_.13} parent=15 // pred_region
        %p232 = scmp.lt.s32.totalorder %s18, 1
        %s233 = scalar_select %p232, %s18, 1
        %s234 = scalar_lea.vmem %s1, %s233
      $region24: #{_lambda_.13} parent=15 // pred_fallthru
        _
      // Predicated region
      $region25: #{_lambda_.13} parent=15 // pred_check
        %p235 = pneg %p106
      $region26: #{_lambda_.13} parent=15 // pred_check_branch
        %237 = sbr.rel (%p235) target = $region28
      $region27: #{_lambda_.13} parent=15 // pred_region
        %p238 = scmp.lt.s32.totalorder %s18, 1
        %s239 = scalar_select %p238, %s18, 1
        %s240 = scalar_lea.vmem %s2, %s239
      $region28: #{_lambda_.13} parent=15 // pred_fallthru
        _
      // Predicated region
      $region29: #{_lambda_.13} parent=15 // pred_check
        %p241 = pneg %p132
      $region30: #{_lambda_.13} parent=15 // pred_check_branch
        %243 = sbr.rel (%p241) target = $region32
      $region31: #{_lambda_.13} parent=15 // pred_region
        %p244 = scmp.lt.s32.totalorder %s18, 1
        %s245 = scalar_select %p244, %s18, 1
        %s246 = scalar_lea.vmem %s3, %s245
      $region32: #{_lambda_.13} parent=15 // pred_fallthru
        _
      // Predicated region
      $region33: #{_lambda_.13} parent=15 // pred_check
        %p247 = pneg %p158
      $region34: #{_lambda_.13} parent=15 // pred_check_branch
        %249 = sbr.rel (%p247) target = $region36
      $region35: #{_lambda_.13} parent=15 // pred_region
        %p250 = scmp.lt.s32.totalorder %s18, 1
        %s251 = scalar_select %p250, %s18, 1
        %s252 = scalar_lea.vmem %s4, %s251
      $region36: #{_lambda_.13} parent=15 // pred_fallthru
        _
    $region16: #{_lambda_.13} parent=5 // pred_fallthru
      _
    %p253 = scmp.le.s32.totalorder 1, %s11
    %p254 = scmp.lt.s32.totalorder %s11, 33
    %p255 = pnand %p253, %p254
    %p256 = pneg %p255
    // Predicated region
    $region37: #{_lambda_.13} parent=5 // pred_check
      _
    $region38: #{_lambda_.13} parent=5 // pred_check_branch
      %258 = sbr.rel (%p255) target = $region40
    $region39: #{_lambda_.13} parent=5 // pred_region
      %s259 = ssub.s32 %s11, 1
      %p260 = scmp.lt.s32.totalorder %s21, 1
      %s261 = scalar_select %p260, %s21, 1
      %p262 = scmp.lt.s32.totalorder %s22, 1
      %s263 = scalar_select %p262, %s22, 1
      %p264 = scmp.lt.s32.totalorder %s23, 7
      %s265 = scalar_select %p264, %s23, 7
      %s266 = smul.addr %s265, 4
      %s267 = smul.addr %s263, 32
      %s268 = sadd.s32 %s266, %s267
      %s269 = smul.addr %s261, 64
      %s270 = sadd.s32 %s268, %s269
      %s271 = smul.addr %s270, 4
      %s272 = scalar_lea.vmem %s0, %s271
      %p273 = pneg %p60
      %p274 = pneg %p57
      %p275 = scmp.lt.s32.totalorder %s21, 1
      %s276 = scalar_select %p275, %s21, 1
      %s277 = scalar_lea.vmem %s1, %s276
      %p278 = pneg %p86
      %p279 = pneg %p83
      %p280 = scmp.lt.s32.totalorder %s21, 1
      %s281 = scalar_select %p280, %s21, 1
      %s282 = scalar_lea.vmem %s2, %s281
      %p283 = pneg %p112
      %p284 = pneg %p109
      %p285 = scmp.lt.s32.totalorder %s21, 1
      %s286 = scalar_select %p285, %s21, 1
      %s287 = scalar_lea.vmem %s3, %s286
      %p288 = pneg %p138
      %p289 = pneg %p135
      %p290 = scmp.lt.s32.totalorder %s21, 1
      %s291 = scalar_select %p290, %s21, 1
      %s292 = scalar_lea.vmem %s4, %s291
      %p293 = pneg %p164
      %p294 = pneg %p161
      %p295 = pneg %p194
      %p296 = pneg %p191
      %p297 = scmp.lt.s32.totalorder %s21, 1
      %s298 = scalar_select %p297, %s21, 1
      %p299 = scmp.lt.s32.totalorder %s22, 1
      %s300 = scalar_select %p299, %s22, 1
      %p301 = scmp.lt.s32.totalorder %s23, 7
      %s302 = scalar_select %p301, %s23, 7
      %s303 = smul.addr %s300, 8
      %s304 = sadd.s32 %s302, %s303
      %s305 = smul.addr %s298, 16
      %s306 = sadd.s32 %s304, %s305
      %s307 = smul.addr %s306, 4
      %s308 = scalar_lea.vmem %s5, %s307
      %p309 = scmp.lt.s32.totalorder %s21, 1
      %s310 = scalar_select %p309, %s21, 1
      %p311 = scmp.lt.s32.totalorder %s22, 1
      %s312 = scalar_select %p311, %s22, 1
      %p313 = scmp.lt.s32.totalorder %s23, 7
      %s314 = scalar_select %p313, %s23, 7
      %s315 = smul.addr %s314, 4
      %s316 = smul.addr %s312, 32
      %s317 = sadd.s32 %s315, %s316
      %s318 = smul.addr %s310, 64
      %s319 = sadd.s32 %s317, %s318
      %s320 = smul.addr %s319, 4
      %s321 = scalar_lea.vmem %s0, %s320
      %p322 = scmp.lt.s32.totalorder %s21, 1
      %s323 = scalar_select %p322, %s21, 1
      %s324 = scalar_lea.vmem %s1, %s323
      %p325 = scmp.lt.s32.totalorder %s21, 1
      %s326 = scalar_select %p325, %s21, 1
      %s327 = scalar_lea.vmem %s2, %s326
      %p328 = scmp.lt.s32.totalorder %s21, 1
      %s329 = scalar_select %p328, %s21, 1
      %s330 = scalar_lea.vmem %s3, %s329
      %p331 = scmp.lt.s32.totalorder %s21, 1
      %s332 = scalar_select %p331, %s21, 1
      %s333 = scalar_lea.vmem %s4, %s332
      %p334 = scmp.lt.s32.totalorder %s21, 1
      %s335 = scalar_select %p334, %s21, 1
      %p336 = scmp.lt.s32.totalorder %s22, 1
      %s337 = scalar_select %p336, %s22, 1
      %p338 = scmp.lt.s32.totalorder %s23, 7
      %s339 = scalar_select %p338, %s23, 7
      %s340 = smul.addr %s337, 8
      %s341 = sadd.s32 %s339, %s340
      %s342 = smul.addr %s335, 16
      %s343 = sadd.s32 %s341, %s342
      %s344 = smul.addr %s343, 4
      %s345 = scalar_lea.vmem %s5, %s344
      %v346 = vld [vmem:[%s321] sm:$0xf]
      %v347 = vld [vmem:[%s321 + $0x4] sm:$0xf]
      %v348 = vld [vmem:[%s321 + $0x8] sm:$0xf]
      %v349 = vld [vmem:[%s321 + $0xc] sm:$0xf]
      %v350 = vunpack.c.l.bf16 %v346
      %v351 = vunpack.c.l.bf16 %v347
      %v352 = vunpack.c.l.bf16 %v348
      %v353 = vunpack.c.l.bf16 %v349
      %v354 = vld [vmem:[%s324] sm:$0x1]
      %v356 = vperm.slane %v354, 0
      %v358 = vmul.f32 %v350, %v356
      %v359 = vmul.f32 %v351, %v356
      %v360 = vmul.f32 %v352, %v356
      %v361 = vmul.f32 %v353, %v356
      %v362 = vld [vmem:[%s327] sm:$0x1]
      %v364 = vperm.slane %v362, 0
      %v366 = vadd.f32 %v358, %v364
      %v367 = vadd.f32 %v359, %v364
      %v368 = vadd.f32 %v360, %v364
      %v369 = vadd.f32 %v361, %v364
      %v370 = vmax.f32 %v366, 0.0
      %v371 = vmax.f32 %v367, 0.0
      %v372 = vmax.f32 %v368, 0.0
      %v373 = vmax.f32 %v369, 0.0
      %v374 = vld [vmem:[%s330] sm:$0x1]
      %v376 = vperm.slane %v374, 0
      %v378 = vmul.f32 %v370, %v376
      %v379 = vmul.f32 %v371, %v376
      %v380 = vmul.f32 %v372, %v376
      %v381 = vmul.f32 %v373, %v376
      %vm382 = vcmask 64512
      %v383 = vsel %vm382, %v378, 0.0
      %384 = vadd.xlane.f32.xlu0 %v383
      %v385 = vpop.xlane.xlu0 %384
      %v386 = vsel %vm382, %v379, 0.0
      %387 = vadd.xlane.f32.xlu0 %v386
      %v388 = vpop.xlane.xlu0 %387
      %v389 = vsel %vm382, %v380, 0.0
      %390 = vadd.xlane.f32.xlu0 %v389
      %v391 = vpop.xlane.xlu0 %390
      %v392 = vsel %vm382, %v381, 0.0
      %393 = vadd.xlane.f32.xlu0 %v392
      %v394 = vpop.xlane.xlu0 %393
      %v395 = vld [vmem:[%s333] sm:$0x1]
      %v397 = vperm.slane %v395, 0
      %398 = vset.pattern.permute.xlu0 0
      %399 = vperm.xlu0 %398, %v397
      %v400 = vpop.permute.xlu0 %399
      %v402 = vadd.f32 %v385, %v400
      %v403 = vadd.f32 %v388, %v400
      %v404 = vadd.f32 %v391, %v400
      %v405 = vadd.f32 %v394, %v400
      %v410 = vlaneseq
      %v411 = vand.u32 %v410, 127
      %v412 = vperm.slane %v402, %v411
      %v413 = vperm.slane %v403, %v411
      %v414 = vperm.slane %v404, %v411
      %v415 = vperm.slane %v405, %v411
      %vm416 = vcmask 1041409
      %v417 = vsel %vm416, %v413, %v412
      %vm418 = vcmask 1042434
      %v419 = vsel %vm418, %v414, %v417
      %vm420 = vcmask 1043459
      %v421 = vsel %vm420, %v415, %v419
      %vm423 = vcmask 60416
      %424 = vst.msk [vmem:[%s345] sm:$0xf] %vm423, %v421
      %p425 = scmp.lt.s32.totalorder %s21, 1
      %s426 = scalar_select %p425, %s21, 1
      %p427 = scmp.lt.s32.totalorder %s22, 1
      %s428 = scalar_select %p427, %s22, 1
      %p429 = scmp.lt.s32.totalorder %s23, 7
      %s430 = scalar_select %p429, %s23, 7
      %s431 = smul.addr %s428, 8
      %s432 = sadd.s32 %s430, %s431
      %s433 = smul.addr %s426, 16
      %s434 = sadd.s32 %s432, %s433
      %s435 = smul.addr %s434, 4
      %s436 = scalar_lea.vmem %s5, %s435
      // Predicated region
      $region41: #{_lambda_.13} parent=39 // pred_check
        %p437 = pneg %p191
      $region42: #{_lambda_.13} parent=39 // pred_check_branch
        %439 = sbr.rel (%p437) target = $region44
      $region43: #{_lambda_.13} parent=39 // pred_region
        _
      $region44: #{_lambda_.13} parent=39 // pred_fallthru
        _
    $region40: #{_lambda_.13} parent=5 // pred_fallthru
      _
    %p440 = scmp.le.s32.totalorder 2, %s11
    // Predicated region
    $region45: #{_lambda_.13} parent=5 // pred_check
      %p441 = pneg %p440
    $region46: #{_lambda_.13} parent=5 // pred_check_branch
      %443 = sbr.rel (%p441) target = $region48
    $region47: #{_lambda_.13} parent=5 // pred_region
      %s444 = ssub.s32 %s11, 2
      // Predicated region
      $region49: #{_lambda_.13} parent=47 // pred_check
        %p445 = pneg %p197
      $region50: #{_lambda_.13} parent=47 // pred_check_branch
        %447 = sbr.rel (%p445) target = $region52
      $region51: #{_lambda_.13} parent=47 // pred_region
        %p448 = scmp.lt.s32.totalorder %s24, 1
        %s449 = scalar_select %p448, %s24, 1
        %p450 = scmp.lt.s32.totalorder %s25, 1
        %s451 = scalar_select %p450, %s25, 1
        %p452 = scmp.lt.s32.totalorder %s26, 7
        %s453 = scalar_select %p452, %s26, 7
        %s454 = smul.addr %s451, 8
        %s455 = sadd.s32 %s453, %s454
        %s456 = smul.addr %s449, 16
        %s457 = sadd.s32 %s455, %s456
        %s458 = smul.addr %s457, 4
        %s459 = scalar_lea.vmem %s5, %s458
      $region52: #{_lambda_.13} parent=47 // pred_fallthru
        _
    $region48: #{_lambda_.13} parent=5 // pred_fallthru
      _
  $region6: #{_lambda_.13} parent=0 // loop_footer
    %s15 = sadd.s32 1, %s11
  $region7: #{_lambda_.13} parent=0 // loop_footer_branch
    %10 = sbr.rel target = $region3
  $region8: #{_lambda_.13} parent=0 // loop_exit
    _

// kernel: _lambda_.12
$region0: #{_lambda_.12}
  #allocation0 [shape = 'u32[]', space=smem, size = 0x4, offset = 0x4, fixed_abs, tag = 'smem constant byte address 0x4 - core index']
  #allocation1 [shape = 'u32[72,128]{1,0:T(1,128)}', space=vmem, size = 0x9000, scoped, tag = 'internal scratch']
  %s0 = inlined_call_operand.vmem [shape: bf16[2,2,10,10,16], index: 0, kind: input, shape index: {}, may-alias: {0,1,2}]
  %s1 = inlined_call_operand.vmem [shape: bf16[2,2,10,10,16], index: 1, kind: input, shape index: {}, may-alias: {0,1,2}]
  %s2 = inlined_call_operand.vmem [shape: bf16[2,2,10,10,16], index: 2, kind: input, shape index: {}, may-alias: {0,1,2}]
  %s3 = inlined_call_operand.vmem [shape: bf16[2,4,4,16,8], index: 3, kind: input, shape index: {}]
  %s4 = inlined_call_operand.vmem [shape: f32[2,1,8], index: 4, kind: input, shape index: {}]
  %s5 = inlined_call_operand.vmem [shape: bf16[2,2,8,4,8,8], index: 5, kind: output, shape index: {0}]
  %s6 = inlined_call_operand.vmem [shape: f32[2,1,8], index: 6, kind: output, shape index: {1}]
  %s7 = inlined_call_operand.vmem [shape: f32[2,1,8], index: 7, kind: output, shape index: {2}]
  %8 = xla_tuple %s5, %s6, %s7
  %s9 = sld [smem:[#allocation0]]
  $region73: #{_lambda_.12} parent=0
    _
  %s11 = ssub.s32 1, %s9
  %s12 = scalar_select 0, %s11, %s9
  loop: start=0, step=1, limit=34
  $region2: #{_lambda_.12} parent=0 // loop_pre_header
    _
  $region3: #{_lambda_.12} parent=0 // loop_header
    %s14 = sphi 0, %s18
    %p15 = scmp.ge.s32.totalorder %s14, 34
    %s21 = sphi 0, %s40
    %s22 = sphi 0, %s36
    %s23 = sphi 0, %s32
    %s24 = sphi 0, %s21
    %s25 = sphi 0, %s22
    %s26 = sphi 0, %s23
    %s27 = sphi 0, %s24
    %s28 = sphi 0, %s25
    %s29 = sphi 0, %s26
    %s47 = sphi 0, %s49
    %s50 = sphi 0, %s47
    %s51 = sphi 0, %s50
    %s67 = sphi 0, %s51
    %s79 = sphi 0, %s81
    %s82 = sphi 0, %s79
    %s83 = sphi 0, %s82
    %s99 = sphi 0, %s83
    %s111 = sphi 0, %s113
    %s114 = sphi 0, %s111
    %s115 = sphi 0, %s114
    %s131 = sphi 0, %s115
    %s137 = sphi 0, %s139
    %s140 = sphi 0, %s137
    %s141 = sphi 0, %s140
    %s157 = sphi 0, %s141
    %s163 = sphi 0, %s165
    %s166 = sphi 0, %s163
    %s167 = sphi 0, %s166
    %s183 = sphi 0, %s167
    %s193 = sphi 0, %s195
    %s196 = sphi 0, %s193
    %s197 = sphi 0, %s196
    %s213 = sphi 0, %s197
    %s219 = sphi 0, %s221
    %s222 = sphi 0, %s219
    %s223 = sphi 0, %s222
    %s239 = sphi 0, %s223
    %s245 = sphi 0, %s247
    %s248 = sphi 0, %s245
    %s249 = sphi 0, %s248
    %s265 = sphi 0, %s249
  $region4: #{_lambda_.12} parent=0 // loop_header_branch
    %17 = sbr.rel (%p15) target = $region8
  $region5: #{_lambda_.12} parent=0 // loop_body
    %s19 = ssub.s32 %s14, 1
    %s20 = ssub.s32 %s14, 2
    %s30 = sadd.s32 1, %s23
    %p31 = scmp.ge.s32.totalorder %s30, 8
    %s32 = scalar_select %p31, 0, %s30
    %s33 = sadd.s32 1, %s22
    %s34 = scalar_select %p31, %s33, %s22
    %p35 = scmp.ge.s32.totalorder %s34, 2
    %s36 = scalar_select %p35, 0, %s34
    %s37 = sadd.s32 1, %s21
    %s38 = scalar_select %p35, %s37, %s21
    %p39 = scmp.ge.s32.totalorder %s38, 2
    %s40 = scalar_select %p39, 0, %s38
    %s41 = ssub.s32 %s21, %s40
    %s42 = ssub.s32 %s22, %s36
    %s43 = sor.u32 %s41, %s42
    %s44 = ssub.s32 %s23, %s32
    %s45 = sor.u32 %s43, %s44
    %p46 = scmp.eq.s32.totalorder %s45, 0
    %s48 = sadd.s32 %s47, 1
    %s49 = scalar_select %p46, %s47, %s48
    %p52 = pneg %p46
    %p53 = scmp.eq.s32.totalorder %s14, 31
    %p54 = por %p52, %p53
    %p55 = scmp.ne.s32.totalorder %s47, %s50
    %p56 = scmp.eq.s32.totalorder %s14, 0
    %p57 = por %p55, %p56
    %p58 = scmp.ne.s32.totalorder %s47, %s50
    %p59 = scmp.eq.s32.totalorder %s19, 31
    %p60 = por %p58, %p59
    %p61 = scmp.ne.s32.totalorder %s50, %s51
    %p62 = scmp.eq.s32.totalorder %s19, 0
    %p63 = por %p61, %p62
    %p64 = scmp.ne.s32.totalorder %s50, %s51
    %p65 = scmp.eq.s32.totalorder %s20, 31
    %p66 = por %p64, %p65
    %p68 = scmp.ne.s32.totalorder %s51, %s67
    %p69 = scmp.eq.s32.totalorder %s20, 0
    %p70 = por %p68, %p69
    %s71 = sadd.s32 %s23, 1
    %s72 = sadd.s32 %s32, 1
    %s73 = ssub.s32 %s21, %s40
    %s74 = ssub.s32 %s22, %s36
    %s75 = sor.u32 %s73, %s74
    %s76 = ssub.s32 %s71, %s72
    %s77 = sor.u32 %s75, %s76
    %p78 = scmp.eq.s32.totalorder %s77, 0
    %s80 = sadd.s32 %s79, 1
    %s81 = scalar_select %p78, %s79, %s80
    %p84 = pneg %p78
    %p85 = scmp.eq.s32.totalorder %s14, 31
    %p86 = por %p84, %p85
    %p87 = scmp.ne.s32.totalorder %s79, %s82
    %p88 = scmp.eq.s32.totalorder %s14, 0
    %p89 = por %p87, %p88
    %p90 = scmp.ne.s32.totalorder %s79, %s82
    %p91 = scmp.eq.s32.totalorder %s19, 31
    %p92 = por %p90, %p91
    %p93 = scmp.ne.s32.totalorder %s82, %s83
    %p94 = scmp.eq.s32.totalorder %s19, 0
    %p95 = por %p93, %p94
    %p96 = scmp.ne.s32.totalorder %s82, %s83
    %p97 = scmp.eq.s32.totalorder %s20, 31
    %p98 = por %p96, %p97
    %p100 = scmp.ne.s32.totalorder %s83, %s99
    %p101 = scmp.eq.s32.totalorder %s20, 0
    %p102 = por %p100, %p101
    %s103 = sadd.s32 %s23, 2
    %s104 = sadd.s32 %s32, 2
    %s105 = ssub.s32 %s21, %s40
    %s106 = ssub.s32 %s22, %s36
    %s107 = sor.u32 %s105, %s106
    %s108 = ssub.s32 %s103, %s104
    %s109 = sor.u32 %s107, %s108
    %p110 = scmp.eq.s32.totalorder %s109, 0
    %s112 = sadd.s32 %s111, 1
    %s113 = scalar_select %p110, %s111, %s112
    %p116 = pneg %p110
    %p117 = scmp.eq.s32.totalorder %s14, 31
    %p118 = por %p116, %p117
    %p119 = scmp.ne.s32.totalorder %s111, %s114
    %p120 = scmp.eq.s32.totalorder %s14, 0
    %p121 = por %p119, %p120
    %p122 = scmp.ne.s32.totalorder %s111, %s114
    %p123 = scmp.eq.s32.totalorder %s19, 31
    %p124 = por %p122, %p123
    %p125 = scmp.ne.s32.totalorder %s114, %s115
    %p126 = scmp.eq.s32.totalorder %s19, 0
    %p127 = por %p125, %p126
    %p128 = scmp.ne.s32.totalorder %s114, %s115
    %p129 = scmp.eq.s32.totalorder %s20, 31
    %p130 = por %p128, %p129
    %p132 = scmp.ne.s32.totalorder %s115, %s131
    %p133 = scmp.eq.s32.totalorder %s20, 0
    %p134 = por %p132, %p133
    %s135 = ssub.s32 %s21, %s40
    %p136 = scmp.eq.s32.totalorder %s135, 0
    %s138 = sadd.s32 %s137, 1
    %s139 = scalar_select %p136, %s137, %s138
    %p142 = pneg %p136
    %p143 = scmp.eq.s32.totalorder %s14, 31
    %p144 = por %p142, %p143
    %p145 = scmp.ne.s32.totalorder %s137, %s140
    %p146 = scmp.eq.s32.totalorder %s14, 0
    %p147 = por %p145, %p146
    %p148 = scmp.ne.s32.totalorder %s137, %s140
    %p149 = scmp.eq.s32.totalorder %s19, 31
    %p150 = por %p148, %p149
    %p151 = scmp.ne.s32.totalorder %s140, %s141
    %p152 = scmp.eq.s32.totalorder %s19, 0
    %p153 = por %p151, %p152
    %p154 = scmp.ne.s32.totalorder %s140, %s141
    %p155 = scmp.eq.s32.totalorder %s20, 31
    %p156 = por %p154, %p155
    %p158 = scmp.ne.s32.totalorder %s141, %s157
    %p159 = scmp.eq.s32.totalorder %s20, 0
    %p160 = por %p158, %p159
    %s161 = ssub.s32 %s21, %s40
    %p162 = scmp.eq.s32.totalorder %s161, 0
    %s164 = sadd.s32 %s163, 1
    %s165 = scalar_select %p162, %s163, %s164
    %p168 = pneg %p162
    %p169 = scmp.eq.s32.totalorder %s14, 31
    %p170 = por %p168, %p169
    %p171 = scmp.ne.s32.totalorder %s163, %s166
    %p172 = scmp.eq.s32.totalorder %s14, 0
    %p173 = por %p171, %p172
    %p174 = scmp.ne.s32.totalorder %s163, %s166
    %p175 = scmp.eq.s32.totalorder %s19, 31
    %p176 = por %p174, %p175
    %p177 = scmp.ne.s32.totalorder %s166, %s167
    %p178 = scmp.eq.s32.totalorder %s19, 0
    %p179 = por %p177, %p178
    %p180 = scmp.ne.s32.totalorder %s166, %s167
    %p181 = scmp.eq.s32.totalorder %s20, 31
    %p182 = por %p180, %p181
    %p184 = scmp.ne.s32.totalorder %s167, %s183
    %p185 = scmp.eq.s32.totalorder %s20, 0
    %p186 = por %p184, %p185
    %s187 = ssub.s32 %s21, %s40
    %s188 = ssub.s32 %s22, %s36
    %s189 = sor.u32 %s187, %s188
    %s190 = ssub.s32 %s23, %s32
    %s191 = sor.u32 %s189, %s190
    %p192 = scmp.eq.s32.totalorder %s191, 0
    %s194 = sadd.s32 %s193, 1
    %s195 = scalar_select %p192, %s193, %s194
    %p198 = pneg %p192
    %p199 = scmp.eq.s32.totalorder %s14, 31
    %p200 = por %p198, %p199
    %p201 = scmp.ne.s32.totalorder %s193, %s196
    %p202 = scmp.eq.s32.totalorder %s14, 0
    %p203 = por %p201, %p202
    %p204 = scmp.ne.s32.totalorder %s193, %s196
    %p205 = scmp.eq.s32.totalorder %s19, 31
    %p206 = por %p204, %p205
    %p207 = scmp.ne.s32.totalorder %s196, %s197
    %p208 = scmp.eq.s32.totalorder %s19, 0
    %p209 = por %p207, %p208
    %p210 = scmp.ne.s32.totalorder %s196, %s197
    %p211 = scmp.eq.s32.totalorder %s20, 31
    %p212 = por %p210, %p211
    %p214 = scmp.ne.s32.totalorder %s197, %s213
    %p215 = scmp.eq.s32.totalorder %s20, 0
    %p216 = por %p214, %p215
    %s217 = ssub.s32 %s21, %s40
    %p218 = scmp.eq.s32.totalorder %s217, 0
    %s220 = sadd.s32 %s219, 1
    %s221 = scalar_select %p218, %s219, %s220
    %p224 = pneg %p218
    %p225 = scmp.eq.s32.totalorder %s14, 31
    %p226 = por %p224, %p225
    %p227 = scmp.ne.s32.totalorder %s219, %s222
    %p228 = scmp.eq.s32.totalorder %s14, 0
    %p229 = por %p227, %p228
    %p230 = scmp.ne.s32.totalorder %s219, %s222
    %p231 = scmp.eq.s32.totalorder %s19, 31
    %p232 = por %p230, %p231
    %p233 = scmp.ne.s32.totalorder %s222, %s223
    %p234 = scmp.eq.s32.totalorder %s19, 0
    %p235 = por %p233, %p234
    %p236 = scmp.ne.s32.totalorder %s222, %s223
    %p237 = scmp.eq.s32.totalorder %s20, 31
    %p238 = por %p236, %p237
    %p240 = scmp.ne.s32.totalorder %s223, %s239
    %p241 = scmp.eq.s32.totalorder %s20, 0
    %p242 = por %p240, %p241
    %s243 = ssub.s32 %s21, %s40
    %p244 = scmp.eq.s32.totalorder %s243, 0
    %s246 = sadd.s32 %s245, 1
    %s247 = scalar_select %p244, %s245, %s246
    %p250 = pneg %p244
    %p251 = scmp.eq.s32.totalorder %s14, 31
    %p252 = por %p250, %p251
    %p253 = scmp.ne.s32.totalorder %s245, %s248
    %p254 = scmp.eq.s32.totalorder %s14, 0
    %p255 = por %p253, %p254
    %p256 = scmp.ne.s32.totalorder %s245, %s248
    %p257 = scmp.eq.s32.totalorder %s19, 31
    %p258 = por %p256, %p257
    %p259 = scmp.ne.s32.totalorder %s248, %s249
    %p260 = scmp.eq.s32.totalorder %s19, 0
    %p261 = por %p259, %p260
    %p262 = scmp.ne.s32.totalorder %s248, %s249
    %p263 = scmp.eq.s32.totalorder %s20, 31
    %p264 = por %p262, %p263
    %p266 = scmp.ne.s32.totalorder %s249, %s265
    %p267 = scmp.eq.s32.totalorder %s20, 0
    %p268 = por %p266, %p267
    %p269 = scmp.le.s32.totalorder 1, %s14
    %p270 = scmp.lt.s32.totalorder %s14, 33
    %p271 = pnand %p269, %p270
    %p272 = pneg %p271
    // Predicated region
    $region9: #{_lambda_.12} parent=5 // pred_check
      _
    $region10: #{_lambda_.12} parent=5 // pred_check_branch
      %274 = sbr.rel (%p271) target = $region12
    $region11: #{_lambda_.12} parent=5 // pred_region
      %s275 = ssub.s32 %s14, 1
    $region12: #{_lambda_.12} parent=5 // pred_fallthru
      _
    %p276 = scmp.lt.s32.totalorder %s14, 32
    // Predicated region
    $region13: #{_lambda_.12} parent=5 // pred_check
      %p277 = pneg %p276
    $region14: #{_lambda_.12} parent=5 // pred_check_branch
      %279 = sbr.rel (%p277) target = $region16
    $region15: #{_lambda_.12} parent=5 // pred_region
      // Predicated region
      $region17: #{_lambda_.12} parent=15 // pred_check
        %p280 = pneg %p57
      $region18: #{_lambda_.12} parent=15 // pred_check_branch
        %282 = sbr.rel (%p280) target = $region20
      $region19: #{_lambda_.12} parent=15 // pred_region
        %p283 = scmp.lt.s32.totalorder %s21, 1
        %s284 = scalar_select %p283, %s21, 1
        %p285 = scmp.lt.s32.totalorder %s22, 1
        %s286 = scalar_select %p285, %s22, 1
        %p287 = scmp.lt.s32.totalorder %s23, 9
        %s288 = scalar_select %p287, %s23, 9
        %s289 = smul.addr %s288, 2
        %s290 = smul.addr %s286, 20
        %s291 = sadd.s32 %s289, %s290
        %s292 = smul.addr %s284, 40
        %s293 = sadd.s32 %s291, %s292
        %s294 = smul.addr %s293, 4
        %s295 = scalar_lea.vmem %s0, %s294
      $region20: #{_lambda_.12} parent=15 // pred_fallthru
        _
      // Predicated region
      $region21: #{_lambda_.12} parent=15 // pred_check
        %p296 = pneg %p89
      $region22: #{_lambda_.12} parent=15 // pred_check_branch
        %298 = sbr.rel (%p296) target = $region24
      $region23: #{_lambda_.12} parent=15 // pred_region
        %s299 = sadd.s32 %s23, 1
        %p300 = scmp.lt.s32.totalorder %s21, 1
        %s301 = scalar_select %p300, %s21, 1
        %p302 = scmp.lt.s32.totalorder %s22, 1
        %s303 = scalar_select %p302, %s22, 1
        %p304 = scmp.lt.s32.totalorder %s299, 9
        %s305 = scalar_select %p304, %s299, 9
        %s306 = smul.addr %s305, 2
        %s307 = smul.addr %s303, 20
        %s308 = sadd.s32 %s306, %s307
        %s309 = smul.addr %s301, 40
        %s310 = sadd.s32 %s308, %s309
        %s311 = smul.addr %s310, 4
        %s312 = scalar_lea.vmem %s1, %s311
        %s313 = sadd.s32 %s23, 1
      $region24: #{_lambda_.12} parent=15 // pred_fallthru
        _
      // Predicated region
      $region25: #{_lambda_.12} parent=15 // pred_check
        %p314 = pneg %p121
      $region26: #{_lambda_.12} parent=15 // pred_check_branch
        %316 = sbr.rel (%p314) target = $region28
      $region27: #{_lambda_.12} parent=15 // pred_region
        %s317 = sadd.s32 %s23, 2
        %p318 = scmp.lt.s32.totalorder %s21, 1
        %s319 = scalar_select %p318, %s21, 1
        %p320 = scmp.lt.s32.totalorder %s22, 1
        %s321 = scalar_select %p320, %s22, 1
        %p322 = scmp.lt.s32.totalorder %s317, 9
        %s323 = scalar_select %p322, %s317, 9
        %s324 = smul.addr %s323, 2
        %s325 = smul.addr %s321, 20
        %s326 = sadd.s32 %s324, %s325
        %s327 = smul.addr %s319, 40
        %s328 = sadd.s32 %s326, %s327
        %s329 = smul.addr %s328, 4
        %s330 = scalar_lea.vmem %s2, %s329
        %s331 = sadd.s32 %s23, 2
      $region28: #{_lambda_.12} parent=15 // pred_fallthru
        _
      // Predicated region
      $region29: #{_lambda_.12} parent=15 // pred_check
        %p332 = pneg %p147
      $region30: #{_lambda_.12} parent=15 // pred_check_branch
        %334 = sbr.rel (%p332) target = $region32
      $region31: #{_lambda_.12} parent=15 // pred_region
        %p335 = scmp.lt.s32.totalorder %s21, 1
        %s336 = scalar_select %p335, %s21, 1
        %s337 = smul.addr %s336, 32
        %s338 = smul.addr %s337, 4
        %s339 = scalar_lea.vmem %s3, %s338
      $region32: #{_lambda_.12} parent=15 // pred_fallthru
        _
      // Predicated region
      $region33: #{_lambda_.12} parent=15 // pred_check
        %p340 = pneg %p173
      $region34: #{_lambda_.12} parent=15 // pred_check_branch
        %342 = sbr.rel (%p340) target = $region36
      $region35: #{_lambda_.12} parent=15 // pred_region
        %p343 = scmp.lt.s32.totalorder %s21, 1
        %s344 = scalar_select %p343, %s21, 1
        %s345 = scalar_lea.vmem %s4, %s344
      $region36: #{_lambda_.12} parent=15 // pred_fallthru
        _
    $region16: #{_lambda_.12} parent=5 // pred_fallthru
      _
    %p346 = scmp.le.s32.totalorder 1, %s14
    %p347 = scmp.lt.s32.totalorder %s14, 33
    %p348 = pnand %p346, %p347
    %p349 = pneg %p348
    // Predicated region
    $region37: #{_lambda_.12} parent=5 // pred_check
      _
    $region38: #{_lambda_.12} parent=5 // pred_check_branch
      %351 = sbr.rel (%p348) target = $region40
    $region39: #{_lambda_.12} parent=5 // pred_region
      %s352 = ssub.s32 %s14, 1
      %p353 = scmp.lt.s32.totalorder %s24, 1
      %s354 = scalar_select %p353, %s24, 1
      %p355 = scmp.lt.s32.totalorder %s25, 1
      %s356 = scalar_select %p355, %s25, 1
      %p357 = scmp.lt.s32.totalorder %s26, 9
      %s358 = scalar_select %p357, %s26, 9
      %s359 = smul.addr %s358, 2
      %s360 = smul.addr %s356, 20
      %s361 = sadd.s32 %s359, %s360
      %s362 = smul.addr %s354, 40
      %s363 = sadd.s32 %s361, %s362
      %s364 = smul.addr %s363, 4
      %s365 = scalar_lea.vmem %s0, %s364
      %p366 = pneg %p63
      %p367 = pneg %p60
      %s368 = sadd.s32 %s26, 1
      %p369 = scmp.lt.s32.totalorder %s24, 1
      %s370 = scalar_select %p369, %s24, 1
      %p371 = scmp.lt.s32.totalorder %s25, 1
      %s372 = scalar_select %p371, %s25, 1
      %p373 = scmp.lt.s32.totalorder %s368, 9
      %s374 = scalar_select %p373, %s368, 9
      %s375 = smul.addr %s374, 2
      %s376 = smul.addr %s372, 20
      %s377 = sadd.s32 %s375, %s376
      %s378 = smul.addr %s370, 40
      %s379 = sadd.s32 %s377, %s378
      %s380 = smul.addr %s379, 4
      %s381 = scalar_lea.vmem %s1, %s380
      %p382 = pneg %p95
      %p383 = pneg %p92
      %s384 = sadd.s32 %s26, 2
      %p385 = scmp.lt.s32.totalorder %s24, 1
      %s386 = scalar_select %p385, %s24, 1
      %p387 = scmp.lt.s32.totalorder %s25, 1
      %s388 = scalar_select %p387, %s25, 1
      %p389 = scmp.lt.s32.totalorder %s384, 9
      %s390 = scalar_select %p389, %s384, 9
      %s391 = smul.addr %s390, 2
      %s392 = smul.addr %s388, 20
      %s393 = sadd.s32 %s391, %s392
      %s394 = smul.addr %s386, 40
      %s395 = sadd.s32 %s393, %s394
      %s396 = smul.addr %s395, 4
      %s397 = scalar_lea.vmem %s2, %s396
      %p398 = pneg %p127
      %p399 = pneg %p124
      %p400 = scmp.lt.s32.totalorder %s24, 1
      %s401 = scalar_select %p400, %s24, 1
      %s402 = smul.addr %s401, 32
      %s403 = smul.addr %s402, 4
      %s404 = scalar_lea.vmem %s3, %s403
      %p405 = pneg %p153
      %p406 = pneg %p150
      %p407 = scmp.lt.s32.totalorder %s24, 1
      %s408 = scalar_select %p407, %s24, 1
      %s409 = scalar_lea.vmem %s4, %s408
      %p410 = pneg %p179
      %p411 = pneg %p176
      %p412 = pneg %p209
      %p413 = pneg %p206
      %p414 = scmp.lt.s32.totalorder %s24, 1
      %s415 = scalar_select %p414, %s24, 1
      %p416 = scmp.lt.s32.totalorder %s25, 1
      %s417 = scalar_select %p416, %s25, 1
      %p418 = scmp.lt.s32.totalorder %s26, 7
      %s419 = scalar_select %p418, %s26, 7
      %s420 = smul.addr %s419, 4
      %s421 = smul.addr %s417, 32
      %s422 = sadd.s32 %s420, %s421
      %s423 = smul.addr %s415, 64
      %s424 = sadd.s32 %s422, %s423
      %s425 = smul.addr %s424, 4
      %s426 = scalar_lea.vmem %s5, %s425
      %p427 = pneg %p235
      %p428 = pneg %p232
      %p429 = scmp.lt.s32.totalorder %s24, 1
      %s430 = scalar_select %p429, %s24, 1
      %s431 = scalar_lea.vmem %s6, %s430
      %p432 = pneg %p261
      %p433 = pneg %p258
      %p434 = scmp.lt.s32.totalorder %s24, 1
      %s435 = scalar_select %p434, %s24, 1
      %s436 = scalar_lea.vmem %s7, %s435
      %p437 = scmp.lt.s32.totalorder %s24, 1
      %s438 = scalar_select %p437, %s24, 1
      %p439 = scmp.lt.s32.totalorder %s25, 1
      %s440 = scalar_select %p439, %s25, 1
      %p441 = scmp.lt.s32.totalorder %s26, 9
      %s442 = scalar_select %p441, %s26, 9
      %s443 = smul.addr %s442, 2
      %s444 = smul.addr %s440, 20
      %s445 = sadd.s32 %s443, %s444
      %s446 = smul.addr %s438, 40
      %s447 = sadd.s32 %s445, %s446
      %s448 = smul.addr %s447, 4
      %s449 = scalar_lea.vmem %s0, %s448
      %s450 = sadd.s32 %s26, 1
      %p451 = scmp.lt.s32.totalorder %s24, 1
      %s452 = scalar_select %p451, %s24, 1
      %p453 = scmp.lt.s32.totalorder %s25, 1
      %s454 = scalar_select %p453, %s25, 1
      %p455 = scmp.lt.s32.totalorder %s450, 9
      %s456 = scalar_select %p455, %s450, 9
      %s457 = smul.addr %s456, 2
      %s458 = smul.addr %s454, 20
      %s459 = sadd.s32 %s457, %s458
      %s460 = smul.addr %s452, 40
      %s461 = sadd.s32 %s459, %s460
      %s462 = smul.addr %s461, 4
      %s463 = scalar_lea.vmem %s1, %s462
      %s464 = sadd.s32 %s26, 1
      %s465 = sadd.s32 %s26, 2
      %p466 = scmp.lt.s32.totalorder %s24, 1
      %s467 = scalar_select %p466, %s24, 1
      %p468 = scmp.lt.s32.totalorder %s25, 1
      %s469 = scalar_select %p468, %s25, 1
      %p470 = scmp.lt.s32.totalorder %s465, 9
      %s471 = scalar_select %p470, %s465, 9
      %s472 = smul.addr %s471, 2
      %s473 = smul.addr %s469, 20
      %s474 = sadd.s32 %s472, %s473
      %s475 = smul.addr %s467, 40
      %s476 = sadd.s32 %s474, %s475
      %s477 = smul.addr %s476, 4
      %s478 = scalar_lea.vmem %s2, %s477
      %s479 = sadd.s32 %s26, 2
      %p480 = scmp.lt.s32.totalorder %s24, 1
      %s481 = scalar_select %p480, %s24, 1
      %s482 = smul.addr %s481, 32
      %s483 = smul.addr %s482, 4
      %s484 = scalar_lea.vmem %s3, %s483
      %p485 = scmp.lt.s32.totalorder %s24, 1
      %s486 = scalar_select %p485, %s24, 1
      %s487 = scalar_lea.vmem %s4, %s486
      %p488 = scmp.lt.s32.totalorder %s24, 1
      %s489 = scalar_select %p488, %s24, 1
      %p490 = scmp.lt.s32.totalorder %s25, 1
      %s491 = scalar_select %p490, %s25, 1
      %p492 = scmp.lt.s32.totalorder %s26, 7
      %s493 = scalar_select %p492, %s26, 7
      %s494 = smul.addr %s493, 4
      %s495 = smul.addr %s491, 32
      %s496 = sadd.s32 %s494, %s495
      %s497 = smul.addr %s489, 64
      %s498 = sadd.s32 %s496, %s497
      %s499 = smul.addr %s498, 4
      %s500 = scalar_lea.vmem %s5, %s499
      %p501 = scmp.lt.s32.totalorder %s24, 1
      %s502 = scalar_select %p501, %s24, 1
      %s503 = scalar_lea.vmem %s6, %s502
      %p504 = scmp.lt.s32.totalorder %s24, 1
      %s505 = scalar_select %p504, %s24, 1
      %s506 = scalar_lea.vmem %s7, %s505
      %v508 = vld [vmem:[%s449] sm:$0xf]
      %v509 = vunpack.c.l.bf16 %v508
      %v510 = vmax.f32 %v509, 0.0
      %v511 = vpack.c.bf16 %v510, %v510
      %v512 = vld [vmem:[%s449 + $0x4] sm:$0x1]
      %v513 = vunpack.c.l.bf16 %v512
      %v514 = vmax.f32 %v513, 0.0
      %v515 = vpack.c.bf16 %v514, %v510
      %v516 = vld [vmem:[%s449] sm:$0xe]
      %v517 = vunpack.c.l.bf16 %v516
      %v518 = vmax.f32 %v517, 0.0
      %v519 = vpack.c.bf16 %v514, %v518
      %v520 = vld [vmem:[%s463] sm:$0xf]
      %v521 = vunpack.c.l.bf16 %v520
      %v522 = vmax.f32 %v521, 0.0
      %v523 = vpack.c.bf16 %v522, %v522
      %v524 = vld [vmem:[%s463 + $0x4] sm:$0x1]
      %v525 = vunpack.c.l.bf16 %v524
      %v526 = vmax.f32 %v525, 0.0
      %v527 = vpack.c.bf16 %v526, %v522
      %v528 = vld [vmem:[%s463] sm:$0xe]
      %v529 = vunpack.c.l.bf16 %v528
      %v530 = vmax.f32 %v529, 0.0
      %v531 = vpack.c.bf16 %v526, %v530
      %v532 = vld [vmem:[%s478] sm:$0xf]
      %v533 = vunpack.c.l.bf16 %v532
      %v534 = vmax.f32 %v533, 0.0
      %v535 = vpack.c.bf16 %v534, %v534
      %v536 = vld [vmem:[%s478 + $0x4] sm:$0x1]
      %v537 = vunpack.c.l.bf16 %v536
      %v538 = vmax.f32 %v537, 0.0
      %v539 = vpack.c.bf16 %v538, %v534
      %v540 = vld [vmem:[%s478] sm:$0xe]
      %v541 = vunpack.c.l.bf16 %v540
      %v542 = vmax.f32 %v541, 0.0
      %v543 = vpack.c.bf16 %v538, %v542
      %p544 = scmp.eq.s32.totalorder %s25, 0
      %p545 = scmp.eq.s32.totalorder %s26, 0
      %p546 = pnand %p544, %p545
      %p547 = pneg %p546
      // Predicated region
      $region41: #{_lambda_.12} parent=39 // pred_check
        _
      $region42: #{_lambda_.12} parent=39 // pred_check_branch
        %549 = sbr.rel (%p546) target = $region44
      $region43: #{_lambda_.12} parent=39 // pred_region
        %vm550 = vcmask 57344
        %551 = vst.msk [vmem:[%s503] sm:$0x1] %vm550, 0.0
        %552 = vst.msk [vmem:[%s506] sm:$0x1] %vm550, 0.0
      $region44: #{_lambda_.12} parent=39 // pred_fallthru
        _
      %v553 = vld [vmem:[%s484] sm:$0xf]
      %v554 = vld [vmem:[%s484 + $0x4] sm:$0xf]
      %s555 = scalar_lea.vmem %s484, 8
      %v556 = vld [vmem:[%s555] sm:$0xf]
      %v557 = vld [vmem:[%s555 + $0x4] sm:$0xf]
      %v559 = vshrl.u32 %v515, 16
      %v561 = vshll.u32 %v515, 16
      %v563 = vrot.slane %v561, 1
      %v564 = vor.u32 %v559, %v563
      %v567 = vunpack.c.l.b16 %v556
      %v568 = vunpack.c.l.b16 %v557
      %v569 = vpack.c.b16 %v568, %v567
      %vm571 = vcmask 130048
      %v573 = vsel %vm571, %v564, 0
      %575 = vmatpush.bf16.msra.mxu0 0
      %576 = vmatpush.bf16.msra.mxu0 0
      %577 = vmatpush.bf16.msra.mxu0 0
      %578 = vmatpush.bf16.msra.mxu0 0
      %579 = vmatpush.bf16.msra.mxu0 0
      %580 = vmatpush.bf16.msra.mxu0 0
      %581 = vmatpush.bf16.msra.mxu0 0
      %582 = vmatpush.bf16.msra.mxu0 %v569
      %583 = vmatmul.bf16.gmra.mxu0 %v573
      %v584 = vpop.f32.mrf.mxu0
      %v585 = vadd.f32 0.0, %v584
      %v586 = vpop.f32.mrf.mxu0
      %587 = vdwg.mxu0
      %v590 = vunpack.c.l.b16 %v553
      %v591 = vunpack.c.l.b16 %v554
      %v592 = vpack.c.b16 %v591, %v590
      %v595 = vsel %vm571, %v511, 0
      %597 = vmatpush.bf16.msra.mxu0 0
      %598 = vmatpush.bf16.msra.mxu0 0
      %599 = vmatpush.bf16.msra.mxu0 0
      %600 = vmatpush.bf16.msra.mxu0 0
      %601 = vmatpush.bf16.msra.mxu0 0
      %602 = vmatpush.bf16.msra.mxu0 0
      %603 = vmatpush.bf16.msra.mxu0 0
      %604 = vmatpush.bf16.msra.mxu0 %v592
      %605 = vmatmul.bf16.gmra.mxu0 %v595
      %v606 = vpop.f32.mrf.mxu0
      %v607 = vadd.f32 %v585, %v606
      %v608 = vpop.f32.mrf.mxu0
      %609 = vdwg.mxu0
      %s610 = scalar_lea.vmem %s484, 16
      %v611 = vld [vmem:[%s610] sm:$0xf]
      %v612 = vld [vmem:[%s610 + $0x4] sm:$0xf]
      %v615 = vunpack.c.l.b16 %v611
      %v616 = vunpack.c.l.b16 %v612
      %v617 = vpack.c.b16 %v616, %v615
      %v620 = vsel %vm571, %v523, 0
      %622 = vmatpush.bf16.msra.mxu0 0
      %623 = vmatpush.bf16.msra.mxu0 0
      %624 = vmatpush.bf16.msra.mxu0 0
      %625 = vmatpush.bf16.msra.mxu0 0
      %626 = vmatpush.bf16.msra.mxu0 0
      %627 = vmatpush.bf16.msra.mxu0 0
      %628 = vmatpush.bf16.msra.mxu0 0
      %629 = vmatpush.bf16.msra.mxu0 %v617
      %630 = vmatmul.bf16.gmra.mxu0 %v620
      %v631 = vpop.f32.mrf.mxu0
      %v632 = vadd.f32 0.0, %v631
      %v633 = vpop.f32.mrf.mxu0
      %634 = vdwg.mxu0
      %v635 = vadd.f32 %v607, %v632
      %s636 = scalar_lea.vmem %s484, 24
      %v637 = vld [vmem:[%s636] sm:$0xf]
      %v638 = vld [vmem:[%s636 + $0x4] sm:$0xf]
      %v640 = vshrl.u32 %v527, 16
      %v642 = vshll.u32 %v527, 16
      %v644 = vrot.slane %v642, 1
      %v645 = vor.u32 %v640, %v644
      %v648 = vunpack.c.l.b16 %v637
      %v649 = vunpack.c.l.b16 %v638
      %v650 = vpack.c.b16 %v649, %v648
      %v653 = vsel %vm571, %v645, 0
      %655 = vmatpush.bf16.msra.mxu0 0
      %656 = vmatpush.bf16.msra.mxu0 0
      %657 = vmatpush.bf16.msra.mxu0 0
      %658 = vmatpush.bf16.msra.mxu0 0
      %659 = vmatpush.bf16.msra.mxu0 0
      %660 = vmatpush.bf16.msra.mxu0 0
      %661 = vmatpush.bf16.msra.mxu0 0
      %662 = vmatpush.bf16.msra.mxu0 %v650
      %663 = vmatmul.bf16.gmra.mxu0 %v653
      %v664 = vpop.f32.mrf.mxu0
      %v665 = vadd.f32 0.0, %v664
      %v666 = vpop.f32.mrf.mxu0
      %667 = vdwg.mxu0
      %v668 = vadd.f32 %v635, %v665
      %vm669 = vcmask 64512
      %v670 = vsel %vm669, %v668, 0.0
      %v671 = vrot.slane %v670, 4
      %v672 = vadd.f32 %v670, %v671
      %v673 = vrot.slane %v672, 2
      %v674 = vadd.f32 %v672, %v673
      %v675 = vrot.slane %v674, 1
      %v676 = vadd.f32 %v674, %v675
      %v677 = vadd.f32 %v676, 0.0
      %v678 = vmul.f32 %v668, %v668
      %v679 = vsel %vm669, %v678, 0.0
      %v680 = vrot.slane %v679, 4
      %v681 = vadd.f32 %v679, %v680
      %v682 = vrot.slane %v681, 2
      %v683 = vadd.f32 %v681, %v682
      %v684 = vrot.slane %v683, 1
      %v685 = vadd.f32 %v683, %v684
      %v686 = vadd.f32 %v685, 0.0
      %v687 = vld [vmem:[%s487] sm:$0x1]
      %v689 = vperm.slane %v687, 0
      %v691 = vadd.f32 %v668, %v689
      %v692 = vpack.c.bf16 %v691, %v691
      %vm693 = vcmask 60416
      %694 = vst.msk [vmem:[%s500] sm:$0xf] %vm693, %v692
      %s695 = scalar_lea.vmem %s484, 32
      %v696 = vld [vmem:[%s695] sm:$0xf]
      %v697 = vld [vmem:[%s695 + $0x4] sm:$0xf]
      %s698 = scalar_lea.vmem %s484, 40
      %v699 = vld [vmem:[%s698] sm:$0xf]
      %v700 = vld [vmem:[%s698 + $0x4] sm:$0xf]
      %v702 = vrot.slane %v519, 1
      %v705 = vunpack.c.l.b16 %v699
      %v706 = vunpack.c.l.b16 %v700
      %v707 = vpack.c.b16 %v706, %v705
      %v710 = vsel %vm571, %v702, 0
      %712 = vmatpush.bf16.msra.mxu0 0
      %713 = vmatpush.bf16.msra.mxu0 0
      %714 = vmatpush.bf16.msra.mxu0 0
      %715 = vmatpush.bf16.msra.mxu0 0
      %716 = vmatpush.bf16.msra.mxu0 0
      %717 = vmatpush.bf16.msra.mxu0 0
      %718 = vmatpush.bf16.msra.mxu0 0
      %719 = vmatpush.bf16.msra.mxu0 %v707
      %720 = vmatmul.bf16.gmra.mxu0 %v710
      %v721 = vpop.f32.mrf.mxu0
      %v722 = vadd.f32 0.0, %v721
      %v723 = vpop.f32.mrf.mxu0
      %724 = vdwg.mxu0
      %v727 = vunpack.c.l.b16 %v696
      %v728 = vunpack.c.l.b16 %v697
      %v729 = vpack.c.b16 %v728, %v727
      %731 = vmatpush.bf16.msra.mxu0 0
      %732 = vmatpush.bf16.msra.mxu0 0
      %733 = vmatpush.bf16.msra.mxu0 0
      %734 = vmatpush.bf16.msra.mxu0 0
      %735 = vmatpush.bf16.msra.mxu0 0
      %736 = vmatpush.bf16.msra.mxu0 0
      %737 = vmatpush.bf16.msra.mxu0 0
      %738 = vmatpush.bf16.msra.mxu0 %v729
      %739 = vmatmul.bf16.gmra.mxu0 %v573
      %v740 = vpop.f32.mrf.mxu0
      %v741 = vadd.f32 %v722, %v740
      %v742 = vpop.f32.mrf.mxu0
      %743 = vdwg.mxu0
      %s744 = scalar_lea.vmem %s484, 48
      %v745 = vld [vmem:[%s744] sm:$0xf]
      %v746 = vld [vmem:[%s744 + $0x4] sm:$0xf]
      %v749 = vunpack.c.l.b16 %v745
      %v750 = vunpack.c.l.b16 %v746
      %v751 = vpack.c.b16 %v750, %v749
      %753 = vmatpush.bf16.msra.mxu0 0
      %754 = vmatpush.bf16.msra.mxu0 0
      %755 = vmatpush.bf16.msra.mxu0 0
      %756 = vmatpush.bf16.msra.mxu0 0
      %757 = vmatpush.bf16.msra.mxu0 0
      %758 = vmatpush.bf16.msra.mxu0 0
      %759 = vmatpush.bf16.msra.mxu0 0
      %760 = vmatpush.bf16.msra.mxu0 %v751
      %761 = vmatmul.bf16.gmra.mxu0 %v653
      %v762 = vpop.f32.mrf.mxu0
      %v763 = vadd.f32 0.0, %v762
      %v764 = vpop.f32.mrf.mxu0
      %765 = vdwg.mxu0
      %v766 = vadd.f32 %v741, %v763
      %s767 = scalar_lea.vmem %s484, 56
      %v768 = vld [vmem:[%s767] sm:$0xf]
      %v769 = vld [vmem:[%s767 + $0x4] sm:$0xf]
      %v771 = vrot.slane %v531, 1
      %v774 = vunpack.c.l.b16 %v768
      %v775 = vunpack.c.l.b16 %v769
      %v776 = vpack.c.b16 %v775, %v774
      %v779 = vsel %vm571, %v771, 0
      %781 = vmatpush.bf16.msra.mxu0 0
      %782 = vmatpush.bf16.msra.mxu0 0
      %783 = vmatpush.bf16.msra.mxu0 0
      %784 = vmatpush.bf16.msra.mxu0 0
      %785 = vmatpush.bf16.msra.mxu0 0
      %786 = vmatpush.bf16.msra.mxu0 0
      %787 = vmatpush.bf16.msra.mxu0 0
      %788 = vmatpush.bf16.msra.mxu0 %v776
      %789 = vmatmul.bf16.gmra.mxu0 %v779
      %v790 = vpop.f32.mrf.mxu0
      %v791 = vadd.f32 0.0, %v790
      %v792 = vpop.f32.mrf.mxu0
      %793 = vdwg.mxu0
      %v794 = vadd.f32 %v766, %v791
      %v795 = vsel %vm669, %v794, 0.0
      %v796 = vrot.slane %v795, 4
      %v797 = vadd.f32 %v795, %v796
      %v798 = vrot.slane %v797, 2
      %v799 = vadd.f32 %v797, %v798
      %v800 = vrot.slane %v799, 1
      %v801 = vadd.f32 %v799, %v800
      %v802 = vadd.f32 %v677, %v801
      %v803 = vmul.f32 %v794, %v794
      %v804 = vsel %vm669, %v803, 0.0
      %v805 = vrot.slane %v804, 4
      %v806 = vadd.f32 %v804, %v805
      %v807 = vrot.slane %v806, 2
      %v808 = vadd.f32 %v806, %v807
      %v809 = vrot.slane %v808, 1
      %v810 = vadd.f32 %v808, %v809
      %v811 = vadd.f32 %v686, %v810
      %v812 = vld [vmem:[%s487] sm:$0x1]
      %v814 = vperm.slane %v812, 0
      %v816 = vadd.f32 %v794, %v814
      %v817 = vpack.c.bf16 %v816, %v816
      %s818 = scalar_lea.vmem %s500, 4
      %819 = vst.msk [vmem:[%s818] sm:$0xf] %vm693, %v817
      %s820 = scalar_lea.vmem %s484, 64
      %v821 = vld [vmem:[%s820] sm:$0xf]
      %v822 = vld [vmem:[%s820 + $0x4] sm:$0xf]
      %s823 = scalar_lea.vmem %s484, 72
      %v824 = vld [vmem:[%s823] sm:$0xf]
      %v825 = vld [vmem:[%s823 + $0x4] sm:$0xf]
      %v828 = vunpack.c.l.b16 %v824
      %v829 = vunpack.c.l.b16 %v825
      %v830 = vpack.c.b16 %v829, %v828
      %832 = vmatpush.bf16.msra.mxu0 0
      %833 = vmatpush.bf16.msra.mxu0 0
      %834 = vmatpush.bf16.msra.mxu0 0
      %835 = vmatpush.bf16.msra.mxu0 0
      %836 = vmatpush.bf16.msra.mxu0 0
      %837 = vmatpush.bf16.msra.mxu0 0
      %838 = vmatpush.bf16.msra.mxu0 0
      %839 = vmatpush.bf16.msra.mxu0 %v830
      %840 = vmatmul.bf16.gmra.mxu0 %v653
      %v841 = vpop.f32.mrf.mxu0
      %v842 = vadd.f32 0.0, %v841
      %v843 = vpop.f32.mrf.mxu0
      %844 = vdwg.mxu0
      %v847 = vunpack.c.l.b16 %v821
      %v848 = vunpack.c.l.b16 %v822
      %v849 = vpack.c.b16 %v848, %v847
      %851 = vmatpush.bf16.msra.mxu0 0
      %852 = vmatpush.bf16.msra.mxu0 0
      %853 = vmatpush.bf16.msra.mxu0 0
      %854 = vmatpush.bf16.msra.mxu0 0
      %855 = vmatpush.bf16.msra.mxu0 0
      %856 = vmatpush.bf16.msra.mxu0 0
      %857 = vmatpush.bf16.msra.mxu0 0
      %858 = vmatpush.bf16.msra.mxu0 %v849
      %859 = vmatmul.bf16.gmra.mxu0 %v620
      %v860 = vpop.f32.mrf.mxu0
      %v861 = vadd.f32 %v842, %v860
      %v862 = vpop.f32.mrf.mxu0
      %863 = vdwg.mxu0
      %s864 = scalar_lea.vmem %s484, 80
      %v865 = vld [vmem:[%s864] sm:$0xf]
      %v866 = vld [vmem:[%s864 + $0x4] sm:$0xf]
      %v869 = vunpack.c.l.b16 %v865
      %v870 = vunpack.c.l.b16 %v866
      %v871 = vpack.c.b16 %v870, %v869
      %v874 = vsel %vm571, %v535, 0
      %876 = vmatpush.bf16.msra.mxu0 0
      %877 = vmatpush.bf16.msra.mxu0 0
      %878 = vmatpush.bf16.msra.mxu0 0
      %879 = vmatpush.bf16.msra.mxu0 0
      %880 = vmatpush.bf16.msra.mxu0 0
      %881 = vmatpush.bf16.msra.mxu0 0
      %882 = vmatpush.bf16.msra.mxu0 0
      %883 = vmatpush.bf16.msra.mxu0 %v871
      %884 = vmatmul.bf16.gmra.mxu0 %v874
      %v885 = vpop.f32.mrf.mxu0
      %v886 = vadd.f32 0.0, %v885
      %v887 = vpop.f32.mrf.mxu0
      %888 = vdwg.mxu0
      %v889 = vadd.f32 %v861, %v886
      %s890 = scalar_lea.vmem %s484, 88
      %v891 = vld [vmem:[%s890] sm:$0xf]
      %v892 = vld [vmem:[%s890 + $0x4] sm:$0xf]
      %v894 = vshrl.u32 %v539, 16
      %v896 = vshll.u32 %v539, 16
      %v898 = vrot.slane %v896, 1
      %v899 = vor.u32 %v894, %v898
      %v902 = vunpack.c.l.b16 %v891
      %v903 = vunpack.c.l.b16 %v892
      %v904 = vpack.c.b16 %v903, %v902
      %v907 = vsel %vm571, %v899, 0
      %909 = vmatpush.bf16.msra.mxu0 0
      %910 = vmatpush.bf16.msra.mxu0 0
      %911 = vmatpush.bf16.msra.mxu0 0
      %912 = vmatpush.bf16.msra.mxu0 0
      %913 = vmatpush.bf16.msra.mxu0 0
      %914 = vmatpush.bf16.msra.mxu0 0
      %915 = vmatpush.bf16.msra.mxu0 0
      %916 = vmatpush.bf16.msra.mxu0 %v904
      %917 = vmatmul.bf16.gmra.mxu0 %v907
      %v918 = vpop.f32.mrf.mxu0
      %v919 = vadd.f32 0.0, %v918
      %v920 = vpop.f32.mrf.mxu0
      %921 = vdwg.mxu0
      %v922 = vadd.f32 %v889, %v919
      %v923 = vsel %vm669, %v922, 0.0
      %v924 = vrot.slane %v923, 4
      %v925 = vadd.f32 %v923, %v924
      %v926 = vrot.slane %v925, 2
      %v927 = vadd.f32 %v925, %v926
      %v928 = vrot.slane %v927, 1
      %v929 = vadd.f32 %v927, %v928
      %v930 = vadd.f32 %v802, %v929
      %v931 = vmul.f32 %v922, %v922
      %v932 = vsel %vm669, %v931, 0.0
      %v933 = vrot.slane %v932, 4
      %v934 = vadd.f32 %v932, %v933
      %v935 = vrot.slane %v934, 2
      %v936 = vadd.f32 %v934, %v935
      %v937 = vrot.slane %v936, 1
      %v938 = vadd.f32 %v936, %v937
      %v939 = vadd.f32 %v811, %v938
      %v940 = vld [vmem:[%s487] sm:$0x1]
      %v942 = vperm.slane %v940, 0
      %v944 = vadd.f32 %v922, %v942
      %v945 = vpack.c.bf16 %v944, %v944
      %s946 = scalar_lea.vmem %s500, 8
      %947 = vst.msk [vmem:[%s946] sm:$0xf] %vm693, %v945
      %s948 = scalar_lea.vmem %s484, 96
      %v949 = vld [vmem:[%s948] sm:$0xf]
      %v950 = vld [vmem:[%s948 + $0x4] sm:$0xf]
      %s951 = scalar_lea.vmem %s484, 104
      %v952 = vld [vmem:[%s951] sm:$0xf]
      %v953 = vld [vmem:[%s951 + $0x4] sm:$0xf]
      %v956 = vunpack.c.l.b16 %v952
      %v957 = vunpack.c.l.b16 %v953
      %v958 = vpack.c.b16 %v957, %v956
      %960 = vmatpush.bf16.msra.mxu0 0
      %961 = vmatpush.bf16.msra.mxu0 0
      %962 = vmatpush.bf16.msra.mxu0 0
      %963 = vmatpush.bf16.msra.mxu0 0
      %964 = vmatpush.bf16.msra.mxu0 0
      %965 = vmatpush.bf16.msra.mxu0 0
      %966 = vmatpush.bf16.msra.mxu0 0
      %967 = vmatpush.bf16.msra.mxu0 %v958
      %968 = vmatmul.bf16.gmra.mxu0 %v779
      %v969 = vpop.f32.mrf.mxu0
      %v970 = vadd.f32 0.0, %v969
      %v971 = vpop.f32.mrf.mxu0
      %972 = vdwg.mxu0
      %v975 = vunpack.c.l.b16 %v949
      %v976 = vunpack.c.l.b16 %v950
      %v977 = vpack.c.b16 %v976, %v975
      %979 = vmatpush.bf16.msra.mxu0 0
      %980 = vmatpush.bf16.msra.mxu0 0
      %981 = vmatpush.bf16.msra.mxu0 0
      %982 = vmatpush.bf16.msra.mxu0 0
      %983 = vmatpush.bf16.msra.mxu0 0
      %984 = vmatpush.bf16.msra.mxu0 0
      %985 = vmatpush.bf16.msra.mxu0 0
      %986 = vmatpush.bf16.msra.mxu0 %v977
      %987 = vmatmul.bf16.gmra.mxu0 %v653
      %v988 = vpop.f32.mrf.mxu0
      %v989 = vadd.f32 %v970, %v988
      %v990 = vpop.f32.mrf.mxu0
      %991 = vdwg.mxu0
      %s992 = scalar_lea.vmem %s484, 112
      %v993 = vld [vmem:[%s992] sm:$0xf]
      %v994 = vld [vmem:[%s992 + $0x4] sm:$0xf]
      %v997 = vunpack.c.l.b16 %v993
      %v998 = vunpack.c.l.b16 %v994
      %v999 = vpack.c.b16 %v998, %v997
      %1001 = vmatpush.bf16.msra.mxu0 0
      %1002 = vmatpush.bf16.msra.mxu0 0
      %1003 = vmatpush.bf16.msra.mxu0 0
      %1004 = vmatpush.bf16.msra.mxu0 0
      %1005 = vmatpush.bf16.msra.mxu0 0
      %1006 = vmatpush.bf16.msra.mxu0 0
      %1007 = vmatpush.bf16.msra.mxu0 0
      %1008 = vmatpush.bf16.msra.mxu0 %v999
      %1009 = vmatmul.bf16.gmra.mxu0 %v907
      %v1010 = vpop.f32.mrf.mxu0
      %v1011 = vadd.f32 0.0, %v1010
      %v1012 = vpop.f32.mrf.mxu0
      %1013 = vdwg.mxu0
      %v1014 = vadd.f32 %v989, %v1011
      %s1015 = scalar_lea.vmem %s484, 120
      %v1016 = vld [vmem:[%s1015] sm:$0xf]
      %v1017 = vld [vmem:[%s1015 + $0x4] sm:$0xf]
      %v1019 = vrot.slane %v543, 1
      %v1022 = vunpack.c.l.b16 %v1016
      %v1023 = vunpack.c.l.b16 %v1017
      %v1024 = vpack.c.b16 %v1023, %v1022
      %v1027 = vsel %vm571, %v1019, 0
      %1029 = vmatpush.bf16.msra.mxu0 0
      %1030 = vmatpush.bf16.msra.mxu0 0
      %1031 = vmatpush.bf16.msra.mxu0 0
      %1032 = vmatpush.bf16.msra.mxu0 0
      %1033 = vmatpush.bf16.msra.mxu0 0
      %1034 = vmatpush.bf16.msra.mxu0 0
      %1035 = vmatpush.bf16.msra.mxu0 0
      %1036 = vmatpush.bf16.msra.mxu0 %v1024
      %1037 = vmatmul.bf16.gmra.mxu0 %v1027
      %v1038 = vpop.f32.mrf.mxu0
      %v1039 = vadd.f32 0.0, %v1038
      %v1040 = vpop.f32.mrf.mxu0
      %1041 = vdwg.mxu0
      %v1042 = vadd.f32 %v1014, %v1039
      %v1043 = vsel %vm669, %v1042, 0.0
      %v1044 = vrot.slane %v1043, 4
      %v1045 = vadd.f32 %v1043, %v1044
      %v1046 = vrot.slane %v1045, 2
      %v1047 = vadd.f32 %v1045, %v1046
      %v1048 = vrot.slane %v1047, 1
      %v1049 = vadd.f32 %v1047, %v1048
      %v1050 = vadd.f32 %v930, %v1049
      %v1051 = vmul.f32 %v1042, %v1042
      %v1052 = vsel %vm669, %v1051, 0.0
      %v1053 = vrot.slane %v1052, 4
      %v1054 = vadd.f32 %v1052, %v1053
      %v1055 = vrot.slane %v1054, 2
      %v1056 = vadd.f32 %v1054, %v1055
      %v1057 = vrot.slane %v1056, 1
      %v1058 = vadd.f32 %v1056, %v1057
      %v1059 = vadd.f32 %v939, %v1058
      %v1060 = vld [vmem:[%s487] sm:$0x1]
      %v1062 = vperm.slane %v1060, 0
      %v1064 = vadd.f32 %v1042, %v1062
      %v1065 = vpack.c.bf16 %v1064, %v1064
      %s1066 = scalar_lea.vmem %s500, 12
      %1067 = vst.msk [vmem:[%s1066] sm:$0xf] %vm693, %v1065
      %v1068 = vld [vmem:[%s503] sm:$0x1]
      %v1069 = vadd.f32 %v1068, %v1050
      %vm1070 = vcmask 57344
      %1071 = vst.msk [vmem:[%s503] sm:$0x1] %vm1070, %v1069
      %v1072 = vld [vmem:[%s506] sm:$0x1]
      %v1073 = vadd.f32 %v1072, %v1059
      %1074 = vst.msk [vmem:[%s506] sm:$0x1] %vm1070, %v1073
      %p1075 = scmp.lt.s32.totalorder %s24, 1
      %s1076 = scalar_select %p1075, %s24, 1
      %p1077 = scmp.lt.s32.totalorder %s25, 1
      %s1078 = scalar_select %p1077, %s25, 1
      %p1079 = scmp.lt.s32.totalorder %s26, 7
      %s1080 = scalar_select %p1079, %s26, 7
      %s1081 = smul.addr %s1080, 4
      %s1082 = smul.addr %s1078, 32
      %s1083 = sadd.s32 %s1081, %s1082
      %s1084 = smul.addr %s1076, 64
      %s1085 = sadd.s32 %s1083, %s1084
      %s1086 = smul.addr %s1085, 4
      %s1087 = scalar_lea.vmem %s5, %s1086
      %p1088 = scmp.lt.s32.totalorder %s24, 1
      %s1089 = scalar_select %p1088, %s24, 1
      %s1090 = scalar_lea.vmem %s6, %s1089
      %p1091 = scmp.lt.s32.totalorder %s24, 1
      %s1092 = scalar_select %p1091, %s24, 1
      %s1093 = scalar_lea.vmem %s7, %s1092
      // Predicated region
      $region45: #{_lambda_.12} parent=39 // pred_check
        %p1094 = pneg %p206
      $region46: #{_lambda_.12} parent=39 // pred_check_branch
        %1096 = sbr.rel (%p1094) target = $region48
      $region47: #{_lambda_.12} parent=39 // pred_region
        _
      $region48: #{_lambda_.12} parent=39 // pred_fallthru
        _
      // Predicated region
      $region49: #{_lambda_.12} parent=39 // pred_check
        %p1097 = pneg %p232
      $region50: #{_lambda_.12} parent=39 // pred_check_branch
        %1099 = sbr.rel (%p1097) target = $region52
      $region51: #{_lambda_.12} parent=39 // pred_region
        _
      $region52: #{_lambda_.12} parent=39 // pred_fallthru
        _
      // Predicated region
      $region53: #{_lambda_.12} parent=39 // pred_check
        %p1100 = pneg %p258
      $region54: #{_lambda_.12} parent=39 // pred_check_branch
        %1102 = sbr.rel (%p1100) target = $region56
      $region55: #{_lambda_.12} parent=39 // pred_region
        _
      $region56: #{_lambda_.12} parent=39 // pred_fallthru
        _
    $region40: #{_lambda_.12} parent=5 // pred_fallthru
      _
    %p1103 = scmp.le.s32.totalorder 2, %s14
    // Predicated region
    $region57: #{_lambda_.12} parent=5 // pred_check
      %p1104 = pneg %p1103
    $region58: #{_lambda_.12} parent=5 // pred_check_branch
      %1106 = sbr.rel (%p1104) target = $region60
    $region59: #{_lambda_.12} parent=5 // pred_region
      %s1107 = ssub.s32 %s14, 2
      // Predicated region
      $region61: #{_lambda_.12} parent=59 // pred_check
        %p1108 = pneg %p212
      $region62: #{_lambda_.12} parent=59 // pred_check_branch
        %1110 = sbr.rel (%p1108) target = $region64
      $region63: #{_lambda_.12} parent=59 // pred_region
        %p1111 = scmp.lt.s32.totalorder %s27, 1
        %s1112 = scalar_select %p1111, %s27, 1
        %p1113 = scmp.lt.s32.totalorder %s28, 1
        %s1114 = scalar_select %p1113, %s28, 1
        %p1115 = scmp.lt.s32.totalorder %s29, 7
        %s1116 = scalar_select %p1115, %s29, 7
        %s1117 = smul.addr %s1116, 4
        %s1118 = smul.addr %s1114, 32
        %s1119 = sadd.s32 %s1117, %s1118
        %s1120 = smul.addr %s1112, 64
        %s1121 = sadd.s32 %s1119, %s1120
        %s1122 = smul.addr %s1121, 4
        %s1123 = scalar_lea.vmem %s5, %s1122
      $region64: #{_lambda_.12} parent=59 // pred_fallthru
        _
      // Predicated region
      $region65: #{_lambda_.12} parent=59 // pred_check
        %p1124 = pneg %p238
      $region66: #{_lambda_.12} parent=59 // pred_check_branch
        %1126 = sbr.rel (%p1124) target = $region68
      $region67: #{_lambda_.12} parent=59 // pred_region
        %p1127 = scmp.lt.s32.totalorder %s27, 1
        %s1128 = scalar_select %p1127, %s27, 1
        %s1129 = scalar_lea.vmem %s6, %s1128
      $region68: #{_lambda_.12} parent=59 // pred_fallthru
        _
      // Predicated region
      $region69: #{_lambda_.12} parent=59 // pred_check
        %p1130 = pneg %p264
      $region70: #{_lambda_.12} parent=59 // pred_check_branch
        %1132 = sbr.rel (%p1130) target = $region72
      $region71: #{_lambda_.12} parent=59 // pred_region
        %p1133 = scmp.lt.s32.totalorder %s27, 1
        %s1134 = scalar_select %p1133, %s27, 1
        %s1135 = scalar_lea.vmem %s7, %s1134
      $region72: #{_lambda_.12} parent=59 // pred_fallthru
        _
    $region60: #{_lambda_.12} parent=5 // pred_fallthru
      _
  $region6: #{_lambda_.12} parent=0 // loop_footer
    %s18 = sadd.s32 1, %s14
  $region7: #{_lambda_.12} parent=0 // loop_footer_branch
    %13 = sbr.rel target = $region3
  $region8: #{_lambda_.12} parent=0 // loop_exit
    _

</llo_original>
